<compile_context>
chip_gen: v7x
topology: tpu7x:2x2x1
jax: 0.10.0
libtpu: 0.0.40
codegen_flags: <defaults>
</compile_context>

<pallas_src>
import numpy as np
import jax
import jax.numpy as jnp
from jax.experimental import pallas as pl
from jax.experimental.pallas import tpu as pltpu

BN_EPS = 1e-5
MXU_DTYPE = jnp.bfloat16     # matmul operand dtype (accumulation is always f32)


# ----------------------------------------------------------------------------
# Host-side constants: exact PyTorch bilinear-x2 weights, boundary masks
# ----------------------------------------------------------------------------
def _interp_pairs(n):
    """Per output index u in [0, 2n): (i0, i1, l0, l1) of
    F.interpolate(scale=2, mode='bilinear', align_corners=False):
    half-pixel centers with edge clamping."""
    pairs = []
    for u in range(2 * n):
        src = (u + 0.5) * 0.5 - 0.5
        if src < 0.0:
            src = 0.0
        i0 = int(np.floor(src))
        i1 = min(i0 + 1, n - 1)
        l1 = src - i0
        pairs.append((i0, i1, 1.0 - l1, l1))
    return pairs


def _interp_matrix_np(n):
    """(2n, n) dense form of the same weights (used only by the XLA reference
    and to build the tiny per-stage W-direction matrices)."""
    M = np.zeros((2 * n, n), np.float64)
    for u, (i0, i1, l0, l1) in enumerate(_interp_pairs(n)):
        M[u, i0] += l0
        M[u, i1] += l1
    return M


def _w_upsample_matrix(w):
    """(W, 2W) right-multiplication matrix for the W-direction x2 upsample."""
    return jnp.asarray(_interp_matrix_np(w).T, MXU_DTYPE)


def _w_boundary_masks(h, w):
    """(2, h*w) float masks over the flat row-major index:
    row0 = (col != 0), row1 = (col != w-1)."""
    col = np.arange(h * w) % w
    return jnp.asarray(np.stack([(col != 0), (col != w - 1)]).astype(np.float32))


# ----------------------------------------------------------------------------
# In-kernel helpers (VMEM/vreg-resident values, channel-major flat (C, H*W))
# ----------------------------------------------------------------------------
def _relu6(x):
    return jnp.clip(x, 0.0, 6.0)


def _pw(x, w_ref, b_ref):
    """Pointwise conv + folded-BN + ReLU6.
    x: (Cin, HW) f32; w_ref: (Cout, Cin) bf16 (BN scale folded); b_ref: (Cout, 1)."""
    w = w_ref[...]
    y = jnp.dot(w, x.astype(w.dtype), preferred_element_type=jnp.float32)
    return _relu6(y + b_ref[...])


def _dw3x3(x, w_ref, b_ref, m_ref, W):
    """Depthwise 3x3 (stride 1, pad 1) + folded-BN + ReLU6 on a flat (C, H*W)
    tile.  The 3x3 stencil is 9 static lane-shifts of the zero-padded flat
    tile.  Correctness invariant: with pad = W + 1, every H-boundary
    wrap-around for taps with w+dw in [0, W-1] lands inside the zero padding,
    and the only remaining wrap cases have dw = +-1 at a W edge, which the
    not_first / not_last masks kill.  Stays f32 on the VPU."""
    w9 = w_ref[...]                       # (C, 9), BN scale folded
    b = b_ref[...]                        # (C, 1)
    not_first = m_ref[0:1, :]             # (1, HW): col != 0
    not_last = m_ref[1:2, :]              # (1, HW): col != W-1
    C, HW = x.shape
    pad = W + 1
    z = jnp.zeros((C, pad), x.dtype)
    xp = jnp.concatenate([z, x, z], axis=1)          # (C, HW + 2W + 2)
    acc = jnp.zeros((C, HW), jnp.float32)
    k = 0
    for dh in (-1, 0, 1):
        for dw in (-1, 0, 1):
            s = dh * W + dw
            t = xp[:, pad + s: pad + s + HW]
            if dw == -1:
                t = t * not_first
            elif dw == 1:
                t = t * not_last
            acc = acc + t * w9[:, k:k + 1]
            k += 1
    return _relu6(acc + b)


def _up2x(p, mw_ref, H, W):
    """Separable bilinear x2 upsample of a flat (C, H*W) tile.
    W direction: per-row (C, W) @ (W, 2W) bf16 MXU matmul (f32 accumulation).
    H direction: exact 2-tap f32 blends of adjacent upsampled rows (VPU).
    Returns (C, (2H)*(2W)) f32 flat row-major."""
    mwT = mw_ref[...]                                 # (W, 2W) bf16
    pb = p.astype(mwT.dtype)
    rows = [
        jnp.dot(pb[:, h * W:(h + 1) * W], mwT, preferred_element_type=jnp.float32)
        for h in range(H)
    ]                                                 # H x (C, 2W) f32
    out_rows = []
    for (i0, i1, l0, l1) in _interp_pairs(H):
        if l1 == 0.0 or i0 == i1:
            out_rows.append(rows[i0])
        else:
            out_rows.append(rows[i0] * l0 + rows[i1] * l1)
    return jnp.concatenate(out_rows, axis=1)          # (C, 2H*2W)


# ----------------------------------------------------------------------------
# The fused LightFPN kernel (one grid step = one image)
# ----------------------------------------------------------------------------
def _make_kernel(spatial):
    (H4, W4), (H3, W3), (H2, W2), (_H1, W1) = spatial

    def kernel(c1_ref, c2_ref, c3_ref, c4_ref,
               w1_ref, b1_ref, w2_ref, b2_ref,
               w3d_ref, b3d_ref, w3p_ref, b3p_ref,
               w4_ref, b4_ref,
               w5d_ref, b5d_ref, w5p_ref, b5p_ref,
               w6_ref, b6_ref,
               w7d_ref, b7d_ref, w7p_ref, b7p_ref,
               mw4_ref, mw3_ref, mw2_ref,
               m3_ref, m2_ref, m1_ref,
               p1_ref, p2_ref, p3_ref, p4_ref):
        # ---- P4 = conv1(C4) --------------------------------------------
        p4 = _pw(c4_ref[0], w1_ref, b1_ref)
        p4_ref[0] = p4

        # ---- x = up2x(P4) + conv2(C3); P3 = conv3(x) ---------------------
        x = _up2x(p4, mw4_ref, H4, W4)
        x = x + _pw(c3_ref[0], w2_ref, b2_ref)
        x = _dw3x3(x, w3d_ref, b3d_ref, m3_ref, W3)
        p3 = _pw(x, w3p_ref, b3p_ref)
        p3_ref[0] = p3

        # ---- x = up2x(P3) + conv4(C2); P2 = conv5(x) ---------------------
        x = _up2x(p3, mw3_ref, H3, W3)
        x = x + _pw(c2_ref[0], w4_ref, b4_ref)
        x = _dw3x3(x, w5d_ref, b5d_ref, m2_ref, W2)
        p2 = _pw(x, w5p_ref, b5p_ref)
        p2_ref[0] = p2

        # ---- x = up2x(P2) + conv6(C1); P1 = conv7(x) ---------------------
        x = _up2x(p2, mw2_ref, H2, W2)
        x = x + _pw(c1_ref[0], w6_ref, b6_ref)
        x = _dw3x3(x, w7d_ref, b7d_ref, m1_ref, W1)
        p1 = _pw(x, w7p_ref, b7p_ref)
        p1_ref[0] = p1

    return kernel


# ----------------------------------------------------------------------------
# Parameter initialization (mirrors the PyTorch __init__, BN scale folded in)
# ----------------------------------------------------------------------------
def _kaiming_fan_out(key, torch_shape):
    out_ch, _, kh, kw = torch_shape
    fan_out = out_ch * kh * kw
    std = float(np.sqrt(2.0 / fan_out))
    return jax.random.normal(key, torch_shape, dtype=jnp.float32) * std


def _bn_fold(c):
    # fresh nn.BatchNorm2d (inference): gamma=1, beta=0, mean=0, var=1
    scale = jnp.full((c,), 1.0 / np.sqrt(1.0 + BN_EPS), dtype=jnp.float32)
    shift = jnp.zeros((c,), dtype=jnp.float32)
    return scale, shift


def _make_pw(key, cin, cout):
    w = _kaiming_fan_out(key, (cout, cin, 1, 1))[:, :, 0, 0]        # (Cout, Cin)
    scale, shift = _bn_fold(cout)
    return dict(w=(w * scale[:, None]).astype(MXU_DTYPE),           # bf16, BN folded
                b=shift.reshape(cout, 1))                           # f32


def _make_dw(key, c):
    w = _kaiming_fan_out(key, (c, 1, 3, 3))[:, 0].reshape(c, 9)     # (C, 9)
    scale, shift = _bn_fold(c)
    return dict(w=w * scale[:, None],                                # f32 (VPU path)
                b=shift.reshape(c, 1))


def init_params(key, stage_in, stage_out):
    assert len(stage_in) == 4 and len(stage_out) == 3
    # The PyTorch forward only type-checks when these hold (depthwise convs):
    assert stage_in[2] == stage_out[2]
    assert stage_in[1] == stage_out[1]
    ks = jax.random.split(key, 10)
    return {
        "conv1": _make_pw(ks[0], stage_in[3], stage_out[2]),
        "conv2": _make_pw(ks[1], stage_in[2], stage_out[2]),
        "conv3_dw": _make_dw(ks[2], stage_out[2]),
        "conv3_pw": _make_pw(ks[3], stage_out[2], stage_out[1]),
        "conv4": _make_pw(ks[4], stage_in[1], stage_out[1]),
        "conv5_dw": _make_dw(ks[5], stage_out[1]),
        "conv5_pw": _make_pw(ks[6], stage_out[1], stage_out[0]),
        "conv6": _make_pw(ks[7], stage_in[0], stage_out[0]),
        "conv7_dw": _make_dw(ks[8], stage_out[0]),
        "conv7_pw": _make_pw(ks[9], stage_out[0], stage_out[0]),
    }


# ----------------------------------------------------------------------------
# LightFPN forward (public interface in NCHW, like PyTorch)
# ----------------------------------------------------------------------------
def light_fpn_forward(params, C1, C2, C3, C4):
    N = C1.shape[0]
    H1, W1 = C1.shape[2], C1.shape[3]
    H2, W2 = C2.shape[2], C2.shape[3]
    H3, W3 = C3.shape[2], C3.shape[3]
    H4, W4 = C4.shape[2], C4.shape[3]
    assert (H3, W3) == (2 * H4, 2 * W4)
    assert (H2, W2) == (2 * H3, 2 * W3)
    assert (H1, W1) == (2 * H2, 2 * W2)
    assert min(W1, W2, W3, W4) >= 2

    co0 = params["conv6"]["w"].shape[0]
    co1 = params["conv4"]["w"].shape[0]
    co2 = params["conv1"]["w"].shape[0]

    # NCHW -> (N, C, H*W): free reshapes, no host-side transposes or pads.
    flat = lambda t: t.reshape(t.shape[0], t.shape[1], t.shape[2] * t.shape[3])
    c1f, c2f, c3f, c4f = (flat(t) for t in (C1, C2, C3, C4))

    # Tiny per-stage constants (KBs): separable upsample matrices + masks.
    mw4 = _w_upsample_matrix(W4)          # (W4, 2W4) bf16
    mw3 = _w_upsample_matrix(W3)
    mw2 = _w_upsample_matrix(W2)
    m3 = _w_boundary_masks(H3, W3)
    m2 = _w_boundary_masks(H2, W2)
    m1 = _w_boundary_masks(H1, W1)

    p = params
    inputs = (c1f, c2f, c3f, c4f)
    consts = (
        p["conv1"]["w"], p["conv1"]["b"], p["conv2"]["w"], p["conv2"]["b"],
        p["conv3_dw"]["w"], p["conv3_dw"]["b"], p["conv3_pw"]["w"], p["conv3_pw"]["b"],
        p["conv4"]["w"], p["conv4"]["b"],
        p["conv5_dw"]["w"], p["conv5_dw"]["b"], p["conv5_pw"]["w"], p["conv5_pw"]["b"],
        p["conv6"]["w"], p["conv6"]["b"],
        p["conv7_dw"]["w"], p["conv7_dw"]["b"], p["conv7_pw"]["w"], p["conv7_pw"]["b"],
        mw4, mw3, mw2, m3, m2, m1,
    )

    def batched_spec(arr):
        c, hw = arr.shape[1], arr.shape[2]
        return pl.BlockSpec((1, c, hw), lambda n: (n, 0, 0))

    def const_spec(arr):
        nd = arr.ndim
        return pl.BlockSpec(arr.shape, lambda n: (0,) * nd)

    in_specs = [batched_spec(a) for a in inputs] + [const_spec(a) for a in consts]

    out_shape = (
        jax.ShapeDtypeStruct((N, co0, H1 * W1), jnp.float32),   # P1
        jax.ShapeDtypeStruct((N, co0, H2 * W2), jnp.float32),   # P2
        jax.ShapeDtypeStruct((N, co1, H3 * W3), jnp.float32),   # P3
        jax.ShapeDtypeStruct((N, co2, H4 * W4), jnp.float32),   # P4
    )
    out_specs = tuple(
        pl.BlockSpec((1, s.shape[1], s.shape[2]), lambda n: (n, 0, 0))
        for s in out_shape)

    kernel = _make_kernel(((H4, W4), (H3, W3), (H2, W2), (H1, W1)))
    P1f, P2f, P3f, P4f = pl.pallas_call(
        kernel,
        grid=(N,),
        in_specs=in_specs,
        out_specs=out_specs,
        out_shape=out_shape,
        compiler_params=pltpu.CompilerParams(
            dimension_semantics=("parallel",),      # megacore sharding on v7x
            vmem_limit_bytes=32 * 1024 * 1024),     # explicit VMEM budget
    )(*inputs, *consts)

    P1 = P1f.reshape(N, co0, H1, W1)
    P2 = P2f.reshape(N, co0, H2, W2)
    P3 = P3f.reshape(N, co1, H3, W3)
    P4 = P4f.reshape(N, co2, H4, W4)
    return P1, P2, P3, P4


# ----------------------------------------------------------------------------
# Plain-XLA reference with matched precision (same folded bf16 weights, same
# bf16 cast points, f32 accumulation) for a tight correctness cross-check.
# ----------------------------------------------------------------------------
def _ref_pw(x, w, b):
    y = jnp.einsum("oc,nchw->nohw", w, x.astype(w.dtype),
                   preferred_element_type=jnp.float32)
    return jnp.clip(y + b.reshape(1, -1, 1, 1), 0.0, 6.0)


def _ref_dw(x, w9, b):
    c = x.shape[1]
    y = jax.lax.conv_general_dilated(
        x, w9.reshape(c, 1, 3, 3), (1, 1), ((1, 1), (1, 1)),
        dimension_numbers=("NCHW", "OIHW", "NCHW"),
        feature_group_count=c,
        precision=jax.lax.Precision.HIGHEST)
    return jnp.clip(y + b.reshape(1, -1, 1, 1), 0.0, 6.0)


def _ref_up2x(x, mwT):
    h = x.shape[2]
    xw = jnp.einsum("nchw,wv->nchv", x.astype(mwT.dtype), mwT,
                    preferred_element_type=jnp.float32)           # W step (bf16 -> f32)
    Mh = jnp.asarray(_interp_matrix_np(h), jnp.float32)           # (2h, h)
    return jnp.einsum("nchv,uh->ncuv", xw, Mh,
                      precision=jax.lax.Precision.HIGHEST)        # H step (f32)


def light_fpn_reference(params, C1, C2, C3, C4):
    p = params
    mw4 = _w_upsample_matrix(C4.shape[3])
    mw3 = _w_upsample_matrix(C3.shape[3])
    mw2 = _w_upsample_matrix(C2.shape[3])
    P4 = _ref_pw(C4, p["conv1"]["w"], p["conv1"]["b"])
    x = _ref_up2x(P4, mw4) + _ref_pw(C3, p["conv2"]["w"], p["conv2"]["b"])
    x = _ref_dw(x, p["conv3_dw"]["w"], p["conv3_dw"]["b"])
    P3 = _ref_pw(x, p["conv3_pw"]["w"], p["conv3_pw"]["b"])
    x = _ref_up2x(P3, mw3) + _ref_pw(C2, p["conv4"]["w"], p["conv4"]["b"])
    x = _ref_dw(x, p["conv5_dw"]["w"], p["conv5_dw"]["b"])
    P2 = _ref_pw(x, p["conv5_pw"]["w"], p["conv5_pw"]["b"])
    x = _ref_up2x(P2, mw2) + _ref_pw(C1, p["conv6"]["w"], p["conv6"]["b"])
    x = _ref_dw(x, p["conv7_dw"]["w"], p["conv7_dw"]["b"])
    P1 = _ref_pw(x, p["conv7_pw"]["w"], p["conv7_pw"]["b"])
    return P1, P2, P3, P4


# ----------------------------------------------------------------------------
if __name__ == "__main__":
    stage_in_channels = (8, 16, 24, 32)
    stage_out_channels = (8, 16, 24)

    key = jax.random.PRNGKey(0)
    kp, k1, k2, k3, k4 = jax.random.split(key, 5)
    params = init_params(kp, stage_in_channels, stage_out_channels)

    N = 2
    C1 = jax.random.normal(k1, (N, stage_in_channels[0], 32, 32), jnp.float32)
    C2 = jax.random.normal(k2, (N, stage_in_channels[1], 16, 16), jnp.float32)
    C3 = jax.random.normal(k3, (N, stage_in_channels[2], 8, 8), jnp.float32)
    C4 = jax.random.normal(k4, (N, stage_in_channels[3], 4, 4), jnp.float32)

    fwd = jax.jit(light_fpn_forward)
    P1, P2, P3, P4 = fwd(params, C1, C2, C3, C4)
    jax.block_until_ready((P1, P2, P3, P4))

    assert P4.shape == (N, stage_out_channels[2], 4, 4)
    assert P3.shape == (N, stage_out_channels[1], 8, 8)
    assert P2.shape == (N, stage_out_channels[0], 16, 16)
    assert P1.shape == (N, stage_out_channels[0], 32, 32)
    assert all(bool(jnp.isfinite(t).all()) for t in (P1, P2, P3, P4))

    # Cross-check the fused Pallas kernel against a precision-matched XLA
    # reference.  Residual differences come from f32 accumulation order and
    # rare 1-ulp divergence at the bf16 cast points, so we bound both the mean
    # (tight) and the max (loose) absolute error.
    R1, R2, R3, R4 = light_fpn_reference(params, C1, C2, C3, C4)
    for name, got, ref in (("P1", P1, R1), ("P2", P2, R2),
                           ("P3", P3, R3), ("P4", P4, R4)):
        diff = jnp.abs(got - ref)
        mean_err = float(jnp.mean(diff))
        max_err = float(jnp.max(diff))
        assert mean_err < 1e-3, f"{name}: mean abs err = {mean_err}"
        assert max_err < 1e-1, f"{name}: max abs err = {max_err}"

    print("KERNEL_OK")
</pallas_src>

<mosaic_0001>
module attributes {stable_mosaic.version = 11 : i64} {
  func.func @kernel(%arg0: i32, %arg1: memref<1x8x1024xf32, #tpu.memory_space<vmem>>, %arg2: memref<1x16x256xf32, #tpu.memory_space<vmem>>, %arg3: memref<1x24x64xf32, #tpu.memory_space<vmem>>, %arg4: memref<1x32x16xf32, #tpu.memory_space<vmem>>, %arg5: memref<24x32xbf16, #tpu.memory_space<vmem>>, %arg6: memref<24x1xf32, #tpu.memory_space<vmem>>, %arg7: memref<24x24xbf16, #tpu.memory_space<vmem>>, %arg8: memref<24x1xf32, #tpu.memory_space<vmem>>, %arg9: memref<24x9xf32, #tpu.memory_space<vmem>>, %arg10: memref<24x1xf32, #tpu.memory_space<vmem>>, %arg11: memref<16x24xbf16, #tpu.memory_space<vmem>>, %arg12: memref<16x1xf32, #tpu.memory_space<vmem>>, %arg13: memref<16x16xbf16, #tpu.memory_space<vmem>>, %arg14: memref<16x1xf32, #tpu.memory_space<vmem>>, %arg15: memref<16x9xf32, #tpu.memory_space<vmem>>, %arg16: memref<16x1xf32, #tpu.memory_space<vmem>>, %arg17: memref<8x16xbf16, #tpu.memory_space<vmem>>, %arg18: memref<8x1xf32, #tpu.memory_space<vmem>>, %arg19: memref<8x8xbf16, #tpu.memory_space<vmem>>, %arg20: memref<8x1xf32, #tpu.memory_space<vmem>>, %arg21: memref<8x9xf32, #tpu.memory_space<vmem>>, %arg22: memref<8x1xf32, #tpu.memory_space<vmem>>, %arg23: memref<8x8xbf16, #tpu.memory_space<vmem>>, %arg24: memref<8x1xf32, #tpu.memory_space<vmem>>, %arg25: memref<4x8xbf16, #tpu.memory_space<vmem>>, %arg26: memref<8x16xbf16, #tpu.memory_space<vmem>>, %arg27: memref<16x32xbf16, #tpu.memory_space<vmem>>, %arg28: memref<2x64xf32, #tpu.memory_space<vmem>>, %arg29: memref<2x256xf32, #tpu.memory_space<vmem>>, %arg30: memref<2x1024xf32, #tpu.memory_space<vmem>>, %arg31: memref<1x8x1024xf32, #tpu.memory_space<vmem>>, %arg32: memref<1x8x256xf32, #tpu.memory_space<vmem>>, %arg33: memref<1x16x64xf32, #tpu.memory_space<vmem>>, %arg34: memref<1x24x16xf32, #tpu.memory_space<vmem>>) attributes {dimension_semantics = [#tpu.dimension_semantics<parallel>], iteration_bounds = array<i64: 2>, scalar_prefetch = 0 : i64, scratch_operands = 0 : i64, tpu.core_type = #tpu.core_type<tc>, window_params = [{transform_indices = @transform_0, window_bounds = array<i64: 1, 8, 1024>}, {transform_indices = @transform_1, window_bounds = array<i64: 1, 16, 256>}, {transform_indices = @transform_2, window_bounds = array<i64: 1, 24, 64>}, {transform_indices = @transform_3, window_bounds = array<i64: 1, 32, 16>}, {pipeline_mode = #tpu.pipeline_mode<synchronous>, transform_indices = @transform_4, window_bounds = array<i64: 24, 32>}, {pipeline_mode = #tpu.pipeline_mode<synchronous>, transform_indices = @transform_5, window_bounds = array<i64: 24, 1>}, {pipeline_mode = #tpu.pipeline_mode<synchronous>, transform_indices = @transform_6, window_bounds = array<i64: 24, 24>}, {pipeline_mode = #tpu.pipeline_mode<synchronous>, transform_indices = @transform_7, window_bounds = array<i64: 24, 1>}, {pipeline_mode = #tpu.pipeline_mode<synchronous>, transform_indices = @transform_8, window_bounds = array<i64: 24, 9>}, {pipeline_mode = #tpu.pipeline_mode<synchronous>, transform_indices = @transform_9, window_bounds = array<i64: 24, 1>}, {pipeline_mode = #tpu.pipeline_mode<synchronous>, transform_indices = @transform_10, window_bounds = array<i64: 16, 24>}, {pipeline_mode = #tpu.pipeline_mode<synchronous>, transform_indices = @transform_11, window_bounds = array<i64: 16, 1>}, {pipeline_mode = #tpu.pipeline_mode<synchronous>, transform_indices = @transform_12, window_bounds = array<i64: 16, 16>}, {pipeline_mode = #tpu.pipeline_mode<synchronous>, transform_indices = @transform_13, window_bounds = array<i64: 16, 1>}, {pipeline_mode = #tpu.pipeline_mode<synchronous>, transform_indices = @transform_14, window_bounds = array<i64: 16, 9>}, {pipeline_mode = #tpu.pipeline_mode<synchronous>, transform_indices = @transform_15, window_bounds = array<i64: 16, 1>}, {pipeline_mode = #tpu.pipeline_mode<synchronous>, transform_indices = @transform_16, window_bounds = array<i64: 8, 16>}, {pipeline_mode = #tpu.pipeline_mode<synchronous>, transform_indices = @transform_17, window_bounds = array<i64: 8, 1>}, {pipeline_mode = #tpu.pipeline_mode<synchronous>, transform_indices = @transform_18, window_bounds = array<i64: 8, 8>}, {pipeline_mode = #tpu.pipeline_mode<synchronous>, transform_indices = @transform_19, window_bounds = array<i64: 8, 1>}, {pipeline_mode = #tpu.pipeline_mode<synchronous>, transform_indices = @transform_20, window_bounds = array<i64: 8, 9>}, {pipeline_mode = #tpu.pipeline_mode<synchronous>, transform_indices = @transform_21, window_bounds = array<i64: 8, 1>}, {pipeline_mode = #tpu.pipeline_mode<synchronous>, transform_indices = @transform_22, window_bounds = array<i64: 8, 8>}, {pipeline_mode = #tpu.pipeline_mode<synchronous>, transform_indices = @transform_23, window_bounds = array<i64: 8, 1>}, {pipeline_mode = #tpu.pipeline_mode<synchronous>, transform_indices = @transform_24, window_bounds = array<i64: 4, 8>}, {pipeline_mode = #tpu.pipeline_mode<synchronous>, transform_indices = @transform_25, window_bounds = array<i64: 8, 16>}, {pipeline_mode = #tpu.pipeline_mode<synchronous>, transform_indices = @transform_26, window_bounds = array<i64: 16, 32>}, {pipeline_mode = #tpu.pipeline_mode<synchronous>, transform_indices = @transform_27, window_bounds = array<i64: 2, 64>}, {pipeline_mode = #tpu.pipeline_mode<synchronous>, transform_indices = @transform_28, window_bounds = array<i64: 2, 256>}, {pipeline_mode = #tpu.pipeline_mode<synchronous>, transform_indices = @transform_29, window_bounds = array<i64: 2, 1024>}, {transform_indices = @transform_30, window_bounds = array<i64: 1, 8, 1024>}, {transform_indices = @transform_31, window_bounds = array<i64: 1, 8, 256>}, {transform_indices = @transform_32, window_bounds = array<i64: 1, 16, 64>}, {transform_indices = @transform_33, window_bounds = array<i64: 1, 24, 16>}]} {
    %c0 = arith.constant 0 : index
    %c0_0 = arith.constant 0 : index
    %c0_1 = arith.constant 0 : index
    %0 = vector.load %arg4[%c0, %c0_0, %c0_1] : memref<1x32x16xf32, #tpu.memory_space<vmem>>, vector<1x32x16xf32>
    %1 = vector.shape_cast %0 : vector<1x32x16xf32> to vector<32x16xf32>
    %c0_2 = arith.constant 0 : index
    %c0_3 = arith.constant 0 : index
    %2 = vector.load %arg5[%c0_2, %c0_3] : memref<24x32xbf16, #tpu.memory_space<vmem>>, vector<24x32xbf16>
    %3 = arith.truncf %1 : vector<32x16xf32> to vector<32x16xbf16>
    %cst = arith.constant dense<0.000000e+00> : vector<24x16xf32>
    %4 = tpu.matmul %2, %3, %cst {dimension_numbers = #tpu.dot_dimension_numbers<[1], [0], [0], [1], [0, 0, 1, 1], [], []>} : vector<24x32xbf16>, vector<32x16xbf16>, vector<24x16xf32> -> vector<24x16xf32>
    %c0_4 = arith.constant 0 : index
    %c0_5 = arith.constant 0 : index
    %5 = vector.load %arg6[%c0_4, %c0_5] : memref<24x1xf32, #tpu.memory_space<vmem>>, vector<24x1xf32>
    %6 = vector.broadcast %5 : vector<24x1xf32> to vector<24x16xf32>
    %7 = arith.addf %4, %6 : vector<24x16xf32>
    %cst_6 = arith.constant 0.000000e+00 : f32
    %cst_7 = arith.constant 6.000000e+00 : f32
    %8 = vector.broadcast %cst_6 : f32 to vector<24x16xf32>
    %9 = arith.maximumf %8, %7 : vector<24x16xf32>
    %10 = vector.broadcast %cst_7 : f32 to vector<24x16xf32>
    %11 = arith.minimumf %10, %9 : vector<24x16xf32>
    %c0_8 = arith.constant 0 : index
    %c0_9 = arith.constant 0 : index
    %c0_10 = arith.constant 0 : index
    %12 = vector.load %arg34[%c0_8, %c0_9, %c0_10] : memref<1x24x16xf32, #tpu.memory_space<vmem>>, vector<1x24x16xf32>
    %13 = vector.shape_cast %12 : vector<1x24x16xf32> to vector<24x16xf32>
    %14 = vector.shape_cast %11 : vector<24x16xf32> to vector<1x24x16xf32>
    tpu.vector_store %arg34[%c0_8, %c0_9, %c0_10], %14 {strides = array<i32>} : memref<1x24x16xf32, #tpu.memory_space<vmem>>, vector<1x24x16xf32>,
    %c0_11 = arith.constant 0 : index
    %c0_12 = arith.constant 0 : index
    %15 = vector.load %arg25[%c0_11, %c0_12] : memref<4x8xbf16, #tpu.memory_space<vmem>>, vector<4x8xbf16>
    %16 = arith.truncf %11 : vector<24x16xf32> to vector<24x16xbf16>
    %17 = vector.extract_strided_slice %16 {offsets = [0, 0], sizes = [24, 4], strides = [1, 1]} : vector<24x16xbf16> to vector<24x4xbf16>
    %cst_13 = arith.constant dense<0.000000e+00> : vector<24x8xf32>
    %18 = tpu.matmul %17, %15, %cst_13 {dimension_numbers = #tpu.dot_dimension_numbers<[1], [0], [0], [1], [0, 0, 1, 1], [], []>} : vector<24x4xbf16>, vector<4x8xbf16>, vector<24x8xf32> -> vector<24x8xf32>
    %19 = vector.extract_strided_slice %16 {offsets = [0, 4], sizes = [24, 4], strides = [1, 1]} : vector<24x16xbf16> to vector<24x4xbf16>
    %cst_14 = arith.constant dense<0.000000e+00> : vector<24x8xf32>
    %20 = tpu.matmul %19, %15, %cst_14 {dimension_numbers = #tpu.dot_dimension_numbers<[1], [0], [0], [1], [0, 0, 1, 1], [], []>} : vector<24x4xbf16>, vector<4x8xbf16>, vector<24x8xf32> -> vector<24x8xf32>
    %21 = vector.extract_strided_slice %16 {offsets = [0, 8], sizes = [24, 4], strides = [1, 1]} : vector<24x16xbf16> to vector<24x4xbf16>
    %cst_15 = arith.constant dense<0.000000e+00> : vector<24x8xf32>
    %22 = tpu.matmul %21, %15, %cst_15 {dimension_numbers = #tpu.dot_dimension_numbers<[1], [0], [0], [1], [0, 0, 1, 1], [], []>} : vector<24x4xbf16>, vector<4x8xbf16>, vector<24x8xf32> -> vector<24x8xf32>
    %23 = vector.extract_strided_slice %16 {offsets = [0, 12], sizes = [24, 4], strides = [1, 1]} : vector<24x16xbf16> to vector<24x4xbf16>
    %cst_16 = arith.constant dense<0.000000e+00> : vector<24x8xf32>
    %24 = tpu.matmul %23, %15, %cst_16 {dimension_numbers = #tpu.dot_dimension_numbers<[1], [0], [0], [1], [0, 0, 1, 1], [], []>} : vector<24x4xbf16>, vector<4x8xbf16>, vector<24x8xf32> -> vector<24x8xf32>
    %cst_17 = arith.constant 7.500000e-01 : f32
    %25 = vector.broadcast %cst_17 : f32 to vector<24x8xf32>
    %26 = arith.mulf %18, %25 : vector<24x8xf32>
    %cst_18 = arith.constant 2.500000e-01 : f32
    %27 = vector.broadcast %cst_18 : f32 to vector<24x8xf32>
    %28 = arith.mulf %20, %27 : vector<24x8xf32>
    %29 = arith.addf %26, %28 : vector<24x8xf32>
    %cst_19 = arith.constant 2.500000e-01 : f32
    %30 = vector.broadcast %cst_19 : f32 to vector<24x8xf32>
    %31 = arith.mulf %18, %30 : vector<24x8xf32>
    %cst_20 = arith.constant 7.500000e-01 : f32
    %32 = vector.broadcast %cst_20 : f32 to vector<24x8xf32>
    %33 = arith.mulf %20, %32 : vector<24x8xf32>
    %34 = arith.addf %31, %33 : vector<24x8xf32>
    %cst_21 = arith.constant 7.500000e-01 : f32
    %35 = vector.broadcast %cst_21 : f32 to vector<24x8xf32>
    %36 = arith.mulf %20, %35 : vector<24x8xf32>
    %cst_22 = arith.constant 2.500000e-01 : f32
    %37 = vector.broadcast %cst_22 : f32 to vector<24x8xf32>
    %38 = arith.mulf %22, %37 : vector<24x8xf32>
    %39 = arith.addf %36, %38 : vector<24x8xf32>
    %cst_23 = arith.constant 2.500000e-01 : f32
    %40 = vector.broadcast %cst_23 : f32 to vector<24x8xf32>
    %41 = arith.mulf %20, %40 : vector<24x8xf32>
    %cst_24 = arith.constant 7.500000e-01 : f32
    %42 = vector.broadcast %cst_24 : f32 to vector<24x8xf32>
    %43 = arith.mulf %22, %42 : vector<24x8xf32>
    %44 = arith.addf %41, %43 : vector<24x8xf32>
    %cst_25 = arith.constant 7.500000e-01 : f32
    %45 = vector.broadcast %cst_25 : f32 to vector<24x8xf32>
    %46 = arith.mulf %22, %45 : vector<24x8xf32>
    %cst_26 = arith.constant 2.500000e-01 : f32
    %47 = vector.broadcast %cst_26 : f32 to vector<24x8xf32>
    %48 = arith.mulf %24, %47 : vector<24x8xf32>
    %49 = arith.addf %46, %48 : vector<24x8xf32>
    %cst_27 = arith.constant 2.500000e-01 : f32
    %50 = vector.broadcast %cst_27 : f32 to vector<24x8xf32>
    %51 = arith.mulf %22, %50 : vector<24x8xf32>
    %cst_28 = arith.constant 7.500000e-01 : f32
    %52 = vector.broadcast %cst_28 : f32 to vector<24x8xf32>
    %53 = arith.mulf %24, %52 : vector<24x8xf32>
    %54 = arith.addf %51, %53 : vector<24x8xf32>
    %55 = tpu.concatenate %18, %29, %34, %39, %44, %49, %54, %24 in 1 : vector<24x8xf32>, vector<24x8xf32>, vector<24x8xf32>, vector<24x8xf32>, vector<24x8xf32>, vector<24x8xf32>, vector<24x8xf32>, vector<24x8xf32> -> vector<24x64xf32>
    %c0_29 = arith.constant 0 : index
    %c0_30 = arith.constant 0 : index
    %c0_31 = arith.constant 0 : index
    %56 = vector.load %arg3[%c0_29, %c0_30, %c0_31] : memref<1x24x64xf32, #tpu.memory_space<vmem>>, vector<1x24x64xf32>
    %57 = vector.shape_cast %56 : vector<1x24x64xf32> to vector<24x64xf32>
    %c0_32 = arith.constant 0 : index
    %c0_33 = arith.constant 0 : index
    %58 = vector.load %arg7[%c0_32, %c0_33] : memref<24x24xbf16, #tpu.memory_space<vmem>>, vector<24x24xbf16>
    %59 = arith.truncf %57 : vector<24x64xf32> to vector<24x64xbf16>
    %cst_34 = arith.constant dense<0.000000e+00> : vector<24x64xf32>
    %60 = tpu.matmul %58, %59, %cst_34 {dimension_numbers = #tpu.dot_dimension_numbers<[1], [0], [0], [1], [0, 0, 1, 1], [], []>} : vector<24x24xbf16>, vector<24x64xbf16>, vector<24x64xf32> -> vector<24x64xf32>
    %c0_35 = arith.constant 0 : index
    %c0_36 = arith.constant 0 : index
    %61 = vector.load %arg8[%c0_35, %c0_36] : memref<24x1xf32, #tpu.memory_space<vmem>>, vector<24x1xf32>
    %62 = vector.broadcast %61 : vector<24x1xf32> to vector<24x64xf32>
    %63 = arith.addf %60, %62 : vector<24x64xf32>
    %cst_37 = arith.constant 0.000000e+00 : f32
    %cst_38 = arith.constant 6.000000e+00 : f32
    %64 = vector.broadcast %cst_37 : f32 to vector<24x64xf32>
    %65 = arith.maximumf %64, %63 : vector<24x64xf32>
    %66 = vector.broadcast %cst_38 : f32 to vector<24x64xf32>
    %67 = arith.minimumf %66, %65 : vector<24x64xf32>
    %68 = arith.addf %55, %67 : vector<24x64xf32>
    %c0_39 = arith.constant 0 : index
    %c0_40 = arith.constant 0 : index
    %69 = vector.load %arg9[%c0_39, %c0_40] : memref<24x9xf32, #tpu.memory_space<vmem>>, vector<24x9xf32>
    %c0_41 = arith.constant 0 : index
    %c0_42 = arith.constant 0 : index
    %70 = vector.load %arg10[%c0_41, %c0_42] : memref<24x1xf32, #tpu.memory_space<vmem>>, vector<24x1xf32>
    %c0_43 = arith.constant 0 : index
    %c0_44 = arith.constant 0 : index
    %71 = vector.load %arg28[%c0_43, %c0_44] : memref<2x64xf32, #tpu.memory_space<vmem>>, vector<1x64xf32>
    %c1 = arith.constant 1 : index
    %c0_45 = arith.constant 0 : index
    %72 = vector.load %arg28[%c1, %c0_45] : memref<2x64xf32, #tpu.memory_space<vmem>>, vector<1x64xf32>
    %cst_46 = arith.constant 0.000000e+00 : f32
    %73 = vector.broadcast %cst_46 : f32 to vector<24x9xf32>
    %74 = tpu.concatenate %73, %68, %73 in 1 : vector<24x9xf32>, vector<24x64xf32>, vector<24x9xf32> -> vector<24x82xf32>
    %cst_47 = arith.constant 0.000000e+00 : f32
    %75 = vector.broadcast %cst_47 : f32 to vector<24x64xf32>
    %76 = vector.extract_strided_slice %74 {offsets = [0, 0], sizes = [24, 64], strides = [1, 1]} : vector<24x82xf32> to vector<24x64xf32>
    %77 = vector.broadcast %71 : vector<1x64xf32> to vector<24x64xf32>
    %78 = arith.mulf %76, %77 : vector<24x64xf32>
    %79 = vector.extract_strided_slice %69 {offsets = [0, 0], sizes = [24, 1], strides = [1, 1]} : vector<24x9xf32> to vector<24x1xf32>
    %80 = vector.broadcast %79 : vector<24x1xf32> to vector<24x64xf32>
    %81 = arith.mulf %78, %80 : vector<24x64xf32>
    %82 = arith.addf %75, %81 : vector<24x64xf32>
    %83 = vector.extract_strided_slice %74 {offsets = [0, 1], sizes = [24, 64], strides = [1, 1]} : vector<24x82xf32> to vector<24x64xf32>
    %84 = vector.extract_strided_slice %69 {offsets = [0, 1], sizes = [24, 1], strides = [1, 1]} : vector<24x9xf32> to vector<24x1xf32>
    %85 = vector.broadcast %84 : vector<24x1xf32> to vector<24x64xf32>
    %86 = arith.mulf %83, %85 : vector<24x64xf32>
    %87 = arith.addf %82, %86 : vector<24x64xf32>
    %88 = vector.extract_strided_slice %74 {offsets = [0, 2], sizes = [24, 64], strides = [1, 1]} : vector<24x82xf32> to vector<24x64xf32>
    %89 = vector.broadcast %72 : vector<1x64xf32> to vector<24x64xf32>
    %90 = arith.mulf %88, %89 : vector<24x64xf32>
    %91 = vector.extract_strided_slice %69 {offsets = [0, 2], sizes = [24, 1], strides = [1, 1]} : vector<24x9xf32> to vector<24x1xf32>
    %92 = vector.broadcast %91 : vector<24x1xf32> to vector<24x64xf32>
    %93 = arith.mulf %90, %92 : vector<24x64xf32>
    %94 = arith.addf %87, %93 : vector<24x64xf32>
    %95 = vector.extract_strided_slice %74 {offsets = [0, 8], sizes = [24, 64], strides = [1, 1]} : vector<24x82xf32> to vector<24x64xf32>
    %96 = vector.broadcast %71 : vector<1x64xf32> to vector<24x64xf32>
    %97 = arith.mulf %95, %96 : vector<24x64xf32>
    %98 = vector.extract_strided_slice %69 {offsets = [0, 3], sizes = [24, 1], strides = [1, 1]} : vector<24x9xf32> to vector<24x1xf32>
    %99 = vector.broadcast %98 : vector<24x1xf32> to vector<24x64xf32>
    %100 = arith.mulf %97, %99 : vector<24x64xf32>
    %101 = arith.addf %94, %100 : vector<24x64xf32>
    %102 = vector.extract_strided_slice %74 {offsets = [0, 9], sizes = [24, 64], strides = [1, 1]} : vector<24x82xf32> to vector<24x64xf32>
    %103 = vector.extract_strided_slice %69 {offsets = [0, 4], sizes = [24, 1], strides = [1, 1]} : vector<24x9xf32> to vector<24x1xf32>
    %104 = vector.broadcast %103 : vector<24x1xf32> to vector<24x64xf32>
    %105 = arith.mulf %102, %104 : vector<24x64xf32>
    %106 = arith.addf %101, %105 : vector<24x64xf32>
    %107 = vector.extract_strided_slice %74 {offsets = [0, 10], sizes = [24, 64], strides = [1, 1]} : vector<24x82xf32> to vector<24x64xf32>
    %108 = vector.broadcast %72 : vector<1x64xf32> to vector<24x64xf32>
    %109 = arith.mulf %107, %108 : vector<24x64xf32>
    %110 = vector.extract_strided_slice %69 {offsets = [0, 5], sizes = [24, 1], strides = [1, 1]} : vector<24x9xf32> to vector<24x1xf32>
    %111 = vector.broadcast %110 : vector<24x1xf32> to vector<24x64xf32>
    %112 = arith.mulf %109, %111 : vector<24x64xf32>
    %113 = arith.addf %106, %112 : vector<24x64xf32>
    %114 = vector.extract_strided_slice %74 {offsets = [0, 16], sizes = [24, 64], strides = [1, 1]} : vector<24x82xf32> to vector<24x64xf32>
    %115 = vector.broadcast %71 : vector<1x64xf32> to vector<24x64xf32>
    %116 = arith.mulf %114, %115 : vector<24x64xf32>
    %117 = vector.extract_strided_slice %69 {offsets = [0, 6], sizes = [24, 1], strides = [1, 1]} : vector<24x9xf32> to vector<24x1xf32>
    %118 = vector.broadcast %117 : vector<24x1xf32> to vector<24x64xf32>
    %119 = arith.mulf %116, %118 : vector<24x64xf32>
    %120 = arith.addf %113, %119 : vector<24x64xf32>
    %121 = vector.extract_strided_slice %74 {offsets = [0, 17], sizes = [24, 64], strides = [1, 1]} : vector<24x82xf32> to vector<24x64xf32>
    %122 = vector.extract_strided_slice %69 {offsets = [0, 7], sizes = [24, 1], strides = [1, 1]} : vector<24x9xf32> to vector<24x1xf32>
    %123 = vector.broadcast %122 : vector<24x1xf32> to vector<24x64xf32>
    %124 = arith.mulf %121, %123 : vector<24x64xf32>
    %125 = arith.addf %120, %124 : vector<24x64xf32>
    %126 = vector.extract_strided_slice %74 {offsets = [0, 18], sizes = [24, 64], strides = [1, 1]} : vector<24x82xf32> to vector<24x64xf32>
    %127 = vector.broadcast %72 : vector<1x64xf32> to vector<24x64xf32>
    %128 = arith.mulf %126, %127 : vector<24x64xf32>
    %129 = vector.extract_strided_slice %69 {offsets = [0, 8], sizes = [24, 1], strides = [1, 1]} : vector<24x9xf32> to vector<24x1xf32>
    %130 = vector.broadcast %129 : vector<24x1xf32> to vector<24x64xf32>
    %131 = arith.mulf %128, %130 : vector<24x64xf32>
    %132 = arith.addf %125, %131 : vector<24x64xf32>
    %133 = vector.broadcast %70 : vector<24x1xf32> to vector<24x64xf32>
    %134 = arith.addf %132, %133 : vector<24x64xf32>
    %cst_48 = arith.constant 0.000000e+00 : f32
    %cst_49 = arith.constant 6.000000e+00 : f32
    %135 = vector.broadcast %cst_48 : f32 to vector<24x64xf32>
    %136 = arith.maximumf %135, %134 : vector<24x64xf32>
    %137 = vector.broadcast %cst_49 : f32 to vector<24x64xf32>
    %138 = arith.minimumf %137, %136 : vector<24x64xf32>
    %c0_50 = arith.constant 0 : index
    %c0_51 = arith.constant 0 : index
    %139 = vector.load %arg11[%c0_50, %c0_51] : memref<16x24xbf16, #tpu.memory_space<vmem>>, vector<16x24xbf16>
    %140 = arith.truncf %138 : vector<24x64xf32> to vector<24x64xbf16>
    %cst_52 = arith.constant dense<0.000000e+00> : vector<16x64xf32>
    %141 = tpu.matmul %139, %140, %cst_52 {dimension_numbers = #tpu.dot_dimension_numbers<[1], [0], [0], [1], [0, 0, 1, 1], [], []>} : vector<16x24xbf16>, vector<24x64xbf16>, vector<16x64xf32> -> vector<16x64xf32>
    %c0_53 = arith.constant 0 : index
    %c0_54 = arith.constant 0 : index
    %142 = vector.load %arg12[%c0_53, %c0_54] : memref<16x1xf32, #tpu.memory_space<vmem>>, vector<16x1xf32>
    %143 = vector.broadcast %142 : vector<16x1xf32> to vector<16x64xf32>
    %144 = arith.addf %141, %143 : vector<16x64xf32>
    %cst_55 = arith.constant 0.000000e+00 : f32
    %cst_56 = arith.constant 6.000000e+00 : f32
    %145 = vector.broadcast %cst_55 : f32 to vector<16x64xf32>
    %146 = arith.maximumf %145, %144 : vector<16x64xf32>
    %147 = vector.broadcast %cst_56 : f32 to vector<16x64xf32>
    %148 = arith.minimumf %147, %146 : vector<16x64xf32>
    %c0_57 = arith.constant 0 : index
    %c0_58 = arith.constant 0 : index
    %c0_59 = arith.constant 0 : index
    %149 = vector.load %arg33[%c0_57, %c0_58, %c0_59] : memref<1x16x64xf32, #tpu.memory_space<vmem>>, vector<1x16x64xf32>
    %150 = vector.shape_cast %149 : vector<1x16x64xf32> to vector<16x64xf32>
    %151 = vector.shape_cast %148 : vector<16x64xf32> to vector<1x16x64xf32>
    tpu.vector_store %arg33[%c0_57, %c0_58, %c0_59], %151 {strides = array<i32>} : memref<1x16x64xf32, #tpu.memory_space<vmem>>, vector<1x16x64xf32>,
    %c0_60 = arith.constant 0 : index
    %c0_61 = arith.constant 0 : index
    %152 = vector.load %arg26[%c0_60, %c0_61] : memref<8x16xbf16, #tpu.memory_space<vmem>>, vector<8x16xbf16>
    %153 = arith.truncf %148 : vector<16x64xf32> to vector<16x64xbf16>
    %154 = vector.extract_strided_slice %153 {offsets = [0, 0], sizes = [16, 8], strides = [1, 1]} : vector<16x64xbf16> to vector<16x8xbf16>
    %cst_62 = arith.constant dense<0.000000e+00> : vector<16x16xf32>
    %155 = tpu.matmul %154, %152, %cst_62 {dimension_numbers = #tpu.dot_dimension_numbers<[1], [0], [0], [1], [0, 0, 1, 1], [], []>} : vector<16x8xbf16>, vector<8x16xbf16>, vector<16x16xf32> -> vector<16x16xf32>
    %156 = vector.extract_strided_slice %153 {offsets = [0, 8], sizes = [16, 8], strides = [1, 1]} : vector<16x64xbf16> to vector<16x8xbf16>
    %cst_63 = arith.constant dense<0.000000e+00> : vector<16x16xf32>
    %157 = tpu.matmul %156, %152, %cst_63 {dimension_numbers = #tpu.dot_dimension_numbers<[1], [0], [0], [1], [0, 0, 1, 1], [], []>} : vector<16x8xbf16>, vector<8x16xbf16>, vector<16x16xf32> -> vector<16x16xf32>
    %158 = vector.extract_strided_slice %153 {offsets = [0, 16], sizes = [16, 8], strides = [1, 1]} : vector<16x64xbf16> to vector<16x8xbf16>
    %cst_64 = arith.constant dense<0.000000e+00> : vector<16x16xf32>
    %159 = tpu.matmul %158, %152, %cst_64 {dimension_numbers = #tpu.dot_dimension_numbers<[1], [0], [0], [1], [0, 0, 1, 1], [], []>} : vector<16x8xbf16>, vector<8x16xbf16>, vector<16x16xf32> -> vector<16x16xf32>
    %160 = vector.extract_strided_slice %153 {offsets = [0, 24], sizes = [16, 8], strides = [1, 1]} : vector<16x64xbf16> to vector<16x8xbf16>
    %cst_65 = arith.constant dense<0.000000e+00> : vector<16x16xf32>
    %161 = tpu.matmul %160, %152, %cst_65 {dimension_numbers = #tpu.dot_dimension_numbers<[1], [0], [0], [1], [0, 0, 1, 1], [], []>} : vector<16x8xbf16>, vector<8x16xbf16>, vector<16x16xf32> -> vector<16x16xf32>
    %162 = vector.extract_strided_slice %153 {offsets = [0, 32], sizes = [16, 8], strides = [1, 1]} : vector<16x64xbf16> to vector<16x8xbf16>
    %cst_66 = arith.constant dense<0.000000e+00> : vector<16x16xf32>
    %163 = tpu.matmul %162, %152, %cst_66 {dimension_numbers = #tpu.dot_dimension_numbers<[1], [0], [0], [1], [0, 0, 1, 1], [], []>} : vector<16x8xbf16>, vector<8x16xbf16>, vector<16x16xf32> -> vector<16x16xf32>
    %164 = vector.extract_strided_slice %153 {offsets = [0, 40], sizes = [16, 8], strides = [1, 1]} : vector<16x64xbf16> to vector<16x8xbf16>
    %cst_67 = arith.constant dense<0.000000e+00> : vector<16x16xf32>
    %165 = tpu.matmul %164, %152, %cst_67 {dimension_numbers = #tpu.dot_dimension_numbers<[1], [0], [0], [1], [0, 0, 1, 1], [], []>} : vector<16x8xbf16>, vector<8x16xbf16>, vector<16x16xf32> -> vector<16x16xf32>
    %166 = vector.extract_strided_slice %153 {offsets = [0, 48], sizes = [16, 8], strides = [1, 1]} : vector<16x64xbf16> to vector<16x8xbf16>
    %cst_68 = arith.constant dense<0.000000e+00> : vector<16x16xf32>
    %167 = tpu.matmul %166, %152, %cst_68 {dimension_numbers = #tpu.dot_dimension_numbers<[1], [0], [0], [1], [0, 0, 1, 1], [], []>} : vector<16x8xbf16>, vector<8x16xbf16>, vector<16x16xf32> -> vector<16x16xf32>
    %168 = vector.extract_strided_slice %153 {offsets = [0, 56], sizes = [16, 8], strides = [1, 1]} : vector<16x64xbf16> to vector<16x8xbf16>
    %cst_69 = arith.constant dense<0.000000e+00> : vector<16x16xf32>
    %169 = tpu.matmul %168, %152, %cst_69 {dimension_numbers = #tpu.dot_dimension_numbers<[1], [0], [0], [1], [0, 0, 1, 1], [], []>} : vector<16x8xbf16>, vector<8x16xbf16>, vector<16x16xf32> -> vector<16x16xf32>
    %cst_70 = arith.constant 7.500000e-01 : f32
    %170 = vector.broadcast %cst_70 : f32 to vector<16x16xf32>
    %171 = arith.mulf %155, %170 : vector<16x16xf32>
    %cst_71 = arith.constant 2.500000e-01 : f32
    %172 = vector.broadcast %cst_71 : f32 to vector<16x16xf32>
    %173 = arith.mulf %157, %172 : vector<16x16xf32>
    %174 = arith.addf %171, %173 : vector<16x16xf32>
    %cst_72 = arith.constant 2.500000e-01 : f32
    %175 = vector.broadcast %cst_72 : f32 to vector<16x16xf32>
    %176 = arith.mulf %155, %175 : vector<16x16xf32>
    %cst_73 = arith.constant 7.500000e-01 : f32
    %177 = vector.broadcast %cst_73 : f32 to vector<16x16xf32>
    %178 = arith.mulf %157, %177 : vector<16x16xf32>
    %179 = arith.addf %176, %178 : vector<16x16xf32>
    %cst_74 = arith.constant 7.500000e-01 : f32
    %180 = vector.broadcast %cst_74 : f32 to vector<16x16xf32>
    %181 = arith.mulf %157, %180 : vector<16x16xf32>
    %cst_75 = arith.constant 2.500000e-01 : f32
    %182 = vector.broadcast %cst_75 : f32 to vector<16x16xf32>
    %183 = arith.mulf %159, %182 : vector<16x16xf32>
    %184 = arith.addf %181, %183 : vector<16x16xf32>
    %cst_76 = arith.constant 2.500000e-01 : f32
    %185 = vector.broadcast %cst_76 : f32 to vector<16x16xf32>
    %186 = arith.mulf %157, %185 : vector<16x16xf32>
    %cst_77 = arith.constant 7.500000e-01 : f32
    %187 = vector.broadcast %cst_77 : f32 to vector<16x16xf32>
    %188 = arith.mulf %159, %187 : vector<16x16xf32>
    %189 = arith.addf %186, %188 : vector<16x16xf32>
    %cst_78 = arith.constant 7.500000e-01 : f32
    %190 = vector.broadcast %cst_78 : f32 to vector<16x16xf32>
    %191 = arith.mulf %159, %190 : vector<16x16xf32>
    %cst_79 = arith.constant 2.500000e-01 : f32
    %192 = vector.broadcast %cst_79 : f32 to vector<16x16xf32>
    %193 = arith.mulf %161, %192 : vector<16x16xf32>
    %194 = arith.addf %191, %193 : vector<16x16xf32>
    %cst_80 = arith.constant 2.500000e-01 : f32
    %195 = vector.broadcast %cst_80 : f32 to vector<16x16xf32>
    %196 = arith.mulf %159, %195 : vector<16x16xf32>
    %cst_81 = arith.constant 7.500000e-01 : f32
    %197 = vector.broadcast %cst_81 : f32 to vector<16x16xf32>
    %198 = arith.mulf %161, %197 : vector<16x16xf32>
    %199 = arith.addf %196, %198 : vector<16x16xf32>
    %cst_82 = arith.constant 7.500000e-01 : f32
    %200 = vector.broadcast %cst_82 : f32 to vector<16x16xf32>
    %201 = arith.mulf %161, %200 : vector<16x16xf32>
    %cst_83 = arith.constant 2.500000e-01 : f32
    %202 = vector.broadcast %cst_83 : f32 to vector<16x16xf32>
    %203 = arith.mulf %163, %202 : vector<16x16xf32>
    %204 = arith.addf %201, %203 : vector<16x16xf32>
    %cst_84 = arith.constant 2.500000e-01 : f32
    %205 = vector.broadcast %cst_84 : f32 to vector<16x16xf32>
    %206 = arith.mulf %161, %205 : vector<16x16xf32>
    %cst_85 = arith.constant 7.500000e-01 : f32
    %207 = vector.broadcast %cst_85 : f32 to vector<16x16xf32>
    %208 = arith.mulf %163, %207 : vector<16x16xf32>
    %209 = arith.addf %206, %208 : vector<16x16xf32>
    %cst_86 = arith.constant 7.500000e-01 : f32
    %210 = vector.broadcast %cst_86 : f32 to vector<16x16xf32>
    %211 = arith.mulf %163, %210 : vector<16x16xf32>
    %cst_87 = arith.constant 2.500000e-01 : f32
    %212 = vector.broadcast %cst_87 : f32 to vector<16x16xf32>
    %213 = arith.mulf %165, %212 : vector<16x16xf32>
    %214 = arith.addf %211, %213 : vector<16x16xf32>
    %cst_88 = arith.constant 2.500000e-01 : f32
    %215 = vector.broadcast %cst_88 : f32 to vector<16x16xf32>
    %216 = arith.mulf %163, %215 : vector<16x16xf32>
    %cst_89 = arith.constant 7.500000e-01 : f32
    %217 = vector.broadcast %cst_89 : f32 to vector<16x16xf32>
    %218 = arith.mulf %165, %217 : vector<16x16xf32>
    %219 = arith.addf %216, %218 : vector<16x16xf32>
    %cst_90 = arith.constant 7.500000e-01 : f32
    %220 = vector.broadcast %cst_90 : f32 to vector<16x16xf32>
    %221 = arith.mulf %165, %220 : vector<16x16xf32>
    %cst_91 = arith.constant 2.500000e-01 : f32
    %222 = vector.broadcast %cst_91 : f32 to vector<16x16xf32>
    %223 = arith.mulf %167, %222 : vector<16x16xf32>
    %224 = arith.addf %221, %223 : vector<16x16xf32>
    %cst_92 = arith.constant 2.500000e-01 : f32
    %225 = vector.broadcast %cst_92 : f32 to vector<16x16xf32>
    %226 = arith.mulf %165, %225 : vector<16x16xf32>
    %cst_93 = arith.constant 7.500000e-01 : f32
    %227 = vector.broadcast %cst_93 : f32 to vector<16x16xf32>
    %228 = arith.mulf %167, %227 : vector<16x16xf32>
    %229 = arith.addf %226, %228 : vector<16x16xf32>
    %cst_94 = arith.constant 7.500000e-01 : f32
    %230 = vector.broadcast %cst_94 : f32 to vector<16x16xf32>
    %231 = arith.mulf %167, %230 : vector<16x16xf32>
    %cst_95 = arith.constant 2.500000e-01 : f32
    %232 = vector.broadcast %cst_95 : f32 to vector<16x16xf32>
    %233 = arith.mulf %169, %232 : vector<16x16xf32>
    %234 = arith.addf %231, %233 : vector<16x16xf32>
    %cst_96 = arith.constant 2.500000e-01 : f32
    %235 = vector.broadcast %cst_96 : f32 to vector<16x16xf32>
    %236 = arith.mulf %167, %235 : vector<16x16xf32>
    %cst_97 = arith.constant 7.500000e-01 : f32
    %237 = vector.broadcast %cst_97 : f32 to vector<16x16xf32>
    %238 = arith.mulf %169, %237 : vector<16x16xf32>
    %239 = arith.addf %236, %238 : vector<16x16xf32>
    %240 = tpu.concatenate %155, %174, %179, %184, %189, %194, %199, %204, %209, %214, %219, %224, %229, %234, %239, %169 in 1 : vector<16x16xf32>, vector<16x16xf32>, vector<16x16xf32>, vector<16x16xf32>, vector<16x16xf32>, vector<16x16xf32>, vector<16x16xf32>, vector<16x16xf32>, vector<16x16xf32>, vector<16x16xf32>, vector<16x16xf32>, vector<16x16xf32>, vector<16x16xf32>, vector<16x16xf32>, vector<16x16xf32>, vector<16x16xf32> -> vector<16x256xf32>
    %c0_98 = arith.constant 0 : index
    %c0_99 = arith.constant 0 : index
    %c0_100 = arith.constant 0 : index
    %241 = vector.load %arg2[%c0_98, %c0_99, %c0_100] : memref<1x16x256xf32, #tpu.memory_space<vmem>>, vector<1x16x256xf32>
    %242 = vector.shape_cast %241 : vector<1x16x256xf32> to vector<16x256xf32>
    %c0_101 = arith.constant 0 : index
    %c0_102 = arith.constant 0 : index
    %243 = vector.load %arg13[%c0_101, %c0_102] : memref<16x16xbf16, #tpu.memory_space<vmem>>, vector<16x16xbf16>
    %244 = arith.truncf %242 : vector<16x256xf32> to vector<16x256xbf16>
    %cst_103 = arith.constant dense<0.000000e+00> : vector<16x256xf32>
    %245 = tpu.matmul %243, %244, %cst_103 {dimension_numbers = #tpu.dot_dimension_numbers<[1], [0], [0], [1], [0, 0, 1, 1], [], []>} : vector<16x16xbf16>, vector<16x256xbf16>, vector<16x256xf32> -> vector<16x256xf32>
    %c0_104 = arith.constant 0 : index
    %c0_105 = arith.constant 0 : index
    %246 = vector.load %arg14[%c0_104, %c0_105] : memref<16x1xf32, #tpu.memory_space<vmem>>, vector<16x1xf32>
    %247 = vector.broadcast %246 : vector<16x1xf32> to vector<16x256xf32>
    %248 = arith.addf %245, %247 : vector<16x256xf32>
    %cst_106 = arith.constant 0.000000e+00 : f32
    %cst_107 = arith.constant 6.000000e+00 : f32
    %249 = vector.broadcast %cst_106 : f32 to vector<16x256xf32>
    %250 = arith.maximumf %249, %248 : vector<16x256xf32>
    %251 = vector.broadcast %cst_107 : f32 to vector<16x256xf32>
    %252 = arith.minimumf %251, %250 : vector<16x256xf32>
    %253 = arith.addf %240, %252 : vector<16x256xf32>
    %c0_108 = arith.constant 0 : index
    %c0_109 = arith.constant 0 : index
    %254 = vector.load %arg15[%c0_108, %c0_109] : memref<16x9xf32, #tpu.memory_space<vmem>>, vector<16x9xf32>
    %c0_110 = arith.constant 0 : index
    %c0_111 = arith.constant 0 : index
    %255 = vector.load %arg16[%c0_110, %c0_111] : memref<16x1xf32, #tpu.memory_space<vmem>>, vector<16x1xf32>
    %c0_112 = arith.constant 0 : index
    %c0_113 = arith.constant 0 : index
    %256 = vector.load %arg29[%c0_112, %c0_113] : memref<2x256xf32, #tpu.memory_space<vmem>>, vector<1x256xf32>
    %c1_114 = arith.constant 1 : index
    %c0_115 = arith.constant 0 : index
    %257 = vector.load %arg29[%c1_114, %c0_115] : memref<2x256xf32, #tpu.memory_space<vmem>>, vector<1x256xf32>
    %cst_116 = arith.constant 0.000000e+00 : f32
    %258 = vector.broadcast %cst_116 : f32 to vector<16x17xf32>
    %259 = tpu.concatenate %258, %253, %258 in 1 : vector<16x17xf32>, vector<16x256xf32>, vector<16x17xf32> -> vector<16x290xf32>
    %cst_117 = arith.constant 0.000000e+00 : f32
    %260 = vector.broadcast %cst_117 : f32 to vector<16x256xf32>
    %261 = vector.extract_strided_slice %259 {offsets = [0, 0], sizes = [16, 256], strides = [1, 1]} : vector<16x290xf32> to vector<16x256xf32>
    %262 = vector.broadcast %256 : vector<1x256xf32> to vector<16x256xf32>
    %263 = arith.mulf %261, %262 : vector<16x256xf32>
    %264 = vector.extract_strided_slice %254 {offsets = [0, 0], sizes = [16, 1], strides = [1, 1]} : vector<16x9xf32> to vector<16x1xf32>
    %265 = vector.broadcast %264 : vector<16x1xf32> to vector<16x256xf32>
    %266 = arith.mulf %263, %265 : vector<16x256xf32>
    %267 = arith.addf %260, %266 : vector<16x256xf32>
    %268 = vector.extract_strided_slice %259 {offsets = [0, 1], sizes = [16, 256], strides = [1, 1]} : vector<16x290xf32> to vector<16x256xf32>
    %269 = vector.extract_strided_slice %254 {offsets = [0, 1], sizes = [16, 1], strides = [1, 1]} : vector<16x9xf32> to vector<16x1xf32>
    %270 = vector.broadcast %269 : vector<16x1xf32> to vector<16x256xf32>
    %271 = arith.mulf %268, %270 : vector<16x256xf32>
    %272 = arith.addf %267, %271 : vector<16x256xf32>
    %273 = vector.extract_strided_slice %259 {offsets = [0, 2], sizes = [16, 256], strides = [1, 1]} : vector<16x290xf32> to vector<16x256xf32>
    %274 = vector.broadcast %257 : vector<1x256xf32> to vector<16x256xf32>
    %275 = arith.mulf %273, %274 : vector<16x256xf32>
    %276 = vector.extract_strided_slice %254 {offsets = [0, 2], sizes = [16, 1], strides = [1, 1]} : vector<16x9xf32> to vector<16x1xf32>
    %277 = vector.broadcast %276 : vector<16x1xf32> to vector<16x256xf32>
    %278 = arith.mulf %275, %277 : vector<16x256xf32>
    %279 = arith.addf %272, %278 : vector<16x256xf32>
    %280 = vector.extract_strided_slice %259 {offsets = [0, 16], sizes = [16, 256], strides = [1, 1]} : vector<16x290xf32> to vector<16x256xf32>
    %281 = vector.broadcast %256 : vector<1x256xf32> to vector<16x256xf32>
    %282 = arith.mulf %280, %281 : vector<16x256xf32>
    %283 = vector.extract_strided_slice %254 {offsets = [0, 3], sizes = [16, 1], strides = [1, 1]} : vector<16x9xf32> to vector<16x1xf32>
    %284 = vector.broadcast %283 : vector<16x1xf32> to vector<16x256xf32>
    %285 = arith.mulf %282, %284 : vector<16x256xf32>
    %286 = arith.addf %279, %285 : vector<16x256xf32>
    %287 = vector.extract_strided_slice %259 {offsets = [0, 17], sizes = [16, 256], strides = [1, 1]} : vector<16x290xf32> to vector<16x256xf32>
    %288 = vector.extract_strided_slice %254 {offsets = [0, 4], sizes = [16, 1], strides = [1, 1]} : vector<16x9xf32> to vector<16x1xf32>
    %289 = vector.broadcast %288 : vector<16x1xf32> to vector<16x256xf32>
    %290 = arith.mulf %287, %289 : vector<16x256xf32>
    %291 = arith.addf %286, %290 : vector<16x256xf32>
    %292 = vector.extract_strided_slice %259 {offsets = [0, 18], sizes = [16, 256], strides = [1, 1]} : vector<16x290xf32> to vector<16x256xf32>
    %293 = vector.broadcast %257 : vector<1x256xf32> to vector<16x256xf32>
    %294 = arith.mulf %292, %293 : vector<16x256xf32>
    %295 = vector.extract_strided_slice %254 {offsets = [0, 5], sizes = [16, 1], strides = [1, 1]} : vector<16x9xf32> to vector<16x1xf32>
    %296 = vector.broadcast %295 : vector<16x1xf32> to vector<16x256xf32>
    %297 = arith.mulf %294, %296 : vector<16x256xf32>
    %298 = arith.addf %291, %297 : vector<16x256xf32>
    %299 = vector.extract_strided_slice %259 {offsets = [0, 32], sizes = [16, 256], strides = [1, 1]} : vector<16x290xf32> to vector<16x256xf32>
    %300 = vector.broadcast %256 : vector<1x256xf32> to vector<16x256xf32>
    %301 = arith.mulf %299, %300 : vector<16x256xf32>
    %302 = vector.extract_strided_slice %254 {offsets = [0, 6], sizes = [16, 1], strides = [1, 1]} : vector<16x9xf32> to vector<16x1xf32>
    %303 = vector.broadcast %302 : vector<16x1xf32> to vector<16x256xf32>
    %304 = arith.mulf %301, %303 : vector<16x256xf32>
    %305 = arith.addf %298, %304 : vector<16x256xf32>
    %306 = vector.extract_strided_slice %259 {offsets = [0, 33], sizes = [16, 256], strides = [1, 1]} : vector<16x290xf32> to vector<16x256xf32>
    %307 = vector.extract_strided_slice %254 {offsets = [0, 7], sizes = [16, 1], strides = [1, 1]} : vector<16x9xf32> to vector<16x1xf32>
    %308 = vector.broadcast %307 : vector<16x1xf32> to vector<16x256xf32>
    %309 = arith.mulf %306, %308 : vector<16x256xf32>
    %310 = arith.addf %305, %309 : vector<16x256xf32>
    %311 = vector.extract_strided_slice %259 {offsets = [0, 34], sizes = [16, 256], strides = [1, 1]} : vector<16x290xf32> to vector<16x256xf32>
    %312 = vector.broadcast %257 : vector<1x256xf32> to vector<16x256xf32>
    %313 = arith.mulf %311, %312 : vector<16x256xf32>
    %314 = vector.extract_strided_slice %254 {offsets = [0, 8], sizes = [16, 1], strides = [1, 1]} : vector<16x9xf32> to vector<16x1xf32>
    %315 = vector.broadcast %314 : vector<16x1xf32> to vector<16x256xf32>
    %316 = arith.mulf %313, %315 : vector<16x256xf32>
    %317 = arith.addf %310, %316 : vector<16x256xf32>
    %318 = vector.broadcast %255 : vector<16x1xf32> to vector<16x256xf32>
    %319 = arith.addf %317, %318 : vector<16x256xf32>
    %cst_118 = arith.constant 0.000000e+00 : f32
    %cst_119 = arith.constant 6.000000e+00 : f32
    %320 = vector.broadcast %cst_118 : f32 to vector<16x256xf32>
    %321 = arith.maximumf %320, %319 : vector<16x256xf32>
    %322 = vector.broadcast %cst_119 : f32 to vector<16x256xf32>
    %323 = arith.minimumf %322, %321 : vector<16x256xf32>
    %c0_120 = arith.constant 0 : index
    %c0_121 = arith.constant 0 : index
    %324 = vector.load %arg17[%c0_120, %c0_121] : memref<8x16xbf16, #tpu.memory_space<vmem>>, vector<8x16xbf16>
    %325 = arith.truncf %323 : vector<16x256xf32> to vector<16x256xbf16>
    %cst_122 = arith.constant dense<0.000000e+00> : vector<8x256xf32>
    %326 = tpu.matmul %324, %325, %cst_122 {dimension_numbers = #tpu.dot_dimension_numbers<[1], [0], [0], [1], [0, 0, 1, 1], [], []>} : vector<8x16xbf16>, vector<16x256xbf16>, vector<8x256xf32> -> vector<8x256xf32>
    %c0_123 = arith.constant 0 : index
    %c0_124 = arith.constant 0 : index
    %327 = vector.load %arg18[%c0_123, %c0_124] : memref<8x1xf32, #tpu.memory_space<vmem>>, vector<8x1xf32>
    %328 = vector.broadcast %327 : vector<8x1xf32> to vector<8x256xf32>
    %329 = arith.addf %326, %328 : vector<8x256xf32>
    %cst_125 = arith.constant 0.000000e+00 : f32
    %cst_126 = arith.constant 6.000000e+00 : f32
    %330 = vector.broadcast %cst_125 : f32 to vector<8x256xf32>
    %331 = arith.maximumf %330, %329 : vector<8x256xf32>
    %332 = vector.broadcast %cst_126 : f32 to vector<8x256xf32>
    %333 = arith.minimumf %332, %331 : vector<8x256xf32>
    %c0_127 = arith.constant 0 : index
    %c0_128 = arith.constant 0 : index
    %c0_129 = arith.constant 0 : index
    %334 = vector.load %arg32[%c0_127, %c0_128, %c0_129] : memref<1x8x256xf32, #tpu.memory_space<vmem>>, vector<1x8x256xf32>
    %335 = vector.shape_cast %334 : vector<1x8x256xf32> to vector<8x256xf32>
    %336 = vector.shape_cast %333 : vector<8x256xf32> to vector<1x8x256xf32>
    tpu.vector_store %arg32[%c0_127, %c0_128, %c0_129], %336 {strides = array<i32>} : memref<1x8x256xf32, #tpu.memory_space<vmem>>, vector<1x8x256xf32>,
    %c0_130 = arith.constant 0 : index
    %c0_131 = arith.constant 0 : index
    %337 = vector.load %arg27[%c0_130, %c0_131] : memref<16x32xbf16, #tpu.memory_space<vmem>>, vector<16x32xbf16>
    %338 = arith.truncf %333 : vector<8x256xf32> to vector<8x256xbf16>
    %339 = vector.extract_strided_slice %338 {offsets = [0, 0], sizes = [8, 16], strides = [1, 1]} : vector<8x256xbf16> to vector<8x16xbf16>
    %cst_132 = arith.constant dense<0.000000e+00> : vector<8x32xf32>
    %340 = tpu.matmul %339, %337, %cst_132 {dimension_numbers = #tpu.dot_dimension_numbers<[1], [0], [0], [1], [0, 0, 1, 1], [], []>} : vector<8x16xbf16>, vector<16x32xbf16>, vector<8x32xf32> -> vector<8x32xf32>
    %341 = vector.extract_strided_slice %338 {offsets = [0, 16], sizes = [8, 16], strides = [1, 1]} : vector<8x256xbf16> to vector<8x16xbf16>
    %cst_133 = arith.constant dense<0.000000e+00> : vector<8x32xf32>
    %342 = tpu.matmul %341, %337, %cst_133 {dimension_numbers = #tpu.dot_dimension_numbers<[1], [0], [0], [1], [0, 0, 1, 1], [], []>} : vector<8x16xbf16>, vector<16x32xbf16>, vector<8x32xf32> -> vector<8x32xf32>
    %343 = vector.extract_strided_slice %338 {offsets = [0, 32], sizes = [8, 16], strides = [1, 1]} : vector<8x256xbf16> to vector<8x16xbf16>
    %cst_134 = arith.constant dense<0.000000e+00> : vector<8x32xf32>
    %344 = tpu.matmul %343, %337, %cst_134 {dimension_numbers = #tpu.dot_dimension_numbers<[1], [0], [0], [1], [0, 0, 1, 1], [], []>} : vector<8x16xbf16>, vector<16x32xbf16>, vector<8x32xf32> -> vector<8x32xf32>
    %345 = vector.extract_strided_slice %338 {offsets = [0, 48], sizes = [8, 16], strides = [1, 1]} : vector<8x256xbf16> to vector<8x16xbf16>
    %cst_135 = arith.constant dense<0.000000e+00> : vector<8x32xf32>
    %346 = tpu.matmul %345, %337, %cst_135 {dimension_numbers = #tpu.dot_dimension_numbers<[1], [0], [0], [1], [0, 0, 1, 1], [], []>} : vector<8x16xbf16>, vector<16x32xbf16>, vector<8x32xf32> -> vector<8x32xf32>
    %347 = vector.extract_strided_slice %338 {offsets = [0, 64], sizes = [8, 16], strides = [1, 1]} : vector<8x256xbf16> to vector<8x16xbf16>
    %cst_136 = arith.constant dense<0.000000e+00> : vector<8x32xf32>
    %348 = tpu.matmul %347, %337, %cst_136 {dimension_numbers = #tpu.dot_dimension_numbers<[1], [0], [0], [1], [0, 0, 1, 1], [], []>} : vector<8x16xbf16>, vector<16x32xbf16>, vector<8x32xf32> -> vector<8x32xf32>
    %349 = vector.extract_strided_slice %338 {offsets = [0, 80], sizes = [8, 16], strides = [1, 1]} : vector<8x256xbf16> to vector<8x16xbf16>
    %cst_137 = arith.constant dense<0.000000e+00> : vector<8x32xf32>
    %350 = tpu.matmul %349, %337, %cst_137 {dimension_numbers = #tpu.dot_dimension_numbers<[1], [0], [0], [1], [0, 0, 1, 1], [], []>} : vector<8x16xbf16>, vector<16x32xbf16>, vector<8x32xf32> -> vector<8x32xf32>
    %351 = vector.extract_strided_slice %338 {offsets = [0, 96], sizes = [8, 16], strides = [1, 1]} : vector<8x256xbf16> to vector<8x16xbf16>
    %cst_138 = arith.constant dense<0.000000e+00> : vector<8x32xf32>
    %352 = tpu.matmul %351, %337, %cst_138 {dimension_numbers = #tpu.dot_dimension_numbers<[1], [0], [0], [1], [0, 0, 1, 1], [], []>} : vector<8x16xbf16>, vector<16x32xbf16>, vector<8x32xf32> -> vector<8x32xf32>
    %353 = vector.extract_strided_slice %338 {offsets = [0, 112], sizes = [8, 16], strides = [1, 1]} : vector<8x256xbf16> to vector<8x16xbf16>
    %cst_139 = arith.constant dense<0.000000e+00> : vector<8x32xf32>
    %354 = tpu.matmul %353, %337, %cst_139 {dimension_numbers = #tpu.dot_dimension_numbers<[1], [0], [0], [1], [0, 0, 1, 1], [], []>} : vector<8x16xbf16>, vector<16x32xbf16>, vector<8x32xf32> -> vector<8x32xf32>
    %355 = vector.extract_strided_slice %338 {offsets = [0, 128], sizes = [8, 16], strides = [1, 1]} : vector<8x256xbf16> to vector<8x16xbf16>
    %cst_140 = arith.constant dense<0.000000e+00> : vector<8x32xf32>
    %356 = tpu.matmul %355, %337, %cst_140 {dimension_numbers = #tpu.dot_dimension_numbers<[1], [0], [0], [1], [0, 0, 1, 1], [], []>} : vector<8x16xbf16>, vector<16x32xbf16>, vector<8x32xf32> -> vector<8x32xf32>
    %357 = vector.extract_strided_slice %338 {offsets = [0, 144], sizes = [8, 16], strides = [1, 1]} : vector<8x256xbf16> to vector<8x16xbf16>
    %cst_141 = arith.constant dense<0.000000e+00> : vector<8x32xf32>
    %358 = tpu.matmul %357, %337, %cst_141 {dimension_numbers = #tpu.dot_dimension_numbers<[1], [0], [0], [1], [0, 0, 1, 1], [], []>} : vector<8x16xbf16>, vector<16x32xbf16>, vector<8x32xf32> -> vector<8x32xf32>
    %359 = vector.extract_strided_slice %338 {offsets = [0, 160], sizes = [8, 16], strides = [1, 1]} : vector<8x256xbf16> to vector<8x16xbf16>
    %cst_142 = arith.constant dense<0.000000e+00> : vector<8x32xf32>
    %360 = tpu.matmul %359, %337, %cst_142 {dimension_numbers = #tpu.dot_dimension_numbers<[1], [0], [0], [1], [0, 0, 1, 1], [], []>} : vector<8x16xbf16>, vector<16x32xbf16>, vector<8x32xf32> -> vector<8x32xf32>
    %361 = vector.extract_strided_slice %338 {offsets = [0, 176], sizes = [8, 16], strides = [1, 1]} : vector<8x256xbf16> to vector<8x16xbf16>
    %cst_143 = arith.constant dense<0.000000e+00> : vector<8x32xf32>
    %362 = tpu.matmul %361, %337, %cst_143 {dimension_numbers = #tpu.dot_dimension_numbers<[1], [0], [0], [1], [0, 0, 1, 1], [], []>} : vector<8x16xbf16>, vector<16x32xbf16>, vector<8x32xf32> -> vector<8x32xf32>
    %363 = vector.extract_strided_slice %338 {offsets = [0, 192], sizes = [8, 16], strides = [1, 1]} : vector<8x256xbf16> to vector<8x16xbf16>
    %cst_144 = arith.constant dense<0.000000e+00> : vector<8x32xf32>
    %364 = tpu.matmul %363, %337, %cst_144 {dimension_numbers = #tpu.dot_dimension_numbers<[1], [0], [0], [1], [0, 0, 1, 1], [], []>} : vector<8x16xbf16>, vector<16x32xbf16>, vector<8x32xf32> -> vector<8x32xf32>
    %365 = vector.extract_strided_slice %338 {offsets = [0, 208], sizes = [8, 16], strides = [1, 1]} : vector<8x256xbf16> to vector<8x16xbf16>
    %cst_145 = arith.constant dense<0.000000e+00> : vector<8x32xf32>
    %366 = tpu.matmul %365, %337, %cst_145 {dimension_numbers = #tpu.dot_dimension_numbers<[1], [0], [0], [1], [0, 0, 1, 1], [], []>} : vector<8x16xbf16>, vector<16x32xbf16>, vector<8x32xf32> -> vector<8x32xf32>
    %367 = vector.extract_strided_slice %338 {offsets = [0, 224], sizes = [8, 16], strides = [1, 1]} : vector<8x256xbf16> to vector<8x16xbf16>
    %cst_146 = arith.constant dense<0.000000e+00> : vector<8x32xf32>
    %368 = tpu.matmul %367, %337, %cst_146 {dimension_numbers = #tpu.dot_dimension_numbers<[1], [0], [0], [1], [0, 0, 1, 1], [], []>} : vector<8x16xbf16>, vector<16x32xbf16>, vector<8x32xf32> -> vector<8x32xf32>
    %369 = vector.extract_strided_slice %338 {offsets = [0, 240], sizes = [8, 16], strides = [1, 1]} : vector<8x256xbf16> to vector<8x16xbf16>
    %cst_147 = arith.constant dense<0.000000e+00> : vector<8x32xf32>
    %370 = tpu.matmul %369, %337, %cst_147 {dimension_numbers = #tpu.dot_dimension_numbers<[1], [0], [0], [1], [0, 0, 1, 1], [], []>} : vector<8x16xbf16>, vector<16x32xbf16>, vector<8x32xf32> -> vector<8x32xf32>
    %cst_148 = arith.constant 7.500000e-01 : f32
    %371 = vector.broadcast %cst_148 : f32 to vector<8x32xf32>
    %372 = arith.mulf %340, %371 : vector<8x32xf32>
    %cst_149 = arith.constant 2.500000e-01 : f32
    %373 = vector.broadcast %cst_149 : f32 to vector<8x32xf32>
    %374 = arith.mulf %342, %373 : vector<8x32xf32>
    %375 = arith.addf %372, %374 : vector<8x32xf32>
    %cst_150 = arith.constant 2.500000e-01 : f32
    %376 = vector.broadcast %cst_150 : f32 to vector<8x32xf32>
    %377 = arith.mulf %340, %376 : vector<8x32xf32>
    %cst_151 = arith.constant 7.500000e-01 : f32
    %378 = vector.broadcast %cst_151 : f32 to vector<8x32xf32>
    %379 = arith.mulf %342, %378 : vector<8x32xf32>
    %380 = arith.addf %377, %379 : vector<8x32xf32>
    %cst_152 = arith.constant 7.500000e-01 : f32
    %381 = vector.broadcast %cst_152 : f32 to vector<8x32xf32>
    %382 = arith.mulf %342, %381 : vector<8x32xf32>
    %cst_153 = arith.constant 2.500000e-01 : f32
    %383 = vector.broadcast %cst_153 : f32 to vector<8x32xf32>
    %384 = arith.mulf %344, %383 : vector<8x32xf32>
    %385 = arith.addf %382, %384 : vector<8x32xf32>
    %cst_154 = arith.constant 2.500000e-01 : f32
    %386 = vector.broadcast %cst_154 : f32 to vector<8x32xf32>
    %387 = arith.mulf %342, %386 : vector<8x32xf32>
    %cst_155 = arith.constant 7.500000e-01 : f32
    %388 = vector.broadcast %cst_155 : f32 to vector<8x32xf32>
    %389 = arith.mulf %344, %388 : vector<8x32xf32>
    %390 = arith.addf %387, %389 : vector<8x32xf32>
    %cst_156 = arith.constant 7.500000e-01 : f32
    %391 = vector.broadcast %cst_156 : f32 to vector<8x32xf32>
    %392 = arith.mulf %344, %391 : vector<8x32xf32>
    %cst_157 = arith.constant 2.500000e-01 : f32
    %393 = vector.broadcast %cst_157 : f32 to vector<8x32xf32>
    %394 = arith.mulf %346, %393 : vector<8x32xf32>
    %395 = arith.addf %392, %394 : vector<8x32xf32>
    %cst_158 = arith.constant 2.500000e-01 : f32
    %396 = vector.broadcast %cst_158 : f32 to vector<8x32xf32>
    %397 = arith.mulf %344, %396 : vector<8x32xf32>
    %cst_159 = arith.constant 7.500000e-01 : f32
    %398 = vector.broadcast %cst_159 : f32 to vector<8x32xf32>
    %399 = arith.mulf %346, %398 : vector<8x32xf32>
    %400 = arith.addf %397, %399 : vector<8x32xf32>
    %cst_160 = arith.constant 7.500000e-01 : f32
    %401 = vector.broadcast %cst_160 : f32 to vector<8x32xf32>
    %402 = arith.mulf %346, %401 : vector<8x32xf32>
    %cst_161 = arith.constant 2.500000e-01 : f32
    %403 = vector.broadcast %cst_161 : f32 to vector<8x32xf32>
    %404 = arith.mulf %348, %403 : vector<8x32xf32>
    %405 = arith.addf %402, %404 : vector<8x32xf32>
    %cst_162 = arith.constant 2.500000e-01 : f32
    %406 = vector.broadcast %cst_162 : f32 to vector<8x32xf32>
    %407 = arith.mulf %346, %406 : vector<8x32xf32>
    %cst_163 = arith.constant 7.500000e-01 : f32
    %408 = vector.broadcast %cst_163 : f32 to vector<8x32xf32>
    %409 = arith.mulf %348, %408 : vector<8x32xf32>
    %410 = arith.addf %407, %409 : vector<8x32xf32>
    %cst_164 = arith.constant 7.500000e-01 : f32
    %411 = vector.broadcast %cst_164 : f32 to vector<8x32xf32>
    %412 = arith.mulf %348, %411 : vector<8x32xf32>
    %cst_165 = arith.constant 2.500000e-01 : f32
    %413 = vector.broadcast %cst_165 : f32 to vector<8x32xf32>
    %414 = arith.mulf %350, %413 : vector<8x32xf32>
    %415 = arith.addf %412, %414 : vector<8x32xf32>
    %cst_166 = arith.constant 2.500000e-01 : f32
    %416 = vector.broadcast %cst_166 : f32 to vector<8x32xf32>
    %417 = arith.mulf %348, %416 : vector<8x32xf32>
    %cst_167 = arith.constant 7.500000e-01 : f32
    %418 = vector.broadcast %cst_167 : f32 to vector<8x32xf32>
    %419 = arith.mulf %350, %418 : vector<8x32xf32>
    %420 = arith.addf %417, %419 : vector<8x32xf32>
    %cst_168 = arith.constant 7.500000e-01 : f32
    %421 = vector.broadcast %cst_168 : f32 to vector<8x32xf32>
    %422 = arith.mulf %350, %421 : vector<8x32xf32>
    %cst_169 = arith.constant 2.500000e-01 : f32
    %423 = vector.broadcast %cst_169 : f32 to vector<8x32xf32>
    %424 = arith.mulf %352, %423 : vector<8x32xf32>
    %425 = arith.addf %422, %424 : vector<8x32xf32>
    %cst_170 = arith.constant 2.500000e-01 : f32
    %426 = vector.broadcast %cst_170 : f32 to vector<8x32xf32>
    %427 = arith.mulf %350, %426 : vector<8x32xf32>
    %cst_171 = arith.constant 7.500000e-01 : f32
    %428 = vector.broadcast %cst_171 : f32 to vector<8x32xf32>
    %429 = arith.mulf %352, %428 : vector<8x32xf32>
    %430 = arith.addf %427, %429 : vector<8x32xf32>
    %cst_172 = arith.constant 7.500000e-01 : f32
    %431 = vector.broadcast %cst_172 : f32 to vector<8x32xf32>
    %432 = arith.mulf %352, %431 : vector<8x32xf32>
    %cst_173 = arith.constant 2.500000e-01 : f32
    %433 = vector.broadcast %cst_173 : f32 to vector<8x32xf32>
    %434 = arith.mulf %354, %433 : vector<8x32xf32>
    %435 = arith.addf %432, %434 : vector<8x32xf32>
    %cst_174 = arith.constant 2.500000e-01 : f32
    %436 = vector.broadcast %cst_174 : f32 to vector<8x32xf32>
    %437 = arith.mulf %352, %436 : vector<8x32xf32>
    %cst_175 = arith.constant 7.500000e-01 : f32
    %438 = vector.broadcast %cst_175 : f32 to vector<8x32xf32>
    %439 = arith.mulf %354, %438 : vector<8x32xf32>
    %440 = arith.addf %437, %439 : vector<8x32xf32>
    %cst_176 = arith.constant 7.500000e-01 : f32
    %441 = vector.broadcast %cst_176 : f32 to vector<8x32xf32>
    %442 = arith.mulf %354, %441 : vector<8x32xf32>
    %cst_177 = arith.constant 2.500000e-01 : f32
    %443 = vector.broadcast %cst_177 : f32 to vector<8x32xf32>
    %444 = arith.mulf %356, %443 : vector<8x32xf32>
    %445 = arith.addf %442, %444 : vector<8x32xf32>
    %cst_178 = arith.constant 2.500000e-01 : f32
    %446 = vector.broadcast %cst_178 : f32 to vector<8x32xf32>
    %447 = arith.mulf %354, %446 : vector<8x32xf32>
    %cst_179 = arith.constant 7.500000e-01 : f32
    %448 = vector.broadcast %cst_179 : f32 to vector<8x32xf32>
    %449 = arith.mulf %356, %448 : vector<8x32xf32>
    %450 = arith.addf %447, %449 : vector<8x32xf32>
    %cst_180 = arith.constant 7.500000e-01 : f32
    %451 = vector.broadcast %cst_180 : f32 to vector<8x32xf32>
    %452 = arith.mulf %356, %451 : vector<8x32xf32>
    %cst_181 = arith.constant 2.500000e-01 : f32
    %453 = vector.broadcast %cst_181 : f32 to vector<8x32xf32>
    %454 = arith.mulf %358, %453 : vector<8x32xf32>
    %455 = arith.addf %452, %454 : vector<8x32xf32>
    %cst_182 = arith.constant 2.500000e-01 : f32
    %456 = vector.broadcast %cst_182 : f32 to vector<8x32xf32>
    %457 = arith.mulf %356, %456 : vector<8x32xf32>
    %cst_183 = arith.constant 7.500000e-01 : f32
    %458 = vector.broadcast %cst_183 : f32 to vector<8x32xf32>
    %459 = arith.mulf %358, %458 : vector<8x32xf32>
    %460 = arith.addf %457, %459 : vector<8x32xf32>
    %cst_184 = arith.constant 7.500000e-01 : f32
    %461 = vector.broadcast %cst_184 : f32 to vector<8x32xf32>
    %462 = arith.mulf %358, %461 : vector<8x32xf32>
    %cst_185 = arith.constant 2.500000e-01 : f32
    %463 = vector.broadcast %cst_185 : f32 to vector<8x32xf32>
    %464 = arith.mulf %360, %463 : vector<8x32xf32>
    %465 = arith.addf %462, %464 : vector<8x32xf32>
    %cst_186 = arith.constant 2.500000e-01 : f32
    %466 = vector.broadcast %cst_186 : f32 to vector<8x32xf32>
    %467 = arith.mulf %358, %466 : vector<8x32xf32>
    %cst_187 = arith.constant 7.500000e-01 : f32
    %468 = vector.broadcast %cst_187 : f32 to vector<8x32xf32>
    %469 = arith.mulf %360, %468 : vector<8x32xf32>
    %470 = arith.addf %467, %469 : vector<8x32xf32>
    %cst_188 = arith.constant 7.500000e-01 : f32
    %471 = vector.broadcast %cst_188 : f32 to vector<8x32xf32>
    %472 = arith.mulf %360, %471 : vector<8x32xf32>
    %cst_189 = arith.constant 2.500000e-01 : f32
    %473 = vector.broadcast %cst_189 : f32 to vector<8x32xf32>
    %474 = arith.mulf %362, %473 : vector<8x32xf32>
    %475 = arith.addf %472, %474 : vector<8x32xf32>
    %cst_190 = arith.constant 2.500000e-01 : f32
    %476 = vector.broadcast %cst_190 : f32 to vector<8x32xf32>
    %477 = arith.mulf %360, %476 : vector<8x32xf32>
    %cst_191 = arith.constant 7.500000e-01 : f32
    %478 = vector.broadcast %cst_191 : f32 to vector<8x32xf32>
    %479 = arith.mulf %362, %478 : vector<8x32xf32>
    %480 = arith.addf %477, %479 : vector<8x32xf32>
    %cst_192 = arith.constant 7.500000e-01 : f32
    %481 = vector.broadcast %cst_192 : f32 to vector<8x32xf32>
    %482 = arith.mulf %362, %481 : vector<8x32xf32>
    %cst_193 = arith.constant 2.500000e-01 : f32
    %483 = vector.broadcast %cst_193 : f32 to vector<8x32xf32>
    %484 = arith.mulf %364, %483 : vector<8x32xf32>
    %485 = arith.addf %482, %484 : vector<8x32xf32>
    %cst_194 = arith.constant 2.500000e-01 : f32
    %486 = vector.broadcast %cst_194 : f32 to vector<8x32xf32>
    %487 = arith.mulf %362, %486 : vector<8x32xf32>
    %cst_195 = arith.constant 7.500000e-01 : f32
    %488 = vector.broadcast %cst_195 : f32 to vector<8x32xf32>
    %489 = arith.mulf %364, %488 : vector<8x32xf32>
    %490 = arith.addf %487, %489 : vector<8x32xf32>
    %cst_196 = arith.constant 7.500000e-01 : f32
    %491 = vector.broadcast %cst_196 : f32 to vector<8x32xf32>
    %492 = arith.mulf %364, %491 : vector<8x32xf32>
    %cst_197 = arith.constant 2.500000e-01 : f32
    %493 = vector.broadcast %cst_197 : f32 to vector<8x32xf32>
    %494 = arith.mulf %366, %493 : vector<8x32xf32>
    %495 = arith.addf %492, %494 : vector<8x32xf32>
    %cst_198 = arith.constant 2.500000e-01 : f32
    %496 = vector.broadcast %cst_198 : f32 to vector<8x32xf32>
    %497 = arith.mulf %364, %496 : vector<8x32xf32>
    %cst_199 = arith.constant 7.500000e-01 : f32
    %498 = vector.broadcast %cst_199 : f32 to vector<8x32xf32>
    %499 = arith.mulf %366, %498 : vector<8x32xf32>
    %500 = arith.addf %497, %499 : vector<8x32xf32>
    %cst_200 = arith.constant 7.500000e-01 : f32
    %501 = vector.broadcast %cst_200 : f32 to vector<8x32xf32>
    %502 = arith.mulf %366, %501 : vector<8x32xf32>
    %cst_201 = arith.constant 2.500000e-01 : f32
    %503 = vector.broadcast %cst_201 : f32 to vector<8x32xf32>
    %504 = arith.mulf %368, %503 : vector<8x32xf32>
    %505 = arith.addf %502, %504 : vector<8x32xf32>
    %cst_202 = arith.constant 2.500000e-01 : f32
    %506 = vector.broadcast %cst_202 : f32 to vector<8x32xf32>
    %507 = arith.mulf %366, %506 : vector<8x32xf32>
    %cst_203 = arith.constant 7.500000e-01 : f32
    %508 = vector.broadcast %cst_203 : f32 to vector<8x32xf32>
    %509 = arith.mulf %368, %508 : vector<8x32xf32>
    %510 = arith.addf %507, %509 : vector<8x32xf32>
    %cst_204 = arith.constant 7.500000e-01 : f32
    %511 = vector.broadcast %cst_204 : f32 to vector<8x32xf32>
    %512 = arith.mulf %368, %511 : vector<8x32xf32>
    %cst_205 = arith.constant 2.500000e-01 : f32
    %513 = vector.broadcast %cst_205 : f32 to vector<8x32xf32>
    %514 = arith.mulf %370, %513 : vector<8x32xf32>
    %515 = arith.addf %512, %514 : vector<8x32xf32>
    %cst_206 = arith.constant 2.500000e-01 : f32
    %516 = vector.broadcast %cst_206 : f32 to vector<8x32xf32>
    %517 = arith.mulf %368, %516 : vector<8x32xf32>
    %cst_207 = arith.constant 7.500000e-01 : f32
    %518 = vector.broadcast %cst_207 : f32 to vector<8x32xf32>
    %519 = arith.mulf %370, %518 : vector<8x32xf32>
    %520 = arith.addf %517, %519 : vector<8x32xf32>
    %521 = tpu.concatenate %340, %375, %380, %385, %390, %395, %400, %405, %410, %415, %420, %425, %430, %435, %440, %445 in 1 : vector<8x32xf32>, vector<8x32xf32>, vector<8x32xf32>, vector<8x32xf32>, vector<8x32xf32>, vector<8x32xf32>, vector<8x32xf32>, vector<8x32xf32>, vector<8x32xf32>, vector<8x32xf32>, vector<8x32xf32>, vector<8x32xf32>, vector<8x32xf32>, vector<8x32xf32>, vector<8x32xf32>, vector<8x32xf32> -> vector<8x512xf32>
    %522 = tpu.concatenate %450, %455, %460, %465, %470, %475, %480, %485, %490, %495, %500, %505, %510, %515, %520, %370 in 1 : vector<8x32xf32>, vector<8x32xf32>, vector<8x32xf32>, vector<8x32xf32>, vector<8x32xf32>, vector<8x32xf32>, vector<8x32xf32>, vector<8x32xf32>, vector<8x32xf32>, vector<8x32xf32>, vector<8x32xf32>, vector<8x32xf32>, vector<8x32xf32>, vector<8x32xf32>, vector<8x32xf32>, vector<8x32xf32> -> vector<8x512xf32>
    %523 = tpu.concatenate %521, %522 in 1 : vector<8x512xf32>, vector<8x512xf32> -> vector<8x1024xf32>
    %c0_208 = arith.constant 0 : index
    %c0_209 = arith.constant 0 : index
    %c0_210 = arith.constant 0 : index
    %524 = vector.load %arg1[%c0_208, %c0_209, %c0_210] : memref<1x8x1024xf32, #tpu.memory_space<vmem>>, vector<1x8x1024xf32>
    %525 = vector.shape_cast %524 : vector<1x8x1024xf32> to vector<8x1024xf32>
    %c0_211 = arith.constant 0 : index
    %c0_212 = arith.constant 0 : index
    %526 = vector.load %arg19[%c0_211, %c0_212] : memref<8x8xbf16, #tpu.memory_space<vmem>>, vector<8x8xbf16>
    %527 = arith.truncf %525 : vector<8x1024xf32> to vector<8x1024xbf16>
    %cst_213 = arith.constant dense<0.000000e+00> : vector<8x1024xf32>
    %528 = tpu.matmul %526, %527, %cst_213 {dimension_numbers = #tpu.dot_dimension_numbers<[1], [0], [0], [1], [0, 0, 1, 1], [], []>} : vector<8x8xbf16>, vector<8x1024xbf16>, vector<8x1024xf32> -> vector<8x1024xf32>
    %c0_214 = arith.constant 0 : index
    %c0_215 = arith.constant 0 : index
    %529 = vector.load %arg20[%c0_214, %c0_215] : memref<8x1xf32, #tpu.memory_space<vmem>>, vector<8x1xf32>
    %530 = vector.broadcast %529 : vector<8x1xf32> to vector<8x1024xf32>
    %531 = arith.addf %528, %530 : vector<8x1024xf32>
    %cst_216 = arith.constant 0.000000e+00 : f32
    %cst_217 = arith.constant 6.000000e+00 : f32
    %532 = vector.broadcast %cst_216 : f32 to vector<8x1024xf32>
    %533 = arith.maximumf %532, %531 : vector<8x1024xf32>
    %534 = vector.broadcast %cst_217 : f32 to vector<8x1024xf32>
    %535 = arith.minimumf %534, %533 : vector<8x1024xf32>
    %536 = arith.addf %523, %535 : vector<8x1024xf32>
    %c0_218 = arith.constant 0 : index
    %c0_219 = arith.constant 0 : index
    %537 = vector.load %arg21[%c0_218, %c0_219] : memref<8x9xf32, #tpu.memory_space<vmem>>, vector<8x9xf32>
    %c0_220 = arith.constant 0 : index
    %c0_221 = arith.constant 0 : index
    %538 = vector.load %arg22[%c0_220, %c0_221] : memref<8x1xf32, #tpu.memory_space<vmem>>, vector<8x1xf32>
    %c0_222 = arith.constant 0 : index
    %c0_223 = arith.constant 0 : index
    %539 = vector.load %arg30[%c0_222, %c0_223] : memref<2x1024xf32, #tpu.memory_space<vmem>>, vector<1x1024xf32>
    %c1_224 = arith.constant 1 : index
    %c0_225 = arith.constant 0 : index
    %540 = vector.load %arg30[%c1_224, %c0_225] : memref<2x1024xf32, #tpu.memory_space<vmem>>, vector<1x1024xf32>
    %cst_226 = arith.constant 0.000000e+00 : f32
    %541 = vector.broadcast %cst_226 : f32 to vector<8x33xf32>
    %542 = tpu.concatenate %541, %536, %541 in 1 : vector<8x33xf32>, vector<8x1024xf32>, vector<8x33xf32> -> vector<8x1090xf32>
    %cst_227 = arith.constant 0.000000e+00 : f32
    %543 = vector.broadcast %cst_227 : f32 to vector<8x1024xf32>
    %544 = vector.extract_strided_slice %542 {offsets = [0, 0], sizes = [8, 1024], strides = [1, 1]} : vector<8x1090xf32> to vector<8x1024xf32>
    %545 = vector.broadcast %539 : vector<1x1024xf32> to vector<8x1024xf32>
    %546 = arith.mulf %544, %545 : vector<8x1024xf32>
    %547 = vector.extract_strided_slice %537 {offsets = [0, 0], sizes = [8, 1], strides = [1, 1]} : vector<8x9xf32> to vector<8x1xf32>
    %548 = vector.broadcast %547 : vector<8x1xf32> to vector<8x1024xf32>
    %549 = arith.mulf %546, %548 : vector<8x1024xf32>
    %550 = arith.addf %543, %549 : vector<8x1024xf32>
    %551 = vector.extract_strided_slice %542 {offsets = [0, 1], sizes = [8, 1024], strides = [1, 1]} : vector<8x1090xf32> to vector<8x1024xf32>
    %552 = vector.extract_strided_slice %537 {offsets = [0, 1], sizes = [8, 1], strides = [1, 1]} : vector<8x9xf32> to vector<8x1xf32>
    %553 = vector.broadcast %552 : vector<8x1xf32> to vector<8x1024xf32>
    %554 = arith.mulf %551, %553 : vector<8x1024xf32>
    %555 = arith.addf %550, %554 : vector<8x1024xf32>
    %556 = vector.extract_strided_slice %542 {offsets = [0, 2], sizes = [8, 1024], strides = [1, 1]} : vector<8x1090xf32> to vector<8x1024xf32>
    %557 = vector.broadcast %540 : vector<1x1024xf32> to vector<8x1024xf32>
    %558 = arith.mulf %556, %557 : vector<8x1024xf32>
    %559 = vector.extract_strided_slice %537 {offsets = [0, 2], sizes = [8, 1], strides = [1, 1]} : vector<8x9xf32> to vector<8x1xf32>
    %560 = vector.broadcast %559 : vector<8x1xf32> to vector<8x1024xf32>
    %561 = arith.mulf %558, %560 : vector<8x1024xf32>
    %562 = arith.addf %555, %561 : vector<8x1024xf32>
    %563 = vector.extract_strided_slice %542 {offsets = [0, 32], sizes = [8, 1024], strides = [1, 1]} : vector<8x1090xf32> to vector<8x1024xf32>
    %564 = vector.broadcast %539 : vector<1x1024xf32> to vector<8x1024xf32>
    %565 = arith.mulf %563, %564 : vector<8x1024xf32>
    %566 = vector.extract_strided_slice %537 {offsets = [0, 3], sizes = [8, 1], strides = [1, 1]} : vector<8x9xf32> to vector<8x1xf32>
    %567 = vector.broadcast %566 : vector<8x1xf32> to vector<8x1024xf32>
    %568 = arith.mulf %565, %567 : vector<8x1024xf32>
    %569 = arith.addf %562, %568 : vector<8x1024xf32>
    %570 = vector.extract_strided_slice %542 {offsets = [0, 33], sizes = [8, 1024], strides = [1, 1]} : vector<8x1090xf32> to vector<8x1024xf32>
    %571 = vector.extract_strided_slice %537 {offsets = [0, 4], sizes = [8, 1], strides = [1, 1]} : vector<8x9xf32> to vector<8x1xf32>
    %572 = vector.broadcast %571 : vector<8x1xf32> to vector<8x1024xf32>
    %573 = arith.mulf %570, %572 : vector<8x1024xf32>
    %574 = arith.addf %569, %573 : vector<8x1024xf32>
    %575 = vector.extract_strided_slice %542 {offsets = [0, 34], sizes = [8, 1024], strides = [1, 1]} : vector<8x1090xf32> to vector<8x1024xf32>
    %576 = vector.broadcast %540 : vector<1x1024xf32> to vector<8x1024xf32>
    %577 = arith.mulf %575, %576 : vector<8x1024xf32>
    %578 = vector.extract_strided_slice %537 {offsets = [0, 5], sizes = [8, 1], strides = [1, 1]} : vector<8x9xf32> to vector<8x1xf32>
    %579 = vector.broadcast %578 : vector<8x1xf32> to vector<8x1024xf32>
    %580 = arith.mulf %577, %579 : vector<8x1024xf32>
    %581 = arith.addf %574, %580 : vector<8x1024xf32>
    %582 = vector.extract_strided_slice %542 {offsets = [0, 64], sizes = [8, 1024], strides = [1, 1]} : vector<8x1090xf32> to vector<8x1024xf32>
    %583 = vector.broadcast %539 : vector<1x1024xf32> to vector<8x1024xf32>
    %584 = arith.mulf %582, %583 : vector<8x1024xf32>
    %585 = vector.extract_strided_slice %537 {offsets = [0, 6], sizes = [8, 1], strides = [1, 1]} : vector<8x9xf32> to vector<8x1xf32>
    %586 = vector.broadcast %585 : vector<8x1xf32> to vector<8x1024xf32>
    %587 = arith.mulf %584, %586 : vector<8x1024xf32>
    %588 = arith.addf %581, %587 : vector<8x1024xf32>
    %589 = vector.extract_strided_slice %542 {offsets = [0, 65], sizes = [8, 1024], strides = [1, 1]} : vector<8x1090xf32> to vector<8x1024xf32>
    %590 = vector.extract_strided_slice %537 {offsets = [0, 7], sizes = [8, 1], strides = [1, 1]} : vector<8x9xf32> to vector<8x1xf32>
    %591 = vector.broadcast %590 : vector<8x1xf32> to vector<8x1024xf32>
    %592 = arith.mulf %589, %591 : vector<8x1024xf32>
    %593 = arith.addf %588, %592 : vector<8x1024xf32>
    %594 = vector.extract_strided_slice %542 {offsets = [0, 66], sizes = [8, 1024], strides = [1, 1]} : vector<8x1090xf32> to vector<8x1024xf32>
    %595 = vector.broadcast %540 : vector<1x1024xf32> to vector<8x1024xf32>
    %596 = arith.mulf %594, %595 : vector<8x1024xf32>
    %597 = vector.extract_strided_slice %537 {offsets = [0, 8], sizes = [8, 1], strides = [1, 1]} : vector<8x9xf32> to vector<8x1xf32>
    %598 = vector.broadcast %597 : vector<8x1xf32> to vector<8x1024xf32>
    %599 = arith.mulf %596, %598 : vector<8x1024xf32>
    %600 = arith.addf %593, %599 : vector<8x1024xf32>
    %601 = vector.broadcast %538 : vector<8x1xf32> to vector<8x1024xf32>
    %602 = arith.addf %600, %601 : vector<8x1024xf32>
    %cst_228 = arith.constant 0.000000e+00 : f32
    %cst_229 = arith.constant 6.000000e+00 : f32
    %603 = vector.broadcast %cst_228 : f32 to vector<8x1024xf32>
    %604 = arith.maximumf %603, %602 : vector<8x1024xf32>
    %605 = vector.broadcast %cst_229 : f32 to vector<8x1024xf32>
    %606 = arith.minimumf %605, %604 : vector<8x1024xf32>
    %c0_230 = arith.constant 0 : index
    %c0_231 = arith.constant 0 : index
    %607 = vector.load %arg23[%c0_230, %c0_231] : memref<8x8xbf16, #tpu.memory_space<vmem>>, vector<8x8xbf16>
    %608 = arith.truncf %606 : vector<8x1024xf32> to vector<8x1024xbf16>
    %cst_232 = arith.constant dense<0.000000e+00> : vector<8x1024xf32>
    %609 = tpu.matmul %607, %608, %cst_232 {dimension_numbers = #tpu.dot_dimension_numbers<[1], [0], [0], [1], [0, 0, 1, 1], [], []>} : vector<8x8xbf16>, vector<8x1024xbf16>, vector<8x1024xf32> -> vector<8x1024xf32>
    %c0_233 = arith.constant 0 : index
    %c0_234 = arith.constant 0 : index
    %610 = vector.load %arg24[%c0_233, %c0_234] : memref<8x1xf32, #tpu.memory_space<vmem>>, vector<8x1xf32>
    %611 = vector.broadcast %610 : vector<8x1xf32> to vector<8x1024xf32>
    %612 = arith.addf %609, %611 : vector<8x1024xf32>
    %cst_235 = arith.constant 0.000000e+00 : f32
    %cst_236 = arith.constant 6.000000e+00 : f32
    %613 = vector.broadcast %cst_235 : f32 to vector<8x1024xf32>
    %614 = arith.maximumf %613, %612 : vector<8x1024xf32>
    %615 = vector.broadcast %cst_236 : f32 to vector<8x1024xf32>
    %616 = arith.minimumf %615, %614 : vector<8x1024xf32>
    %c0_237 = arith.constant 0 : index
    %c0_238 = arith.constant 0 : index
    %c0_239 = arith.constant 0 : index
    %617 = vector.load %arg31[%c0_237, %c0_238, %c0_239] : memref<1x8x1024xf32, #tpu.memory_space<vmem>>, vector<1x8x1024xf32>
    %618 = vector.shape_cast %617 : vector<1x8x1024xf32> to vector<8x1024xf32>
    %619 = vector.shape_cast %616 : vector<8x1024xf32> to vector<1x8x1024xf32>
    tpu.vector_store %arg31[%c0_237, %c0_238, %c0_239], %619 {strides = array<i32>} : memref<1x8x1024xf32, #tpu.memory_space<vmem>>, vector<1x8x1024xf32>,
    return
  }
  func.func @transform_0(%arg0: i32) -> (i32, i32, i32) {
    %c0_i32 = arith.constant 0 : i32
    %c0_i32_0 = arith.constant 0 : i32
    %c0_i32_1 = arith.constant 0 : i32
    return %arg0, %c0_i32, %c0_i32_0 : i32, i32, i32
  }
  func.func @transform_1(%arg0: i32) -> (i32, i32, i32) {
    %c0_i32 = arith.constant 0 : i32
    %c0_i32_0 = arith.constant 0 : i32
    %c0_i32_1 = arith.constant 0 : i32
    return %arg0, %c0_i32, %c0_i32_0 : i32, i32, i32
  }
  func.func @transform_2(%arg0: i32) -> (i32, i32, i32) {
    %c0_i32 = arith.constant 0 : i32
    %c0_i32_0 = arith.constant 0 : i32
    %c0_i32_1 = arith.constant 0 : i32
    return %arg0, %c0_i32, %c0_i32_0 : i32, i32, i32
  }
  func.func @transform_3(%arg0: i32) -> (i32, i32, i32) {
    %c0_i32 = arith.constant 0 : i32
    %c0_i32_0 = arith.constant 0 : i32
    %c0_i32_1 = arith.constant 0 : i32
    return %arg0, %c0_i32, %c0_i32_0 : i32, i32, i32
  }
  func.func @transform_4(%arg0: i32) -> (i32, i32) {
    %c0_i32 = arith.constant 0 : i32
    %c0_i32_0 = arith.constant 0 : i32
    %c0_i32_1 = arith.constant 0 : i32
    return %c0_i32, %c0_i32_0 : i32, i32
  }
  func.func @transform_5(%arg0: i32) -> (i32, i32) {
    %c0_i32 = arith.constant 0 : i32
    %c0_i32_0 = arith.constant 0 : i32
    %c0_i32_1 = arith.constant 0 : i32
    return %c0_i32, %c0_i32_0 : i32, i32
  }
  func.func @transform_6(%arg0: i32) -> (i32, i32) {
    %c0_i32 = arith.constant 0 : i32
    %c0_i32_0 = arith.constant 0 : i32
    %c0_i32_1 = arith.constant 0 : i32
    return %c0_i32, %c0_i32_0 : i32, i32
  }
  func.func @transform_7(%arg0: i32) -> (i32, i32) {
    %c0_i32 = arith.constant 0 : i32
    %c0_i32_0 = arith.constant 0 : i32
    %c0_i32_1 = arith.constant 0 : i32
    return %c0_i32, %c0_i32_0 : i32, i32
  }
  func.func @transform_8(%arg0: i32) -> (i32, i32) {
    %c0_i32 = arith.constant 0 : i32
    %c0_i32_0 = arith.constant 0 : i32
    %c0_i32_1 = arith.constant 0 : i32
    return %c0_i32, %c0_i32_0 : i32, i32
  }
  func.func @transform_9(%arg0: i32) -> (i32, i32) {
    %c0_i32 = arith.constant 0 : i32
    %c0_i32_0 = arith.constant 0 : i32
    %c0_i32_1 = arith.constant 0 : i32
    return %c0_i32, %c0_i32_0 : i32, i32
  }
  func.func @transform_10(%arg0: i32) -> (i32, i32) {
    %c0_i32 = arith.constant 0 : i32
    %c0_i32_0 = arith.constant 0 : i32
    %c0_i32_1 = arith.constant 0 : i32
    return %c0_i32, %c0_i32_0 : i32, i32
  }
  func.func @transform_11(%arg0: i32) -> (i32, i32) {
    %c0_i32 = arith.constant 0 : i32
    %c0_i32_0 = arith.constant 0 : i32
    %c0_i32_1 = arith.constant 0 : i32
    return %c0_i32, %c0_i32_0 : i32, i32
  }
  func.func @transform_12(%arg0: i32) -> (i32, i32) {
    %c0_i32 = arith.constant 0 : i32
    %c0_i32_0 = arith.constant 0 : i32
    %c0_i32_1 = arith.constant 0 : i32
    return %c0_i32, %c0_i32_0 : i32, i32
  }
  func.func @transform_13(%arg0: i32) -> (i32, i32) {
    %c0_i32 = arith.constant 0 : i32
    %c0_i32_0 = arith.constant 0 : i32
    %c0_i32_1 = arith.constant 0 : i32
    return %c0_i32, %c0_i32_0 : i32, i32
  }
  func.func @transform_14(%arg0: i32) -> (i32, i32) {
    %c0_i32 = arith.constant 0 : i32
    %c0_i32_0 = arith.constant 0 : i32
    %c0_i32_1 = arith.constant 0 : i32
    return %c0_i32, %c0_i32_0 : i32, i32
  }
  func.func @transform_15(%arg0: i32) -> (i32, i32) {
    %c0_i32 = arith.constant 0 : i32
    %c0_i32_0 = arith.constant 0 : i32
    %c0_i32_1 = arith.constant 0 : i32
    return %c0_i32, %c0_i32_0 : i32, i32
  }
  func.func @transform_16(%arg0: i32) -> (i32, i32) {
    %c0_i32 = arith.constant 0 : i32
    %c0_i32_0 = arith.constant 0 : i32
    %c0_i32_1 = arith.constant 0 : i32
    return %c0_i32, %c0_i32_0 : i32, i32
  }
  func.func @transform_17(%arg0: i32) -> (i32, i32) {
    %c0_i32 = arith.constant 0 : i32
    %c0_i32_0 = arith.constant 0 : i32
    %c0_i32_1 = arith.constant 0 : i32
    return %c0_i32, %c0_i32_0 : i32, i32
  }
  func.func @transform_18(%arg0: i32) -> (i32, i32) {
    %c0_i32 = arith.constant 0 : i32
    %c0_i32_0 = arith.constant 0 : i32
    %c0_i32_1 = arith.constant 0 : i32
    return %c0_i32, %c0_i32_0 : i32, i32
  }
  func.func @transform_19(%arg0: i32) -> (i32, i32) {
    %c0_i32 = arith.constant 0 : i32
    %c0_i32_0 = arith.constant 0 : i32
    %c0_i32_1 = arith.constant 0 : i32
    return %c0_i32, %c0_i32_0 : i32, i32
  }
  func.func @transform_20(%arg0: i32) -> (i32, i32) {
    %c0_i32 = arith.constant 0 : i32
    %c0_i32_0 = arith.constant 0 : i32
    %c0_i32_1 = arith.constant 0 : i32
    return %c0_i32, %c0_i32_0 : i32, i32
  }
  func.func @transform_21(%arg0: i32) -> (i32, i32) {
    %c0_i32 = arith.constant 0 : i32
    %c0_i32_0 = arith.constant 0 : i32
    %c0_i32_1 = arith.constant 0 : i32
    return %c0_i32, %c0_i32_0 : i32, i32
  }
  func.func @transform_22(%arg0: i32) -> (i32, i32) {
    %c0_i32 = arith.constant 0 : i32
    %c0_i32_0 = arith.constant 0 : i32
    %c0_i32_1 = arith.constant 0 : i32
    return %c0_i32, %c0_i32_0 : i32, i32
  }
  func.func @transform_23(%arg0: i32) -> (i32, i32) {
    %c0_i32 = arith.constant 0 : i32
    %c0_i32_0 = arith.constant 0 : i32
    %c0_i32_1 = arith.constant 0 : i32
    return %c0_i32, %c0_i32_0 : i32, i32
  }
  func.func @transform_24(%arg0: i32) -> (i32, i32) {
    %c0_i32 = arith.constant 0 : i32
    %c0_i32_0 = arith.constant 0 : i32
    %c0_i32_1 = arith.constant 0 : i32
    return %c0_i32, %c0_i32_0 : i32, i32
  }
  func.func @transform_25(%arg0: i32) -> (i32, i32) {
    %c0_i32 = arith.constant 0 : i32
    %c0_i32_0 = arith.constant 0 : i32
    %c0_i32_1 = arith.constant 0 : i32
    return %c0_i32, %c0_i32_0 : i32, i32
  }
  func.func @transform_26(%arg0: i32) -> (i32, i32) {
    %c0_i32 = arith.constant 0 : i32
    %c0_i32_0 = arith.constant 0 : i32
    %c0_i32_1 = arith.constant 0 : i32
    return %c0_i32, %c0_i32_0 : i32, i32
  }
  func.func @transform_27(%arg0: i32) -> (i32, i32) {
    %c0_i32 = arith.constant 0 : i32
    %c0_i32_0 = arith.constant 0 : i32
    %c0_i32_1 = arith.constant 0 : i32
    return %c0_i32, %c0_i32_0 : i32, i32
  }
  func.func @transform_28(%arg0: i32) -> (i32, i32) {
    %c0_i32 = arith.constant 0 : i32
    %c0_i32_0 = arith.constant 0 : i32
    %c0_i32_1 = arith.constant 0 : i32
    return %c0_i32, %c0_i32_0 : i32, i32
  }
  func.func @transform_29(%arg0: i32) -> (i32, i32) {
    %c0_i32 = arith.constant 0 : i32
    %c0_i32_0 = arith.constant 0 : i32
    %c0_i32_1 = arith.constant 0 : i32
    return %c0_i32, %c0_i32_0 : i32, i32
  }
  func.func @transform_30(%arg0: i32) -> (i32, i32, i32) {
    %c0_i32 = arith.constant 0 : i32
    %c0_i32_0 = arith.constant 0 : i32
    %c0_i32_1 = arith.constant 0 : i32
    return %arg0, %c0_i32, %c0_i32_0 : i32, i32, i32
  }
  func.func @transform_31(%arg0: i32) -> (i32, i32, i32) {
    %c0_i32 = arith.constant 0 : i32
    %c0_i32_0 = arith.constant 0 : i32
    %c0_i32_1 = arith.constant 0 : i32
    return %arg0, %c0_i32, %c0_i32_0 : i32, i32, i32
  }
  func.func @transform_32(%arg0: i32) -> (i32, i32, i32) {
    %c0_i32 = arith.constant 0 : i32
    %c0_i32_0 = arith.constant 0 : i32
    %c0_i32_1 = arith.constant 0 : i32
    return %arg0, %c0_i32, %c0_i32_0 : i32, i32, i32
  }
  func.func @transform_33(%arg0: i32) -> (i32, i32, i32) {
    %c0_i32 = arith.constant 0 : i32
    %c0_i32_0 = arith.constant 0 : i32
    %c0_i32_1 = arith.constant 0 : i32
    return %arg0, %c0_i32, %c0_i32_0 : i32, i32, i32
  }
}

</mosaic_0001>

<llo_original>
// kernel: light_fpn_forward.1
$region0: #{light_fpn_forward.1}
  #allocation0 [shape = 'u32[]', space=smem, size = 0x4, offset = 0x4, fixed_abs, tag = 'smem constant byte address 0x4 - core index']
  #allocation1 [shape = 'u32[144,128]{1,0:T(1,128)}', space=vmem, size = 0x12000, scoped, tag = 'internal scratch']
  %s0 = inlined_call_operand.smem [shape: u32[34], index: -1, kind: input, shape index: {}]
  %s1 = sld [smem:[%s0]]
  %s2 = scalar_lea.smem %s0, 1
  %s3 = sld [smem:[%s2]]
  %s4 = scalar_lea.smem %s0, 2
  %s5 = sld [smem:[%s4]]
  %s6 = scalar_lea.smem %s0, 3
  %s7 = sld [smem:[%s6]]
  %s8 = scalar_lea.smem %s0, 4
  %s9 = sld [smem:[%s8]]
  %s10 = scalar_lea.smem %s0, 5
  %s11 = sld [smem:[%s10]]
  %s12 = scalar_lea.smem %s0, 6
  %s13 = sld [smem:[%s12]]
  %s14 = scalar_lea.smem %s0, 7
  %s15 = sld [smem:[%s14]]
  %s16 = scalar_lea.smem %s0, 8
  %s17 = sld [smem:[%s16]]
  %s18 = scalar_lea.smem %s0, 9
  %s19 = sld [smem:[%s18]]
  %s20 = scalar_lea.smem %s0, 10
  %s21 = sld [smem:[%s20]]
  %s22 = scalar_lea.smem %s0, 11
  %s23 = sld [smem:[%s22]]
  %s24 = scalar_lea.smem %s0, 12
  %s25 = sld [smem:[%s24]]
  %s26 = scalar_lea.smem %s0, 13
  %s27 = sld [smem:[%s26]]
  %s28 = scalar_lea.smem %s0, 14
  %s29 = sld [smem:[%s28]]
  %s30 = scalar_lea.smem %s0, 15
  %s31 = sld [smem:[%s30]]
  %s32 = scalar_lea.smem %s0, 16
  %s33 = sld [smem:[%s32]]
  %s34 = scalar_lea.smem %s0, 17
  %s35 = sld [smem:[%s34]]
  %s36 = scalar_lea.smem %s0, 18
  %s37 = sld [smem:[%s36]]
  %s38 = scalar_lea.smem %s0, 19
  %s39 = sld [smem:[%s38]]
  %s40 = scalar_lea.smem %s0, 20
  %s41 = sld [smem:[%s40]]
  %s42 = scalar_lea.smem %s0, 21
  %s43 = sld [smem:[%s42]]
  %s44 = scalar_lea.smem %s0, 22
  %s45 = sld [smem:[%s44]]
  %s46 = scalar_lea.smem %s0, 23
  %s47 = sld [smem:[%s46]]
  %s48 = scalar_lea.smem %s0, 24
  %s49 = sld [smem:[%s48]]
  %s50 = scalar_lea.smem %s0, 25
  %s51 = sld [smem:[%s50]]
  %s52 = scalar_lea.smem %s0, 26
  %s53 = sld [smem:[%s52]]
  %s54 = scalar_lea.smem %s0, 27
  %s55 = sld [smem:[%s54]]
  %s56 = scalar_lea.smem %s0, 28
  %s57 = sld [smem:[%s56]]
  %s58 = scalar_lea.smem %s0, 29
  %s59 = sld [smem:[%s58]]
  %s60 = scalar_lea.smem %s0, 30
  %s61 = sld [smem:[%s60]]
  %s62 = scalar_lea.smem %s0, 31
  %s63 = sld [smem:[%s62]]
  %s64 = scalar_lea.smem %s0, 32
  %s65 = sld [smem:[%s64]]
  %s66 = scalar_lea.smem %s0, 33
  %s67 = sld [smem:[%s66]]
  %68 = xla_tuple %s61, %s63, %s65, %s67
  %s69 = sld [smem:[#allocation0]]
  $region177: #{light_fpn_forward.1} parent=0
    _
  %s71 = ssub.s32 1, %s69
  %s72 = scalar_select 0, %s71, %s69
  loop: start=0, step=1, limit=4
  $region2: #{light_fpn_forward.1} parent=0 // loop_pre_header
    _
  $region3: #{light_fpn_forward.1} parent=0 // loop_header
    %s74 = sphi 0, %s78
    %p75 = scmp.ge.s32.totalorder %s74, 4
    %s84 = sphi 0, %s86
    %s87 = sphi 0, %s84
    %s88 = sphi 0, %s87
    %s104 = sphi 0, %s88
    %s110 = sphi 0, %s112
    %s113 = sphi 0, %s110
    %s114 = sphi 0, %s113
    %s130 = sphi 0, %s114
    %s136 = sphi 0, %s138
    %s139 = sphi 0, %s136
    %s140 = sphi 0, %s139
    %s156 = sphi 0, %s140
    %s162 = sphi 0, %s164
    %s165 = sphi 0, %s162
    %s166 = sphi 0, %s165
    %s182 = sphi 0, %s166
    %s186 = sphi 0, %s186
    %s188 = sphi 0, %s186
    %s189 = sphi 0, %s188
    %s203 = sphi 0, %s189
    %s207 = sphi 0, %s207
    %s209 = sphi 0, %s207
    %s210 = sphi 0, %s209
    %s224 = sphi 0, %s210
    %s228 = sphi 0, %s228
    %s230 = sphi 0, %s228
    %s231 = sphi 0, %s230
    %s245 = sphi 0, %s231
    %s249 = sphi 0, %s249
    %s251 = sphi 0, %s249
    %s252 = sphi 0, %s251
    %s266 = sphi 0, %s252
    %s270 = sphi 0, %s270
    %s272 = sphi 0, %s270
    %s273 = sphi 0, %s272
    %s287 = sphi 0, %s273
    %s291 = sphi 0, %s291
    %s293 = sphi 0, %s291
    %s294 = sphi 0, %s293
    %s308 = sphi 0, %s294
    %s312 = sphi 0, %s312
    %s314 = sphi 0, %s312
    %s315 = sphi 0, %s314
    %s329 = sphi 0, %s315
    %s333 = sphi 0, %s333
    %s335 = sphi 0, %s333
    %s336 = sphi 0, %s335
    %s350 = sphi 0, %s336
    %s354 = sphi 0, %s354
    %s356 = sphi 0, %s354
    %s357 = sphi 0, %s356
    %s371 = sphi 0, %s357
    %s375 = sphi 0, %s375
    %s377 = sphi 0, %s375
    %s378 = sphi 0, %s377
    %s392 = sphi 0, %s378
    %s396 = sphi 0, %s396
    %s398 = sphi 0, %s396
    %s399 = sphi 0, %s398
    %s413 = sphi 0, %s399
    %s417 = sphi 0, %s417
    %s419 = sphi 0, %s417
    %s420 = sphi 0, %s419
    %s434 = sphi 0, %s420
    %s438 = sphi 0, %s438
    %s440 = sphi 0, %s438
    %s441 = sphi 0, %s440
    %s455 = sphi 0, %s441
    %s459 = sphi 0, %s459
    %s461 = sphi 0, %s459
    %s462 = sphi 0, %s461
    %s476 = sphi 0, %s462
    %s480 = sphi 0, %s480
    %s482 = sphi 0, %s480
    %s483 = sphi 0, %s482
    %s497 = sphi 0, %s483
    %s501 = sphi 0, %s501
    %s503 = sphi 0, %s501
    %s504 = sphi 0, %s503
    %s518 = sphi 0, %s504
    %s522 = sphi 0, %s522
    %s524 = sphi 0, %s522
    %s525 = sphi 0, %s524
    %s539 = sphi 0, %s525
    %s543 = sphi 0, %s543
    %s545 = sphi 0, %s543
    %s546 = sphi 0, %s545
    %s560 = sphi 0, %s546
    %s564 = sphi 0, %s564
    %s566 = sphi 0, %s564
    %s567 = sphi 0, %s566
    %s581 = sphi 0, %s567
    %s585 = sphi 0, %s585
    %s587 = sphi 0, %s585
    %s588 = sphi 0, %s587
    %s602 = sphi 0, %s588
    %s606 = sphi 0, %s606
    %s608 = sphi 0, %s606
    %s609 = sphi 0, %s608
    %s623 = sphi 0, %s609
    %s627 = sphi 0, %s627
    %s629 = sphi 0, %s627
    %s630 = sphi 0, %s629
    %s644 = sphi 0, %s630
    %s648 = sphi 0, %s648
    %s650 = sphi 0, %s648
    %s651 = sphi 0, %s650
    %s665 = sphi 0, %s651
    %s669 = sphi 0, %s669
    %s671 = sphi 0, %s669
    %s672 = sphi 0, %s671
    %s686 = sphi 0, %s672
    %s690 = sphi 0, %s690
    %s692 = sphi 0, %s690
    %s693 = sphi 0, %s692
    %s707 = sphi 0, %s693
    %s711 = sphi 0, %s711
    %s713 = sphi 0, %s711
    %s714 = sphi 0, %s713
    %s728 = sphi 0, %s714
    %s734 = sphi 0, %s736
    %s737 = sphi 0, %s734
    %s738 = sphi 0, %s737
    %s754 = sphi 0, %s738
    %s760 = sphi 0, %s762
    %s763 = sphi 0, %s760
    %s764 = sphi 0, %s763
    %s780 = sphi 0, %s764
    %s786 = sphi 0, %s788
    %s789 = sphi 0, %s786
    %s790 = sphi 0, %s789
    %s806 = sphi 0, %s790
    %s812 = sphi 0, %s814
    %s815 = sphi 0, %s812
    %s816 = sphi 0, %s815
    %s832 = sphi 0, %s816
  $region4: #{light_fpn_forward.1} parent=0 // loop_header_branch
    %77 = sbr.rel (%p75) target = $region8
  $region5: #{light_fpn_forward.1} parent=0 // loop_body
    %s79 = ssub.s32 %s74, 1
    %s80 = ssub.s32 %s74, 2
    %s81 = sadd.s32 %s74, 1
    %s82 = ssub.s32 %s74, %s81
    %p83 = scmp.eq.s32.totalorder %s82, 0
    %s85 = sadd.s32 %s84, 1
    %s86 = scalar_select %p83, %s84, %s85
    %p89 = pneg %p83
    %p90 = scmp.eq.s32.totalorder %s74, 1
    %p91 = por %p89, %p90
    %p92 = scmp.ne.s32.totalorder %s84, %s87
    %p93 = scmp.eq.s32.totalorder %s74, 0
    %p94 = por %p92, %p93
    %p95 = scmp.ne.s32.totalorder %s84, %s87
    %p96 = scmp.eq.s32.totalorder %s79, 1
    %p97 = por %p95, %p96
    %p98 = scmp.ne.s32.totalorder %s87, %s88
    %p99 = scmp.eq.s32.totalorder %s79, 0
    %p100 = por %p98, %p99
    %p101 = scmp.ne.s32.totalorder %s87, %s88
    %p102 = scmp.eq.s32.totalorder %s80, 1
    %p103 = por %p101, %p102
    %p105 = scmp.ne.s32.totalorder %s88, %s104
    %p106 = scmp.eq.s32.totalorder %s80, 0
    %p107 = por %p105, %p106
    %s108 = ssub.s32 %s74, %s81
    %p109 = scmp.eq.s32.totalorder %s108, 0
    %s111 = sadd.s32 %s110, 1
    %s112 = scalar_select %p109, %s110, %s111
    %p115 = pneg %p109
    %p116 = scmp.eq.s32.totalorder %s74, 1
    %p117 = por %p115, %p116
    %p118 = scmp.ne.s32.totalorder %s110, %s113
    %p119 = scmp.eq.s32.totalorder %s74, 0
    %p120 = por %p118, %p119
    %p121 = scmp.ne.s32.totalorder %s110, %s113
    %p122 = scmp.eq.s32.totalorder %s79, 1
    %p123 = por %p121, %p122
    %p124 = scmp.ne.s32.totalorder %s113, %s114
    %p125 = scmp.eq.s32.totalorder %s79, 0
    %p126 = por %p124, %p125
    %p127 = scmp.ne.s32.totalorder %s113, %s114
    %p128 = scmp.eq.s32.totalorder %s80, 1
    %p129 = por %p127, %p128
    %p131 = scmp.ne.s32.totalorder %s114, %s130
    %p132 = scmp.eq.s32.totalorder %s80, 0
    %p133 = por %p131, %p132
    %s134 = ssub.s32 %s74, %s81
    %p135 = scmp.eq.s32.totalorder %s134, 0
    %s137 = sadd.s32 %s136, 1
    %s138 = scalar_select %p135, %s136, %s137
    %p141 = pneg %p135
    %p142 = scmp.eq.s32.totalorder %s74, 1
    %p143 = por %p141, %p142
    %p144 = scmp.ne.s32.totalorder %s136, %s139
    %p145 = scmp.eq.s32.totalorder %s74, 0
    %p146 = por %p144, %p145
    %p147 = scmp.ne.s32.totalorder %s136, %s139
    %p148 = scmp.eq.s32.totalorder %s79, 1
    %p149 = por %p147, %p148
    %p150 = scmp.ne.s32.totalorder %s139, %s140
    %p151 = scmp.eq.s32.totalorder %s79, 0
    %p152 = por %p150, %p151
    %p153 = scmp.ne.s32.totalorder %s139, %s140
    %p154 = scmp.eq.s32.totalorder %s80, 1
    %p155 = por %p153, %p154
    %p157 = scmp.ne.s32.totalorder %s140, %s156
    %p158 = scmp.eq.s32.totalorder %s80, 0
    %p159 = por %p157, %p158
    %s160 = ssub.s32 %s74, %s81
    %p161 = scmp.eq.s32.totalorder %s160, 0
    %s163 = sadd.s32 %s162, 1
    %s164 = scalar_select %p161, %s162, %s163
    %p167 = pneg %p161
    %p168 = scmp.eq.s32.totalorder %s74, 1
    %p169 = por %p167, %p168
    %p170 = scmp.ne.s32.totalorder %s162, %s165
    %p171 = scmp.eq.s32.totalorder %s74, 0
    %p172 = por %p170, %p171
    %p173 = scmp.ne.s32.totalorder %s162, %s165
    %p174 = scmp.eq.s32.totalorder %s79, 1
    %p175 = por %p173, %p174
    %p176 = scmp.ne.s32.totalorder %s165, %s166
    %p177 = scmp.eq.s32.totalorder %s79, 0
    %p178 = por %p176, %p177
    %p179 = scmp.ne.s32.totalorder %s165, %s166
    %p180 = scmp.eq.s32.totalorder %s80, 1
    %p181 = por %p179, %p180
    %p183 = scmp.ne.s32.totalorder %s166, %s182
    %p184 = scmp.eq.s32.totalorder %s80, 0
    %p185 = por %p183, %p184
    %s187 = sadd.s32 %s186, 1
    %p190 = scmp.eq.s32.totalorder %s74, 1
    %p191 = scmp.ne.s32.totalorder %s186, %s188
    %p192 = scmp.eq.s32.totalorder %s74, 0
    %p193 = por %p191, %p192
    %p194 = scmp.ne.s32.totalorder %s186, %s188
    %p195 = scmp.eq.s32.totalorder %s79, 1
    %p196 = por %p194, %p195
    %p197 = scmp.ne.s32.totalorder %s188, %s189
    %p198 = scmp.eq.s32.totalorder %s79, 0
    %p199 = por %p197, %p198
    %p200 = scmp.ne.s32.totalorder %s188, %s189
    %p201 = scmp.eq.s32.totalorder %s80, 1
    %p202 = por %p200, %p201
    %p204 = scmp.ne.s32.totalorder %s189, %s203
    %p205 = scmp.eq.s32.totalorder %s80, 0
    %p206 = por %p204, %p205
    %s208 = sadd.s32 %s207, 1
    %p211 = scmp.eq.s32.totalorder %s74, 1
    %p212 = scmp.ne.s32.totalorder %s207, %s209
    %p213 = scmp.eq.s32.totalorder %s74, 0
    %p214 = por %p212, %p213
    %p215 = scmp.ne.s32.totalorder %s207, %s209
    %p216 = scmp.eq.s32.totalorder %s79, 1
    %p217 = por %p215, %p216
    %p218 = scmp.ne.s32.totalorder %s209, %s210
    %p219 = scmp.eq.s32.totalorder %s79, 0
    %p220 = por %p218, %p219
    %p221 = scmp.ne.s32.totalorder %s209, %s210
    %p222 = scmp.eq.s32.totalorder %s80, 1
    %p223 = por %p221, %p222
    %p225 = scmp.ne.s32.totalorder %s210, %s224
    %p226 = scmp.eq.s32.totalorder %s80, 0
    %p227 = por %p225, %p226
    %s229 = sadd.s32 %s228, 1
    %p232 = scmp.eq.s32.totalorder %s74, 1
    %p233 = scmp.ne.s32.totalorder %s228, %s230
    %p234 = scmp.eq.s32.totalorder %s74, 0
    %p235 = por %p233, %p234
    %p236 = scmp.ne.s32.totalorder %s228, %s230
    %p237 = scmp.eq.s32.totalorder %s79, 1
    %p238 = por %p236, %p237
    %p239 = scmp.ne.s32.totalorder %s230, %s231
    %p240 = scmp.eq.s32.totalorder %s79, 0
    %p241 = por %p239, %p240
    %p242 = scmp.ne.s32.totalorder %s230, %s231
    %p243 = scmp.eq.s32.totalorder %s80, 1
    %p244 = por %p242, %p243
    %p246 = scmp.ne.s32.totalorder %s231, %s245
    %p247 = scmp.eq.s32.totalorder %s80, 0
    %p248 = por %p246, %p247
    %s250 = sadd.s32 %s249, 1
    %p253 = scmp.eq.s32.totalorder %s74, 1
    %p254 = scmp.ne.s32.totalorder %s249, %s251
    %p255 = scmp.eq.s32.totalorder %s74, 0
    %p256 = por %p254, %p255
    %p257 = scmp.ne.s32.totalorder %s249, %s251
    %p258 = scmp.eq.s32.totalorder %s79, 1
    %p259 = por %p257, %p258
    %p260 = scmp.ne.s32.totalorder %s251, %s252
    %p261 = scmp.eq.s32.totalorder %s79, 0
    %p262 = por %p260, %p261
    %p263 = scmp.ne.s32.totalorder %s251, %s252
    %p264 = scmp.eq.s32.totalorder %s80, 1
    %p265 = por %p263, %p264
    %p267 = scmp.ne.s32.totalorder %s252, %s266
    %p268 = scmp.eq.s32.totalorder %s80, 0
    %p269 = por %p267, %p268
    %s271 = sadd.s32 %s270, 1
    %p274 = scmp.eq.s32.totalorder %s74, 1
    %p275 = scmp.ne.s32.totalorder %s270, %s272
    %p276 = scmp.eq.s32.totalorder %s74, 0
    %p277 = por %p275, %p276
    %p278 = scmp.ne.s32.totalorder %s270, %s272
    %p279 = scmp.eq.s32.totalorder %s79, 1
    %p280 = por %p278, %p279
    %p281 = scmp.ne.s32.totalorder %s272, %s273
    %p282 = scmp.eq.s32.totalorder %s79, 0
    %p283 = por %p281, %p282
    %p284 = scmp.ne.s32.totalorder %s272, %s273
    %p285 = scmp.eq.s32.totalorder %s80, 1
    %p286 = por %p284, %p285
    %p288 = scmp.ne.s32.totalorder %s273, %s287
    %p289 = scmp.eq.s32.totalorder %s80, 0
    %p290 = por %p288, %p289
    %s292 = sadd.s32 %s291, 1
    %p295 = scmp.eq.s32.totalorder %s74, 1
    %p296 = scmp.ne.s32.totalorder %s291, %s293
    %p297 = scmp.eq.s32.totalorder %s74, 0
    %p298 = por %p296, %p297
    %p299 = scmp.ne.s32.totalorder %s291, %s293
    %p300 = scmp.eq.s32.totalorder %s79, 1
    %p301 = por %p299, %p300
    %p302 = scmp.ne.s32.totalorder %s293, %s294
    %p303 = scmp.eq.s32.totalorder %s79, 0
    %p304 = por %p302, %p303
    %p305 = scmp.ne.s32.totalorder %s293, %s294
    %p306 = scmp.eq.s32.totalorder %s80, 1
    %p307 = por %p305, %p306
    %p309 = scmp.ne.s32.totalorder %s294, %s308
    %p310 = scmp.eq.s32.totalorder %s80, 0
    %p311 = por %p309, %p310
    %s313 = sadd.s32 %s312, 1
    %p316 = scmp.eq.s32.totalorder %s74, 1
    %p317 = scmp.ne.s32.totalorder %s312, %s314
    %p318 = scmp.eq.s32.totalorder %s74, 0
    %p319 = por %p317, %p318
    %p320 = scmp.ne.s32.totalorder %s312, %s314
    %p321 = scmp.eq.s32.totalorder %s79, 1
    %p322 = por %p320, %p321
    %p323 = scmp.ne.s32.totalorder %s314, %s315
    %p324 = scmp.eq.s32.totalorder %s79, 0
    %p325 = por %p323, %p324
    %p326 = scmp.ne.s32.totalorder %s314, %s315
    %p327 = scmp.eq.s32.totalorder %s80, 1
    %p328 = por %p326, %p327
    %p330 = scmp.ne.s32.totalorder %s315, %s329
    %p331 = scmp.eq.s32.totalorder %s80, 0
    %p332 = por %p330, %p331
    %s334 = sadd.s32 %s333, 1
    %p337 = scmp.eq.s32.totalorder %s74, 1
    %p338 = scmp.ne.s32.totalorder %s333, %s335
    %p339 = scmp.eq.s32.totalorder %s74, 0
    %p340 = por %p338, %p339
    %p341 = scmp.ne.s32.totalorder %s333, %s335
    %p342 = scmp.eq.s32.totalorder %s79, 1
    %p343 = por %p341, %p342
    %p344 = scmp.ne.s32.totalorder %s335, %s336
    %p345 = scmp.eq.s32.totalorder %s79, 0
    %p346 = por %p344, %p345
    %p347 = scmp.ne.s32.totalorder %s335, %s336
    %p348 = scmp.eq.s32.totalorder %s80, 1
    %p349 = por %p347, %p348
    %p351 = scmp.ne.s32.totalorder %s336, %s350
    %p352 = scmp.eq.s32.totalorder %s80, 0
    %p353 = por %p351, %p352
    %s355 = sadd.s32 %s354, 1
    %p358 = scmp.eq.s32.totalorder %s74, 1
    %p359 = scmp.ne.s32.totalorder %s354, %s356
    %p360 = scmp.eq.s32.totalorder %s74, 0
    %p361 = por %p359, %p360
    %p362 = scmp.ne.s32.totalorder %s354, %s356
    %p363 = scmp.eq.s32.totalorder %s79, 1
    %p364 = por %p362, %p363
    %p365 = scmp.ne.s32.totalorder %s356, %s357
    %p366 = scmp.eq.s32.totalorder %s79, 0
    %p367 = por %p365, %p366
    %p368 = scmp.ne.s32.totalorder %s356, %s357
    %p369 = scmp.eq.s32.totalorder %s80, 1
    %p370 = por %p368, %p369
    %p372 = scmp.ne.s32.totalorder %s357, %s371
    %p373 = scmp.eq.s32.totalorder %s80, 0
    %p374 = por %p372, %p373
    %s376 = sadd.s32 %s375, 1
    %p379 = scmp.eq.s32.totalorder %s74, 1
    %p380 = scmp.ne.s32.totalorder %s375, %s377
    %p381 = scmp.eq.s32.totalorder %s74, 0
    %p382 = por %p380, %p381
    %p383 = scmp.ne.s32.totalorder %s375, %s377
    %p384 = scmp.eq.s32.totalorder %s79, 1
    %p385 = por %p383, %p384
    %p386 = scmp.ne.s32.totalorder %s377, %s378
    %p387 = scmp.eq.s32.totalorder %s79, 0
    %p388 = por %p386, %p387
    %p389 = scmp.ne.s32.totalorder %s377, %s378
    %p390 = scmp.eq.s32.totalorder %s80, 1
    %p391 = por %p389, %p390
    %p393 = scmp.ne.s32.totalorder %s378, %s392
    %p394 = scmp.eq.s32.totalorder %s80, 0
    %p395 = por %p393, %p394
    %s397 = sadd.s32 %s396, 1
    %p400 = scmp.eq.s32.totalorder %s74, 1
    %p401 = scmp.ne.s32.totalorder %s396, %s398
    %p402 = scmp.eq.s32.totalorder %s74, 0
    %p403 = por %p401, %p402
    %p404 = scmp.ne.s32.totalorder %s396, %s398
    %p405 = scmp.eq.s32.totalorder %s79, 1
    %p406 = por %p404, %p405
    %p407 = scmp.ne.s32.totalorder %s398, %s399
    %p408 = scmp.eq.s32.totalorder %s79, 0
    %p409 = por %p407, %p408
    %p410 = scmp.ne.s32.totalorder %s398, %s399
    %p411 = scmp.eq.s32.totalorder %s80, 1
    %p412 = por %p410, %p411
    %p414 = scmp.ne.s32.totalorder %s399, %s413
    %p415 = scmp.eq.s32.totalorder %s80, 0
    %p416 = por %p414, %p415
    %s418 = sadd.s32 %s417, 1
    %p421 = scmp.eq.s32.totalorder %s74, 1
    %p422 = scmp.ne.s32.totalorder %s417, %s419
    %p423 = scmp.eq.s32.totalorder %s74, 0
    %p424 = por %p422, %p423
    %p425 = scmp.ne.s32.totalorder %s417, %s419
    %p426 = scmp.eq.s32.totalorder %s79, 1
    %p427 = por %p425, %p426
    %p428 = scmp.ne.s32.totalorder %s419, %s420
    %p429 = scmp.eq.s32.totalorder %s79, 0
    %p430 = por %p428, %p429
    %p431 = scmp.ne.s32.totalorder %s419, %s420
    %p432 = scmp.eq.s32.totalorder %s80, 1
    %p433 = por %p431, %p432
    %p435 = scmp.ne.s32.totalorder %s420, %s434
    %p436 = scmp.eq.s32.totalorder %s80, 0
    %p437 = por %p435, %p436
    %s439 = sadd.s32 %s438, 1
    %p442 = scmp.eq.s32.totalorder %s74, 1
    %p443 = scmp.ne.s32.totalorder %s438, %s440
    %p444 = scmp.eq.s32.totalorder %s74, 0
    %p445 = por %p443, %p444
    %p446 = scmp.ne.s32.totalorder %s438, %s440
    %p447 = scmp.eq.s32.totalorder %s79, 1
    %p448 = por %p446, %p447
    %p449 = scmp.ne.s32.totalorder %s440, %s441
    %p450 = scmp.eq.s32.totalorder %s79, 0
    %p451 = por %p449, %p450
    %p452 = scmp.ne.s32.totalorder %s440, %s441
    %p453 = scmp.eq.s32.totalorder %s80, 1
    %p454 = por %p452, %p453
    %p456 = scmp.ne.s32.totalorder %s441, %s455
    %p457 = scmp.eq.s32.totalorder %s80, 0
    %p458 = por %p456, %p457
    %s460 = sadd.s32 %s459, 1
    %p463 = scmp.eq.s32.totalorder %s74, 1
    %p464 = scmp.ne.s32.totalorder %s459, %s461
    %p465 = scmp.eq.s32.totalorder %s74, 0
    %p466 = por %p464, %p465
    %p467 = scmp.ne.s32.totalorder %s459, %s461
    %p468 = scmp.eq.s32.totalorder %s79, 1
    %p469 = por %p467, %p468
    %p470 = scmp.ne.s32.totalorder %s461, %s462
    %p471 = scmp.eq.s32.totalorder %s79, 0
    %p472 = por %p470, %p471
    %p473 = scmp.ne.s32.totalorder %s461, %s462
    %p474 = scmp.eq.s32.totalorder %s80, 1
    %p475 = por %p473, %p474
    %p477 = scmp.ne.s32.totalorder %s462, %s476
    %p478 = scmp.eq.s32.totalorder %s80, 0
    %p479 = por %p477, %p478
    %s481 = sadd.s32 %s480, 1
    %p484 = scmp.eq.s32.totalorder %s74, 1
    %p485 = scmp.ne.s32.totalorder %s480, %s482
    %p486 = scmp.eq.s32.totalorder %s74, 0
    %p487 = por %p485, %p486
    %p488 = scmp.ne.s32.totalorder %s480, %s482
    %p489 = scmp.eq.s32.totalorder %s79, 1
    %p490 = por %p488, %p489
    %p491 = scmp.ne.s32.totalorder %s482, %s483
    %p492 = scmp.eq.s32.totalorder %s79, 0
    %p493 = por %p491, %p492
    %p494 = scmp.ne.s32.totalorder %s482, %s483
    %p495 = scmp.eq.s32.totalorder %s80, 1
    %p496 = por %p494, %p495
    %p498 = scmp.ne.s32.totalorder %s483, %s497
    %p499 = scmp.eq.s32.totalorder %s80, 0
    %p500 = por %p498, %p499
    %s502 = sadd.s32 %s501, 1
    %p505 = scmp.eq.s32.totalorder %s74, 1
    %p506 = scmp.ne.s32.totalorder %s501, %s503
    %p507 = scmp.eq.s32.totalorder %s74, 0
    %p508 = por %p506, %p507
    %p509 = scmp.ne.s32.totalorder %s501, %s503
    %p510 = scmp.eq.s32.totalorder %s79, 1
    %p511 = por %p509, %p510
    %p512 = scmp.ne.s32.totalorder %s503, %s504
    %p513 = scmp.eq.s32.totalorder %s79, 0
    %p514 = por %p512, %p513
    %p515 = scmp.ne.s32.totalorder %s503, %s504
    %p516 = scmp.eq.s32.totalorder %s80, 1
    %p517 = por %p515, %p516
    %p519 = scmp.ne.s32.totalorder %s504, %s518
    %p520 = scmp.eq.s32.totalorder %s80, 0
    %p521 = por %p519, %p520
    %s523 = sadd.s32 %s522, 1
    %p526 = scmp.eq.s32.totalorder %s74, 1
    %p527 = scmp.ne.s32.totalorder %s522, %s524
    %p528 = scmp.eq.s32.totalorder %s74, 0
    %p529 = por %p527, %p528
    %p530 = scmp.ne.s32.totalorder %s522, %s524
    %p531 = scmp.eq.s32.totalorder %s79, 1
    %p532 = por %p530, %p531
    %p533 = scmp.ne.s32.totalorder %s524, %s525
    %p534 = scmp.eq.s32.totalorder %s79, 0
    %p535 = por %p533, %p534
    %p536 = scmp.ne.s32.totalorder %s524, %s525
    %p537 = scmp.eq.s32.totalorder %s80, 1
    %p538 = por %p536, %p537
    %p540 = scmp.ne.s32.totalorder %s525, %s539
    %p541 = scmp.eq.s32.totalorder %s80, 0
    %p542 = por %p540, %p541
    %s544 = sadd.s32 %s543, 1
    %p547 = scmp.eq.s32.totalorder %s74, 1
    %p548 = scmp.ne.s32.totalorder %s543, %s545
    %p549 = scmp.eq.s32.totalorder %s74, 0
    %p550 = por %p548, %p549
    %p551 = scmp.ne.s32.totalorder %s543, %s545
    %p552 = scmp.eq.s32.totalorder %s79, 1
    %p553 = por %p551, %p552
    %p554 = scmp.ne.s32.totalorder %s545, %s546
    %p555 = scmp.eq.s32.totalorder %s79, 0
    %p556 = por %p554, %p555
    %p557 = scmp.ne.s32.totalorder %s545, %s546
    %p558 = scmp.eq.s32.totalorder %s80, 1
    %p559 = por %p557, %p558
    %p561 = scmp.ne.s32.totalorder %s546, %s560
    %p562 = scmp.eq.s32.totalorder %s80, 0
    %p563 = por %p561, %p562
    %s565 = sadd.s32 %s564, 1
    %p568 = scmp.eq.s32.totalorder %s74, 1
    %p569 = scmp.ne.s32.totalorder %s564, %s566
    %p570 = scmp.eq.s32.totalorder %s74, 0
    %p571 = por %p569, %p570
    %p572 = scmp.ne.s32.totalorder %s564, %s566
    %p573 = scmp.eq.s32.totalorder %s79, 1
    %p574 = por %p572, %p573
    %p575 = scmp.ne.s32.totalorder %s566, %s567
    %p576 = scmp.eq.s32.totalorder %s79, 0
    %p577 = por %p575, %p576
    %p578 = scmp.ne.s32.totalorder %s566, %s567
    %p579 = scmp.eq.s32.totalorder %s80, 1
    %p580 = por %p578, %p579
    %p582 = scmp.ne.s32.totalorder %s567, %s581
    %p583 = scmp.eq.s32.totalorder %s80, 0
    %p584 = por %p582, %p583
    %s586 = sadd.s32 %s585, 1
    %p589 = scmp.eq.s32.totalorder %s74, 1
    %p590 = scmp.ne.s32.totalorder %s585, %s587
    %p591 = scmp.eq.s32.totalorder %s74, 0
    %p592 = por %p590, %p591
    %p593 = scmp.ne.s32.totalorder %s585, %s587
    %p594 = scmp.eq.s32.totalorder %s79, 1
    %p595 = por %p593, %p594
    %p596 = scmp.ne.s32.totalorder %s587, %s588
    %p597 = scmp.eq.s32.totalorder %s79, 0
    %p598 = por %p596, %p597
    %p599 = scmp.ne.s32.totalorder %s587, %s588
    %p600 = scmp.eq.s32.totalorder %s80, 1
    %p601 = por %p599, %p600
    %p603 = scmp.ne.s32.totalorder %s588, %s602
    %p604 = scmp.eq.s32.totalorder %s80, 0
    %p605 = por %p603, %p604
    %s607 = sadd.s32 %s606, 1
    %p610 = scmp.eq.s32.totalorder %s74, 1
    %p611 = scmp.ne.s32.totalorder %s606, %s608
    %p612 = scmp.eq.s32.totalorder %s74, 0
    %p613 = por %p611, %p612
    %p614 = scmp.ne.s32.totalorder %s606, %s608
    %p615 = scmp.eq.s32.totalorder %s79, 1
    %p616 = por %p614, %p615
    %p617 = scmp.ne.s32.totalorder %s608, %s609
    %p618 = scmp.eq.s32.totalorder %s79, 0
    %p619 = por %p617, %p618
    %p620 = scmp.ne.s32.totalorder %s608, %s609
    %p621 = scmp.eq.s32.totalorder %s80, 1
    %p622 = por %p620, %p621
    %p624 = scmp.ne.s32.totalorder %s609, %s623
    %p625 = scmp.eq.s32.totalorder %s80, 0
    %p626 = por %p624, %p625
    %s628 = sadd.s32 %s627, 1
    %p631 = scmp.eq.s32.totalorder %s74, 1
    %p632 = scmp.ne.s32.totalorder %s627, %s629
    %p633 = scmp.eq.s32.totalorder %s74, 0
    %p634 = por %p632, %p633
    %p635 = scmp.ne.s32.totalorder %s627, %s629
    %p636 = scmp.eq.s32.totalorder %s79, 1
    %p637 = por %p635, %p636
    %p638 = scmp.ne.s32.totalorder %s629, %s630
    %p639 = scmp.eq.s32.totalorder %s79, 0
    %p640 = por %p638, %p639
    %p641 = scmp.ne.s32.totalorder %s629, %s630
    %p642 = scmp.eq.s32.totalorder %s80, 1
    %p643 = por %p641, %p642
    %p645 = scmp.ne.s32.totalorder %s630, %s644
    %p646 = scmp.eq.s32.totalorder %s80, 0
    %p647 = por %p645, %p646
    %s649 = sadd.s32 %s648, 1
    %p652 = scmp.eq.s32.totalorder %s74, 1
    %p653 = scmp.ne.s32.totalorder %s648, %s650
    %p654 = scmp.eq.s32.totalorder %s74, 0
    %p655 = por %p653, %p654
    %p656 = scmp.ne.s32.totalorder %s648, %s650
    %p657 = scmp.eq.s32.totalorder %s79, 1
    %p658 = por %p656, %p657
    %p659 = scmp.ne.s32.totalorder %s650, %s651
    %p660 = scmp.eq.s32.totalorder %s79, 0
    %p661 = por %p659, %p660
    %p662 = scmp.ne.s32.totalorder %s650, %s651
    %p663 = scmp.eq.s32.totalorder %s80, 1
    %p664 = por %p662, %p663
    %p666 = scmp.ne.s32.totalorder %s651, %s665
    %p667 = scmp.eq.s32.totalorder %s80, 0
    %p668 = por %p666, %p667
    %s670 = sadd.s32 %s669, 1
    %p673 = scmp.eq.s32.totalorder %s74, 1
    %p674 = scmp.ne.s32.totalorder %s669, %s671
    %p675 = scmp.eq.s32.totalorder %s74, 0
    %p676 = por %p674, %p675
    %p677 = scmp.ne.s32.totalorder %s669, %s671
    %p678 = scmp.eq.s32.totalorder %s79, 1
    %p679 = por %p677, %p678
    %p680 = scmp.ne.s32.totalorder %s671, %s672
    %p681 = scmp.eq.s32.totalorder %s79, 0
    %p682 = por %p680, %p681
    %p683 = scmp.ne.s32.totalorder %s671, %s672
    %p684 = scmp.eq.s32.totalorder %s80, 1
    %p685 = por %p683, %p684
    %p687 = scmp.ne.s32.totalorder %s672, %s686
    %p688 = scmp.eq.s32.totalorder %s80, 0
    %p689 = por %p687, %p688
    %s691 = sadd.s32 %s690, 1
    %p694 = scmp.eq.s32.totalorder %s74, 1
    %p695 = scmp.ne.s32.totalorder %s690, %s692
    %p696 = scmp.eq.s32.totalorder %s74, 0
    %p697 = por %p695, %p696
    %p698 = scmp.ne.s32.totalorder %s690, %s692
    %p699 = scmp.eq.s32.totalorder %s79, 1
    %p700 = por %p698, %p699
    %p701 = scmp.ne.s32.totalorder %s692, %s693
    %p702 = scmp.eq.s32.totalorder %s79, 0
    %p703 = por %p701, %p702
    %p704 = scmp.ne.s32.totalorder %s692, %s693
    %p705 = scmp.eq.s32.totalorder %s80, 1
    %p706 = por %p704, %p705
    %p708 = scmp.ne.s32.totalorder %s693, %s707
    %p709 = scmp.eq.s32.totalorder %s80, 0
    %p710 = por %p708, %p709
    %s712 = sadd.s32 %s711, 1
    %p715 = scmp.eq.s32.totalorder %s74, 1
    %p716 = scmp.ne.s32.totalorder %s711, %s713
    %p717 = scmp.eq.s32.totalorder %s74, 0
    %p718 = por %p716, %p717
    %p719 = scmp.ne.s32.totalorder %s711, %s713
    %p720 = scmp.eq.s32.totalorder %s79, 1
    %p721 = por %p719, %p720
    %p722 = scmp.ne.s32.totalorder %s713, %s714
    %p723 = scmp.eq.s32.totalorder %s79, 0
    %p724 = por %p722, %p723
    %p725 = scmp.ne.s32.totalorder %s713, %s714
    %p726 = scmp.eq.s32.totalorder %s80, 1
    %p727 = por %p725, %p726
    %p729 = scmp.ne.s32.totalorder %s714, %s728
    %p730 = scmp.eq.s32.totalorder %s80, 0
    %p731 = por %p729, %p730
    %s732 = ssub.s32 %s74, %s81
    %p733 = scmp.eq.s32.totalorder %s732, 0
    %s735 = sadd.s32 %s734, 1
    %s736 = scalar_select %p733, %s734, %s735
    %p739 = pneg %p733
    %p740 = scmp.eq.s32.totalorder %s74, 1
    %p741 = por %p739, %p740
    %p742 = scmp.ne.s32.totalorder %s734, %s737
    %p743 = scmp.eq.s32.totalorder %s74, 0
    %p744 = por %p742, %p743
    %p745 = scmp.ne.s32.totalorder %s734, %s737
    %p746 = scmp.eq.s32.totalorder %s79, 1
    %p747 = por %p745, %p746
    %p748 = scmp.ne.s32.totalorder %s737, %s738
    %p749 = scmp.eq.s32.totalorder %s79, 0
    %p750 = por %p748, %p749
    %p751 = scmp.ne.s32.totalorder %s737, %s738
    %p752 = scmp.eq.s32.totalorder %s80, 1
    %p753 = por %p751, %p752
    %p755 = scmp.ne.s32.totalorder %s738, %s754
    %p756 = scmp.eq.s32.totalorder %s80, 0
    %p757 = por %p755, %p756
    %s758 = ssub.s32 %s74, %s81
    %p759 = scmp.eq.s32.totalorder %s758, 0
    %s761 = sadd.s32 %s760, 1
    %s762 = scalar_select %p759, %s760, %s761
    %p765 = pneg %p759
    %p766 = scmp.eq.s32.totalorder %s74, 1
    %p767 = por %p765, %p766
    %p768 = scmp.ne.s32.totalorder %s760, %s763
    %p769 = scmp.eq.s32.totalorder %s74, 0
    %p770 = por %p768, %p769
    %p771 = scmp.ne.s32.totalorder %s760, %s763
    %p772 = scmp.eq.s32.totalorder %s79, 1
    %p773 = por %p771, %p772
    %p774 = scmp.ne.s32.totalorder %s763, %s764
    %p775 = scmp.eq.s32.totalorder %s79, 0
    %p776 = por %p774, %p775
    %p777 = scmp.ne.s32.totalorder %s763, %s764
    %p778 = scmp.eq.s32.totalorder %s80, 1
    %p779 = por %p777, %p778
    %p781 = scmp.ne.s32.totalorder %s764, %s780
    %p782 = scmp.eq.s32.totalorder %s80, 0
    %p783 = por %p781, %p782
    %s784 = ssub.s32 %s74, %s81
    %p785 = scmp.eq.s32.totalorder %s784, 0
    %s787 = sadd.s32 %s786, 1
    %s788 = scalar_select %p785, %s786, %s787
    %p791 = pneg %p785
    %p792 = scmp.eq.s32.totalorder %s74, 1
    %p793 = por %p791, %p792
    %p794 = scmp.ne.s32.totalorder %s786, %s789
    %p795 = scmp.eq.s32.totalorder %s74, 0
    %p796 = por %p794, %p795
    %p797 = scmp.ne.s32.totalorder %s786, %s789
    %p798 = scmp.eq.s32.totalorder %s79, 1
    %p799 = por %p797, %p798
    %p800 = scmp.ne.s32.totalorder %s789, %s790
    %p801 = scmp.eq.s32.totalorder %s79, 0
    %p802 = por %p800, %p801
    %p803 = scmp.ne.s32.totalorder %s789, %s790
    %p804 = scmp.eq.s32.totalorder %s80, 1
    %p805 = por %p803, %p804
    %p807 = scmp.ne.s32.totalorder %s790, %s806
    %p808 = scmp.eq.s32.totalorder %s80, 0
    %p809 = por %p807, %p808
    %s810 = ssub.s32 %s74, %s81
    %p811 = scmp.eq.s32.totalorder %s810, 0
    %s813 = sadd.s32 %s812, 1
    %s814 = scalar_select %p811, %s812, %s813
    %p817 = pneg %p811
    %p818 = scmp.eq.s32.totalorder %s74, 1
    %p819 = por %p817, %p818
    %p820 = scmp.ne.s32.totalorder %s812, %s815
    %p821 = scmp.eq.s32.totalorder %s74, 0
    %p822 = por %p820, %p821
    %p823 = scmp.ne.s32.totalorder %s812, %s815
    %p824 = scmp.eq.s32.totalorder %s79, 1
    %p825 = por %p823, %p824
    %p826 = scmp.ne.s32.totalorder %s815, %s816
    %p827 = scmp.eq.s32.totalorder %s79, 0
    %p828 = por %p826, %p827
    %p829 = scmp.ne.s32.totalorder %s815, %s816
    %p830 = scmp.eq.s32.totalorder %s80, 1
    %p831 = por %p829, %p830
    %p833 = scmp.ne.s32.totalorder %s816, %s832
    %p834 = scmp.eq.s32.totalorder %s80, 0
    %p835 = por %p833, %p834
    %p836 = scmp.le.s32.totalorder 1, %s74
    %p837 = scmp.lt.s32.totalorder %s74, 3
    %p838 = pnand %p836, %p837
    %p839 = pneg %p838
    // Predicated region
    $region9: #{light_fpn_forward.1} parent=5 // pred_check
      _
    $region10: #{light_fpn_forward.1} parent=5 // pred_check_branch
      %841 = sbr.rel (%p838) target = $region12
    $region11: #{light_fpn_forward.1} parent=5 // pred_region
      %s842 = ssub.s32 %s74, 1
      // Predicated region
      $region13: #{light_fpn_forward.1} parent=11 // pred_check
        %p843 = pneg %p199
      $region14: #{light_fpn_forward.1} parent=11 // pred_check_branch
        %845 = sbr.rel (%p843) target = $region16
      $region15: #{light_fpn_forward.1} parent=11 // pred_region
        _
      $region16: #{light_fpn_forward.1} parent=11 // pred_fallthru
        _
      // Predicated region
      $region17: #{light_fpn_forward.1} parent=11 // pred_check
        %p846 = pneg %p220
      $region18: #{light_fpn_forward.1} parent=11 // pred_check_branch
        %848 = sbr.rel (%p846) target = $region20
      $region19: #{light_fpn_forward.1} parent=11 // pred_region
        _
      $region20: #{light_fpn_forward.1} parent=11 // pred_fallthru
        _
      // Predicated region
      $region21: #{light_fpn_forward.1} parent=11 // pred_check
        %p849 = pneg %p241
      $region22: #{light_fpn_forward.1} parent=11 // pred_check_branch
        %851 = sbr.rel (%p849) target = $region24
      $region23: #{light_fpn_forward.1} parent=11 // pred_region
        _
      $region24: #{light_fpn_forward.1} parent=11 // pred_fallthru
        _
      // Predicated region
      $region25: #{light_fpn_forward.1} parent=11 // pred_check
        %p852 = pneg %p262
      $region26: #{light_fpn_forward.1} parent=11 // pred_check_branch
        %854 = sbr.rel (%p852) target = $region28
      $region27: #{light_fpn_forward.1} parent=11 // pred_region
        _
      $region28: #{light_fpn_forward.1} parent=11 // pred_fallthru
        _
      // Predicated region
      $region29: #{light_fpn_forward.1} parent=11 // pred_check
        %p855 = pneg %p283
      $region30: #{light_fpn_forward.1} parent=11 // pred_check_branch
        %857 = sbr.rel (%p855) target = $region32
      $region31: #{light_fpn_forward.1} parent=11 // pred_region
        _
      $region32: #{light_fpn_forward.1} parent=11 // pred_fallthru
        _
      // Predicated region
      $region33: #{light_fpn_forward.1} parent=11 // pred_check
        %p858 = pneg %p304
      $region34: #{light_fpn_forward.1} parent=11 // pred_check_branch
        %860 = sbr.rel (%p858) target = $region36
      $region35: #{light_fpn_forward.1} parent=11 // pred_region
        _
      $region36: #{light_fpn_forward.1} parent=11 // pred_fallthru
        _
      // Predicated region
      $region37: #{light_fpn_forward.1} parent=11 // pred_check
        %p861 = pneg %p325
      $region38: #{light_fpn_forward.1} parent=11 // pred_check_branch
        %863 = sbr.rel (%p861) target = $region40
      $region39: #{light_fpn_forward.1} parent=11 // pred_region
        _
      $region40: #{light_fpn_forward.1} parent=11 // pred_fallthru
        _
      // Predicated region
      $region41: #{light_fpn_forward.1} parent=11 // pred_check
        %p864 = pneg %p346
      $region42: #{light_fpn_forward.1} parent=11 // pred_check_branch
        %866 = sbr.rel (%p864) target = $region44
      $region43: #{light_fpn_forward.1} parent=11 // pred_region
        _
      $region44: #{light_fpn_forward.1} parent=11 // pred_fallthru
        _
      // Predicated region
      $region45: #{light_fpn_forward.1} parent=11 // pred_check
        %p867 = pneg %p367
      $region46: #{light_fpn_forward.1} parent=11 // pred_check_branch
        %869 = sbr.rel (%p867) target = $region48
      $region47: #{light_fpn_forward.1} parent=11 // pred_region
        _
      $region48: #{light_fpn_forward.1} parent=11 // pred_fallthru
        _
      // Predicated region
      $region49: #{light_fpn_forward.1} parent=11 // pred_check
        %p870 = pneg %p388
      $region50: #{light_fpn_forward.1} parent=11 // pred_check_branch
        %872 = sbr.rel (%p870) target = $region52
      $region51: #{light_fpn_forward.1} parent=11 // pred_region
        _
      $region52: #{light_fpn_forward.1} parent=11 // pred_fallthru
        _
      // Predicated region
      $region53: #{light_fpn_forward.1} parent=11 // pred_check
        %p873 = pneg %p409
      $region54: #{light_fpn_forward.1} parent=11 // pred_check_branch
        %875 = sbr.rel (%p873) target = $region56
      $region55: #{light_fpn_forward.1} parent=11 // pred_region
        _
      $region56: #{light_fpn_forward.1} parent=11 // pred_fallthru
        _
      // Predicated region
      $region57: #{light_fpn_forward.1} parent=11 // pred_check
        %p876 = pneg %p430
      $region58: #{light_fpn_forward.1} parent=11 // pred_check_branch
        %878 = sbr.rel (%p876) target = $region60
      $region59: #{light_fpn_forward.1} parent=11 // pred_region
        _
      $region60: #{light_fpn_forward.1} parent=11 // pred_fallthru
        _
      // Predicated region
      $region61: #{light_fpn_forward.1} parent=11 // pred_check
        %p879 = pneg %p451
      $region62: #{light_fpn_forward.1} parent=11 // pred_check_branch
        %881 = sbr.rel (%p879) target = $region64
      $region63: #{light_fpn_forward.1} parent=11 // pred_region
        _
      $region64: #{light_fpn_forward.1} parent=11 // pred_fallthru
        _
      // Predicated region
      $region65: #{light_fpn_forward.1} parent=11 // pred_check
        %p882 = pneg %p472
      $region66: #{light_fpn_forward.1} parent=11 // pred_check_branch
        %884 = sbr.rel (%p882) target = $region68
      $region67: #{light_fpn_forward.1} parent=11 // pred_region
        _
      $region68: #{light_fpn_forward.1} parent=11 // pred_fallthru
        _
      // Predicated region
      $region69: #{light_fpn_forward.1} parent=11 // pred_check
        %p885 = pneg %p493
      $region70: #{light_fpn_forward.1} parent=11 // pred_check_branch
        %887 = sbr.rel (%p885) target = $region72
      $region71: #{light_fpn_forward.1} parent=11 // pred_region
        _
      $region72: #{light_fpn_forward.1} parent=11 // pred_fallthru
        _
      // Predicated region
      $region73: #{light_fpn_forward.1} parent=11 // pred_check
        %p888 = pneg %p514
      $region74: #{light_fpn_forward.1} parent=11 // pred_check_branch
        %890 = sbr.rel (%p888) target = $region76
      $region75: #{light_fpn_forward.1} parent=11 // pred_region
        _
      $region76: #{light_fpn_forward.1} parent=11 // pred_fallthru
        _
      // Predicated region
      $region77: #{light_fpn_forward.1} parent=11 // pred_check
        %p891 = pneg %p535
      $region78: #{light_fpn_forward.1} parent=11 // pred_check_branch
        %893 = sbr.rel (%p891) target = $region80
      $region79: #{light_fpn_forward.1} parent=11 // pred_region
        _
      $region80: #{light_fpn_forward.1} parent=11 // pred_fallthru
        _
      // Predicated region
      $region81: #{light_fpn_forward.1} parent=11 // pred_check
        %p894 = pneg %p556
      $region82: #{light_fpn_forward.1} parent=11 // pred_check_branch
        %896 = sbr.rel (%p894) target = $region84
      $region83: #{light_fpn_forward.1} parent=11 // pred_region
        _
      $region84: #{light_fpn_forward.1} parent=11 // pred_fallthru
        _
      // Predicated region
      $region85: #{light_fpn_forward.1} parent=11 // pred_check
        %p897 = pneg %p577
      $region86: #{light_fpn_forward.1} parent=11 // pred_check_branch
        %899 = sbr.rel (%p897) target = $region88
      $region87: #{light_fpn_forward.1} parent=11 // pred_region
        _
      $region88: #{light_fpn_forward.1} parent=11 // pred_fallthru
        _
      // Predicated region
      $region89: #{light_fpn_forward.1} parent=11 // pred_check
        %p900 = pneg %p598
      $region90: #{light_fpn_forward.1} parent=11 // pred_check_branch
        %902 = sbr.rel (%p900) target = $region92
      $region91: #{light_fpn_forward.1} parent=11 // pred_region
        _
      $region92: #{light_fpn_forward.1} parent=11 // pred_fallthru
        _
      // Predicated region
      $region93: #{light_fpn_forward.1} parent=11 // pred_check
        %p903 = pneg %p619
      $region94: #{light_fpn_forward.1} parent=11 // pred_check_branch
        %905 = sbr.rel (%p903) target = $region96
      $region95: #{light_fpn_forward.1} parent=11 // pred_region
        _
      $region96: #{light_fpn_forward.1} parent=11 // pred_fallthru
        _
      // Predicated region
      $region97: #{light_fpn_forward.1} parent=11 // pred_check
        %p906 = pneg %p640
      $region98: #{light_fpn_forward.1} parent=11 // pred_check_branch
        %908 = sbr.rel (%p906) target = $region100
      $region99: #{light_fpn_forward.1} parent=11 // pred_region
        _
      $region100: #{light_fpn_forward.1} parent=11 // pred_fallthru
        _
      // Predicated region
      $region101: #{light_fpn_forward.1} parent=11 // pred_check
        %p909 = pneg %p661
      $region102: #{light_fpn_forward.1} parent=11 // pred_check_branch
        %911 = sbr.rel (%p909) target = $region104
      $region103: #{light_fpn_forward.1} parent=11 // pred_region
        _
      $region104: #{light_fpn_forward.1} parent=11 // pred_fallthru
        _
      // Predicated region
      $region105: #{light_fpn_forward.1} parent=11 // pred_check
        %p912 = pneg %p682
      $region106: #{light_fpn_forward.1} parent=11 // pred_check_branch
        %914 = sbr.rel (%p912) target = $region108
      $region107: #{light_fpn_forward.1} parent=11 // pred_region
        _
      $region108: #{light_fpn_forward.1} parent=11 // pred_fallthru
        _
      // Predicated region
      $region109: #{light_fpn_forward.1} parent=11 // pred_check
        %p915 = pneg %p703
      $region110: #{light_fpn_forward.1} parent=11 // pred_check_branch
        %917 = sbr.rel (%p915) target = $region112
      $region111: #{light_fpn_forward.1} parent=11 // pred_region
        _
      $region112: #{light_fpn_forward.1} parent=11 // pred_fallthru
        _
      // Predicated region
      $region113: #{light_fpn_forward.1} parent=11 // pred_check
        %p918 = pneg %p724
      $region114: #{light_fpn_forward.1} parent=11 // pred_check_branch
        %920 = sbr.rel (%p918) target = $region116
      $region115: #{light_fpn_forward.1} parent=11 // pred_region
        _
      $region116: #{light_fpn_forward.1} parent=11 // pred_fallthru
        _
    $region12: #{light_fpn_forward.1} parent=5 // pred_fallthru
      _
    %p921 = scmp.lt.s32.totalorder %s74, 2
    // Predicated region
    $region117: #{light_fpn_forward.1} parent=5 // pred_check
      %p922 = pneg %p921
    $region118: #{light_fpn_forward.1} parent=5 // pred_check_branch
      %924 = sbr.rel (%p922) target = $region120
    $region119: #{light_fpn_forward.1} parent=5 // pred_region
      // Predicated region
      $region121: #{light_fpn_forward.1} parent=119 // pred_check
        %p925 = pneg %p94
      $region122: #{light_fpn_forward.1} parent=119 // pred_check_branch
        %927 = sbr.rel (%p925) target = $region124
      $region123: #{light_fpn_forward.1} parent=119 // pred_region
        %p928 = scmp.lt.s32.totalorder %s74, 1
        %s929 = scalar_select %p928, %s74, 1
        %s930 = smul.addr %s929, 8
        %s931 = smul.addr %s930, 8
        %s932 = scalar_lea.vmem %s1, %s931
      $region124: #{light_fpn_forward.1} parent=119 // pred_fallthru
        _
      // Predicated region
      $region125: #{light_fpn_forward.1} parent=119 // pred_check
        %p933 = pneg %p120
      $region126: #{light_fpn_forward.1} parent=119 // pred_check_branch
        %935 = sbr.rel (%p933) target = $region128
      $region127: #{light_fpn_forward.1} parent=119 // pred_region
        %p936 = scmp.lt.s32.totalorder %s74, 1
        %s937 = scalar_select %p936, %s74, 1
        %s938 = smul.addr %s937, 4
        %s939 = smul.addr %s938, 8
        %s940 = scalar_lea.vmem %s3, %s939
      $region128: #{light_fpn_forward.1} parent=119 // pred_fallthru
        _
      // Predicated region
      $region129: #{light_fpn_forward.1} parent=119 // pred_check
        %p941 = pneg %p146
      $region130: #{light_fpn_forward.1} parent=119 // pred_check_branch
        %943 = sbr.rel (%p941) target = $region132
      $region131: #{light_fpn_forward.1} parent=119 // pred_region
        %p944 = scmp.lt.s32.totalorder %s74, 1
        %s945 = scalar_select %p944, %s74, 1
        %s946 = smul.addr %s945, 3
        %s947 = smul.addr %s946, 8
        %s948 = scalar_lea.vmem %s5, %s947
      $region132: #{light_fpn_forward.1} parent=119 // pred_fallthru
        _
      // Predicated region
      $region133: #{light_fpn_forward.1} parent=119 // pred_check
        %p949 = pneg %p172
      $region134: #{light_fpn_forward.1} parent=119 // pred_check_branch
        %951 = sbr.rel (%p949) target = $region136
      $region135: #{light_fpn_forward.1} parent=119 // pred_region
        %p952 = scmp.lt.s32.totalorder %s74, 1
        %s953 = scalar_select %p952, %s74, 1
        %s954 = smul.addr %s953, 4
        %s955 = smul.addr %s954, 8
        %s956 = scalar_lea.vmem %s7, %s955
      $region136: #{light_fpn_forward.1} parent=119 // pred_fallthru
        _
    $region120: #{light_fpn_forward.1} parent=5 // pred_fallthru
      _
    %p957 = scmp.le.s32.totalorder 1, %s74
    %p958 = scmp.lt.s32.totalorder %s74, 3
    %p959 = pnand %p957, %p958
    %p960 = pneg %p959
    // Predicated region
    $region137: #{light_fpn_forward.1} parent=5 // pred_check
      _
    $region138: #{light_fpn_forward.1} parent=5 // pred_check_branch
      %962 = sbr.rel (%p959) target = $region140
    $region139: #{light_fpn_forward.1} parent=5 // pred_region
      %s963 = ssub.s32 %s74, 1
      %p964 = scmp.lt.s32.totalorder %s79, 1
      %s965 = scalar_select %p964, %s79, 1
      %s966 = smul.addr %s965, 8
      %s967 = smul.addr %s966, 8
      %s968 = scalar_lea.vmem %s1, %s967
      %p969 = pneg %p100
      %p970 = pneg %p97
      %p971 = scmp.lt.s32.totalorder %s79, 1
      %s972 = scalar_select %p971, %s79, 1
      %s973 = smul.addr %s972, 4
      %s974 = smul.addr %s973, 8
      %s975 = scalar_lea.vmem %s3, %s974
      %p976 = pneg %p126
      %p977 = pneg %p123
      %p978 = scmp.lt.s32.totalorder %s79, 1
      %s979 = scalar_select %p978, %s79, 1
      %s980 = smul.addr %s979, 3
      %s981 = smul.addr %s980, 8
      %s982 = scalar_lea.vmem %s5, %s981
      %p983 = pneg %p152
      %p984 = pneg %p149
      %p985 = scmp.lt.s32.totalorder %s79, 1
      %s986 = scalar_select %p985, %s79, 1
      %s987 = smul.addr %s986, 4
      %s988 = smul.addr %s987, 8
      %s989 = scalar_lea.vmem %s7, %s988
      %p990 = pneg %p178
      %p991 = pneg %p175
      %p992 = pneg %p199
      %p993 = pneg %p196
      %p994 = pneg %p220
      %p995 = pneg %p217
      %p996 = pneg %p241
      %p997 = pneg %p238
      %p998 = pneg %p262
      %p999 = pneg %p259
      %p1000 = pneg %p283
      %p1001 = pneg %p280
      %p1002 = pneg %p304
      %p1003 = pneg %p301
      %p1004 = pneg %p325
      %p1005 = pneg %p322
      %p1006 = pneg %p346
      %p1007 = pneg %p343
      %p1008 = pneg %p367
      %p1009 = pneg %p364
      %p1010 = pneg %p388
      %p1011 = pneg %p385
      %p1012 = pneg %p409
      %p1013 = pneg %p406
      %p1014 = pneg %p430
      %p1015 = pneg %p427
      %p1016 = pneg %p451
      %p1017 = pneg %p448
      %p1018 = pneg %p472
      %p1019 = pneg %p469
      %p1020 = pneg %p493
      %p1021 = pneg %p490
      %p1022 = pneg %p514
      %p1023 = pneg %p511
      %p1024 = pneg %p535
      %p1025 = pneg %p532
      %p1026 = pneg %p556
      %p1027 = pneg %p553
      %p1028 = pneg %p577
      %p1029 = pneg %p574
      %p1030 = pneg %p598
      %p1031 = pneg %p595
      %p1032 = pneg %p619
      %p1033 = pneg %p616
      %p1034 = pneg %p640
      %p1035 = pneg %p637
      %p1036 = pneg %p661
      %p1037 = pneg %p658
      %p1038 = pneg %p682
      %p1039 = pneg %p679
      %p1040 = pneg %p703
      %p1041 = pneg %p700
      %p1042 = pneg %p724
      %p1043 = pneg %p721
      %p1044 = pneg %p750
      %p1045 = pneg %p747
      %p1046 = scmp.lt.s32.totalorder %s79, 1
      %s1047 = scalar_select %p1046, %s79, 1
      %s1048 = smul.addr %s1047, 8
      %s1049 = smul.addr %s1048, 8
      %s1050 = scalar_lea.vmem %s61, %s1049
      %p1051 = pneg %p776
      %p1052 = pneg %p773
      %p1053 = scmp.lt.s32.totalorder %s79, 1
      %s1054 = scalar_select %p1053, %s79, 1
      %s1055 = smul.addr %s1054, 2
      %s1056 = smul.addr %s1055, 8
      %s1057 = scalar_lea.vmem %s63, %s1056
      %p1058 = pneg %p802
      %p1059 = pneg %p799
      %p1060 = scmp.lt.s32.totalorder %s79, 1
      %s1061 = scalar_select %p1060, %s79, 1
      %s1062 = smul.addr %s1061, 2
      %s1063 = smul.addr %s1062, 8
      %s1064 = scalar_lea.vmem %s65, %s1063
      %p1065 = pneg %p828
      %p1066 = pneg %p825
      %p1067 = scmp.lt.s32.totalorder %s79, 1
      %s1068 = scalar_select %p1067, %s79, 1
      %s1069 = smul.addr %s1068, 3
      %s1070 = smul.addr %s1069, 8
      %s1071 = scalar_lea.vmem %s67, %s1070
      %p1072 = scmp.lt.s32.totalorder %s79, 1
      %s1073 = scalar_select %p1072, %s79, 1
      %s1074 = smul.addr %s1073, 8
      %s1075 = smul.addr %s1074, 8
      %s1076 = scalar_lea.vmem %s1, %s1075
      %p1077 = scmp.lt.s32.totalorder %s79, 1
      %s1078 = scalar_select %p1077, %s79, 1
      %s1079 = smul.addr %s1078, 4
      %s1080 = smul.addr %s1079, 8
      %s1081 = scalar_lea.vmem %s3, %s1080
      %p1082 = scmp.lt.s32.totalorder %s79, 1
      %s1083 = scalar_select %p1082, %s79, 1
      %s1084 = smul.addr %s1083, 3
      %s1085 = smul.addr %s1084, 8
      %s1086 = scalar_lea.vmem %s5, %s1085
      %p1087 = scmp.lt.s32.totalorder %s79, 1
      %s1088 = scalar_select %p1087, %s79, 1
      %s1089 = smul.addr %s1088, 4
      %s1090 = smul.addr %s1089, 8
      %s1091 = scalar_lea.vmem %s7, %s1090
      %p1092 = scmp.lt.s32.totalorder %s79, 1
      %s1093 = scalar_select %p1092, %s79, 1
      %s1094 = smul.addr %s1093, 8
      %s1095 = smul.addr %s1094, 8
      %s1096 = scalar_lea.vmem %s61, %s1095
      %p1097 = scmp.lt.s32.totalorder %s79, 1
      %s1098 = scalar_select %p1097, %s79, 1
      %s1099 = smul.addr %s1098, 2
      %s1100 = smul.addr %s1099, 8
      %s1101 = scalar_lea.vmem %s63, %s1100
      %p1102 = scmp.lt.s32.totalorder %s79, 1
      %s1103 = scalar_select %p1102, %s79, 1
      %s1104 = smul.addr %s1103, 2
      %s1105 = smul.addr %s1104, 8
      %s1106 = scalar_lea.vmem %s65, %s1105
      %p1107 = scmp.lt.s32.totalorder %s79, 1
      %s1108 = scalar_select %p1107, %s79, 1
      %s1109 = smul.addr %s1108, 3
      %s1110 = smul.addr %s1109, 8
      %s1111 = scalar_lea.vmem %s67, %s1110
      %v1113 = vld [vmem:[%s1091] sm:$0xff]
      %v1114 = vld [vmem:[%s1091 + $0x8] sm:$0xff]
      %v1115 = vld [vmem:[%s1091 + $0x10] sm:$0xff]
      %v1116 = vld [vmem:[%s1091 + $0x18] sm:$0xff]
      %v1117 = vld [vmem:[%s9] sm:$0xf]
      %v1118 = vld [vmem:[%s9 + $0x4] sm:$0xf]
      %v1119 = vld [vmem:[%s9 + $0x8] sm:$0xf]
      %v1120 = vpack.c.bf16 %v1114, %v1113
      %v1121 = vpack.c.bf16 %v1116, %v1115
      %v1122 = vld [vmem:[%s11] sm:$0xff]
      %v1123 = vld [vmem:[%s11 + $0x8] sm:$0xff]
      %v1124 = vld [vmem:[%s11 + $0x10] sm:$0xff]
      %1126 = vset.pattern.permute.xlu0 0
      %1127 = vperm.xlu0 %1126, %v1122
      %v1128 = vpop.permute.xlu0 %1127
      %1131 = vset.pattern.permute.xlu0 0
      %1132 = vperm.xlu0 %1131, %v1123
      %v1133 = vpop.permute.xlu0 %1132
      %1136 = vset.pattern.permute.xlu0 0
      %1137 = vperm.xlu0 %1136, %v1124
      %v1138 = vpop.permute.xlu0 %1137
      %v1143 = vunpack.c.l.b16 %v1117
      %v1144 = vunpack.c.l.b16 %v1118
      %v1145 = vunpack.c.l.b16 %v1119
      %v1146 = vpack.c.b16 %v1144, %v1143
      %v1147 = vpack.c.b16 %v1145, %v1145
      %vm1148 = vcmask 261120
      %v1150 = vsel %vm1148, %v1146, 0
      %v1153 = vsel %vm1148, %v1147, 0
      %1155 = vmatprep.subr.bf16.mxu0 0
      %1156 = vmatpush1.bf16.msra.mxu0 %v1120
      %1157 = vmatprep.subr.bf16.mxu0 0
      %1158 = vmatpush1.bf16.msra.mxu0 %v1121
      %1159 = vmatprep.subr.bf16.mxu0 0
      %1160 = vmatpush1.bf16.msra.mxu0 0
      %1161 = vmatprep.subr.bf16.mxu0 0
      %1162 = vmatpush1.bf16.msra.mxu0 0
      %1163 = vmatprep.subr.bf16.mxu0 0
      %1164 = vmatpush1.bf16.msra.mxu0 0
      %1165 = vmatprep.subr.bf16.mxu0 0
      %1166 = vmatpush1.bf16.msra.mxu0 0
      %1167 = vmatprep.subr.bf16.mxu0 0
      %1168 = vmatpush1.bf16.msra.mxu0 0
      %1169 = vmatprep.subr.bf16.mxu0 0
      %1170 = vmatpush1.bf16.msra.mxu0 0
      %1171 = vmatprep.subr.bf16.mxu0 0
      %1172 = vmatpush1.bf16.msra.mxu0 0
      %1173 = vmatprep.subr.bf16.mxu0 0
      %1174 = vmatpush1.bf16.msra.mxu0 0
      %1175 = vmatprep.subr.bf16.mxu0 0
      %1176 = vmatpush1.bf16.msra.mxu0 0
      %1177 = vmatprep.subr.bf16.mxu0 0
      %1178 = vmatpush1.bf16.msra.mxu0 0
      %1179 = vmatprep.subr.bf16.mxu0 0
      %1180 = vmatpush1.bf16.msra.mxu0 0
      %1181 = vmatprep.subr.bf16.mxu0 0
      %1182 = vmatpush1.bf16.msra.mxu0 0
      %1183 = vmatprep.subr.bf16.mxu0 0
      %1184 = vmatpush1.bf16.msra.mxu0 0
      %1185 = vmatprep.subr.bf16.mxu0 0
      %1186 = vmatpush1.bf16.msra.mxu0 0
      %1187 = vmatprep.mubr.bf16.mxu0 0
      %1188 = vmatmul.mubr.bf16.gmra.mrb[0].mxu0 %v1150
      %v1189 = vpop.f32.mrb[0].mxu0
      %v1190 = vadd.f32 %v1128, %v1189
      %v1191 = vpop.f32.mrb[0].mxu0
      %v1192 = vpop.f32.mrb[0].mxu0
      %v1193 = vadd.f32 %v1133, %v1192
      %v1194 = vpop.f32.mrb[0].mxu0
      %1195 = vmatprep.mubr.bf16.mxu0 0
      %1196 = vmatmul.mubr.bf16.gmra.mrb[0].mxu0 %v1153
      %v1197 = vpop.f32.mrb[0].mxu0
      %v1198 = vadd.f32 %v1138, %v1197
      %v1199 = vpop.f32.mrb[0].mxu0
      %v1200 = vpop.f32.mrb[0].mxu0
      %v1201 = vpop.f32.mrb[0].mxu0
      %1202 = vdwg.mxu0
      %v1203 = vmax.f32 %v1190, 0.0
      %v1204 = vmax.f32 %v1193, 0.0
      %v1205 = vmax.f32 %v1198, 0.0
      %v1206 = vmin.f32 %v1203, 6.0
      %v1207 = vmin.f32 %v1204, 6.0
      %v1208 = vmin.f32 %v1205, 6.0
      %vm1209 = vcmask 130048
      %1210 = vst.msk [vmem:[%s1111] sm:$0xff] %vm1209, %v1206
      %1211 = vst.msk [vmem:[%s1111 + $0x8] sm:$0xff] %vm1209, %v1207
      %1212 = vst.msk [vmem:[%s1111 + $0x10] sm:$0xff] %vm1209, %v1208
      %v1213 = vld [vmem:[%s49] sm:$0x3]
      %v1214 = vpack.c.bf16 %v1207, %v1206
      %v1215 = vpack.c.bf16 %v1208, %v1208
      %vm1216 = vcmask 31744
      %v1218 = vsel %vm1216, %v1214, 0
      %v1221 = vsel %vm1216, %v1215, 0
      %vm1223 = vcmask 1041408
      %v1225 = vsel %vm1223, %v1213, 0
      %1227 = vmatprep.subr.bf16.mxu0 0
      %1228 = vmatpush1.bf16.msra.mxu0 %v1225
      %1229 = vmatprep.subr.bf16.mxu0 0
      %1230 = vmatpush1.bf16.msra.mxu0 0
      %1231 = vmatprep.subr.bf16.mxu0 0
      %1232 = vmatpush1.bf16.msra.mxu0 0
      %1233 = vmatprep.subr.bf16.mxu0 0
      %1234 = vmatpush1.bf16.msra.mxu0 0
      %1235 = vmatprep.subr.bf16.mxu0 0
      %1236 = vmatpush1.bf16.msra.mxu0 0
      %1237 = vmatprep.subr.bf16.mxu0 0
      %1238 = vmatpush1.bf16.msra.mxu0 0
      %1239 = vmatprep.subr.bf16.mxu0 0
      %1240 = vmatpush1.bf16.msra.mxu0 0
      %1241 = vmatprep.subr.bf16.mxu0 0
      %1242 = vmatpush1.bf16.msra.mxu0 0
      %1243 = vmatprep.subr.bf16.mxu0 0
      %1244 = vmatpush1.bf16.msra.mxu0 0
      %1245 = vmatprep.subr.bf16.mxu0 0
      %1246 = vmatpush1.bf16.msra.mxu0 0
      %1247 = vmatprep.subr.bf16.mxu0 0
      %1248 = vmatpush1.bf16.msra.mxu0 0
      %1249 = vmatprep.subr.bf16.mxu0 0
      %1250 = vmatpush1.bf16.msra.mxu0 0
      %1251 = vmatprep.subr.bf16.mxu0 0
      %1252 = vmatpush1.bf16.msra.mxu0 0
      %1253 = vmatprep.subr.bf16.mxu0 0
      %1254 = vmatpush1.bf16.msra.mxu0 0
      %1255 = vmatprep.subr.bf16.mxu0 0
      %1256 = vmatpush1.bf16.msra.mxu0 0
      %1257 = vmatprep.subr.bf16.mxu0 0
      %1258 = vmatpush1.bf16.msra.mxu0 0
      %1259 = vmatprep.mubr.bf16.mxu0 0
      %1260 = vmatmul.mubr.bf16.gmra.mrb[0].mxu0 %v1218
      %v1261 = vpop.f32.mrb[0].mxu0
      %v1262 = vadd.f32 0.0, %v1261
      %v1263 = vpop.f32.mrb[0].mxu0
      %v1264 = vpop.f32.mrb[0].mxu0
      %v1265 = vadd.f32 0.0, %v1264
      %v1266 = vpop.f32.mrb[0].mxu0
      %1267 = vmatprep.mubr.bf16.mxu0 0
      %1268 = vmatmul.mubr.bf16.gmra.mrb[0].mxu0 %v1221
      %v1269 = vpop.f32.mrb[0].mxu0
      %v1270 = vadd.f32 0.0, %v1269
      %v1271 = vpop.f32.mrb[0].mxu0
      %v1272 = vpop.f32.mrb[0].mxu0
      %v1273 = vpop.f32.mrb[0].mxu0
      %1274 = vdwg.mxu0
      %1277 = vrot.lane.b32.xlu0 %v1214, 124
      %v1278 = vpop.permute.xlu0 %1277
      %1279 = vrot.lane.b32.xlu0 %v1215, 124
      %v1280 = vpop.permute.xlu0 %1279
      %v1282 = vsel %vm1216, %v1278, 0
      %v1285 = vsel %vm1216, %v1280, 0
      %1287 = vmatprep.subr.bf16.mxu0 0
      %1288 = vmatpush1.bf16.msra.mxu0 %v1225
      %1289 = vmatprep.subr.bf16.mxu0 0
      %1290 = vmatpush1.bf16.msra.mxu0 0
      %1291 = vmatprep.subr.bf16.mxu0 0
      %1292 = vmatpush1.bf16.msra.mxu0 0
      %1293 = vmatprep.subr.bf16.mxu0 0
      %1294 = vmatpush1.bf16.msra.mxu0 0
      %1295 = vmatprep.subr.bf16.mxu0 0
      %1296 = vmatpush1.bf16.msra.mxu0 0
      %1297 = vmatprep.subr.bf16.mxu0 0
      %1298 = vmatpush1.bf16.msra.mxu0 0
      %1299 = vmatprep.subr.bf16.mxu0 0
      %1300 = vmatpush1.bf16.msra.mxu0 0
      %1301 = vmatprep.subr.bf16.mxu0 0
      %1302 = vmatpush1.bf16.msra.mxu0 0
      %1303 = vmatprep.subr.bf16.mxu0 0
      %1304 = vmatpush1.bf16.msra.mxu0 0
      %1305 = vmatprep.subr.bf16.mxu0 0
      %1306 = vmatpush1.bf16.msra.mxu0 0
      %1307 = vmatprep.subr.bf16.mxu0 0
      %1308 = vmatpush1.bf16.msra.mxu0 0
      %1309 = vmatprep.subr.bf16.mxu0 0
      %1310 = vmatpush1.bf16.msra.mxu0 0
      %1311 = vmatprep.subr.bf16.mxu0 0
      %1312 = vmatpush1.bf16.msra.mxu0 0
      %1313 = vmatprep.subr.bf16.mxu0 0
      %1314 = vmatpush1.bf16.msra.mxu0 0
      %1315 = vmatprep.subr.bf16.mxu0 0
      %1316 = vmatpush1.bf16.msra.mxu0 0
      %1317 = vmatprep.subr.bf16.mxu0 0
      %1318 = vmatpush1.bf16.msra.mxu0 0
      %1319 = vmatprep.mubr.bf16.mxu0 0
      %1320 = vmatmul.mubr.bf16.gmra.mrb[0].mxu0 %v1282
      %v1321 = vpop.f32.mrb[0].mxu0
      %v1322 = vadd.f32 0.0, %v1321
      %v1323 = vpop.f32.mrb[0].mxu0
      %v1324 = vpop.f32.mrb[0].mxu0
      %v1325 = vadd.f32 0.0, %v1324
      %v1326 = vpop.f32.mrb[0].mxu0
      %1327 = vmatprep.mubr.bf16.mxu0 0
      %1328 = vmatmul.mubr.bf16.gmra.mrb[0].mxu0 %v1285
      %v1329 = vpop.f32.mrb[0].mxu0
      %v1330 = vadd.f32 0.0, %v1329
      %v1331 = vpop.f32.mrb[0].mxu0
      %v1332 = vpop.f32.mrb[0].mxu0
      %v1333 = vpop.f32.mrb[0].mxu0
      %1334 = vdwg.mxu0
      %1335 = vrot.lane.b32.xlu0 %v1214, 120
      %v1336 = vpop.permute.xlu0 %1335
      %1337 = vrot.lane.b32.xlu0 %v1215, 120
      %v1338 = vpop.permute.xlu0 %1337
      %v1340 = vsel %vm1216, %v1336, 0
      %v1343 = vsel %vm1216, %v1338, 0
      %1345 = vmatprep.subr.bf16.mxu0 0
      %1346 = vmatpush1.bf16.msra.mxu0 %v1225
      %1347 = vmatprep.subr.bf16.mxu0 0
      %1348 = vmatpush1.bf16.msra.mxu0 0
      %1349 = vmatprep.subr.bf16.mxu0 0
      %1350 = vmatpush1.bf16.msra.mxu0 0
      %1351 = vmatprep.subr.bf16.mxu0 0
      %1352 = vmatpush1.bf16.msra.mxu0 0
      %1353 = vmatprep.subr.bf16.mxu0 0
      %1354 = vmatpush1.bf16.msra.mxu0 0
      %1355 = vmatprep.subr.bf16.mxu0 0
      %1356 = vmatpush1.bf16.msra.mxu0 0
      %1357 = vmatprep.subr.bf16.mxu0 0
      %1358 = vmatpush1.bf16.msra.mxu0 0
      %1359 = vmatprep.subr.bf16.mxu0 0
      %1360 = vmatpush1.bf16.msra.mxu0 0
      %1361 = vmatprep.subr.bf16.mxu0 0
      %1362 = vmatpush1.bf16.msra.mxu0 0
      %1363 = vmatprep.subr.bf16.mxu0 0
      %1364 = vmatpush1.bf16.msra.mxu0 0
      %1365 = vmatprep.subr.bf16.mxu0 0
      %1366 = vmatpush1.bf16.msra.mxu0 0
      %1367 = vmatprep.subr.bf16.mxu0 0
      %1368 = vmatpush1.bf16.msra.mxu0 0
      %1369 = vmatprep.subr.bf16.mxu0 0
      %1370 = vmatpush1.bf16.msra.mxu0 0
      %1371 = vmatprep.subr.bf16.mxu0 0
      %1372 = vmatpush1.bf16.msra.mxu0 0
      %1373 = vmatprep.subr.bf16.mxu0 0
      %1374 = vmatpush1.bf16.msra.mxu0 0
      %1375 = vmatprep.subr.bf16.mxu0 0
      %1376 = vmatpush1.bf16.msra.mxu0 0
      %1377 = vmatprep.mubr.bf16.mxu0 0
      %1378 = vmatmul.mubr.bf16.gmra.mrb[0].mxu0 %v1340
      %v1379 = vpop.f32.mrb[0].mxu0
      %v1380 = vadd.f32 0.0, %v1379
      %v1381 = vpop.f32.mrb[0].mxu0
      %v1382 = vpop.f32.mrb[0].mxu0
      %v1383 = vadd.f32 0.0, %v1382
      %v1384 = vpop.f32.mrb[0].mxu0
      %1385 = vmatprep.mubr.bf16.mxu0 0
      %1386 = vmatmul.mubr.bf16.gmra.mrb[0].mxu0 %v1343
      %v1387 = vpop.f32.mrb[0].mxu0
      %v1388 = vadd.f32 0.0, %v1387
      %v1389 = vpop.f32.mrb[0].mxu0
      %v1390 = vpop.f32.mrb[0].mxu0
      %v1391 = vpop.f32.mrb[0].mxu0
      %1392 = vdwg.mxu0
      %1393 = vrot.lane.b32.xlu0 %v1214, 116
      %v1394 = vpop.permute.xlu0 %1393
      %1395 = vrot.lane.b32.xlu0 %v1215, 116
      %v1396 = vpop.permute.xlu0 %1395
      %v1398 = vsel %vm1216, %v1394, 0
      %v1401 = vsel %vm1216, %v1396, 0
      %1403 = vmatprep.subr.bf16.mxu0 0
      %1404 = vmatpush1.bf16.msra.mxu0 %v1225
      %1405 = vmatprep.subr.bf16.mxu0 0
      %1406 = vmatpush1.bf16.msra.mxu0 0
      %1407 = vmatprep.subr.bf16.mxu0 0
      %1408 = vmatpush1.bf16.msra.mxu0 0
      %1409 = vmatprep.subr.bf16.mxu0 0
      %1410 = vmatpush1.bf16.msra.mxu0 0
      %1411 = vmatprep.subr.bf16.mxu0 0
      %1412 = vmatpush1.bf16.msra.mxu0 0
      %1413 = vmatprep.subr.bf16.mxu0 0
      %1414 = vmatpush1.bf16.msra.mxu0 0
      %1415 = vmatprep.subr.bf16.mxu0 0
      %1416 = vmatpush1.bf16.msra.mxu0 0
      %1417 = vmatprep.subr.bf16.mxu0 0
      %1418 = vmatpush1.bf16.msra.mxu0 0
      %1419 = vmatprep.subr.bf16.mxu0 0
      %1420 = vmatpush1.bf16.msra.mxu0 0
      %1421 = vmatprep.subr.bf16.mxu0 0
      %1422 = vmatpush1.bf16.msra.mxu0 0
      %1423 = vmatprep.subr.bf16.mxu0 0
      %1424 = vmatpush1.bf16.msra.mxu0 0
      %1425 = vmatprep.subr.bf16.mxu0 0
      %1426 = vmatpush1.bf16.msra.mxu0 0
      %1427 = vmatprep.subr.bf16.mxu0 0
      %1428 = vmatpush1.bf16.msra.mxu0 0
      %1429 = vmatprep.subr.bf16.mxu0 0
      %1430 = vmatpush1.bf16.msra.mxu0 0
      %1431 = vmatprep.subr.bf16.mxu0 0
      %1432 = vmatpush1.bf16.msra.mxu0 0
      %1433 = vmatprep.subr.bf16.mxu0 0
      %1434 = vmatpush1.bf16.msra.mxu0 0
      %1435 = vmatprep.mubr.bf16.mxu0 0
      %1436 = vmatmul.mubr.bf16.gmra.mrb[0].mxu0 %v1398
      %v1437 = vpop.f32.mrb[0].mxu0
      %v1438 = vadd.f32 0.0, %v1437
      %v1439 = vpop.f32.mrb[0].mxu0
      %v1440 = vpop.f32.mrb[0].mxu0
      %v1441 = vadd.f32 0.0, %v1440
      %v1442 = vpop.f32.mrb[0].mxu0
      %1443 = vmatprep.mubr.bf16.mxu0 0
      %1444 = vmatmul.mubr.bf16.gmra.mrb[0].mxu0 %v1401
      %v1445 = vpop.f32.mrb[0].mxu0
      %v1446 = vadd.f32 0.0, %v1445
      %v1447 = vpop.f32.mrb[0].mxu0
      %v1448 = vpop.f32.mrb[0].mxu0
      %v1449 = vpop.f32.mrb[0].mxu0
      %1450 = vdwg.mxu0
      %v1451 = vmul.f32 %v1262, 0.75
      %v1452 = vmul.f32 %v1265, 0.75
      %v1453 = vmul.f32 %v1270, 0.75
      %v1454 = vmul.f32 %v1322, 0.25
      %v1455 = vmul.f32 %v1325, 0.25
      %v1456 = vmul.f32 %v1330, 0.25
      %v1457 = vadd.f32 %v1451, %v1454
      %v1458 = vadd.f32 %v1452, %v1455
      %v1459 = vadd.f32 %v1453, %v1456
      %v1460 = vmul.f32 %v1262, 0.25
      %v1461 = vmul.f32 %v1265, 0.25
      %v1462 = vmul.f32 %v1270, 0.25
      %v1463 = vmul.f32 %v1322, 0.75
      %v1464 = vmul.f32 %v1325, 0.75
      %v1465 = vmul.f32 %v1330, 0.75
      %v1466 = vadd.f32 %v1460, %v1463
      %v1467 = vadd.f32 %v1461, %v1464
      %v1468 = vadd.f32 %v1462, %v1465
      %v1469 = vmul.f32 %v1380, 0.25
      %v1470 = vmul.f32 %v1383, 0.25
      %v1471 = vmul.f32 %v1388, 0.25
      %v1472 = vadd.f32 %v1463, %v1469
      %v1473 = vadd.f32 %v1464, %v1470
      %v1474 = vadd.f32 %v1465, %v1471
      %v1475 = vmul.f32 %v1380, 0.75
      %v1476 = vmul.f32 %v1383, 0.75
      %v1477 = vmul.f32 %v1388, 0.75
      %v1478 = vadd.f32 %v1454, %v1475
      %v1479 = vadd.f32 %v1455, %v1476
      %v1480 = vadd.f32 %v1456, %v1477
      %v1481 = vmul.f32 %v1438, 0.25
      %v1482 = vmul.f32 %v1441, 0.25
      %v1483 = vmul.f32 %v1446, 0.25
      %v1484 = vadd.f32 %v1475, %v1481
      %v1485 = vadd.f32 %v1476, %v1482
      %v1486 = vadd.f32 %v1477, %v1483
      %v1487 = vmul.f32 %v1438, 0.75
      %v1488 = vmul.f32 %v1441, 0.75
      %v1489 = vmul.f32 %v1446, 0.75
      %v1490 = vadd.f32 %v1469, %v1487
      %v1491 = vadd.f32 %v1470, %v1488
      %v1492 = vadd.f32 %v1471, %v1489
      %1496 = vrot.lane.b32.xlu0 %v1457, 8
      %v1497 = vpop.permute.xlu0 %1496
      %1498 = vrot.lane.b32.xlu0 %v1458, 8
      %v1499 = vpop.permute.xlu0 %1498
      %1500 = vrot.lane.b32.xlu0 %v1459, 8
      %v1501 = vpop.permute.xlu0 %1500
      %1508 = vrot.lane.b32.xlu0 %v1466, 16
      %v1509 = vpop.permute.xlu0 %1508
      %1510 = vrot.lane.b32.xlu0 %v1467, 16
      %v1511 = vpop.permute.xlu0 %1510
      %1512 = vrot.lane.b32.xlu0 %v1468, 16
      %v1513 = vpop.permute.xlu0 %1512
      %1520 = vrot.lane.b32.xlu0 %v1472, 24
      %v1521 = vpop.permute.xlu0 %1520
      %1522 = vrot.lane.b32.xlu0 %v1473, 24
      %v1523 = vpop.permute.xlu0 %1522
      %1524 = vrot.lane.b32.xlu0 %v1474, 24
      %v1525 = vpop.permute.xlu0 %1524
      %1532 = vrot.lane.b32.xlu0 %v1478, 32
      %v1533 = vpop.permute.xlu0 %1532
      %1534 = vrot.lane.b32.xlu0 %v1479, 32
      %v1535 = vpop.permute.xlu0 %1534
      %1536 = vrot.lane.b32.xlu0 %v1480, 32
      %v1537 = vpop.permute.xlu0 %1536
      %1544 = vrot.lane.b32.xlu0 %v1484, 40
      %v1545 = vpop.permute.xlu0 %1544
      %1546 = vrot.lane.b32.xlu0 %v1485, 40
      %v1547 = vpop.permute.xlu0 %1546
      %1548 = vrot.lane.b32.xlu0 %v1486, 40
      %v1549 = vpop.permute.xlu0 %1548
      %1556 = vrot.lane.b32.xlu0 %v1490, 48
      %v1557 = vpop.permute.xlu0 %1556
      %1558 = vrot.lane.b32.xlu0 %v1491, 48
      %v1559 = vpop.permute.xlu0 %1558
      %1560 = vrot.lane.b32.xlu0 %v1492, 48
      %v1561 = vpop.permute.xlu0 %1560
      %1568 = vrot.lane.b32.xlu0 %v1438, 56
      %v1569 = vpop.permute.xlu0 %1568
      %1570 = vrot.lane.b32.xlu0 %v1441, 56
      %v1571 = vpop.permute.xlu0 %1570
      %1572 = vrot.lane.b32.xlu0 %v1446, 56
      %v1573 = vpop.permute.xlu0 %1572
      %vm1577 = vcmask 64512
      %v1578 = vsel %vm1577, %v1262, %v1497
      %v1579 = vsel %vm1577, %v1265, %v1499
      %v1580 = vsel %vm1577, %v1270, %v1501
      %v1581 = vsel %vm1209, %v1578, %v1509
      %v1582 = vsel %vm1209, %v1579, %v1511
      %v1583 = vsel %vm1209, %v1580, %v1513
      %vm1584 = vcmask 195584
      %v1585 = vsel %vm1584, %v1581, %v1521
      %v1586 = vsel %vm1584, %v1582, %v1523
      %v1587 = vsel %vm1584, %v1583, %v1525
      %v1588 = vsel %vm1148, %v1585, %v1533
      %v1589 = vsel %vm1148, %v1586, %v1535
      %v1590 = vsel %vm1148, %v1587, %v1537
      %vm1591 = vcmask 326656
      %v1592 = vsel %vm1591, %v1588, %v1545
      %v1593 = vsel %vm1591, %v1589, %v1547
      %v1594 = vsel %vm1591, %v1590, %v1549
      %vm1595 = vcmask 392192
      %v1596 = vsel %vm1595, %v1592, %v1557
      %v1597 = vsel %vm1595, %v1593, %v1559
      %v1598 = vsel %vm1595, %v1594, %v1561
      %vm1599 = vcmask 457728
      %v1600 = vsel %vm1599, %v1596, %v1569
      %v1601 = vsel %vm1599, %v1597, %v1571
      %v1602 = vsel %vm1599, %v1598, %v1573
      %v1603 = vld [vmem:[%s1086] sm:$0xff]
      %v1604 = vld [vmem:[%s1086 + $0x8] sm:$0xff]
      %v1605 = vld [vmem:[%s1086 + $0x10] sm:$0xff]
      %v1606 = vld [vmem:[%s13] sm:$0xf]
      %v1607 = vld [vmem:[%s13 + $0x4] sm:$0xf]
      %v1608 = vld [vmem:[%s13 + $0x8] sm:$0xf]
      %v1609 = vpack.c.bf16 %v1604, %v1603
      %v1610 = vpack.c.bf16 %v1605, %v1605
      %v1611 = vld [vmem:[%s15] sm:$0xff]
      %v1612 = vld [vmem:[%s15 + $0x8] sm:$0xff]
      %v1613 = vld [vmem:[%s15 + $0x10] sm:$0xff]
      %1615 = vset.pattern.permute.xlu0 0
      %1616 = vperm.xlu0 %1615, %v1611
      %v1617 = vpop.permute.xlu0 %1616
      %1620 = vset.pattern.permute.xlu0 0
      %1621 = vperm.xlu0 %1620, %v1612
      %v1622 = vpop.permute.xlu0 %1621
      %1625 = vset.pattern.permute.xlu0 0
      %1626 = vperm.xlu0 %1625, %v1613
      %v1627 = vpop.permute.xlu0 %1626
      %v1632 = vunpack.c.l.b16 %v1606
      %v1633 = vunpack.c.l.b16 %v1607
      %v1634 = vunpack.c.l.b16 %v1608
      %v1635 = vpack.c.b16 %v1633, %v1632
      %v1636 = vpack.c.b16 %v1634, %v1634
      %v1638 = vsel %vm1584, %v1635, 0
      %v1641 = vsel %vm1584, %v1636, 0
      %vm1643 = vcmask 1043456
      %v1645 = vsel %vm1643, %v1610, 0
      %1647 = vmatprep.subr.bf16.mxu0 0
      %1648 = vmatpush1.bf16.msra.mxu0 %v1609
      %1649 = vmatprep.subr.bf16.mxu0 0
      %1650 = vmatpush1.bf16.msra.mxu0 %v1645
      %1651 = vmatprep.subr.bf16.mxu0 0
      %1652 = vmatpush1.bf16.msra.mxu0 0
      %1653 = vmatprep.subr.bf16.mxu0 0
      %1654 = vmatpush1.bf16.msra.mxu0 0
      %1655 = vmatprep.subr.bf16.mxu0 0
      %1656 = vmatpush1.bf16.msra.mxu0 0
      %1657 = vmatprep.subr.bf16.mxu0 0
      %1658 = vmatpush1.bf16.msra.mxu0 0
      %1659 = vmatprep.subr.bf16.mxu0 0
      %1660 = vmatpush1.bf16.msra.mxu0 0
      %1661 = vmatprep.subr.bf16.mxu0 0
      %1662 = vmatpush1.bf16.msra.mxu0 0
      %1663 = vmatprep.subr.bf16.mxu0 0
      %1664 = vmatpush1.bf16.msra.mxu0 0
      %1665 = vmatprep.subr.bf16.mxu0 0
      %1666 = vmatpush1.bf16.msra.mxu0 0
      %1667 = vmatprep.subr.bf16.mxu0 0
      %1668 = vmatpush1.bf16.msra.mxu0 0
      %1669 = vmatprep.subr.bf16.mxu0 0
      %1670 = vmatpush1.bf16.msra.mxu0 0
      %1671 = vmatprep.subr.bf16.mxu0 0
      %1672 = vmatpush1.bf16.msra.mxu0 0
      %1673 = vmatprep.subr.bf16.mxu0 0
      %1674 = vmatpush1.bf16.msra.mxu0 0
      %1675 = vmatprep.subr.bf16.mxu0 0
      %1676 = vmatpush1.bf16.msra.mxu0 0
      %1677 = vmatprep.subr.bf16.mxu0 0
      %1678 = vmatpush1.bf16.msra.mxu0 0
      %1679 = vmatprep.mubr.bf16.mxu0 0
      %1680 = vmatmul.mubr.bf16.gmra.mrb[0].mxu0 %v1638
      %v1681 = vpop.f32.mrb[0].mxu0
      %v1682 = vadd.f32 %v1617, %v1681
      %v1683 = vpop.f32.mrb[0].mxu0
      %v1684 = vpop.f32.mrb[0].mxu0
      %v1685 = vadd.f32 %v1622, %v1684
      %v1686 = vpop.f32.mrb[0].mxu0
      %1687 = vmatprep.mubr.bf16.mxu0 0
      %1688 = vmatmul.mubr.bf16.gmra.mrb[0].mxu0 %v1641
      %v1689 = vpop.f32.mrb[0].mxu0
      %v1690 = vadd.f32 %v1627, %v1689
      %v1691 = vpop.f32.mrb[0].mxu0
      %v1692 = vpop.f32.mrb[0].mxu0
      %v1693 = vpop.f32.mrb[0].mxu0
      %1694 = vdwg.mxu0
      %v1695 = vmax.f32 %v1682, 0.0
      %v1696 = vmax.f32 %v1685, 0.0
      %v1697 = vmax.f32 %v1690, 0.0
      %v1698 = vmin.f32 %v1695, 6.0
      %v1699 = vmin.f32 %v1696, 6.0
      %v1700 = vmin.f32 %v1697, 6.0
      %v1701 = vadd.f32 %v1600, %v1698
      %v1702 = vadd.f32 %v1601, %v1699
      %v1703 = vadd.f32 %v1602, %v1700
      %v1704 = vld [vmem:[%s17] sm:$0xff]
      %v1705 = vld [vmem:[%s17 + $0x8] sm:$0xff]
      %v1706 = vld [vmem:[%s17 + $0x10] sm:$0xff]
      %v1707 = vld [vmem:[%s19] sm:$0xff]
      %v1708 = vld [vmem:[%s19 + $0x8] sm:$0xff]
      %v1709 = vld [vmem:[%s19 + $0x10] sm:$0xff]
      %v1710 = vld [vmem:[%s55] sm:$0x1]
      %v1711 = vld [vmem:[%s55 + $0x1] sm:$0x1]
      %1715 = vrot.lane.b32.xlu0 %v1701, 9
      %v1716 = vpop.permute.xlu0 %1715
      %1717 = vrot.lane.b32.xlu0 %v1702, 9
      %v1718 = vpop.permute.xlu0 %1717
      %1719 = vrot.lane.b32.xlu0 %v1703, 9
      %v1720 = vpop.permute.xlu0 %1719
      %vm1724 = vcmask 72704
      %v1725 = vsel %vm1724, 0.0, %v1716
      %v1726 = vsel %vm1724, 0.0, %v1718
      %v1727 = vsel %vm1724, 0.0, %v1720
      %vm1728 = vcmask 596992
      %v1729 = vsel %vm1728, %v1725, 0.0
      %v1730 = vsel %vm1728, %v1726, 0.0
      %v1731 = vsel %vm1728, %v1727, 0.0
      %v1732 = vlaneseq
      %v1733 = vshrl.u32 %v1732, 7
      %v1734 = vsub.s32 0, %v1733
      %v1735 = vrot.slane %v1710, %v1734
      %v1736 = vmul.f32 %v1729, %v1735
      %v1737 = vmul.f32 %v1730, %v1735
      %v1738 = vmul.f32 %v1731, %v1735
      %1740 = vset.pattern.permute.xlu0 0
      %1741 = vperm.xlu0 %1740, %v1704
      %v1742 = vpop.permute.xlu0 %1741
      %1745 = vset.pattern.permute.xlu0 0
      %1746 = vperm.xlu0 %1745, %v1705
      %v1747 = vpop.permute.xlu0 %1746
      %1750 = vset.pattern.permute.xlu0 0
      %1751 = vperm.xlu0 %1750, %v1706
      %v1752 = vpop.permute.xlu0 %1751
      %v1754 = vmul.f32 %v1736, %v1742
      %v1755 = vmul.f32 %v1737, %v1747
      %v1756 = vmul.f32 %v1738, %v1752
      %v1757 = vadd.f32 %v1754, 0.0
      %v1758 = vadd.f32 %v1755, 0.0
      %v1759 = vadd.f32 %v1756, 0.0
      %1760 = vset.pattern.permute.xlu0 1
      %1761 = vperm.xlu0 %1760, %v1704
      %v1762 = vpop.permute.xlu0 %1761
      %1764 = vset.pattern.permute.xlu0 1
      %1765 = vperm.xlu0 %1764, %v1705
      %v1766 = vpop.permute.xlu0 %1765
      %1768 = vset.pattern.permute.xlu0 1
      %1769 = vperm.xlu0 %1768, %v1706
      %v1770 = vpop.permute.xlu0 %1769
      %v1772 = vmul.f32 %v1729, %v1762
      %v1773 = vmul.f32 %v1730, %v1766
      %v1774 = vmul.f32 %v1731, %v1770
      %1778 = vrot.lane.b32.xlu0 %v1772, 127
      %v1779 = vpop.permute.xlu0 %1778
      %1780 = vrot.lane.b32.xlu0 %v1773, 127
      %v1781 = vpop.permute.xlu0 %1780
      %1782 = vrot.lane.b32.xlu0 %v1774, 127
      %v1783 = vpop.permute.xlu0 %1782
      %v1787 = vadd.f32 %v1757, %v1779
      %v1788 = vadd.f32 %v1758, %v1781
      %v1789 = vadd.f32 %v1759, %v1783
      %v1790 = vlaneseq
      %v1791 = vshrl.u32 %v1790, 7
      %v1792 = vsub.s32 0, %v1791
      %v1793 = vrot.slane %v1711, %v1792
      %1795 = vrot.lane.b32.xlu0 %v1793, 2
      %v1796 = vpop.permute.xlu0 %1795
      %v1798 = vmul.f32 %v1729, %v1796
      %v1799 = vmul.f32 %v1730, %v1796
      %v1800 = vmul.f32 %v1731, %v1796
      %1801 = vset.pattern.permute.xlu0 2
      %1802 = vperm.xlu0 %1801, %v1704
      %v1803 = vpop.permute.xlu0 %1802
      %1805 = vset.pattern.permute.xlu0 2
      %1806 = vperm.xlu0 %1805, %v1705
      %v1807 = vpop.permute.xlu0 %1806
      %1809 = vset.pattern.permute.xlu0 2
      %1810 = vperm.xlu0 %1809, %v1706
      %v1811 = vpop.permute.xlu0 %1810
      %v1813 = vmul.f32 %v1798, %v1803
      %v1814 = vmul.f32 %v1799, %v1807
      %v1815 = vmul.f32 %v1800, %v1811
      %1819 = vrot.lane.b32.xlu0 %v1813, 126
      %v1820 = vpop.permute.xlu0 %1819
      %1821 = vrot.lane.b32.xlu0 %v1814, 126
      %v1822 = vpop.permute.xlu0 %1821
      %1823 = vrot.lane.b32.xlu0 %v1815, 126
      %v1824 = vpop.permute.xlu0 %1823
      %v1828 = vadd.f32 %v1787, %v1820
      %v1829 = vadd.f32 %v1788, %v1822
      %v1830 = vadd.f32 %v1789, %v1824
      %1832 = vrot.lane.b32.xlu0 %v1735, 8
      %v1833 = vpop.permute.xlu0 %1832
      %v1835 = vmul.f32 %v1729, %v1833
      %v1836 = vmul.f32 %v1730, %v1833
      %v1837 = vmul.f32 %v1731, %v1833
      %1838 = vset.pattern.permute.xlu0 3
      %1839 = vperm.xlu0 %1838, %v1704
      %v1840 = vpop.permute.xlu0 %1839
      %1842 = vset.pattern.permute.xlu0 3
      %1843 = vperm.xlu0 %1842, %v1705
      %v1844 = vpop.permute.xlu0 %1843
      %1846 = vset.pattern.permute.xlu0 3
      %1847 = vperm.xlu0 %1846, %v1706
      %v1848 = vpop.permute.xlu0 %1847
      %v1850 = vmul.f32 %v1835, %v1840
      %v1851 = vmul.f32 %v1836, %v1844
      %v1852 = vmul.f32 %v1837, %v1848
      %1856 = vrot.lane.b32.xlu0 %v1850, 120
      %v1857 = vpop.permute.xlu0 %1856
      %1858 = vrot.lane.b32.xlu0 %v1851, 120
      %v1859 = vpop.permute.xlu0 %1858
      %1860 = vrot.lane.b32.xlu0 %v1852, 120
      %v1861 = vpop.permute.xlu0 %1860
      %v1865 = vadd.f32 %v1828, %v1857
      %v1866 = vadd.f32 %v1829, %v1859
      %v1867 = vadd.f32 %v1830, %v1861
      %1868 = vset.pattern.permute.xlu0 4
      %1869 = vperm.xlu0 %1868, %v1704
      %v1870 = vpop.permute.xlu0 %1869
      %1872 = vset.pattern.permute.xlu0 4
      %1873 = vperm.xlu0 %1872, %v1705
      %v1874 = vpop.permute.xlu0 %1873
      %1876 = vset.pattern.permute.xlu0 4
      %1877 = vperm.xlu0 %1876, %v1706
      %v1878 = vpop.permute.xlu0 %1877
      %v1880 = vmul.f32 %v1729, %v1870
      %v1881 = vmul.f32 %v1730, %v1874
      %v1882 = vmul.f32 %v1731, %v1878
      %1886 = vrot.lane.b32.xlu0 %v1880, 119
      %v1887 = vpop.permute.xlu0 %1886
      %1888 = vrot.lane.b32.xlu0 %v1881, 119
      %v1889 = vpop.permute.xlu0 %1888
      %1890 = vrot.lane.b32.xlu0 %v1882, 119
      %v1891 = vpop.permute.xlu0 %1890
      %v1895 = vadd.f32 %v1865, %v1887
      %v1896 = vadd.f32 %v1866, %v1889
      %v1897 = vadd.f32 %v1867, %v1891
      %1898 = vrot.lane.b32.xlu0 %v1793, 10
      %v1899 = vpop.permute.xlu0 %1898
      %v1901 = vmul.f32 %v1729, %v1899
      %v1902 = vmul.f32 %v1730, %v1899
      %v1903 = vmul.f32 %v1731, %v1899
      %1904 = vset.pattern.permute.xlu0 5
      %1905 = vperm.xlu0 %1904, %v1704
      %v1906 = vpop.permute.xlu0 %1905
      %1908 = vset.pattern.permute.xlu0 5
      %1909 = vperm.xlu0 %1908, %v1705
      %v1910 = vpop.permute.xlu0 %1909
      %1912 = vset.pattern.permute.xlu0 5
      %1913 = vperm.xlu0 %1912, %v1706
      %v1914 = vpop.permute.xlu0 %1913
      %v1916 = vmul.f32 %v1901, %v1906
      %v1917 = vmul.f32 %v1902, %v1910
      %v1918 = vmul.f32 %v1903, %v1914
      %1922 = vrot.lane.b32.xlu0 %v1916, 118
      %v1923 = vpop.permute.xlu0 %1922
      %1924 = vrot.lane.b32.xlu0 %v1917, 118
      %v1925 = vpop.permute.xlu0 %1924
      %1926 = vrot.lane.b32.xlu0 %v1918, 118
      %v1927 = vpop.permute.xlu0 %1926
      %v1931 = vadd.f32 %v1895, %v1923
      %v1932 = vadd.f32 %v1896, %v1925
      %v1933 = vadd.f32 %v1897, %v1927
      %1934 = vrot.lane.b32.xlu0 %v1735, 16
      %v1935 = vpop.permute.xlu0 %1934
      %v1937 = vmul.f32 %v1729, %v1935
      %v1938 = vmul.f32 %v1730, %v1935
      %v1939 = vmul.f32 %v1731, %v1935
      %1940 = vset.pattern.permute.xlu0 6
      %1941 = vperm.xlu0 %1940, %v1704
      %v1942 = vpop.permute.xlu0 %1941
      %1944 = vset.pattern.permute.xlu0 6
      %1945 = vperm.xlu0 %1944, %v1705
      %v1946 = vpop.permute.xlu0 %1945
      %1948 = vset.pattern.permute.xlu0 6
      %1949 = vperm.xlu0 %1948, %v1706
      %v1950 = vpop.permute.xlu0 %1949
      %v1952 = vmul.f32 %v1937, %v1942
      %v1953 = vmul.f32 %v1938, %v1946
      %v1954 = vmul.f32 %v1939, %v1950
      %1958 = vrot.lane.b32.xlu0 %v1952, 112
      %v1959 = vpop.permute.xlu0 %1958
      %1960 = vrot.lane.b32.xlu0 %v1953, 112
      %v1961 = vpop.permute.xlu0 %1960
      %1962 = vrot.lane.b32.xlu0 %v1954, 112
      %v1963 = vpop.permute.xlu0 %1962
      %v1967 = vadd.f32 %v1931, %v1959
      %v1968 = vadd.f32 %v1932, %v1961
      %v1969 = vadd.f32 %v1933, %v1963
      %1970 = vset.pattern.permute.xlu0 7
      %1971 = vperm.xlu0 %1970, %v1704
      %v1972 = vpop.permute.xlu0 %1971
      %1974 = vset.pattern.permute.xlu0 7
      %1975 = vperm.xlu0 %1974, %v1705
      %v1976 = vpop.permute.xlu0 %1975
      %1978 = vset.pattern.permute.xlu0 7
      %1979 = vperm.xlu0 %1978, %v1706
      %v1980 = vpop.permute.xlu0 %1979
      %v1982 = vmul.f32 %v1729, %v1972
      %v1983 = vmul.f32 %v1730, %v1976
      %v1984 = vmul.f32 %v1731, %v1980
      %1988 = vrot.lane.b32.xlu0 %v1982, 111
      %v1989 = vpop.permute.xlu0 %1988
      %1990 = vrot.lane.b32.xlu0 %v1983, 111
      %v1991 = vpop.permute.xlu0 %1990
      %1992 = vrot.lane.b32.xlu0 %v1984, 111
      %v1993 = vpop.permute.xlu0 %1992
      %v1997 = vadd.f32 %v1967, %v1989
      %v1998 = vadd.f32 %v1968, %v1991
      %v1999 = vadd.f32 %v1969, %v1993
      %2000 = vrot.lane.b32.xlu0 %v1793, 18
      %v2001 = vpop.permute.xlu0 %2000
      %v2003 = vmul.f32 %v1729, %v2001
      %v2004 = vmul.f32 %v1730, %v2001
      %v2005 = vmul.f32 %v1731, %v2001
      %2006 = vset.pattern.permute.xlu0 8
      %2007 = vperm.xlu0 %2006, %v1704
      %v2008 = vpop.permute.xlu0 %2007
      %2010 = vset.pattern.permute.xlu0 8
      %2011 = vperm.xlu0 %2010, %v1705
      %v2012 = vpop.permute.xlu0 %2011
      %2014 = vset.pattern.permute.xlu0 8
      %2015 = vperm.xlu0 %2014, %v1706
      %v2016 = vpop.permute.xlu0 %2015
      %v2018 = vmul.f32 %v2003, %v2008
      %v2019 = vmul.f32 %v2004, %v2012
      %v2020 = vmul.f32 %v2005, %v2016
      %2024 = vrot.lane.b32.xlu0 %v2018, 110
      %v2025 = vpop.permute.xlu0 %2024
      %2026 = vrot.lane.b32.xlu0 %v2019, 110
      %v2027 = vpop.permute.xlu0 %2026
      %2028 = vrot.lane.b32.xlu0 %v2020, 110
      %v2029 = vpop.permute.xlu0 %2028
      %v2033 = vadd.f32 %v1997, %v2025
      %v2034 = vadd.f32 %v1998, %v2027
      %v2035 = vadd.f32 %v1999, %v2029
      %2037 = vset.pattern.permute.xlu0 0
      %2038 = vperm.xlu0 %2037, %v1707
      %v2039 = vpop.permute.xlu0 %2038
      %2042 = vset.pattern.permute.xlu0 0
      %2043 = vperm.xlu0 %2042, %v1708
      %v2044 = vpop.permute.xlu0 %2043
      %2047 = vset.pattern.permute.xlu0 0
      %2048 = vperm.xlu0 %2047, %v1709
      %v2049 = vpop.permute.xlu0 %2048
      %v2051 = vadd.f32 %v2033, %v2039
      %v2052 = vadd.f32 %v2034, %v2044
      %v2053 = vadd.f32 %v2035, %v2049
      %v2054 = vmax.f32 %v2051, 0.0
      %v2055 = vmax.f32 %v2052, 0.0
      %v2056 = vmax.f32 %v2053, 0.0
      %v2057 = vmin.f32 %v2054, 6.0
      %v2058 = vmin.f32 %v2055, 6.0
      %v2059 = vmin.f32 %v2056, 6.0
      %v2060 = vld [vmem:[%s21] sm:$0xf]
      %v2061 = vld [vmem:[%s21 + $0x4] sm:$0xf]
      %v2062 = vpack.c.bf16 %v2058, %v2057
      %v2063 = vpack.c.bf16 %v2059, %v2059
      %v2064 = vld [vmem:[%s23] sm:$0xff]
      %v2065 = vld [vmem:[%s23 + $0x8] sm:$0xff]
      %2067 = vset.pattern.permute.xlu0 0
      %2068 = vperm.xlu0 %2067, %v2064
      %v2069 = vpop.permute.xlu0 %2068
      %2072 = vset.pattern.permute.xlu0 0
      %2073 = vperm.xlu0 %2072, %v2065
      %v2074 = vpop.permute.xlu0 %2073
      %v2078 = vunpack.c.l.b16 %v2060
      %v2079 = vunpack.c.l.b16 %v2061
      %v2080 = vpack.c.b16 %v2079, %v2078
      %v2082 = vsel %vm1584, %v2080, 0
      %v2085 = vsel %vm1643, %v2063, 0
      %2087 = vmatprep.subr.bf16.mxu0 0
      %2088 = vmatpush1.bf16.msra.mxu0 %v2062
      %2089 = vmatprep.subr.bf16.mxu0 0
      %2090 = vmatpush1.bf16.msra.mxu0 %v2085
      %2091 = vmatprep.subr.bf16.mxu0 0
      %2092 = vmatpush1.bf16.msra.mxu0 0
      %2093 = vmatprep.subr.bf16.mxu0 0
      %2094 = vmatpush1.bf16.msra.mxu0 0
      %2095 = vmatprep.subr.bf16.mxu0 0
      %2096 = vmatpush1.bf16.msra.mxu0 0
      %2097 = vmatprep.subr.bf16.mxu0 0
      %2098 = vmatpush1.bf16.msra.mxu0 0
      %2099 = vmatprep.subr.bf16.mxu0 0
      %2100 = vmatpush1.bf16.msra.mxu0 0
      %2101 = vmatprep.subr.bf16.mxu0 0
      %2102 = vmatpush1.bf16.msra.mxu0 0
      %2103 = vmatprep.subr.bf16.mxu0 0
      %2104 = vmatpush1.bf16.msra.mxu0 0
      %2105 = vmatprep.subr.bf16.mxu0 0
      %2106 = vmatpush1.bf16.msra.mxu0 0
      %2107 = vmatprep.subr.bf16.mxu0 0
      %2108 = vmatpush1.bf16.msra.mxu0 0
      %2109 = vmatprep.subr.bf16.mxu0 0
      %2110 = vmatpush1.bf16.msra.mxu0 0
      %2111 = vmatprep.subr.bf16.mxu0 0
      %2112 = vmatpush1.bf16.msra.mxu0 0
      %2113 = vmatprep.subr.bf16.mxu0 0
      %2114 = vmatpush1.bf16.msra.mxu0 0
      %2115 = vmatprep.subr.bf16.mxu0 0
      %2116 = vmatpush1.bf16.msra.mxu0 0
      %2117 = vmatprep.subr.bf16.mxu0 0
      %2118 = vmatpush1.bf16.msra.mxu0 0
      %2119 = vmatprep.mubr.bf16.mxu0 0
      %2120 = vmatmul.mubr.bf16.gmra.mrb[0].mxu0 %v2082
      %v2121 = vpop.f32.mrb[0].mxu0
      %v2122 = vadd.f32 %v2069, %v2121
      %v2123 = vpop.f32.mrb[0].mxu0
      %v2124 = vpop.f32.mrb[0].mxu0
      %v2125 = vadd.f32 %v2074, %v2124
      %v2126 = vpop.f32.mrb[0].mxu0
      %2127 = vdwg.mxu0
      %v2128 = vmax.f32 %v2122, 0.0
      %v2129 = vmax.f32 %v2125, 0.0
      %v2130 = vmin.f32 %v2128, 6.0
      %v2131 = vmin.f32 %v2129, 6.0
      %vm2132 = vcmask 523264
      %2133 = vst.msk [vmem:[%s1106] sm:$0xff] %vm2132, %v2130
      %2134 = vst.msk [vmem:[%s1106 + $0x8] sm:$0xff] %vm2132, %v2131
      %v2135 = vld [vmem:[%s51] sm:$0xf]
      %v2136 = vpack.c.bf16 %v2131, %v2130
      %v2138 = vsel %vm1577, %v2136, 0
      %v2141 = vsel %vm1643, %v2135, 0
      %2143 = vmatprep.subr.bf16.mxu0 0
      %2144 = vmatpush1.bf16.msra.mxu0 %v2141
      %2145 = vmatprep.subr.bf16.mxu0 0
      %2146 = vmatpush1.bf16.msra.mxu0 0
      %2147 = vmatprep.subr.bf16.mxu0 0
      %2148 = vmatpush1.bf16.msra.mxu0 0
      %2149 = vmatprep.subr.bf16.mxu0 0
      %2150 = vmatpush1.bf16.msra.mxu0 0
      %2151 = vmatprep.subr.bf16.mxu0 0
      %2152 = vmatpush1.bf16.msra.mxu0 0
      %2153 = vmatprep.subr.bf16.mxu0 0
      %2154 = vmatpush1.bf16.msra.mxu0 0
      %2155 = vmatprep.subr.bf16.mxu0 0
      %2156 = vmatpush1.bf16.msra.mxu0 0
      %2157 = vmatprep.subr.bf16.mxu0 0
      %2158 = vmatpush1.bf16.msra.mxu0 0
      %2159 = vmatprep.subr.bf16.mxu0 0
      %2160 = vmatpush1.bf16.msra.mxu0 0
      %2161 = vmatprep.subr.bf16.mxu0 0
      %2162 = vmatpush1.bf16.msra.mxu0 0
      %2163 = vmatprep.subr.bf16.mxu0 0
      %2164 = vmatpush1.bf16.msra.mxu0 0
      %2165 = vmatprep.subr.bf16.mxu0 0
      %2166 = vmatpush1.bf16.msra.mxu0 0
      %2167 = vmatprep.subr.bf16.mxu0 0
      %2168 = vmatpush1.bf16.msra.mxu0 0
      %2169 = vmatprep.subr.bf16.mxu0 0
      %2170 = vmatpush1.bf16.msra.mxu0 0
      %2171 = vmatprep.subr.bf16.mxu0 0
      %2172 = vmatpush1.bf16.msra.mxu0 0
      %2173 = vmatprep.subr.bf16.mxu0 0
      %2174 = vmatpush1.bf16.msra.mxu0 0
      %2175 = vmatprep.mubr.bf16.mxu0 0
      %2176 = vmatmul.mubr.bf16.gmra.mrb[0].mxu0 %v2138
      %v2177 = vpop.f32.mrb[0].mxu0
      %v2178 = vadd.f32 0.0, %v2177
      %v2179 = vpop.f32.mrb[0].mxu0
      %v2180 = vpop.f32.mrb[0].mxu0
      %v2181 = vadd.f32 0.0, %v2180
      %v2182 = vpop.f32.mrb[0].mxu0
      %2183 = vdwg.mxu0
      %2185 = vrot.lane.b32.xlu0 %v2136, 120
      %v2186 = vpop.permute.xlu0 %2185
      %v2188 = vsel %vm1577, %v2186, 0
      %2190 = vmatprep.subr.bf16.mxu0 0
      %2191 = vmatpush1.bf16.msra.mxu0 %v2141
      %2192 = vmatprep.subr.bf16.mxu0 0
      %2193 = vmatpush1.bf16.msra.mxu0 0
      %2194 = vmatprep.subr.bf16.mxu0 0
      %2195 = vmatpush1.bf16.msra.mxu0 0
      %2196 = vmatprep.subr.bf16.mxu0 0
      %2197 = vmatpush1.bf16.msra.mxu0 0
      %2198 = vmatprep.subr.bf16.mxu0 0
      %2199 = vmatpush1.bf16.msra.mxu0 0
      %2200 = vmatprep.subr.bf16.mxu0 0
      %2201 = vmatpush1.bf16.msra.mxu0 0
      %2202 = vmatprep.subr.bf16.mxu0 0
      %2203 = vmatpush1.bf16.msra.mxu0 0
      %2204 = vmatprep.subr.bf16.mxu0 0
      %2205 = vmatpush1.bf16.msra.mxu0 0
      %2206 = vmatprep.subr.bf16.mxu0 0
      %2207 = vmatpush1.bf16.msra.mxu0 0
      %2208 = vmatprep.subr.bf16.mxu0 0
      %2209 = vmatpush1.bf16.msra.mxu0 0
      %2210 = vmatprep.subr.bf16.mxu0 0
      %2211 = vmatpush1.bf16.msra.mxu0 0
      %2212 = vmatprep.subr.bf16.mxu0 0
      %2213 = vmatpush1.bf16.msra.mxu0 0
      %2214 = vmatprep.subr.bf16.mxu0 0
      %2215 = vmatpush1.bf16.msra.mxu0 0
      %2216 = vmatprep.subr.bf16.mxu0 0
      %2217 = vmatpush1.bf16.msra.mxu0 0
      %2218 = vmatprep.subr.bf16.mxu0 0
      %2219 = vmatpush1.bf16.msra.mxu0 0
      %2220 = vmatprep.subr.bf16.mxu0 0
      %2221 = vmatpush1.bf16.msra.mxu0 0
      %2222 = vmatprep.mubr.bf16.mxu0 0
      %2223 = vmatmul.mubr.bf16.gmra.mrb[0].mxu0 %v2188
      %v2224 = vpop.f32.mrb[0].mxu0
      %v2225 = vadd.f32 0.0, %v2224
      %v2226 = vpop.f32.mrb[0].mxu0
      %v2227 = vpop.f32.mrb[0].mxu0
      %v2228 = vadd.f32 0.0, %v2227
      %v2229 = vpop.f32.mrb[0].mxu0
      %2230 = vdwg.mxu0
      %2231 = vrot.lane.b32.xlu0 %v2136, 112
      %v2232 = vpop.permute.xlu0 %2231
      %v2234 = vsel %vm1577, %v2232, 0
      %2236 = vmatprep.subr.bf16.mxu0 0
      %2237 = vmatpush1.bf16.msra.mxu0 %v2141
      %2238 = vmatprep.subr.bf16.mxu0 0
      %2239 = vmatpush1.bf16.msra.mxu0 0
      %2240 = vmatprep.subr.bf16.mxu0 0
      %2241 = vmatpush1.bf16.msra.mxu0 0
      %2242 = vmatprep.subr.bf16.mxu0 0
      %2243 = vmatpush1.bf16.msra.mxu0 0
      %2244 = vmatprep.subr.bf16.mxu0 0
      %2245 = vmatpush1.bf16.msra.mxu0 0
      %2246 = vmatprep.subr.bf16.mxu0 0
      %2247 = vmatpush1.bf16.msra.mxu0 0
      %2248 = vmatprep.subr.bf16.mxu0 0
      %2249 = vmatpush1.bf16.msra.mxu0 0
      %2250 = vmatprep.subr.bf16.mxu0 0
      %2251 = vmatpush1.bf16.msra.mxu0 0
      %2252 = vmatprep.subr.bf16.mxu0 0
      %2253 = vmatpush1.bf16.msra.mxu0 0
      %2254 = vmatprep.subr.bf16.mxu0 0
      %2255 = vmatpush1.bf16.msra.mxu0 0
      %2256 = vmatprep.subr.bf16.mxu0 0
      %2257 = vmatpush1.bf16.msra.mxu0 0
      %2258 = vmatprep.subr.bf16.mxu0 0
      %2259 = vmatpush1.bf16.msra.mxu0 0
      %2260 = vmatprep.subr.bf16.mxu0 0
      %2261 = vmatpush1.bf16.msra.mxu0 0
      %2262 = vmatprep.subr.bf16.mxu0 0
      %2263 = vmatpush1.bf16.msra.mxu0 0
      %2264 = vmatprep.subr.bf16.mxu0 0
      %2265 = vmatpush1.bf16.msra.mxu0 0
      %2266 = vmatprep.subr.bf16.mxu0 0
      %2267 = vmatpush1.bf16.msra.mxu0 0
      %2268 = vmatprep.mubr.bf16.mxu0 0
      %2269 = vmatmul.mubr.bf16.gmra.mrb[0].mxu0 %v2234
      %v2270 = vpop.f32.mrb[0].mxu0
      %v2271 = vadd.f32 0.0, %v2270
      %v2272 = vpop.f32.mrb[0].mxu0
      %v2273 = vpop.f32.mrb[0].mxu0
      %v2274 = vadd.f32 0.0, %v2273
      %v2275 = vpop.f32.mrb[0].mxu0
      %2276 = vdwg.mxu0
      %2277 = vrot.lane.b32.xlu0 %v2136, 104
      %v2278 = vpop.permute.xlu0 %2277
      %v2280 = vsel %vm1577, %v2278, 0
      %2282 = vmatprep.subr.bf16.mxu0 0
      %2283 = vmatpush1.bf16.msra.mxu0 %v2141
      %2284 = vmatprep.subr.bf16.mxu0 0
      %2285 = vmatpush1.bf16.msra.mxu0 0
      %2286 = vmatprep.subr.bf16.mxu0 0
      %2287 = vmatpush1.bf16.msra.mxu0 0
      %2288 = vmatprep.subr.bf16.mxu0 0
      %2289 = vmatpush1.bf16.msra.mxu0 0
      %2290 = vmatprep.subr.bf16.mxu0 0
      %2291 = vmatpush1.bf16.msra.mxu0 0
      %2292 = vmatprep.subr.bf16.mxu0 0
      %2293 = vmatpush1.bf16.msra.mxu0 0
      %2294 = vmatprep.subr.bf16.mxu0 0
      %2295 = vmatpush1.bf16.msra.mxu0 0
      %2296 = vmatprep.subr.bf16.mxu0 0
      %2297 = vmatpush1.bf16.msra.mxu0 0
      %2298 = vmatprep.subr.bf16.mxu0 0
      %2299 = vmatpush1.bf16.msra.mxu0 0
      %2300 = vmatprep.subr.bf16.mxu0 0
      %2301 = vmatpush1.bf16.msra.mxu0 0
      %2302 = vmatprep.subr.bf16.mxu0 0
      %2303 = vmatpush1.bf16.msra.mxu0 0
      %2304 = vmatprep.subr.bf16.mxu0 0
      %2305 = vmatpush1.bf16.msra.mxu0 0
      %2306 = vmatprep.subr.bf16.mxu0 0
      %2307 = vmatpush1.bf16.msra.mxu0 0
      %2308 = vmatprep.subr.bf16.mxu0 0
      %2309 = vmatpush1.bf16.msra.mxu0 0
      %2310 = vmatprep.subr.bf16.mxu0 0
      %2311 = vmatpush1.bf16.msra.mxu0 0
      %2312 = vmatprep.subr.bf16.mxu0 0
      %2313 = vmatpush1.bf16.msra.mxu0 0
      %2314 = vmatprep.mubr.bf16.mxu0 0
      %2315 = vmatmul.mubr.bf16.gmra.mrb[0].mxu0 %v2280
      %v2316 = vpop.f32.mrb[0].mxu0
      %v2317 = vadd.f32 0.0, %v2316
      %v2318 = vpop.f32.mrb[0].mxu0
      %v2319 = vpop.f32.mrb[0].mxu0
      %v2320 = vadd.f32 0.0, %v2319
      %v2321 = vpop.f32.mrb[0].mxu0
      %2322 = vdwg.mxu0
      %2323 = vrot.lane.b32.xlu0 %v2136, 96
      %v2324 = vpop.permute.xlu0 %2323
      %v2326 = vsel %vm1577, %v2324, 0
      %2328 = vmatprep.subr.bf16.mxu0 0
      %2329 = vmatpush1.bf16.msra.mxu0 %v2141
      %2330 = vmatprep.subr.bf16.mxu0 0
      %2331 = vmatpush1.bf16.msra.mxu0 0
      %2332 = vmatprep.subr.bf16.mxu0 0
      %2333 = vmatpush1.bf16.msra.mxu0 0
      %2334 = vmatprep.subr.bf16.mxu0 0
      %2335 = vmatpush1.bf16.msra.mxu0 0
      %2336 = vmatprep.subr.bf16.mxu0 0
      %2337 = vmatpush1.bf16.msra.mxu0 0
      %2338 = vmatprep.subr.bf16.mxu0 0
      %2339 = vmatpush1.bf16.msra.mxu0 0
      %2340 = vmatprep.subr.bf16.mxu0 0
      %2341 = vmatpush1.bf16.msra.mxu0 0
      %2342 = vmatprep.subr.bf16.mxu0 0
      %2343 = vmatpush1.bf16.msra.mxu0 0
      %2344 = vmatprep.subr.bf16.mxu0 0
      %2345 = vmatpush1.bf16.msra.mxu0 0
      %2346 = vmatprep.subr.bf16.mxu0 0
      %2347 = vmatpush1.bf16.msra.mxu0 0
      %2348 = vmatprep.subr.bf16.mxu0 0
      %2349 = vmatpush1.bf16.msra.mxu0 0
      %2350 = vmatprep.subr.bf16.mxu0 0
      %2351 = vmatpush1.bf16.msra.mxu0 0
      %2352 = vmatprep.subr.bf16.mxu0 0
      %2353 = vmatpush1.bf16.msra.mxu0 0
      %2354 = vmatprep.subr.bf16.mxu0 0
      %2355 = vmatpush1.bf16.msra.mxu0 0
      %2356 = vmatprep.subr.bf16.mxu0 0
      %2357 = vmatpush1.bf16.msra.mxu0 0
      %2358 = vmatprep.subr.bf16.mxu0 0
      %2359 = vmatpush1.bf16.msra.mxu0 0
      %2360 = vmatprep.mubr.bf16.mxu0 0
      %2361 = vmatmul.mubr.bf16.gmra.mrb[0].mxu0 %v2326
      %v2362 = vpop.f32.mrb[0].mxu0
      %v2363 = vadd.f32 0.0, %v2362
      %v2364 = vpop.f32.mrb[0].mxu0
      %v2365 = vpop.f32.mrb[0].mxu0
      %v2366 = vadd.f32 0.0, %v2365
      %v2367 = vpop.f32.mrb[0].mxu0
      %2368 = vdwg.mxu0
      %2369 = vrot.lane.b32.xlu0 %v2136, 88
      %v2370 = vpop.permute.xlu0 %2369
      %v2372 = vsel %vm1577, %v2370, 0
      %2374 = vmatprep.subr.bf16.mxu0 0
      %2375 = vmatpush1.bf16.msra.mxu0 %v2141
      %2376 = vmatprep.subr.bf16.mxu0 0
      %2377 = vmatpush1.bf16.msra.mxu0 0
      %2378 = vmatprep.subr.bf16.mxu0 0
      %2379 = vmatpush1.bf16.msra.mxu0 0
      %2380 = vmatprep.subr.bf16.mxu0 0
      %2381 = vmatpush1.bf16.msra.mxu0 0
      %2382 = vmatprep.subr.bf16.mxu0 0
      %2383 = vmatpush1.bf16.msra.mxu0 0
      %2384 = vmatprep.subr.bf16.mxu0 0
      %2385 = vmatpush1.bf16.msra.mxu0 0
      %2386 = vmatprep.subr.bf16.mxu0 0
      %2387 = vmatpush1.bf16.msra.mxu0 0
      %2388 = vmatprep.subr.bf16.mxu0 0
      %2389 = vmatpush1.bf16.msra.mxu0 0
      %2390 = vmatprep.subr.bf16.mxu0 0
      %2391 = vmatpush1.bf16.msra.mxu0 0
      %2392 = vmatprep.subr.bf16.mxu0 0
      %2393 = vmatpush1.bf16.msra.mxu0 0
      %2394 = vmatprep.subr.bf16.mxu0 0
      %2395 = vmatpush1.bf16.msra.mxu0 0
      %2396 = vmatprep.subr.bf16.mxu0 0
      %2397 = vmatpush1.bf16.msra.mxu0 0
      %2398 = vmatprep.subr.bf16.mxu0 0
      %2399 = vmatpush1.bf16.msra.mxu0 0
      %2400 = vmatprep.subr.bf16.mxu0 0
      %2401 = vmatpush1.bf16.msra.mxu0 0
      %2402 = vmatprep.subr.bf16.mxu0 0
      %2403 = vmatpush1.bf16.msra.mxu0 0
      %2404 = vmatprep.subr.bf16.mxu0 0
      %2405 = vmatpush1.bf16.msra.mxu0 0
      %2406 = vmatprep.mubr.bf16.mxu0 0
      %2407 = vmatmul.mubr.bf16.gmra.mrb[0].mxu0 %v2372
      %v2408 = vpop.f32.mrb[0].mxu0
      %v2409 = vadd.f32 0.0, %v2408
      %v2410 = vpop.f32.mrb[0].mxu0
      %v2411 = vpop.f32.mrb[0].mxu0
      %v2412 = vadd.f32 0.0, %v2411
      %v2413 = vpop.f32.mrb[0].mxu0
      %2414 = vdwg.mxu0
      %2415 = vrot.lane.b32.xlu0 %v2136, 80
      %v2416 = vpop.permute.xlu0 %2415
      %v2418 = vsel %vm1577, %v2416, 0
      %2420 = vmatprep.subr.bf16.mxu0 0
      %2421 = vmatpush1.bf16.msra.mxu0 %v2141
      %2422 = vmatprep.subr.bf16.mxu0 0
      %2423 = vmatpush1.bf16.msra.mxu0 0
      %2424 = vmatprep.subr.bf16.mxu0 0
      %2425 = vmatpush1.bf16.msra.mxu0 0
      %2426 = vmatprep.subr.bf16.mxu0 0
      %2427 = vmatpush1.bf16.msra.mxu0 0
      %2428 = vmatprep.subr.bf16.mxu0 0
      %2429 = vmatpush1.bf16.msra.mxu0 0
      %2430 = vmatprep.subr.bf16.mxu0 0
      %2431 = vmatpush1.bf16.msra.mxu0 0
      %2432 = vmatprep.subr.bf16.mxu0 0
      %2433 = vmatpush1.bf16.msra.mxu0 0
      %2434 = vmatprep.subr.bf16.mxu0 0
      %2435 = vmatpush1.bf16.msra.mxu0 0
      %2436 = vmatprep.subr.bf16.mxu0 0
      %2437 = vmatpush1.bf16.msra.mxu0 0
      %2438 = vmatprep.subr.bf16.mxu0 0
      %2439 = vmatpush1.bf16.msra.mxu0 0
      %2440 = vmatprep.subr.bf16.mxu0 0
      %2441 = vmatpush1.bf16.msra.mxu0 0
      %2442 = vmatprep.subr.bf16.mxu0 0
      %2443 = vmatpush1.bf16.msra.mxu0 0
      %2444 = vmatprep.subr.bf16.mxu0 0
      %2445 = vmatpush1.bf16.msra.mxu0 0
      %2446 = vmatprep.subr.bf16.mxu0 0
      %2447 = vmatpush1.bf16.msra.mxu0 0
      %2448 = vmatprep.subr.bf16.mxu0 0
      %2449 = vmatpush1.bf16.msra.mxu0 0
      %2450 = vmatprep.subr.bf16.mxu0 0
      %2451 = vmatpush1.bf16.msra.mxu0 0
      %2452 = vmatprep.mubr.bf16.mxu0 0
      %2453 = vmatmul.mubr.bf16.gmra.mrb[0].mxu0 %v2418
      %v2454 = vpop.f32.mrb[0].mxu0
      %v2455 = vadd.f32 0.0, %v2454
      %v2456 = vpop.f32.mrb[0].mxu0
      %v2457 = vpop.f32.mrb[0].mxu0
      %v2458 = vadd.f32 0.0, %v2457
      %v2459 = vpop.f32.mrb[0].mxu0
      %2460 = vdwg.mxu0
      %2461 = vrot.lane.b32.xlu0 %v2136, 72
      %v2462 = vpop.permute.xlu0 %2461
      %v2464 = vsel %vm1577, %v2462, 0
      %2466 = vmatprep.subr.bf16.mxu0 0
      %2467 = vmatpush1.bf16.msra.mxu0 %v2141
      %2468 = vmatprep.subr.bf16.mxu0 0
      %2469 = vmatpush1.bf16.msra.mxu0 0
      %2470 = vmatprep.subr.bf16.mxu0 0
      %2471 = vmatpush1.bf16.msra.mxu0 0
      %2472 = vmatprep.subr.bf16.mxu0 0
      %2473 = vmatpush1.bf16.msra.mxu0 0
      %2474 = vmatprep.subr.bf16.mxu0 0
      %2475 = vmatpush1.bf16.msra.mxu0 0
      %2476 = vmatprep.subr.bf16.mxu0 0
      %2477 = vmatpush1.bf16.msra.mxu0 0
      %2478 = vmatprep.subr.bf16.mxu0 0
      %2479 = vmatpush1.bf16.msra.mxu0 0
      %2480 = vmatprep.subr.bf16.mxu0 0
      %2481 = vmatpush1.bf16.msra.mxu0 0
      %2482 = vmatprep.subr.bf16.mxu0 0
      %2483 = vmatpush1.bf16.msra.mxu0 0
      %2484 = vmatprep.subr.bf16.mxu0 0
      %2485 = vmatpush1.bf16.msra.mxu0 0
      %2486 = vmatprep.subr.bf16.mxu0 0
      %2487 = vmatpush1.bf16.msra.mxu0 0
      %2488 = vmatprep.subr.bf16.mxu0 0
      %2489 = vmatpush1.bf16.msra.mxu0 0
      %2490 = vmatprep.subr.bf16.mxu0 0
      %2491 = vmatpush1.bf16.msra.mxu0 0
      %2492 = vmatprep.subr.bf16.mxu0 0
      %2493 = vmatpush1.bf16.msra.mxu0 0
      %2494 = vmatprep.subr.bf16.mxu0 0
      %2495 = vmatpush1.bf16.msra.mxu0 0
      %2496 = vmatprep.subr.bf16.mxu0 0
      %2497 = vmatpush1.bf16.msra.mxu0 0
      %2498 = vmatprep.mubr.bf16.mxu0 0
      %2499 = vmatmul.mubr.bf16.gmra.mrb[0].mxu0 %v2464
      %v2500 = vpop.f32.mrb[0].mxu0
      %v2501 = vadd.f32 0.0, %v2500
      %v2502 = vpop.f32.mrb[0].mxu0
      %v2503 = vpop.f32.mrb[0].mxu0
      %v2504 = vadd.f32 0.0, %v2503
      %v2505 = vpop.f32.mrb[0].mxu0
      %2506 = vdwg.mxu0
      %v2507 = vmul.f32 %v2178, 0.75
      %v2508 = vmul.f32 %v2181, 0.75
      %v2509 = vmul.f32 %v2225, 0.25
      %v2510 = vmul.f32 %v2228, 0.25
      %v2511 = vadd.f32 %v2507, %v2509
      %v2512 = vadd.f32 %v2508, %v2510
      %v2513 = vmul.f32 %v2178, 0.25
      %v2514 = vmul.f32 %v2181, 0.25
      %v2515 = vmul.f32 %v2225, 0.75
      %v2516 = vmul.f32 %v2228, 0.75
      %v2517 = vadd.f32 %v2513, %v2515
      %v2518 = vadd.f32 %v2514, %v2516
      %v2519 = vmul.f32 %v2271, 0.25
      %v2520 = vmul.f32 %v2274, 0.25
      %v2521 = vadd.f32 %v2515, %v2519
      %v2522 = vadd.f32 %v2516, %v2520
      %v2523 = vmul.f32 %v2271, 0.75
      %v2524 = vmul.f32 %v2274, 0.75
      %v2525 = vadd.f32 %v2509, %v2523
      %v2526 = vadd.f32 %v2510, %v2524
      %v2527 = vmul.f32 %v2317, 0.25
      %v2528 = vmul.f32 %v2320, 0.25
      %v2529 = vadd.f32 %v2523, %v2527
      %v2530 = vadd.f32 %v2524, %v2528
      %v2531 = vmul.f32 %v2317, 0.75
      %v2532 = vmul.f32 %v2320, 0.75
      %v2533 = vadd.f32 %v2519, %v2531
      %v2534 = vadd.f32 %v2520, %v2532
      %v2535 = vmul.f32 %v2363, 0.25
      %v2536 = vmul.f32 %v2366, 0.25
      %v2537 = vadd.f32 %v2531, %v2535
      %v2538 = vadd.f32 %v2532, %v2536
      %v2539 = vmul.f32 %v2363, 0.75
      %v2540 = vmul.f32 %v2366, 0.75
      %v2541 = vadd.f32 %v2527, %v2539
      %v2542 = vadd.f32 %v2528, %v2540
      %v2543 = vmul.f32 %v2409, 0.25
      %v2544 = vmul.f32 %v2412, 0.25
      %v2545 = vadd.f32 %v2539, %v2543
      %v2546 = vadd.f32 %v2540, %v2544
      %v2547 = vmul.f32 %v2409, 0.75
      %v2548 = vmul.f32 %v2412, 0.75
      %v2549 = vadd.f32 %v2535, %v2547
      %v2550 = vadd.f32 %v2536, %v2548
      %v2551 = vmul.f32 %v2455, 0.25
      %v2552 = vmul.f32 %v2458, 0.25
      %v2553 = vadd.f32 %v2547, %v2551
      %v2554 = vadd.f32 %v2548, %v2552
      %v2555 = vmul.f32 %v2455, 0.75
      %v2556 = vmul.f32 %v2458, 0.75
      %v2557 = vadd.f32 %v2543, %v2555
      %v2558 = vadd.f32 %v2544, %v2556
      %v2559 = vmul.f32 %v2501, 0.25
      %v2560 = vmul.f32 %v2504, 0.25
      %v2561 = vadd.f32 %v2555, %v2559
      %v2562 = vadd.f32 %v2556, %v2560
      %v2563 = vmul.f32 %v2501, 0.75
      %v2564 = vmul.f32 %v2504, 0.75
      %v2565 = vadd.f32 %v2551, %v2563
      %v2566 = vadd.f32 %v2552, %v2564
      %2569 = vrot.lane.b32.xlu0 %v2511, 16
      %v2570 = vpop.permute.xlu0 %2569
      %2571 = vrot.lane.b32.xlu0 %v2512, 16
      %v2572 = vpop.permute.xlu0 %2571
      %2577 = vrot.lane.b32.xlu0 %v2517, 32
      %v2578 = vpop.permute.xlu0 %2577
      %2579 = vrot.lane.b32.xlu0 %v2518, 32
      %v2580 = vpop.permute.xlu0 %2579
      %2585 = vrot.lane.b32.xlu0 %v2521, 48
      %v2586 = vpop.permute.xlu0 %2585
      %2587 = vrot.lane.b32.xlu0 %v2522, 48
      %v2588 = vpop.permute.xlu0 %2587
      %2593 = vrot.lane.b32.xlu0 %v2525, 64
      %v2594 = vpop.permute.xlu0 %2593
      %2595 = vrot.lane.b32.xlu0 %v2526, 64
      %v2596 = vpop.permute.xlu0 %2595
      %2601 = vrot.lane.b32.xlu0 %v2529, 80
      %v2602 = vpop.permute.xlu0 %2601
      %2603 = vrot.lane.b32.xlu0 %v2530, 80
      %v2604 = vpop.permute.xlu0 %2603
      %2609 = vrot.lane.b32.xlu0 %v2533, 96
      %v2610 = vpop.permute.xlu0 %2609
      %2611 = vrot.lane.b32.xlu0 %v2534, 96
      %v2612 = vpop.permute.xlu0 %2611
      %2617 = vrot.lane.b32.xlu0 %v2537, 112
      %v2618 = vpop.permute.xlu0 %2617
      %2619 = vrot.lane.b32.xlu0 %v2538, 112
      %v2620 = vpop.permute.xlu0 %2619
      %2625 = vrot.lane.b32.xlu0 %v2545, 16
      %v2626 = vpop.permute.xlu0 %2625
      %2627 = vrot.lane.b32.xlu0 %v2546, 16
      %v2628 = vpop.permute.xlu0 %2627
      %2633 = vrot.lane.b32.xlu0 %v2549, 32
      %v2634 = vpop.permute.xlu0 %2633
      %2635 = vrot.lane.b32.xlu0 %v2550, 32
      %v2636 = vpop.permute.xlu0 %2635
      %2641 = vrot.lane.b32.xlu0 %v2553, 48
      %v2642 = vpop.permute.xlu0 %2641
      %2643 = vrot.lane.b32.xlu0 %v2554, 48
      %v2644 = vpop.permute.xlu0 %2643
      %2649 = vrot.lane.b32.xlu0 %v2557, 64
      %v2650 = vpop.permute.xlu0 %2649
      %2651 = vrot.lane.b32.xlu0 %v2558, 64
      %v2652 = vpop.permute.xlu0 %2651
      %2657 = vrot.lane.b32.xlu0 %v2561, 80
      %v2658 = vpop.permute.xlu0 %2657
      %2659 = vrot.lane.b32.xlu0 %v2562, 80
      %v2660 = vpop.permute.xlu0 %2659
      %2665 = vrot.lane.b32.xlu0 %v2565, 96
      %v2666 = vpop.permute.xlu0 %2665
      %2667 = vrot.lane.b32.xlu0 %v2566, 96
      %v2668 = vpop.permute.xlu0 %2667
      %2673 = vrot.lane.b32.xlu0 %v2501, 112
      %v2674 = vpop.permute.xlu0 %2673
      %2675 = vrot.lane.b32.xlu0 %v2504, 112
      %v2676 = vpop.permute.xlu0 %2675
      %v2679 = vsel %vm1209, %v2178, %v2570
      %v2680 = vsel %vm1209, %v2181, %v2572
      %v2681 = vsel %vm1148, %v2679, %v2578
      %v2682 = vsel %vm1148, %v2680, %v2580
      %v2683 = vsel %vm1595, %v2681, %v2586
      %v2684 = vsel %vm1595, %v2682, %v2588
      %v2685 = vsel %vm2132, %v2683, %v2594
      %v2686 = vsel %vm2132, %v2684, %v2596
      %vm2687 = vcmask 654336
      %v2688 = vsel %vm2687, %v2685, %v2602
      %v2689 = vsel %vm2687, %v2686, %v2604
      %vm2690 = vcmask 785408
      %v2691 = vsel %vm2690, %v2688, %v2610
      %v2692 = vsel %vm2690, %v2689, %v2612
      %vm2693 = vcmask 916480
      %v2694 = vsel %vm2693, %v2691, %v2618
      %v2695 = vsel %vm2693, %v2692, %v2620
      %v2696 = vsel %vm1209, %v2541, %v2626
      %v2697 = vsel %vm1209, %v2542, %v2628
      %v2698 = vsel %vm1148, %v2696, %v2634
      %v2699 = vsel %vm1148, %v2697, %v2636
      %v2700 = vsel %vm1595, %v2698, %v2642
      %v2701 = vsel %vm1595, %v2699, %v2644
      %v2702 = vsel %vm2132, %v2700, %v2650
      %v2703 = vsel %vm2132, %v2701, %v2652
      %v2704 = vsel %vm2687, %v2702, %v2658
      %v2705 = vsel %vm2687, %v2703, %v2660
      %v2706 = vsel %vm2690, %v2704, %v2666
      %v2707 = vsel %vm2690, %v2705, %v2668
      %v2708 = vsel %vm2693, %v2706, %v2674
      %v2709 = vsel %vm2693, %v2707, %v2676
      %v2710 = vld [vmem:[%s1081] sm:$0xff]
      %v2711 = vld [vmem:[%s1081 + $0x8] sm:$0xff]
      %v2712 = vld [vmem:[%s1081 + $0x10] sm:$0xff]
      %v2713 = vld [vmem:[%s1081 + $0x18] sm:$0xff]
      %v2714 = vld [vmem:[%s25] sm:$0xf]
      %v2715 = vld [vmem:[%s25 + $0x4] sm:$0xf]
      %v2716 = vpack.c.bf16 %v2712, %v2710
      %v2717 = vpack.c.bf16 %v2713, %v2711
      %v2718 = vld [vmem:[%s27] sm:$0xff]
      %v2719 = vld [vmem:[%s27 + $0x8] sm:$0xff]
      %2721 = vset.pattern.permute.xlu0 0
      %2722 = vperm.xlu0 %2721, %v2718
      %v2723 = vpop.permute.xlu0 %2722
      %2726 = vset.pattern.permute.xlu0 0
      %2727 = vperm.xlu0 %2726, %v2719
      %v2728 = vpop.permute.xlu0 %2727
      %v2732 = vunpack.c.l.b16 %v2714
      %v2733 = vunpack.c.l.b16 %v2715
      %v2734 = vpack.c.b16 %v2733, %v2732
      %v2736 = vsel %vm1209, %v2734, 0
      %2738 = vmatprep.subr.bf16.mxu0 %v2717
      %2739 = vmatpush1.bf16.msra.mxu0 %v2716
      %2740 = vmatprep.subr.bf16.mxu0 0
      %2741 = vmatpush1.bf16.msra.mxu0 0
      %2742 = vmatprep.subr.bf16.mxu0 0
      %2743 = vmatpush1.bf16.msra.mxu0 0
      %2744 = vmatprep.subr.bf16.mxu0 0
      %2745 = vmatpush1.bf16.msra.mxu0 0
      %2746 = vmatprep.subr.bf16.mxu0 0
      %2747 = vmatpush1.bf16.msra.mxu0 0
      %2748 = vmatprep.subr.bf16.mxu0 0
      %2749 = vmatpush1.bf16.msra.mxu0 0
      %2750 = vmatprep.subr.bf16.mxu0 0
      %2751 = vmatpush1.bf16.msra.mxu0 0
      %2752 = vmatprep.subr.bf16.mxu0 0
      %2753 = vmatpush1.bf16.msra.mxu0 0
      %2754 = vmatprep.subr.bf16.mxu0 0
      %2755 = vmatpush1.bf16.msra.mxu0 0
      %2756 = vmatprep.subr.bf16.mxu0 0
      %2757 = vmatpush1.bf16.msra.mxu0 0
      %2758 = vmatprep.subr.bf16.mxu0 0
      %2759 = vmatpush1.bf16.msra.mxu0 0
      %2760 = vmatprep.subr.bf16.mxu0 0
      %2761 = vmatpush1.bf16.msra.mxu0 0
      %2762 = vmatprep.subr.bf16.mxu0 0
      %2763 = vmatpush1.bf16.msra.mxu0 0
      %2764 = vmatprep.subr.bf16.mxu0 0
      %2765 = vmatpush1.bf16.msra.mxu0 0
      %2766 = vmatprep.subr.bf16.mxu0 0
      %2767 = vmatpush1.bf16.msra.mxu0 0
      %2768 = vmatprep.subr.bf16.mxu0 0
      %2769 = vmatpush1.bf16.msra.mxu0 0
      %2770 = vmatprep.mubr.bf16.mxu0 0
      %2771 = vmatmul.mubr.bf16.gmra.mrb[0].mxu0 %v2736
      %v2772 = vpop.f32.mrb[0].mxu0
      %v2773 = vadd.f32 %v2723, %v2772
      %v2774 = vpop.f32.mrb[0].mxu0
      %v2775 = vadd.f32 %v2723, %v2774
      %v2776 = vpop.f32.mrb[0].mxu0
      %v2777 = vadd.f32 %v2728, %v2776
      %v2778 = vpop.f32.mrb[0].mxu0
      %v2779 = vadd.f32 %v2728, %v2778
      %2780 = vdwg.mxu0
      %v2781 = vmax.f32 %v2773, 0.0
      %v2782 = vmax.f32 %v2775, 0.0
      %v2783 = vmax.f32 %v2777, 0.0
      %v2784 = vmax.f32 %v2779, 0.0
      %v2785 = vmin.f32 %v2781, 6.0
      %v2786 = vmin.f32 %v2782, 6.0
      %v2787 = vmin.f32 %v2783, 6.0
      %v2788 = vmin.f32 %v2784, 6.0
      %v2789 = vadd.f32 %v2694, %v2785
      %v2790 = vadd.f32 %v2708, %v2786
      %v2791 = vadd.f32 %v2695, %v2787
      %v2792 = vadd.f32 %v2709, %v2788
      %v2793 = vld [vmem:[%s29] sm:$0xff]
      %v2794 = vld [vmem:[%s29 + $0x8] sm:$0xff]
      %v2795 = vld [vmem:[%s31] sm:$0xff]
      %v2796 = vld [vmem:[%s31 + $0x8] sm:$0xff]
      %v2797 = vld [vmem:[%s57] ss:$2 sm:$0x3]
      %s2798 = scalar_lea.vmem %s57, 1
      %v2799 = vld [vmem:[%s2798] ss:$2 sm:$0x3]
      %2804 = vrot.lane.b32.xlu0 %v2789, 17
      %v2805 = vpop.permute.xlu0 %2804
      %2806 = vrot.lane.b32.xlu0 %v2790, 17
      %v2807 = vpop.permute.xlu0 %2806
      %2808 = vrot.lane.b32.xlu0 %v2791, 17
      %v2809 = vpop.permute.xlu0 %2808
      %2810 = vrot.lane.b32.xlu0 %v2792, 17
      %v2811 = vpop.permute.xlu0 %2810
      %vm2812 = vcmask 138240
      %v2813 = vsel %vm2812, %v2805, %v2807
      %v2814 = vsel %vm2812, %v2809, %v2811
      %v2821 = vsel %vm2812, 0.0, %v2805
      %v2822 = vsel %vm2812, 0.0, %v2809
      %v2823 = vsel %vm2812, %v2807, 0.0
      %v2824 = vsel %vm2812, %v2811, 0.0
      %v2826 = vlaneseq
      %v2827 = vshrl.u32 %v2826, 7
      %v2828 = vsub.s32 0, %v2827
      %v2829 = vrot.slane %v2797, %v2828
      %v2830 = vlaneseq
      %v2831 = vshrl.u32 %v2830, 7
      %v2832 = vsub.s32 1, %v2831
      %v2833 = vrot.slane %v2797, %v2832
      %v2836 = vmul.f32 %v2821, %v2829
      %v2837 = vmul.f32 %v2813, %v2833
      %v2838 = vmul.f32 %v2822, %v2829
      %v2839 = vmul.f32 %v2814, %v2833
      %2841 = vset.pattern.permute.xlu0 0
      %2842 = vperm.xlu0 %2841, %v2793
      %v2843 = vpop.permute.xlu0 %2842
      %2846 = vset.pattern.permute.xlu0 0
      %2847 = vperm.xlu0 %2846, %v2794
      %v2848 = vpop.permute.xlu0 %2847
      %v2850 = vmul.f32 %v2836, %v2843
      %v2851 = vmul.f32 %v2837, %v2843
      %v2852 = vmul.f32 %v2838, %v2848
      %v2853 = vmul.f32 %v2839, %v2848
      %v2854 = vadd.f32 %v2850, 0.0
      %v2855 = vadd.f32 %v2851, 0.0
      %v2856 = vadd.f32 %v2852, 0.0
      %v2857 = vadd.f32 %v2853, 0.0
      %2858 = vset.pattern.permute.xlu0 1
      %2859 = vperm.xlu0 %2858, %v2793
      %v2860 = vpop.permute.xlu0 %2859
      %2862 = vset.pattern.permute.xlu0 1
      %2863 = vperm.xlu0 %2862, %v2794
      %v2864 = vpop.permute.xlu0 %2863
      %v2866 = vmul.f32 %v2821, %v2860
      %v2867 = vmul.f32 %v2813, %v2860
      %v2868 = vmul.f32 %v2823, %v2860
      %v2869 = vmul.f32 %v2822, %v2864
      %v2870 = vmul.f32 %v2814, %v2864
      %v2871 = vmul.f32 %v2824, %v2864
      %2878 = vrot.lane.b32.xlu0 %v2866, 127
      %v2879 = vpop.permute.xlu0 %2878
      %2880 = vrot.lane.b32.xlu0 %v2867, 127
      %v2881 = vpop.permute.xlu0 %2880
      %2882 = vrot.lane.b32.xlu0 %v2868, 127
      %v2883 = vpop.permute.xlu0 %2882
      %2884 = vrot.lane.b32.xlu0 %v2869, 127
      %v2885 = vpop.permute.xlu0 %2884
      %2886 = vrot.lane.b32.xlu0 %v2870, 127
      %v2887 = vpop.permute.xlu0 %2886
      %2888 = vrot.lane.b32.xlu0 %v2871, 127
      %v2889 = vpop.permute.xlu0 %2888
      %vm2890 = vcmask 1039360
      %v2891 = vsel %vm2890, %v2879, %v2881
      %v2892 = vsel %vm2890, %v2881, %v2883
      %v2893 = vsel %vm2890, %v2885, %v2887
      %v2894 = vsel %vm2890, %v2887, %v2889
      %v2899 = vadd.f32 %v2854, %v2891
      %v2900 = vadd.f32 %v2855, %v2892
      %v2901 = vadd.f32 %v2856, %v2893
      %v2902 = vadd.f32 %v2857, %v2894
      %v2904 = vlaneseq
      %v2905 = vshrl.u32 %v2904, 7
      %v2906 = vsub.s32 0, %v2905
      %v2907 = vrot.slane %v2799, %v2906
      %v2908 = vlaneseq
      %v2909 = vshrl.u32 %v2908, 7
      %v2910 = vsub.s32 1, %v2909
      %v2911 = vrot.slane %v2799, %v2910
      %2912 = vrot.lane.b32.xlu0 %v2907, 2
      %v2913 = vpop.permute.xlu0 %2912
      %2914 = vrot.lane.b32.xlu0 %v2911, 2
      %v2915 = vpop.permute.xlu0 %2914
      %vm2916 = vcmask 15360
      %v2917 = vsel %vm2916, %v2913, %v2915
      %v2921 = vmul.f32 %v2821, %v2913
      %v2922 = vmul.f32 %v2813, %v2917
      %v2923 = vmul.f32 %v2823, %v2915
      %v2924 = vmul.f32 %v2822, %v2913
      %v2925 = vmul.f32 %v2814, %v2917
      %v2926 = vmul.f32 %v2824, %v2915
      %2927 = vset.pattern.permute.xlu0 2
      %2928 = vperm.xlu0 %2927, %v2793
      %v2929 = vpop.permute.xlu0 %2928
      %2931 = vset.pattern.permute.xlu0 2
      %2932 = vperm.xlu0 %2931, %v2794
      %v2933 = vpop.permute.xlu0 %2932
      %v2935 = vmul.f32 %v2921, %v2929
      %v2936 = vmul.f32 %v2922, %v2929
      %v2937 = vmul.f32 %v2923, %v2929
      %v2938 = vmul.f32 %v2924, %v2933
      %v2939 = vmul.f32 %v2925, %v2933
      %v2940 = vmul.f32 %v2926, %v2933
      %2947 = vrot.lane.b32.xlu0 %v2935, 126
      %v2948 = vpop.permute.xlu0 %2947
      %2949 = vrot.lane.b32.xlu0 %v2936, 126
      %v2950 = vpop.permute.xlu0 %2949
      %2951 = vrot.lane.b32.xlu0 %v2937, 126
      %v2952 = vpop.permute.xlu0 %2951
      %2953 = vrot.lane.b32.xlu0 %v2938, 126
      %v2954 = vpop.permute.xlu0 %2953
      %2955 = vrot.lane.b32.xlu0 %v2939, 126
      %v2956 = vpop.permute.xlu0 %2955
      %2957 = vrot.lane.b32.xlu0 %v2940, 126
      %v2958 = vpop.permute.xlu0 %2957
      %vm2959 = vcmask 1031168
      %v2960 = vsel %vm2959, %v2948, %v2950
      %v2961 = vsel %vm2959, %v2950, %v2952
      %v2962 = vsel %vm2959, %v2954, %v2956
      %v2963 = vsel %vm2959, %v2956, %v2958
      %v2968 = vadd.f32 %v2899, %v2960
      %v2969 = vadd.f32 %v2900, %v2961
      %v2970 = vadd.f32 %v2901, %v2962
      %v2971 = vadd.f32 %v2902, %v2963
      %2972 = vrot.lane.b32.xlu0 %v2829, 16
      %v2973 = vpop.permute.xlu0 %2972
      %2974 = vrot.lane.b32.xlu0 %v2833, 16
      %v2975 = vpop.permute.xlu0 %2974
      %v2976 = vsel %vm1209, %v2973, %v2975
      %v2980 = vmul.f32 %v2821, %v2973
      %v2981 = vmul.f32 %v2813, %v2976
      %v2982 = vmul.f32 %v2823, %v2975
      %v2983 = vmul.f32 %v2822, %v2973
      %v2984 = vmul.f32 %v2814, %v2976
      %v2985 = vmul.f32 %v2824, %v2975
      %2986 = vset.pattern.permute.xlu0 3
      %2987 = vperm.xlu0 %2986, %v2793
      %v2988 = vpop.permute.xlu0 %2987
      %2990 = vset.pattern.permute.xlu0 3
      %2991 = vperm.xlu0 %2990, %v2794
      %v2992 = vpop.permute.xlu0 %2991
      %v2994 = vmul.f32 %v2980, %v2988
      %v2995 = vmul.f32 %v2981, %v2988
      %v2996 = vmul.f32 %v2982, %v2988
      %v2997 = vmul.f32 %v2983, %v2992
      %v2998 = vmul.f32 %v2984, %v2992
      %v2999 = vmul.f32 %v2985, %v2992
      %3006 = vrot.lane.b32.xlu0 %v2994, 112
      %v3007 = vpop.permute.xlu0 %3006
      %3008 = vrot.lane.b32.xlu0 %v2995, 112
      %v3009 = vpop.permute.xlu0 %3008
      %3010 = vrot.lane.b32.xlu0 %v2996, 112
      %v3011 = vpop.permute.xlu0 %3010
      %3012 = vrot.lane.b32.xlu0 %v2997, 112
      %v3013 = vpop.permute.xlu0 %3012
      %3014 = vrot.lane.b32.xlu0 %v2998, 112
      %v3015 = vpop.permute.xlu0 %3014
      %3016 = vrot.lane.b32.xlu0 %v2999, 112
      %v3017 = vpop.permute.xlu0 %3016
      %v3018 = vsel %vm2693, %v3007, %v3009
      %v3019 = vsel %vm2693, %v3009, %v3011
      %v3020 = vsel %vm2693, %v3013, %v3015
      %v3021 = vsel %vm2693, %v3015, %v3017
      %v3026 = vadd.f32 %v2968, %v3018
      %v3027 = vadd.f32 %v2969, %v3019
      %v3028 = vadd.f32 %v2970, %v3020
      %v3029 = vadd.f32 %v2971, %v3021
      %3030 = vset.pattern.permute.xlu0 4
      %3031 = vperm.xlu0 %3030, %v2793
      %v3032 = vpop.permute.xlu0 %3031
      %3034 = vset.pattern.permute.xlu0 4
      %3035 = vperm.xlu0 %3034, %v2794
      %v3036 = vpop.permute.xlu0 %3035
      %v3038 = vmul.f32 %v2821, %v3032
      %v3039 = vmul.f32 %v2813, %v3032
      %v3040 = vmul.f32 %v2823, %v3032
      %v3041 = vmul.f32 %v2822, %v3036
      %v3042 = vmul.f32 %v2814, %v3036
      %v3043 = vmul.f32 %v2824, %v3036
      %3050 = vrot.lane.b32.xlu0 %v3038, 111
      %v3051 = vpop.permute.xlu0 %3050
      %3052 = vrot.lane.b32.xlu0 %v3039, 111
      %v3053 = vpop.permute.xlu0 %3052
      %3054 = vrot.lane.b32.xlu0 %v3040, 111
      %v3055 = vpop.permute.xlu0 %3054
      %3056 = vrot.lane.b32.xlu0 %v3041, 111
      %v3057 = vpop.permute.xlu0 %3056
      %3058 = vrot.lane.b32.xlu0 %v3042, 111
      %v3059 = vpop.permute.xlu0 %3058
      %3060 = vrot.lane.b32.xlu0 %v3043, 111
      %v3061 = vpop.permute.xlu0 %3060
      %vm3062 = vcmask 908288
      %v3063 = vsel %vm3062, %v3051, %v3053
      %v3064 = vsel %vm3062, %v3053, %v3055
      %v3065 = vsel %vm3062, %v3057, %v3059
      %v3066 = vsel %vm3062, %v3059, %v3061
      %v3071 = vadd.f32 %v3026, %v3063
      %v3072 = vadd.f32 %v3027, %v3064
      %v3073 = vadd.f32 %v3028, %v3065
      %v3074 = vadd.f32 %v3029, %v3066
      %3075 = vrot.lane.b32.xlu0 %v2907, 18
      %v3076 = vpop.permute.xlu0 %3075
      %3077 = vrot.lane.b32.xlu0 %v2911, 18
      %v3078 = vpop.permute.xlu0 %3077
      %vm3079 = vcmask 146432
      %v3080 = vsel %vm3079, %v3076, %v3078
      %v3084 = vmul.f32 %v2821, %v3076
      %v3085 = vmul.f32 %v2813, %v3080
      %v3086 = vmul.f32 %v2823, %v3078
      %v3087 = vmul.f32 %v2822, %v3076
      %v3088 = vmul.f32 %v2814, %v3080
      %v3089 = vmul.f32 %v2824, %v3078
      %3090 = vset.pattern.permute.xlu0 5
      %3091 = vperm.xlu0 %3090, %v2793
      %v3092 = vpop.permute.xlu0 %3091
      %3094 = vset.pattern.permute.xlu0 5
      %3095 = vperm.xlu0 %3094, %v2794
      %v3096 = vpop.permute.xlu0 %3095
      %v3098 = vmul.f32 %v3084, %v3092
      %v3099 = vmul.f32 %v3085, %v3092
      %v3100 = vmul.f32 %v3086, %v3092
      %v3101 = vmul.f32 %v3087, %v3096
      %v3102 = vmul.f32 %v3088, %v3096
      %v3103 = vmul.f32 %v3089, %v3096
      %3110 = vrot.lane.b32.xlu0 %v3098, 110
      %v3111 = vpop.permute.xlu0 %3110
      %3112 = vrot.lane.b32.xlu0 %v3099, 110
      %v3113 = vpop.permute.xlu0 %3112
      %3114 = vrot.lane.b32.xlu0 %v3100, 110
      %v3115 = vpop.permute.xlu0 %3114
      %3116 = vrot.lane.b32.xlu0 %v3101, 110
      %v3117 = vpop.permute.xlu0 %3116
      %3118 = vrot.lane.b32.xlu0 %v3102, 110
      %v3119 = vpop.permute.xlu0 %3118
      %3120 = vrot.lane.b32.xlu0 %v3103, 110
      %v3121 = vpop.permute.xlu0 %3120
      %vm3122 = vcmask 900096
      %v3123 = vsel %vm3122, %v3111, %v3113
      %v3124 = vsel %vm3122, %v3113, %v3115
      %v3125 = vsel %vm3122, %v3117, %v3119
      %v3126 = vsel %vm3122, %v3119, %v3121
      %v3131 = vadd.f32 %v3071, %v3123
      %v3132 = vadd.f32 %v3072, %v3124
      %v3133 = vadd.f32 %v3073, %v3125
      %v3134 = vadd.f32 %v3074, %v3126
      %3135 = vrot.lane.b32.xlu0 %v2829, 32
      %v3136 = vpop.permute.xlu0 %3135
      %3137 = vrot.lane.b32.xlu0 %v2833, 32
      %v3138 = vpop.permute.xlu0 %3137
      %v3139 = vsel %vm1148, %v3136, %v3138
      %v3143 = vmul.f32 %v2821, %v3136
      %v3144 = vmul.f32 %v2813, %v3139
      %v3145 = vmul.f32 %v2823, %v3138
      %v3146 = vmul.f32 %v2822, %v3136
      %v3147 = vmul.f32 %v2814, %v3139
      %v3148 = vmul.f32 %v2824, %v3138
      %3149 = vset.pattern.permute.xlu0 6
      %3150 = vperm.xlu0 %3149, %v2793
      %v3151 = vpop.permute.xlu0 %3150
      %3153 = vset.pattern.permute.xlu0 6
      %3154 = vperm.xlu0 %3153, %v2794
      %v3155 = vpop.permute.xlu0 %3154
      %v3157 = vmul.f32 %v3143, %v3151
      %v3158 = vmul.f32 %v3144, %v3151
      %v3159 = vmul.f32 %v3145, %v3151
      %v3160 = vmul.f32 %v3146, %v3155
      %v3161 = vmul.f32 %v3147, %v3155
      %v3162 = vmul.f32 %v3148, %v3155
      %3169 = vrot.lane.b32.xlu0 %v3157, 96
      %v3170 = vpop.permute.xlu0 %3169
      %3171 = vrot.lane.b32.xlu0 %v3158, 96
      %v3172 = vpop.permute.xlu0 %3171
      %3173 = vrot.lane.b32.xlu0 %v3159, 96
      %v3174 = vpop.permute.xlu0 %3173
      %3175 = vrot.lane.b32.xlu0 %v3160, 96
      %v3176 = vpop.permute.xlu0 %3175
      %3177 = vrot.lane.b32.xlu0 %v3161, 96
      %v3178 = vpop.permute.xlu0 %3177
      %3179 = vrot.lane.b32.xlu0 %v3162, 96
      %v3180 = vpop.permute.xlu0 %3179
      %v3181 = vsel %vm2690, %v3170, %v3172
      %v3182 = vsel %vm2690, %v3172, %v3174
      %v3183 = vsel %vm2690, %v3176, %v3178
      %v3184 = vsel %vm2690, %v3178, %v3180
      %v3189 = vadd.f32 %v3131, %v3181
      %v3190 = vadd.f32 %v3132, %v3182
      %v3191 = vadd.f32 %v3133, %v3183
      %v3192 = vadd.f32 %v3134, %v3184
      %3193 = vset.pattern.permute.xlu0 7
      %3194 = vperm.xlu0 %3193, %v2793
      %v3195 = vpop.permute.xlu0 %3194
      %3197 = vset.pattern.permute.xlu0 7
      %3198 = vperm.xlu0 %3197, %v2794
      %v3199 = vpop.permute.xlu0 %3198
      %v3201 = vmul.f32 %v2821, %v3195
      %v3202 = vmul.f32 %v2813, %v3195
      %v3203 = vmul.f32 %v2823, %v3195
      %v3204 = vmul.f32 %v2822, %v3199
      %v3205 = vmul.f32 %v2814, %v3199
      %v3206 = vmul.f32 %v2824, %v3199
      %3213 = vrot.lane.b32.xlu0 %v3201, 95
      %v3214 = vpop.permute.xlu0 %3213
      %3215 = vrot.lane.b32.xlu0 %v3202, 95
      %v3216 = vpop.permute.xlu0 %3215
      %3217 = vrot.lane.b32.xlu0 %v3203, 95
      %v3218 = vpop.permute.xlu0 %3217
      %3219 = vrot.lane.b32.xlu0 %v3204, 95
      %v3220 = vpop.permute.xlu0 %3219
      %3221 = vrot.lane.b32.xlu0 %v3205, 95
      %v3222 = vpop.permute.xlu0 %3221
      %3223 = vrot.lane.b32.xlu0 %v3206, 95
      %v3224 = vpop.permute.xlu0 %3223
      %vm3225 = vcmask 777216
      %v3226 = vsel %vm3225, %v3214, %v3216
      %v3227 = vsel %vm3225, %v3216, %v3218
      %v3228 = vsel %vm3225, %v3220, %v3222
      %v3229 = vsel %vm3225, %v3222, %v3224
      %v3234 = vadd.f32 %v3189, %v3226
      %v3235 = vadd.f32 %v3190, %v3227
      %v3236 = vadd.f32 %v3191, %v3228
      %v3237 = vadd.f32 %v3192, %v3229
      %3238 = vrot.lane.b32.xlu0 %v2907, 34
      %v3239 = vpop.permute.xlu0 %3238
      %3240 = vrot.lane.b32.xlu0 %v2911, 34
      %v3241 = vpop.permute.xlu0 %3240
      %vm3242 = vcmask 277504
      %v3243 = vsel %vm3242, %v3239, %v3241
      %v3247 = vmul.f32 %v2821, %v3239
      %v3248 = vmul.f32 %v2813, %v3243
      %v3249 = vmul.f32 %v2823, %v3241
      %v3250 = vmul.f32 %v2822, %v3239
      %v3251 = vmul.f32 %v2814, %v3243
      %v3252 = vmul.f32 %v2824, %v3241
      %3253 = vset.pattern.permute.xlu0 8
      %3254 = vperm.xlu0 %3253, %v2793
      %v3255 = vpop.permute.xlu0 %3254
      %3257 = vset.pattern.permute.xlu0 8
      %3258 = vperm.xlu0 %3257, %v2794
      %v3259 = vpop.permute.xlu0 %3258
      %v3261 = vmul.f32 %v3247, %v3255
      %v3262 = vmul.f32 %v3248, %v3255
      %v3263 = vmul.f32 %v3249, %v3255
      %v3264 = vmul.f32 %v3250, %v3259
      %v3265 = vmul.f32 %v3251, %v3259
      %v3266 = vmul.f32 %v3252, %v3259
      %3273 = vrot.lane.b32.xlu0 %v3261, 94
      %v3274 = vpop.permute.xlu0 %3273
      %3275 = vrot.lane.b32.xlu0 %v3262, 94
      %v3276 = vpop.permute.xlu0 %3275
      %3277 = vrot.lane.b32.xlu0 %v3263, 94
      %v3278 = vpop.permute.xlu0 %3277
      %3279 = vrot.lane.b32.xlu0 %v3264, 94
      %v3280 = vpop.permute.xlu0 %3279
      %3281 = vrot.lane.b32.xlu0 %v3265, 94
      %v3282 = vpop.permute.xlu0 %3281
      %3283 = vrot.lane.b32.xlu0 %v3266, 94
      %v3284 = vpop.permute.xlu0 %3283
      %vm3285 = vcmask 769024
      %v3286 = vsel %vm3285, %v3274, %v3276
      %v3287 = vsel %vm3285, %v3276, %v3278
      %v3288 = vsel %vm3285, %v3280, %v3282
      %v3289 = vsel %vm3285, %v3282, %v3284
      %v3294 = vadd.f32 %v3234, %v3286
      %v3295 = vadd.f32 %v3235, %v3287
      %v3296 = vadd.f32 %v3236, %v3288
      %v3297 = vadd.f32 %v3237, %v3289
      %3299 = vset.pattern.permute.xlu0 0
      %3300 = vperm.xlu0 %3299, %v2795
      %v3301 = vpop.permute.xlu0 %3300
      %3304 = vset.pattern.permute.xlu0 0
      %3305 = vperm.xlu0 %3304, %v2796
      %v3306 = vpop.permute.xlu0 %3305
      %v3308 = vadd.f32 %v3294, %v3301
      %v3309 = vadd.f32 %v3295, %v3301
      %v3310 = vadd.f32 %v3296, %v3306
      %v3311 = vadd.f32 %v3297, %v3306
      %v3312 = vmax.f32 %v3308, 0.0
      %v3313 = vmax.f32 %v3309, 0.0
      %v3314 = vmax.f32 %v3310, 0.0
      %v3315 = vmax.f32 %v3311, 0.0
      %v3316 = vmin.f32 %v3312, 6.0
      %v3317 = vmin.f32 %v3313, 6.0
      %v3318 = vmin.f32 %v3314, 6.0
      %v3319 = vmin.f32 %v3315, 6.0
      %v3320 = vld [vmem:[%s33] sm:$0xf]
      %v3321 = vpack.c.bf16 %v3318, %v3316
      %v3322 = vpack.c.bf16 %v3319, %v3317
      %v3323 = vld [vmem:[%s35] sm:$0xff]
      %3325 = vset.pattern.permute.xlu0 0
      %3326 = vperm.xlu0 %3325, %v3323
      %v3327 = vpop.permute.xlu0 %3326
      %v3330 = vsel %vm1209, %v3320, 0
      %3332 = vmatprep.subr.bf16.mxu0 %v3322
      %3333 = vmatpush1.bf16.msra.mxu0 %v3321
      %3334 = vmatprep.subr.bf16.mxu0 0
      %3335 = vmatpush1.bf16.msra.mxu0 0
      %3336 = vmatprep.subr.bf16.mxu0 0
      %3337 = vmatpush1.bf16.msra.mxu0 0
      %3338 = vmatprep.subr.bf16.mxu0 0
      %3339 = vmatpush1.bf16.msra.mxu0 0
      %3340 = vmatprep.subr.bf16.mxu0 0
      %3341 = vmatpush1.bf16.msra.mxu0 0
      %3342 = vmatprep.subr.bf16.mxu0 0
      %3343 = vmatpush1.bf16.msra.mxu0 0
      %3344 = vmatprep.subr.bf16.mxu0 0
      %3345 = vmatpush1.bf16.msra.mxu0 0
      %3346 = vmatprep.subr.bf16.mxu0 0
      %3347 = vmatpush1.bf16.msra.mxu0 0
      %3348 = vmatprep.subr.bf16.mxu0 0
      %3349 = vmatpush1.bf16.msra.mxu0 0
      %3350 = vmatprep.subr.bf16.mxu0 0
      %3351 = vmatpush1.bf16.msra.mxu0 0
      %3352 = vmatprep.subr.bf16.mxu0 0
      %3353 = vmatpush1.bf16.msra.mxu0 0
      %3354 = vmatprep.subr.bf16.mxu0 0
      %3355 = vmatpush1.bf16.msra.mxu0 0
      %3356 = vmatprep.subr.bf16.mxu0 0
      %3357 = vmatpush1.bf16.msra.mxu0 0
      %3358 = vmatprep.subr.bf16.mxu0 0
      %3359 = vmatpush1.bf16.msra.mxu0 0
      %3360 = vmatprep.subr.bf16.mxu0 0
      %3361 = vmatpush1.bf16.msra.mxu0 0
      %3362 = vmatprep.subr.bf16.mxu0 0
      %3363 = vmatpush1.bf16.msra.mxu0 0
      %3364 = vmatprep.mubr.bf16.mxu0 0
      %3365 = vmatmul.mubr.bf16.gmra.mrb[0].mxu0 %v3330
      %v3366 = vpop.f32.mrb[0].mxu0
      %v3367 = vadd.f32 %v3327, %v3366
      %v3368 = vpop.f32.mrb[0].mxu0
      %v3369 = vadd.f32 %v3327, %v3368
      %v3370 = vpop.f32.mrb[0].mxu0
      %v3371 = vpop.f32.mrb[0].mxu0
      %3372 = vdwg.mxu0
      %v3373 = vmax.f32 %v3367, 0.0
      %v3374 = vmax.f32 %v3369, 0.0
      %v3375 = vmin.f32 %v3373, 6.0
      %v3376 = vmin.f32 %v3374, 6.0
      %3377 = vst [vmem:[%s1101] sm:$0xff] %v3375
      %3378 = vst [vmem:[%s1101 + $0x8] sm:$0xff] %v3376
      %v3379 = vld [vmem:[%s53] sm:$0xf]
      %v3380 = vld [vmem:[%s53 + $0x4] sm:$0xf]
      %v3381 = vpack.c.bf16 %v3375, %v3375
      %v3382 = vpack.c.bf16 %v3376, %v3376
      %v3385 = vunpack.c.l.b16 %v3379
      %v3386 = vunpack.c.l.b16 %v3380
      %v3387 = vpack.c.b16 %v3386, %v3385
      %v3390 = vsel %vm1209, %v3381, 0
      %3392 = vmatprep.subr.bf16.mxu0 0
      %3393 = vmatpush1.bf16.msra.mxu0 %v3387
      %3394 = vmatprep.subr.bf16.mxu0 0
      %3395 = vmatpush1.bf16.msra.mxu0 0
      %3396 = vmatprep.subr.bf16.mxu0 0
      %3397 = vmatpush1.bf16.msra.mxu0 0
      %3398 = vmatprep.subr.bf16.mxu0 0
      %3399 = vmatpush1.bf16.msra.mxu0 0
      %3400 = vmatprep.subr.bf16.mxu0 0
      %3401 = vmatpush1.bf16.msra.mxu0 0
      %3402 = vmatprep.subr.bf16.mxu0 0
      %3403 = vmatpush1.bf16.msra.mxu0 0
      %3404 = vmatprep.subr.bf16.mxu0 0
      %3405 = vmatpush1.bf16.msra.mxu0 0
      %3406 = vmatprep.subr.bf16.mxu0 0
      %3407 = vmatpush1.bf16.msra.mxu0 0
      %3408 = vmatprep.subr.bf16.mxu0 0
      %3409 = vmatpush1.bf16.msra.mxu0 0
      %3410 = vmatprep.subr.bf16.mxu0 0
      %3411 = vmatpush1.bf16.msra.mxu0 0
      %3412 = vmatprep.subr.bf16.mxu0 0
      %3413 = vmatpush1.bf16.msra.mxu0 0
      %3414 = vmatprep.subr.bf16.mxu0 0
      %3415 = vmatpush1.bf16.msra.mxu0 0
      %3416 = vmatprep.subr.bf16.mxu0 0
      %3417 = vmatpush1.bf16.msra.mxu0 0
      %3418 = vmatprep.subr.bf16.mxu0 0
      %3419 = vmatpush1.bf16.msra.mxu0 0
      %3420 = vmatprep.subr.bf16.mxu0 0
      %3421 = vmatpush1.bf16.msra.mxu0 0
      %3422 = vmatprep.subr.bf16.mxu0 0
      %3423 = vmatpush1.bf16.msra.mxu0 0
      %3424 = vmatprep.mubr.bf16.mxu0 0
      %3425 = vmatmul.mubr.bf16.gmra.mrb[0].mxu0 %v3390
      %v3426 = vpop.f32.mrb[0].mxu0
      %v3427 = vadd.f32 0.0, %v3426
      %v3428 = vpop.f32.mrb[0].mxu0
      %v3429 = vpop.f32.mrb[0].mxu0
      %v3430 = vpop.f32.mrb[0].mxu0
      %3431 = vdwg.mxu0
      %3433 = vrot.lane.b32.xlu0 %v3381, 112
      %v3434 = vpop.permute.xlu0 %3433
      %v3436 = vsel %vm1209, %v3434, 0
      %3438 = vmatprep.subr.bf16.mxu0 0
      %3439 = vmatpush1.bf16.msra.mxu0 %v3387
      %3440 = vmatprep.subr.bf16.mxu0 0
      %3441 = vmatpush1.bf16.msra.mxu0 0
      %3442 = vmatprep.subr.bf16.mxu0 0
      %3443 = vmatpush1.bf16.msra.mxu0 0
      %3444 = vmatprep.subr.bf16.mxu0 0
      %3445 = vmatpush1.bf16.msra.mxu0 0
      %3446 = vmatprep.subr.bf16.mxu0 0
      %3447 = vmatpush1.bf16.msra.mxu0 0
      %3448 = vmatprep.subr.bf16.mxu0 0
      %3449 = vmatpush1.bf16.msra.mxu0 0
      %3450 = vmatprep.subr.bf16.mxu0 0
      %3451 = vmatpush1.bf16.msra.mxu0 0
      %3452 = vmatprep.subr.bf16.mxu0 0
      %3453 = vmatpush1.bf16.msra.mxu0 0
      %3454 = vmatprep.subr.bf16.mxu0 0
      %3455 = vmatpush1.bf16.msra.mxu0 0
      %3456 = vmatprep.subr.bf16.mxu0 0
      %3457 = vmatpush1.bf16.msra.mxu0 0
      %3458 = vmatprep.subr.bf16.mxu0 0
      %3459 = vmatpush1.bf16.msra.mxu0 0
      %3460 = vmatprep.subr.bf16.mxu0 0
      %3461 = vmatpush1.bf16.msra.mxu0 0
      %3462 = vmatprep.subr.bf16.mxu0 0
      %3463 = vmatpush1.bf16.msra.mxu0 0
      %3464 = vmatprep.subr.bf16.mxu0 0
      %3465 = vmatpush1.bf16.msra.mxu0 0
      %3466 = vmatprep.subr.bf16.mxu0 0
      %3467 = vmatpush1.bf16.msra.mxu0 0
      %3468 = vmatprep.subr.bf16.mxu0 0
      %3469 = vmatpush1.bf16.msra.mxu0 0
      %3470 = vmatprep.mubr.bf16.mxu0 0
      %3471 = vmatmul.mubr.bf16.gmra.mrb[0].mxu0 %v3436
      %v3472 = vpop.f32.mrb[0].mxu0
      %v3473 = vadd.f32 0.0, %v3472
      %v3474 = vpop.f32.mrb[0].mxu0
      %v3475 = vpop.f32.mrb[0].mxu0
      %v3476 = vpop.f32.mrb[0].mxu0
      %3477 = vdwg.mxu0
      %3478 = vrot.lane.b32.xlu0 %v3381, 96
      %v3479 = vpop.permute.xlu0 %3478
      %v3481 = vsel %vm1209, %v3479, 0
      %3483 = vmatprep.subr.bf16.mxu0 0
      %3484 = vmatpush1.bf16.msra.mxu0 %v3387
      %3485 = vmatprep.subr.bf16.mxu0 0
      %3486 = vmatpush1.bf16.msra.mxu0 0
      %3487 = vmatprep.subr.bf16.mxu0 0
      %3488 = vmatpush1.bf16.msra.mxu0 0
      %3489 = vmatprep.subr.bf16.mxu0 0
      %3490 = vmatpush1.bf16.msra.mxu0 0
      %3491 = vmatprep.subr.bf16.mxu0 0
      %3492 = vmatpush1.bf16.msra.mxu0 0
      %3493 = vmatprep.subr.bf16.mxu0 0
      %3494 = vmatpush1.bf16.msra.mxu0 0
      %3495 = vmatprep.subr.bf16.mxu0 0
      %3496 = vmatpush1.bf16.msra.mxu0 0
      %3497 = vmatprep.subr.bf16.mxu0 0
      %3498 = vmatpush1.bf16.msra.mxu0 0
      %3499 = vmatprep.subr.bf16.mxu0 0
      %3500 = vmatpush1.bf16.msra.mxu0 0
      %3501 = vmatprep.subr.bf16.mxu0 0
      %3502 = vmatpush1.bf16.msra.mxu0 0
      %3503 = vmatprep.subr.bf16.mxu0 0
      %3504 = vmatpush1.bf16.msra.mxu0 0
      %3505 = vmatprep.subr.bf16.mxu0 0
      %3506 = vmatpush1.bf16.msra.mxu0 0
      %3507 = vmatprep.subr.bf16.mxu0 0
      %3508 = vmatpush1.bf16.msra.mxu0 0
      %3509 = vmatprep.subr.bf16.mxu0 0
      %3510 = vmatpush1.bf16.msra.mxu0 0
      %3511 = vmatprep.subr.bf16.mxu0 0
      %3512 = vmatpush1.bf16.msra.mxu0 0
      %3513 = vmatprep.subr.bf16.mxu0 0
      %3514 = vmatpush1.bf16.msra.mxu0 0
      %3515 = vmatprep.mubr.bf16.mxu0 0
      %3516 = vmatmul.mubr.bf16.gmra.mrb[0].mxu0 %v3481
      %v3517 = vpop.f32.mrb[0].mxu0
      %v3518 = vadd.f32 0.0, %v3517
      %v3519 = vpop.f32.mrb[0].mxu0
      %v3520 = vpop.f32.mrb[0].mxu0
      %v3521 = vpop.f32.mrb[0].mxu0
      %3522 = vdwg.mxu0
      %3523 = vrot.lane.b32.xlu0 %v3381, 80
      %v3524 = vpop.permute.xlu0 %3523
      %v3526 = vsel %vm1209, %v3524, 0
      %3528 = vmatprep.subr.bf16.mxu0 0
      %3529 = vmatpush1.bf16.msra.mxu0 %v3387
      %3530 = vmatprep.subr.bf16.mxu0 0
      %3531 = vmatpush1.bf16.msra.mxu0 0
      %3532 = vmatprep.subr.bf16.mxu0 0
      %3533 = vmatpush1.bf16.msra.mxu0 0
      %3534 = vmatprep.subr.bf16.mxu0 0
      %3535 = vmatpush1.bf16.msra.mxu0 0
      %3536 = vmatprep.subr.bf16.mxu0 0
      %3537 = vmatpush1.bf16.msra.mxu0 0
      %3538 = vmatprep.subr.bf16.mxu0 0
      %3539 = vmatpush1.bf16.msra.mxu0 0
      %3540 = vmatprep.subr.bf16.mxu0 0
      %3541 = vmatpush1.bf16.msra.mxu0 0
      %3542 = vmatprep.subr.bf16.mxu0 0
      %3543 = vmatpush1.bf16.msra.mxu0 0
      %3544 = vmatprep.subr.bf16.mxu0 0
      %3545 = vmatpush1.bf16.msra.mxu0 0
      %3546 = vmatprep.subr.bf16.mxu0 0
      %3547 = vmatpush1.bf16.msra.mxu0 0
      %3548 = vmatprep.subr.bf16.mxu0 0
      %3549 = vmatpush1.bf16.msra.mxu0 0
      %3550 = vmatprep.subr.bf16.mxu0 0
      %3551 = vmatpush1.bf16.msra.mxu0 0
      %3552 = vmatprep.subr.bf16.mxu0 0
      %3553 = vmatpush1.bf16.msra.mxu0 0
      %3554 = vmatprep.subr.bf16.mxu0 0
      %3555 = vmatpush1.bf16.msra.mxu0 0
      %3556 = vmatprep.subr.bf16.mxu0 0
      %3557 = vmatpush1.bf16.msra.mxu0 0
      %3558 = vmatprep.subr.bf16.mxu0 0
      %3559 = vmatpush1.bf16.msra.mxu0 0
      %3560 = vmatprep.mubr.bf16.mxu0 0
      %3561 = vmatmul.mubr.bf16.gmra.mrb[0].mxu0 %v3526
      %v3562 = vpop.f32.mrb[0].mxu0
      %v3563 = vadd.f32 0.0, %v3562
      %v3564 = vpop.f32.mrb[0].mxu0
      %v3565 = vpop.f32.mrb[0].mxu0
      %v3566 = vpop.f32.mrb[0].mxu0
      %3567 = vdwg.mxu0
      %3568 = vrot.lane.b32.xlu0 %v3381, 64
      %v3569 = vpop.permute.xlu0 %3568
      %v3571 = vsel %vm1209, %v3569, 0
      %3573 = vmatprep.subr.bf16.mxu0 0
      %3574 = vmatpush1.bf16.msra.mxu0 %v3387
      %3575 = vmatprep.subr.bf16.mxu0 0
      %3576 = vmatpush1.bf16.msra.mxu0 0
      %3577 = vmatprep.subr.bf16.mxu0 0
      %3578 = vmatpush1.bf16.msra.mxu0 0
      %3579 = vmatprep.subr.bf16.mxu0 0
      %3580 = vmatpush1.bf16.msra.mxu0 0
      %3581 = vmatprep.subr.bf16.mxu0 0
      %3582 = vmatpush1.bf16.msra.mxu0 0
      %3583 = vmatprep.subr.bf16.mxu0 0
      %3584 = vmatpush1.bf16.msra.mxu0 0
      %3585 = vmatprep.subr.bf16.mxu0 0
      %3586 = vmatpush1.bf16.msra.mxu0 0
      %3587 = vmatprep.subr.bf16.mxu0 0
      %3588 = vmatpush1.bf16.msra.mxu0 0
      %3589 = vmatprep.subr.bf16.mxu0 0
      %3590 = vmatpush1.bf16.msra.mxu0 0
      %3591 = vmatprep.subr.bf16.mxu0 0
      %3592 = vmatpush1.bf16.msra.mxu0 0
      %3593 = vmatprep.subr.bf16.mxu0 0
      %3594 = vmatpush1.bf16.msra.mxu0 0
      %3595 = vmatprep.subr.bf16.mxu0 0
      %3596 = vmatpush1.bf16.msra.mxu0 0
      %3597 = vmatprep.subr.bf16.mxu0 0
      %3598 = vmatpush1.bf16.msra.mxu0 0
      %3599 = vmatprep.subr.bf16.mxu0 0
      %3600 = vmatpush1.bf16.msra.mxu0 0
      %3601 = vmatprep.subr.bf16.mxu0 0
      %3602 = vmatpush1.bf16.msra.mxu0 0
      %3603 = vmatprep.subr.bf16.mxu0 0
      %3604 = vmatpush1.bf16.msra.mxu0 0
      %3605 = vmatprep.mubr.bf16.mxu0 0
      %3606 = vmatmul.mubr.bf16.gmra.mrb[0].mxu0 %v3571
      %v3607 = vpop.f32.mrb[0].mxu0
      %v3608 = vadd.f32 0.0, %v3607
      %v3609 = vpop.f32.mrb[0].mxu0
      %v3610 = vpop.f32.mrb[0].mxu0
      %v3611 = vpop.f32.mrb[0].mxu0
      %3612 = vdwg.mxu0
      %3613 = vrot.lane.b32.xlu0 %v3381, 48
      %v3614 = vpop.permute.xlu0 %3613
      %v3616 = vsel %vm1209, %v3614, 0
      %3618 = vmatprep.subr.bf16.mxu0 0
      %3619 = vmatpush1.bf16.msra.mxu0 %v3387
      %3620 = vmatprep.subr.bf16.mxu0 0
      %3621 = vmatpush1.bf16.msra.mxu0 0
      %3622 = vmatprep.subr.bf16.mxu0 0
      %3623 = vmatpush1.bf16.msra.mxu0 0
      %3624 = vmatprep.subr.bf16.mxu0 0
      %3625 = vmatpush1.bf16.msra.mxu0 0
      %3626 = vmatprep.subr.bf16.mxu0 0
      %3627 = vmatpush1.bf16.msra.mxu0 0
      %3628 = vmatprep.subr.bf16.mxu0 0
      %3629 = vmatpush1.bf16.msra.mxu0 0
      %3630 = vmatprep.subr.bf16.mxu0 0
      %3631 = vmatpush1.bf16.msra.mxu0 0
      %3632 = vmatprep.subr.bf16.mxu0 0
      %3633 = vmatpush1.bf16.msra.mxu0 0
      %3634 = vmatprep.subr.bf16.mxu0 0
      %3635 = vmatpush1.bf16.msra.mxu0 0
      %3636 = vmatprep.subr.bf16.mxu0 0
      %3637 = vmatpush1.bf16.msra.mxu0 0
      %3638 = vmatprep.subr.bf16.mxu0 0
      %3639 = vmatpush1.bf16.msra.mxu0 0
      %3640 = vmatprep.subr.bf16.mxu0 0
      %3641 = vmatpush1.bf16.msra.mxu0 0
      %3642 = vmatprep.subr.bf16.mxu0 0
      %3643 = vmatpush1.bf16.msra.mxu0 0
      %3644 = vmatprep.subr.bf16.mxu0 0
      %3645 = vmatpush1.bf16.msra.mxu0 0
      %3646 = vmatprep.subr.bf16.mxu0 0
      %3647 = vmatpush1.bf16.msra.mxu0 0
      %3648 = vmatprep.subr.bf16.mxu0 0
      %3649 = vmatpush1.bf16.msra.mxu0 0
      %3650 = vmatprep.mubr.bf16.mxu0 0
      %3651 = vmatmul.mubr.bf16.gmra.mrb[0].mxu0 %v3616
      %v3652 = vpop.f32.mrb[0].mxu0
      %v3653 = vadd.f32 0.0, %v3652
      %v3654 = vpop.f32.mrb[0].mxu0
      %v3655 = vpop.f32.mrb[0].mxu0
      %v3656 = vpop.f32.mrb[0].mxu0
      %3657 = vdwg.mxu0
      %3658 = vrot.lane.b32.xlu0 %v3381, 32
      %v3659 = vpop.permute.xlu0 %3658
      %v3661 = vsel %vm1209, %v3659, 0
      %3663 = vmatprep.subr.bf16.mxu0 0
      %3664 = vmatpush1.bf16.msra.mxu0 %v3387
      %3665 = vmatprep.subr.bf16.mxu0 0
      %3666 = vmatpush1.bf16.msra.mxu0 0
      %3667 = vmatprep.subr.bf16.mxu0 0
      %3668 = vmatpush1.bf16.msra.mxu0 0
      %3669 = vmatprep.subr.bf16.mxu0 0
      %3670 = vmatpush1.bf16.msra.mxu0 0
      %3671 = vmatprep.subr.bf16.mxu0 0
      %3672 = vmatpush1.bf16.msra.mxu0 0
      %3673 = vmatprep.subr.bf16.mxu0 0
      %3674 = vmatpush1.bf16.msra.mxu0 0
      %3675 = vmatprep.subr.bf16.mxu0 0
      %3676 = vmatpush1.bf16.msra.mxu0 0
      %3677 = vmatprep.subr.bf16.mxu0 0
      %3678 = vmatpush1.bf16.msra.mxu0 0
      %3679 = vmatprep.subr.bf16.mxu0 0
      %3680 = vmatpush1.bf16.msra.mxu0 0
      %3681 = vmatprep.subr.bf16.mxu0 0
      %3682 = vmatpush1.bf16.msra.mxu0 0
      %3683 = vmatprep.subr.bf16.mxu0 0
      %3684 = vmatpush1.bf16.msra.mxu0 0
      %3685 = vmatprep.subr.bf16.mxu0 0
      %3686 = vmatpush1.bf16.msra.mxu0 0
      %3687 = vmatprep.subr.bf16.mxu0 0
      %3688 = vmatpush1.bf16.msra.mxu0 0
      %3689 = vmatprep.subr.bf16.mxu0 0
      %3690 = vmatpush1.bf16.msra.mxu0 0
      %3691 = vmatprep.subr.bf16.mxu0 0
      %3692 = vmatpush1.bf16.msra.mxu0 0
      %3693 = vmatprep.subr.bf16.mxu0 0
      %3694 = vmatpush1.bf16.msra.mxu0 0
      %3695 = vmatprep.mubr.bf16.mxu0 0
      %3696 = vmatmul.mubr.bf16.gmra.mrb[0].mxu0 %v3661
      %v3697 = vpop.f32.mrb[0].mxu0
      %v3698 = vadd.f32 0.0, %v3697
      %v3699 = vpop.f32.mrb[0].mxu0
      %v3700 = vpop.f32.mrb[0].mxu0
      %v3701 = vpop.f32.mrb[0].mxu0
      %3702 = vdwg.mxu0
      %3703 = vrot.lane.b32.xlu0 %v3381, 16
      %v3704 = vpop.permute.xlu0 %3703
      %v3706 = vsel %vm1209, %v3704, 0
      %3708 = vmatprep.subr.bf16.mxu0 0
      %3709 = vmatpush1.bf16.msra.mxu0 %v3387
      %3710 = vmatprep.subr.bf16.mxu0 0
      %3711 = vmatpush1.bf16.msra.mxu0 0
      %3712 = vmatprep.subr.bf16.mxu0 0
      %3713 = vmatpush1.bf16.msra.mxu0 0
      %3714 = vmatprep.subr.bf16.mxu0 0
      %3715 = vmatpush1.bf16.msra.mxu0 0
      %3716 = vmatprep.subr.bf16.mxu0 0
      %3717 = vmatpush1.bf16.msra.mxu0 0
      %3718 = vmatprep.subr.bf16.mxu0 0
      %3719 = vmatpush1.bf16.msra.mxu0 0
      %3720 = vmatprep.subr.bf16.mxu0 0
      %3721 = vmatpush1.bf16.msra.mxu0 0
      %3722 = vmatprep.subr.bf16.mxu0 0
      %3723 = vmatpush1.bf16.msra.mxu0 0
      %3724 = vmatprep.subr.bf16.mxu0 0
      %3725 = vmatpush1.bf16.msra.mxu0 0
      %3726 = vmatprep.subr.bf16.mxu0 0
      %3727 = vmatpush1.bf16.msra.mxu0 0
      %3728 = vmatprep.subr.bf16.mxu0 0
      %3729 = vmatpush1.bf16.msra.mxu0 0
      %3730 = vmatprep.subr.bf16.mxu0 0
      %3731 = vmatpush1.bf16.msra.mxu0 0
      %3732 = vmatprep.subr.bf16.mxu0 0
      %3733 = vmatpush1.bf16.msra.mxu0 0
      %3734 = vmatprep.subr.bf16.mxu0 0
      %3735 = vmatpush1.bf16.msra.mxu0 0
      %3736 = vmatprep.subr.bf16.mxu0 0
      %3737 = vmatpush1.bf16.msra.mxu0 0
      %3738 = vmatprep.subr.bf16.mxu0 0
      %3739 = vmatpush1.bf16.msra.mxu0 0
      %3740 = vmatprep.mubr.bf16.mxu0 0
      %3741 = vmatmul.mubr.bf16.gmra.mrb[0].mxu0 %v3706
      %v3742 = vpop.f32.mrb[0].mxu0
      %v3743 = vadd.f32 0.0, %v3742
      %v3744 = vpop.f32.mrb[0].mxu0
      %v3745 = vpop.f32.mrb[0].mxu0
      %v3746 = vpop.f32.mrb[0].mxu0
      %3747 = vdwg.mxu0
      %v3749 = vsel %vm1209, %v3382, 0
      %3751 = vmatprep.subr.bf16.mxu0 0
      %3752 = vmatpush1.bf16.msra.mxu0 %v3387
      %3753 = vmatprep.subr.bf16.mxu0 0
      %3754 = vmatpush1.bf16.msra.mxu0 0
      %3755 = vmatprep.subr.bf16.mxu0 0
      %3756 = vmatpush1.bf16.msra.mxu0 0
      %3757 = vmatprep.subr.bf16.mxu0 0
      %3758 = vmatpush1.bf16.msra.mxu0 0
      %3759 = vmatprep.subr.bf16.mxu0 0
      %3760 = vmatpush1.bf16.msra.mxu0 0
      %3761 = vmatprep.subr.bf16.mxu0 0
      %3762 = vmatpush1.bf16.msra.mxu0 0
      %3763 = vmatprep.subr.bf16.mxu0 0
      %3764 = vmatpush1.bf16.msra.mxu0 0
      %3765 = vmatprep.subr.bf16.mxu0 0
      %3766 = vmatpush1.bf16.msra.mxu0 0
      %3767 = vmatprep.subr.bf16.mxu0 0
      %3768 = vmatpush1.bf16.msra.mxu0 0
      %3769 = vmatprep.subr.bf16.mxu0 0
      %3770 = vmatpush1.bf16.msra.mxu0 0
      %3771 = vmatprep.subr.bf16.mxu0 0
      %3772 = vmatpush1.bf16.msra.mxu0 0
      %3773 = vmatprep.subr.bf16.mxu0 0
      %3774 = vmatpush1.bf16.msra.mxu0 0
      %3775 = vmatprep.subr.bf16.mxu0 0
      %3776 = vmatpush1.bf16.msra.mxu0 0
      %3777 = vmatprep.subr.bf16.mxu0 0
      %3778 = vmatpush1.bf16.msra.mxu0 0
      %3779 = vmatprep.subr.bf16.mxu0 0
      %3780 = vmatpush1.bf16.msra.mxu0 0
      %3781 = vmatprep.subr.bf16.mxu0 0
      %3782 = vmatpush1.bf16.msra.mxu0 0
      %3783 = vmatprep.mubr.bf16.mxu0 0
      %3784 = vmatmul.mubr.bf16.gmra.mrb[0].mxu0 %v3749
      %v3785 = vpop.f32.mrb[0].mxu0
      %v3786 = vadd.f32 0.0, %v3785
      %v3787 = vpop.f32.mrb[0].mxu0
      %v3788 = vpop.f32.mrb[0].mxu0
      %v3789 = vpop.f32.mrb[0].mxu0
      %3790 = vdwg.mxu0
      %3792 = vrot.lane.b32.xlu0 %v3382, 112
      %v3793 = vpop.permute.xlu0 %3792
      %v3795 = vsel %vm1209, %v3793, 0
      %3797 = vmatprep.subr.bf16.mxu0 0
      %3798 = vmatpush1.bf16.msra.mxu0 %v3387
      %3799 = vmatprep.subr.bf16.mxu0 0
      %3800 = vmatpush1.bf16.msra.mxu0 0
      %3801 = vmatprep.subr.bf16.mxu0 0
      %3802 = vmatpush1.bf16.msra.mxu0 0
      %3803 = vmatprep.subr.bf16.mxu0 0
      %3804 = vmatpush1.bf16.msra.mxu0 0
      %3805 = vmatprep.subr.bf16.mxu0 0
      %3806 = vmatpush1.bf16.msra.mxu0 0
      %3807 = vmatprep.subr.bf16.mxu0 0
      %3808 = vmatpush1.bf16.msra.mxu0 0
      %3809 = vmatprep.subr.bf16.mxu0 0
      %3810 = vmatpush1.bf16.msra.mxu0 0
      %3811 = vmatprep.subr.bf16.mxu0 0
      %3812 = vmatpush1.bf16.msra.mxu0 0
      %3813 = vmatprep.subr.bf16.mxu0 0
      %3814 = vmatpush1.bf16.msra.mxu0 0
      %3815 = vmatprep.subr.bf16.mxu0 0
      %3816 = vmatpush1.bf16.msra.mxu0 0
      %3817 = vmatprep.subr.bf16.mxu0 0
      %3818 = vmatpush1.bf16.msra.mxu0 0
      %3819 = vmatprep.subr.bf16.mxu0 0
      %3820 = vmatpush1.bf16.msra.mxu0 0
      %3821 = vmatprep.subr.bf16.mxu0 0
      %3822 = vmatpush1.bf16.msra.mxu0 0
      %3823 = vmatprep.subr.bf16.mxu0 0
      %3824 = vmatpush1.bf16.msra.mxu0 0
      %3825 = vmatprep.subr.bf16.mxu0 0
      %3826 = vmatpush1.bf16.msra.mxu0 0
      %3827 = vmatprep.subr.bf16.mxu0 0
      %3828 = vmatpush1.bf16.msra.mxu0 0
      %3829 = vmatprep.mubr.bf16.mxu0 0
      %3830 = vmatmul.mubr.bf16.gmra.mrb[0].mxu0 %v3795
      %v3831 = vpop.f32.mrb[0].mxu0
      %v3832 = vadd.f32 0.0, %v3831
      %v3833 = vpop.f32.mrb[0].mxu0
      %v3834 = vpop.f32.mrb[0].mxu0
      %v3835 = vpop.f32.mrb[0].mxu0
      %3836 = vdwg.mxu0
      %3837 = vrot.lane.b32.xlu0 %v3382, 96
      %v3838 = vpop.permute.xlu0 %3837
      %v3840 = vsel %vm1209, %v3838, 0
      %3842 = vmatprep.subr.bf16.mxu0 0
      %3843 = vmatpush1.bf16.msra.mxu0 %v3387
      %3844 = vmatprep.subr.bf16.mxu0 0
      %3845 = vmatpush1.bf16.msra.mxu0 0
      %3846 = vmatprep.subr.bf16.mxu0 0
      %3847 = vmatpush1.bf16.msra.mxu0 0
      %3848 = vmatprep.subr.bf16.mxu0 0
      %3849 = vmatpush1.bf16.msra.mxu0 0
      %3850 = vmatprep.subr.bf16.mxu0 0
      %3851 = vmatpush1.bf16.msra.mxu0 0
      %3852 = vmatprep.subr.bf16.mxu0 0
      %3853 = vmatpush1.bf16.msra.mxu0 0
      %3854 = vmatprep.subr.bf16.mxu0 0
      %3855 = vmatpush1.bf16.msra.mxu0 0
      %3856 = vmatprep.subr.bf16.mxu0 0
      %3857 = vmatpush1.bf16.msra.mxu0 0
      %3858 = vmatprep.subr.bf16.mxu0 0
      %3859 = vmatpush1.bf16.msra.mxu0 0
      %3860 = vmatprep.subr.bf16.mxu0 0
      %3861 = vmatpush1.bf16.msra.mxu0 0
      %3862 = vmatprep.subr.bf16.mxu0 0
      %3863 = vmatpush1.bf16.msra.mxu0 0
      %3864 = vmatprep.subr.bf16.mxu0 0
      %3865 = vmatpush1.bf16.msra.mxu0 0
      %3866 = vmatprep.subr.bf16.mxu0 0
      %3867 = vmatpush1.bf16.msra.mxu0 0
      %3868 = vmatprep.subr.bf16.mxu0 0
      %3869 = vmatpush1.bf16.msra.mxu0 0
      %3870 = vmatprep.subr.bf16.mxu0 0
      %3871 = vmatpush1.bf16.msra.mxu0 0
      %3872 = vmatprep.subr.bf16.mxu0 0
      %3873 = vmatpush1.bf16.msra.mxu0 0
      %3874 = vmatprep.mubr.bf16.mxu0 0
      %3875 = vmatmul.mubr.bf16.gmra.mrb[0].mxu0 %v3840
      %v3876 = vpop.f32.mrb[0].mxu0
      %v3877 = vadd.f32 0.0, %v3876
      %v3878 = vpop.f32.mrb[0].mxu0
      %v3879 = vpop.f32.mrb[0].mxu0
      %v3880 = vpop.f32.mrb[0].mxu0
      %3881 = vdwg.mxu0
      %3882 = vrot.lane.b32.xlu0 %v3382, 80
      %v3883 = vpop.permute.xlu0 %3882
      %v3885 = vsel %vm1209, %v3883, 0
      %3887 = vmatprep.subr.bf16.mxu0 0
      %3888 = vmatpush1.bf16.msra.mxu0 %v3387
      %3889 = vmatprep.subr.bf16.mxu0 0
      %3890 = vmatpush1.bf16.msra.mxu0 0
      %3891 = vmatprep.subr.bf16.mxu0 0
      %3892 = vmatpush1.bf16.msra.mxu0 0
      %3893 = vmatprep.subr.bf16.mxu0 0
      %3894 = vmatpush1.bf16.msra.mxu0 0
      %3895 = vmatprep.subr.bf16.mxu0 0
      %3896 = vmatpush1.bf16.msra.mxu0 0
      %3897 = vmatprep.subr.bf16.mxu0 0
      %3898 = vmatpush1.bf16.msra.mxu0 0
      %3899 = vmatprep.subr.bf16.mxu0 0
      %3900 = vmatpush1.bf16.msra.mxu0 0
      %3901 = vmatprep.subr.bf16.mxu0 0
      %3902 = vmatpush1.bf16.msra.mxu0 0
      %3903 = vmatprep.subr.bf16.mxu0 0
      %3904 = vmatpush1.bf16.msra.mxu0 0
      %3905 = vmatprep.subr.bf16.mxu0 0
      %3906 = vmatpush1.bf16.msra.mxu0 0
      %3907 = vmatprep.subr.bf16.mxu0 0
      %3908 = vmatpush1.bf16.msra.mxu0 0
      %3909 = vmatprep.subr.bf16.mxu0 0
      %3910 = vmatpush1.bf16.msra.mxu0 0
      %3911 = vmatprep.subr.bf16.mxu0 0
      %3912 = vmatpush1.bf16.msra.mxu0 0
      %3913 = vmatprep.subr.bf16.mxu0 0
      %3914 = vmatpush1.bf16.msra.mxu0 0
      %3915 = vmatprep.subr.bf16.mxu0 0
      %3916 = vmatpush1.bf16.msra.mxu0 0
      %3917 = vmatprep.subr.bf16.mxu0 0
      %3918 = vmatpush1.bf16.msra.mxu0 0
      %3919 = vmatprep.mubr.bf16.mxu0 0
      %3920 = vmatmul.mubr.bf16.gmra.mrb[0].mxu0 %v3885
      %v3921 = vpop.f32.mrb[0].mxu0
      %v3922 = vadd.f32 0.0, %v3921
      %v3923 = vpop.f32.mrb[0].mxu0
      %v3924 = vpop.f32.mrb[0].mxu0
      %v3925 = vpop.f32.mrb[0].mxu0
      %3926 = vdwg.mxu0
      %3927 = vrot.lane.b32.xlu0 %v3382, 64
      %v3928 = vpop.permute.xlu0 %3927
      %v3930 = vsel %vm1209, %v3928, 0
      %3932 = vmatprep.subr.bf16.mxu0 0
      %3933 = vmatpush1.bf16.msra.mxu0 %v3387
      %3934 = vmatprep.subr.bf16.mxu0 0
      %3935 = vmatpush1.bf16.msra.mxu0 0
      %3936 = vmatprep.subr.bf16.mxu0 0
      %3937 = vmatpush1.bf16.msra.mxu0 0
      %3938 = vmatprep.subr.bf16.mxu0 0
      %3939 = vmatpush1.bf16.msra.mxu0 0
      %3940 = vmatprep.subr.bf16.mxu0 0
      %3941 = vmatpush1.bf16.msra.mxu0 0
      %3942 = vmatprep.subr.bf16.mxu0 0
      %3943 = vmatpush1.bf16.msra.mxu0 0
      %3944 = vmatprep.subr.bf16.mxu0 0
      %3945 = vmatpush1.bf16.msra.mxu0 0
      %3946 = vmatprep.subr.bf16.mxu0 0
      %3947 = vmatpush1.bf16.msra.mxu0 0
      %3948 = vmatprep.subr.bf16.mxu0 0
      %3949 = vmatpush1.bf16.msra.mxu0 0
      %3950 = vmatprep.subr.bf16.mxu0 0
      %3951 = vmatpush1.bf16.msra.mxu0 0
      %3952 = vmatprep.subr.bf16.mxu0 0
      %3953 = vmatpush1.bf16.msra.mxu0 0
      %3954 = vmatprep.subr.bf16.mxu0 0
      %3955 = vmatpush1.bf16.msra.mxu0 0
      %3956 = vmatprep.subr.bf16.mxu0 0
      %3957 = vmatpush1.bf16.msra.mxu0 0
      %3958 = vmatprep.subr.bf16.mxu0 0
      %3959 = vmatpush1.bf16.msra.mxu0 0
      %3960 = vmatprep.subr.bf16.mxu0 0
      %3961 = vmatpush1.bf16.msra.mxu0 0
      %3962 = vmatprep.subr.bf16.mxu0 0
      %3963 = vmatpush1.bf16.msra.mxu0 0
      %3964 = vmatprep.mubr.bf16.mxu0 0
      %3965 = vmatmul.mubr.bf16.gmra.mrb[0].mxu0 %v3930
      %v3966 = vpop.f32.mrb[0].mxu0
      %v3967 = vadd.f32 0.0, %v3966
      %v3968 = vpop.f32.mrb[0].mxu0
      %v3969 = vpop.f32.mrb[0].mxu0
      %v3970 = vpop.f32.mrb[0].mxu0
      %3971 = vdwg.mxu0
      %3972 = vrot.lane.b32.xlu0 %v3382, 48
      %v3973 = vpop.permute.xlu0 %3972
      %v3975 = vsel %vm1209, %v3973, 0
      %3977 = vmatprep.subr.bf16.mxu0 0
      %3978 = vmatpush1.bf16.msra.mxu0 %v3387
      %3979 = vmatprep.subr.bf16.mxu0 0
      %3980 = vmatpush1.bf16.msra.mxu0 0
      %3981 = vmatprep.subr.bf16.mxu0 0
      %3982 = vmatpush1.bf16.msra.mxu0 0
      %3983 = vmatprep.subr.bf16.mxu0 0
      %3984 = vmatpush1.bf16.msra.mxu0 0
      %3985 = vmatprep.subr.bf16.mxu0 0
      %3986 = vmatpush1.bf16.msra.mxu0 0
      %3987 = vmatprep.subr.bf16.mxu0 0
      %3988 = vmatpush1.bf16.msra.mxu0 0
      %3989 = vmatprep.subr.bf16.mxu0 0
      %3990 = vmatpush1.bf16.msra.mxu0 0
      %3991 = vmatprep.subr.bf16.mxu0 0
      %3992 = vmatpush1.bf16.msra.mxu0 0
      %3993 = vmatprep.subr.bf16.mxu0 0
      %3994 = vmatpush1.bf16.msra.mxu0 0
      %3995 = vmatprep.subr.bf16.mxu0 0
      %3996 = vmatpush1.bf16.msra.mxu0 0
      %3997 = vmatprep.subr.bf16.mxu0 0
      %3998 = vmatpush1.bf16.msra.mxu0 0
      %3999 = vmatprep.subr.bf16.mxu0 0
      %4000 = vmatpush1.bf16.msra.mxu0 0
      %4001 = vmatprep.subr.bf16.mxu0 0
      %4002 = vmatpush1.bf16.msra.mxu0 0
      %4003 = vmatprep.subr.bf16.mxu0 0
      %4004 = vmatpush1.bf16.msra.mxu0 0
      %4005 = vmatprep.subr.bf16.mxu0 0
      %4006 = vmatpush1.bf16.msra.mxu0 0
      %4007 = vmatprep.subr.bf16.mxu0 0
      %4008 = vmatpush1.bf16.msra.mxu0 0
      %4009 = vmatprep.mubr.bf16.mxu0 0
      %4010 = vmatmul.mubr.bf16.gmra.mrb[0].mxu0 %v3975
      %v4011 = vpop.f32.mrb[0].mxu0
      %v4012 = vadd.f32 0.0, %v4011
      %v4013 = vpop.f32.mrb[0].mxu0
      %v4014 = vpop.f32.mrb[0].mxu0
      %v4015 = vpop.f32.mrb[0].mxu0
      %4016 = vdwg.mxu0
      %4017 = vrot.lane.b32.xlu0 %v3382, 32
      %v4018 = vpop.permute.xlu0 %4017
      %v4020 = vsel %vm1209, %v4018, 0
      %4022 = vmatprep.subr.bf16.mxu0 0
      %4023 = vmatpush1.bf16.msra.mxu0 %v3387
      %4024 = vmatprep.subr.bf16.mxu0 0
      %4025 = vmatpush1.bf16.msra.mxu0 0
      %4026 = vmatprep.subr.bf16.mxu0 0
      %4027 = vmatpush1.bf16.msra.mxu0 0
      %4028 = vmatprep.subr.bf16.mxu0 0
      %4029 = vmatpush1.bf16.msra.mxu0 0
      %4030 = vmatprep.subr.bf16.mxu0 0
      %4031 = vmatpush1.bf16.msra.mxu0 0
      %4032 = vmatprep.subr.bf16.mxu0 0
      %4033 = vmatpush1.bf16.msra.mxu0 0
      %4034 = vmatprep.subr.bf16.mxu0 0
      %4035 = vmatpush1.bf16.msra.mxu0 0
      %4036 = vmatprep.subr.bf16.mxu0 0
      %4037 = vmatpush1.bf16.msra.mxu0 0
      %4038 = vmatprep.subr.bf16.mxu0 0
      %4039 = vmatpush1.bf16.msra.mxu0 0
      %4040 = vmatprep.subr.bf16.mxu0 0
      %4041 = vmatpush1.bf16.msra.mxu0 0
      %4042 = vmatprep.subr.bf16.mxu0 0
      %4043 = vmatpush1.bf16.msra.mxu0 0
      %4044 = vmatprep.subr.bf16.mxu0 0
      %4045 = vmatpush1.bf16.msra.mxu0 0
      %4046 = vmatprep.subr.bf16.mxu0 0
      %4047 = vmatpush1.bf16.msra.mxu0 0
      %4048 = vmatprep.subr.bf16.mxu0 0
      %4049 = vmatpush1.bf16.msra.mxu0 0
      %4050 = vmatprep.subr.bf16.mxu0 0
      %4051 = vmatpush1.bf16.msra.mxu0 0
      %4052 = vmatprep.subr.bf16.mxu0 0
      %4053 = vmatpush1.bf16.msra.mxu0 0
      %4054 = vmatprep.mubr.bf16.mxu0 0
      %4055 = vmatmul.mubr.bf16.gmra.mrb[0].mxu0 %v4020
      %v4056 = vpop.f32.mrb[0].mxu0
      %v4057 = vadd.f32 0.0, %v4056
      %v4058 = vpop.f32.mrb[0].mxu0
      %v4059 = vpop.f32.mrb[0].mxu0
      %v4060 = vpop.f32.mrb[0].mxu0
      %4061 = vdwg.mxu0
      %4062 = vrot.lane.b32.xlu0 %v3382, 16
      %v4063 = vpop.permute.xlu0 %4062
      %v4065 = vsel %vm1209, %v4063, 0
      %4067 = vmatprep.subr.bf16.mxu0 0
      %4068 = vmatpush1.bf16.msra.mxu0 %v3387
      %4069 = vmatprep.subr.bf16.mxu0 0
      %4070 = vmatpush1.bf16.msra.mxu0 0
      %4071 = vmatprep.subr.bf16.mxu0 0
      %4072 = vmatpush1.bf16.msra.mxu0 0
      %4073 = vmatprep.subr.bf16.mxu0 0
      %4074 = vmatpush1.bf16.msra.mxu0 0
      %4075 = vmatprep.subr.bf16.mxu0 0
      %4076 = vmatpush1.bf16.msra.mxu0 0
      %4077 = vmatprep.subr.bf16.mxu0 0
      %4078 = vmatpush1.bf16.msra.mxu0 0
      %4079 = vmatprep.subr.bf16.mxu0 0
      %4080 = vmatpush1.bf16.msra.mxu0 0
      %4081 = vmatprep.subr.bf16.mxu0 0
      %4082 = vmatpush1.bf16.msra.mxu0 0
      %4083 = vmatprep.subr.bf16.mxu0 0
      %4084 = vmatpush1.bf16.msra.mxu0 0
      %4085 = vmatprep.subr.bf16.mxu0 0
      %4086 = vmatpush1.bf16.msra.mxu0 0
      %4087 = vmatprep.subr.bf16.mxu0 0
      %4088 = vmatpush1.bf16.msra.mxu0 0
      %4089 = vmatprep.subr.bf16.mxu0 0
      %4090 = vmatpush1.bf16.msra.mxu0 0
      %4091 = vmatprep.subr.bf16.mxu0 0
      %4092 = vmatpush1.bf16.msra.mxu0 0
      %4093 = vmatprep.subr.bf16.mxu0 0
      %4094 = vmatpush1.bf16.msra.mxu0 0
      %4095 = vmatprep.subr.bf16.mxu0 0
      %4096 = vmatpush1.bf16.msra.mxu0 0
      %4097 = vmatprep.subr.bf16.mxu0 0
      %4098 = vmatpush1.bf16.msra.mxu0 0
      %4099 = vmatprep.mubr.bf16.mxu0 0
      %4100 = vmatmul.mubr.bf16.gmra.mrb[0].mxu0 %v4065
      %v4101 = vpop.f32.mrb[0].mxu0
      %v4102 = vadd.f32 0.0, %v4101
      %v4103 = vpop.f32.mrb[0].mxu0
      %v4104 = vpop.f32.mrb[0].mxu0
      %v4105 = vpop.f32.mrb[0].mxu0
      %4106 = vdwg.mxu0
      %v4107 = vmul.f32 %v3427, 0.75
      %v4108 = vmul.f32 %v3473, 0.25
      %v4109 = vadd.f32 %v4107, %v4108
      %v4110 = vmul.f32 %v3427, 0.25
      %v4111 = vmul.f32 %v3473, 0.75
      %v4112 = vadd.f32 %v4110, %v4111
      %v4113 = vmul.f32 %v3518, 0.25
      %v4114 = vadd.f32 %v4111, %v4113
      %v4115 = vmul.f32 %v3518, 0.75
      %v4116 = vadd.f32 %v4108, %v4115
      %v4117 = vmul.f32 %v3563, 0.25
      %v4118 = vadd.f32 %v4115, %v4117
      %v4119 = vmul.f32 %v3563, 0.75
      %v4120 = vadd.f32 %v4113, %v4119
      %v4121 = vmul.f32 %v3608, 0.25
      %v4122 = vadd.f32 %v4119, %v4121
      %v4123 = vmul.f32 %v3608, 0.75
      %v4124 = vadd.f32 %v4117, %v4123
      %v4125 = vmul.f32 %v3653, 0.25
      %v4126 = vadd.f32 %v4123, %v4125
      %v4127 = vmul.f32 %v3653, 0.75
      %v4128 = vadd.f32 %v4121, %v4127
      %v4129 = vmul.f32 %v3698, 0.25
      %v4130 = vadd.f32 %v4127, %v4129
      %v4131 = vmul.f32 %v3698, 0.75
      %v4132 = vadd.f32 %v4125, %v4131
      %v4133 = vmul.f32 %v3743, 0.25
      %v4134 = vadd.f32 %v4131, %v4133
      %v4135 = vmul.f32 %v3743, 0.75
      %v4136 = vadd.f32 %v4129, %v4135
      %v4137 = vmul.f32 %v3786, 0.25
      %v4138 = vadd.f32 %v4135, %v4137
      %v4139 = vmul.f32 %v3786, 0.75
      %v4140 = vadd.f32 %v4133, %v4139
      %v4141 = vmul.f32 %v3832, 0.25
      %v4142 = vadd.f32 %v4139, %v4141
      %v4143 = vmul.f32 %v3832, 0.75
      %v4144 = vadd.f32 %v4137, %v4143
      %v4145 = vmul.f32 %v3877, 0.25
      %v4146 = vadd.f32 %v4143, %v4145
      %v4147 = vmul.f32 %v3877, 0.75
      %v4148 = vadd.f32 %v4141, %v4147
      %v4149 = vmul.f32 %v3922, 0.25
      %v4150 = vadd.f32 %v4147, %v4149
      %v4151 = vmul.f32 %v3922, 0.75
      %v4152 = vadd.f32 %v4145, %v4151
      %v4153 = vmul.f32 %v3967, 0.25
      %v4154 = vadd.f32 %v4151, %v4153
      %v4155 = vmul.f32 %v3967, 0.75
      %v4156 = vadd.f32 %v4149, %v4155
      %v4157 = vmul.f32 %v4012, 0.25
      %v4158 = vadd.f32 %v4155, %v4157
      %v4159 = vmul.f32 %v4012, 0.75
      %v4160 = vadd.f32 %v4153, %v4159
      %v4161 = vmul.f32 %v4057, 0.25
      %v4162 = vadd.f32 %v4159, %v4161
      %v4163 = vmul.f32 %v4057, 0.75
      %v4164 = vadd.f32 %v4157, %v4163
      %v4165 = vmul.f32 %v4102, 0.25
      %v4166 = vadd.f32 %v4163, %v4165
      %v4167 = vmul.f32 %v4102, 0.75
      %v4168 = vadd.f32 %v4161, %v4167
      %4170 = vrot.lane.b32.xlu0 %v4109, 32
      %v4171 = vpop.permute.xlu0 %4170
      %4174 = vrot.lane.b32.xlu0 %v4112, 64
      %v4175 = vpop.permute.xlu0 %4174
      %4178 = vrot.lane.b32.xlu0 %v4114, 96
      %v4179 = vpop.permute.xlu0 %4178
      %4182 = vrot.lane.b32.xlu0 %v4118, 32
      %v4183 = vpop.permute.xlu0 %4182
      %4186 = vrot.lane.b32.xlu0 %v4120, 64
      %v4187 = vpop.permute.xlu0 %4186
      %4190 = vrot.lane.b32.xlu0 %v4122, 96
      %v4191 = vpop.permute.xlu0 %4190
      %4194 = vrot.lane.b32.xlu0 %v4126, 32
      %v4195 = vpop.permute.xlu0 %4194
      %4198 = vrot.lane.b32.xlu0 %v4128, 64
      %v4199 = vpop.permute.xlu0 %4198
      %4202 = vrot.lane.b32.xlu0 %v4130, 96
      %v4203 = vpop.permute.xlu0 %4202
      %4206 = vrot.lane.b32.xlu0 %v4134, 32
      %v4207 = vpop.permute.xlu0 %4206
      %4210 = vrot.lane.b32.xlu0 %v4136, 64
      %v4211 = vpop.permute.xlu0 %4210
      %4214 = vrot.lane.b32.xlu0 %v4138, 96
      %v4215 = vpop.permute.xlu0 %4214
      %v4217 = vsel %vm1148, %v3427, %v4171
      %v4218 = vsel %vm2132, %v4217, %v4175
      %v4219 = vsel %vm2690, %v4218, %v4179
      %v4220 = vsel %vm1148, %v4116, %v4183
      %v4221 = vsel %vm2132, %v4220, %v4187
      %v4222 = vsel %vm2690, %v4221, %v4191
      %v4223 = vsel %vm1148, %v4124, %v4195
      %v4224 = vsel %vm2132, %v4223, %v4199
      %v4225 = vsel %vm2690, %v4224, %v4203
      %v4226 = vsel %vm1148, %v4132, %v4207
      %v4227 = vsel %vm2132, %v4226, %v4211
      %v4228 = vsel %vm2690, %v4227, %v4215
      %4230 = vrot.lane.b32.xlu0 %v4142, 32
      %v4231 = vpop.permute.xlu0 %4230
      %4234 = vrot.lane.b32.xlu0 %v4144, 64
      %v4235 = vpop.permute.xlu0 %4234
      %4238 = vrot.lane.b32.xlu0 %v4146, 96
      %v4239 = vpop.permute.xlu0 %4238
      %4242 = vrot.lane.b32.xlu0 %v4150, 32
      %v4243 = vpop.permute.xlu0 %4242
      %4246 = vrot.lane.b32.xlu0 %v4152, 64
      %v4247 = vpop.permute.xlu0 %4246
      %4250 = vrot.lane.b32.xlu0 %v4154, 96
      %v4251 = vpop.permute.xlu0 %4250
      %4254 = vrot.lane.b32.xlu0 %v4158, 32
      %v4255 = vpop.permute.xlu0 %4254
      %4258 = vrot.lane.b32.xlu0 %v4160, 64
      %v4259 = vpop.permute.xlu0 %4258
      %4262 = vrot.lane.b32.xlu0 %v4162, 96
      %v4263 = vpop.permute.xlu0 %4262
      %4266 = vrot.lane.b32.xlu0 %v4166, 32
      %v4267 = vpop.permute.xlu0 %4266
      %4270 = vrot.lane.b32.xlu0 %v4168, 64
      %v4271 = vpop.permute.xlu0 %4270
      %4274 = vrot.lane.b32.xlu0 %v4102, 96
      %v4275 = vpop.permute.xlu0 %4274
      %v4277 = vsel %vm1148, %v4140, %v4231
      %v4278 = vsel %vm2132, %v4277, %v4235
      %v4279 = vsel %vm2690, %v4278, %v4239
      %v4280 = vsel %vm1148, %v4148, %v4243
      %v4281 = vsel %vm2132, %v4280, %v4247
      %v4282 = vsel %vm2690, %v4281, %v4251
      %v4283 = vsel %vm1148, %v4156, %v4255
      %v4284 = vsel %vm2132, %v4283, %v4259
      %v4285 = vsel %vm2690, %v4284, %v4263
      %v4286 = vsel %vm1148, %v4164, %v4267
      %v4287 = vsel %vm2132, %v4286, %v4271
      %v4288 = vsel %vm2690, %v4287, %v4275
      %v4289 = vld [vmem:[%s1076] sm:$0xff]
      %v4290 = vld [vmem:[%s1076 + $0x8] sm:$0xff]
      %v4291 = vld [vmem:[%s1076 + $0x10] sm:$0xff]
      %v4292 = vld [vmem:[%s1076 + $0x18] sm:$0xff]
      %v4293 = vld [vmem:[%s1076 + $0x20] sm:$0xff]
      %v4294 = vld [vmem:[%s1076 + $0x28] sm:$0xff]
      %v4295 = vld [vmem:[%s1076 + $0x30] sm:$0xff]
      %v4296 = vld [vmem:[%s1076 + $0x38] sm:$0xff]
      %v4297 = vld [vmem:[%s37] sm:$0xf]
      %v4298 = vpack.c.bf16 %v4289, %v4289
      %v4299 = vpack.c.bf16 %v4290, %v4290
      %v4300 = vpack.c.bf16 %v4291, %v4291
      %v4301 = vpack.c.bf16 %v4292, %v4292
      %v4302 = vpack.c.bf16 %v4293, %v4293
      %v4303 = vpack.c.bf16 %v4294, %v4294
      %v4304 = vpack.c.bf16 %v4295, %v4295
      %v4305 = vpack.c.bf16 %v4296, %v4296
      %v4306 = vld [vmem:[%s39] sm:$0xff]
      %4308 = vset.pattern.permute.xlu0 0
      %4309 = vperm.xlu0 %4308, %v4306
      %v4310 = vpop.permute.xlu0 %4309
      %v4313 = vsel %vm1577, %v4297, 0
      %v4316 = vsel %vm1643, %v4298, 0
      %v4319 = vsel %vm1643, %v4299, 0
      %v4322 = vsel %vm1643, %v4300, 0
      %v4325 = vsel %vm1643, %v4301, 0
      %v4328 = vsel %vm1643, %v4302, 0
      %v4331 = vsel %vm1643, %v4303, 0
      %v4334 = vsel %vm1643, %v4304, 0
      %v4337 = vsel %vm1643, %v4305, 0
      %4339 = vmatprep.subr.bf16.mxu0 %v4319
      %4340 = vmatpush1.bf16.msra.mxu0 %v4316
      %4341 = vmatprep.subr.bf16.mxu0 0
      %4342 = vmatpush1.bf16.msra.mxu0 0
      %4343 = vmatprep.subr.bf16.mxu0 0
      %4344 = vmatpush1.bf16.msra.mxu0 0
      %4345 = vmatprep.subr.bf16.mxu0 0
      %4346 = vmatpush1.bf16.msra.mxu0 0
      %4347 = vmatprep.subr.bf16.mxu0 0
      %4348 = vmatpush1.bf16.msra.mxu0 0
      %4349 = vmatprep.subr.bf16.mxu0 0
      %4350 = vmatpush1.bf16.msra.mxu0 0
      %4351 = vmatprep.subr.bf16.mxu0 0
      %4352 = vmatpush1.bf16.msra.mxu0 0
      %4353 = vmatprep.subr.bf16.mxu0 0
      %4354 = vmatpush1.bf16.msra.mxu0 0
      %4355 = vmatprep.subr.bf16.mxu0 0
      %4356 = vmatpush1.bf16.msra.mxu0 0
      %4357 = vmatprep.subr.bf16.mxu0 0
      %4358 = vmatpush1.bf16.msra.mxu0 0
      %4359 = vmatprep.subr.bf16.mxu0 0
      %4360 = vmatpush1.bf16.msra.mxu0 0
      %4361 = vmatprep.subr.bf16.mxu0 0
      %4362 = vmatpush1.bf16.msra.mxu0 0
      %4363 = vmatprep.subr.bf16.mxu0 0
      %4364 = vmatpush1.bf16.msra.mxu0 0
      %4365 = vmatprep.subr.bf16.mxu0 0
      %4366 = vmatpush1.bf16.msra.mxu0 0
      %4367 = vmatprep.subr.bf16.mxu0 0
      %4368 = vmatpush1.bf16.msra.mxu0 0
      %4369 = vmatprep.subr.bf16.mxu0 0
      %4370 = vmatpush1.bf16.msra.mxu0 0
      %4371 = vmatprep.mubr.bf16.mxu0 0
      %4372 = vmatmul.mubr.bf16.gmra.mrb[0].mxu0 %v4313
      %v4373 = vpop.f32.mrb[0].mxu0
      %v4374 = vadd.f32 %v4310, %v4373
      %v4375 = vpop.f32.mrb[0].mxu0
      %v4376 = vadd.f32 %v4310, %v4375
      %v4377 = vpop.f32.mrb[0].mxu0
      %v4378 = vpop.f32.mrb[0].mxu0
      %4379 = vdwg.mxu0
      %4380 = vmatprep.subr.bf16.mxu0 %v4325
      %4381 = vmatpush1.bf16.msra.mxu0 %v4322
      %4382 = vmatprep.subr.bf16.mxu0 0
      %4383 = vmatpush1.bf16.msra.mxu0 0
      %4384 = vmatprep.subr.bf16.mxu0 0
      %4385 = vmatpush1.bf16.msra.mxu0 0
      %4386 = vmatprep.subr.bf16.mxu0 0
      %4387 = vmatpush1.bf16.msra.mxu0 0
      %4388 = vmatprep.subr.bf16.mxu0 0
      %4389 = vmatpush1.bf16.msra.mxu0 0
      %4390 = vmatprep.subr.bf16.mxu0 0
      %4391 = vmatpush1.bf16.msra.mxu0 0
      %4392 = vmatprep.subr.bf16.mxu0 0
      %4393 = vmatpush1.bf16.msra.mxu0 0
      %4394 = vmatprep.subr.bf16.mxu0 0
      %4395 = vmatpush1.bf16.msra.mxu0 0
      %4396 = vmatprep.subr.bf16.mxu0 0
      %4397 = vmatpush1.bf16.msra.mxu0 0
      %4398 = vmatprep.subr.bf16.mxu0 0
      %4399 = vmatpush1.bf16.msra.mxu0 0
      %4400 = vmatprep.subr.bf16.mxu0 0
      %4401 = vmatpush1.bf16.msra.mxu0 0
      %4402 = vmatprep.subr.bf16.mxu0 0
      %4403 = vmatpush1.bf16.msra.mxu0 0
      %4404 = vmatprep.subr.bf16.mxu0 0
      %4405 = vmatpush1.bf16.msra.mxu0 0
      %4406 = vmatprep.subr.bf16.mxu0 0
      %4407 = vmatpush1.bf16.msra.mxu0 0
      %4408 = vmatprep.subr.bf16.mxu0 0
      %4409 = vmatpush1.bf16.msra.mxu0 0
      %4410 = vmatprep.subr.bf16.mxu0 0
      %4411 = vmatpush1.bf16.msra.mxu0 0
      %4412 = vmatprep.mubr.bf16.mxu0 0
      %4413 = vmatmul.mubr.bf16.gmra.mrb[0].mxu0 %v4313
      %v4414 = vpop.f32.mrb[0].mxu0
      %v4415 = vadd.f32 %v4310, %v4414
      %v4416 = vpop.f32.mrb[0].mxu0
      %v4417 = vadd.f32 %v4310, %v4416
      %v4418 = vpop.f32.mrb[0].mxu0
      %v4419 = vpop.f32.mrb[0].mxu0
      %4420 = vdwg.mxu0
      %4421 = vmatprep.subr.bf16.mxu0 %v4331
      %4422 = vmatpush1.bf16.msra.mxu0 %v4328
      %4423 = vmatprep.subr.bf16.mxu0 0
      %4424 = vmatpush1.bf16.msra.mxu0 0
      %4425 = vmatprep.subr.bf16.mxu0 0
      %4426 = vmatpush1.bf16.msra.mxu0 0
      %4427 = vmatprep.subr.bf16.mxu0 0
      %4428 = vmatpush1.bf16.msra.mxu0 0
      %4429 = vmatprep.subr.bf16.mxu0 0
      %4430 = vmatpush1.bf16.msra.mxu0 0
      %4431 = vmatprep.subr.bf16.mxu0 0
      %4432 = vmatpush1.bf16.msra.mxu0 0
      %4433 = vmatprep.subr.bf16.mxu0 0
      %4434 = vmatpush1.bf16.msra.mxu0 0
      %4435 = vmatprep.subr.bf16.mxu0 0
      %4436 = vmatpush1.bf16.msra.mxu0 0
      %4437 = vmatprep.subr.bf16.mxu0 0
      %4438 = vmatpush1.bf16.msra.mxu0 0
      %4439 = vmatprep.subr.bf16.mxu0 0
      %4440 = vmatpush1.bf16.msra.mxu0 0
      %4441 = vmatprep.subr.bf16.mxu0 0
      %4442 = vmatpush1.bf16.msra.mxu0 0
      %4443 = vmatprep.subr.bf16.mxu0 0
      %4444 = vmatpush1.bf16.msra.mxu0 0
      %4445 = vmatprep.subr.bf16.mxu0 0
      %4446 = vmatpush1.bf16.msra.mxu0 0
      %4447 = vmatprep.subr.bf16.mxu0 0
      %4448 = vmatpush1.bf16.msra.mxu0 0
      %4449 = vmatprep.subr.bf16.mxu0 0
      %4450 = vmatpush1.bf16.msra.mxu0 0
      %4451 = vmatprep.subr.bf16.mxu0 0
      %4452 = vmatpush1.bf16.msra.mxu0 0
      %4453 = vmatprep.mubr.bf16.mxu0 0
      %4454 = vmatmul.mubr.bf16.gmra.mrb[0].mxu0 %v4313
      %v4455 = vpop.f32.mrb[0].mxu0
      %v4456 = vadd.f32 %v4310, %v4455
      %v4457 = vpop.f32.mrb[0].mxu0
      %v4458 = vadd.f32 %v4310, %v4457
      %v4459 = vpop.f32.mrb[0].mxu0
      %v4460 = vpop.f32.mrb[0].mxu0
      %4461 = vdwg.mxu0
      %4462 = vmatprep.subr.bf16.mxu0 %v4337
      %4463 = vmatpush1.bf16.msra.mxu0 %v4334
      %4464 = vmatprep.subr.bf16.mxu0 0
      %4465 = vmatpush1.bf16.msra.mxu0 0
      %4466 = vmatprep.subr.bf16.mxu0 0
      %4467 = vmatpush1.bf16.msra.mxu0 0
      %4468 = vmatprep.subr.bf16.mxu0 0
      %4469 = vmatpush1.bf16.msra.mxu0 0
      %4470 = vmatprep.subr.bf16.mxu0 0
      %4471 = vmatpush1.bf16.msra.mxu0 0
      %4472 = vmatprep.subr.bf16.mxu0 0
      %4473 = vmatpush1.bf16.msra.mxu0 0
      %4474 = vmatprep.subr.bf16.mxu0 0
      %4475 = vmatpush1.bf16.msra.mxu0 0
      %4476 = vmatprep.subr.bf16.mxu0 0
      %4477 = vmatpush1.bf16.msra.mxu0 0
      %4478 = vmatprep.subr.bf16.mxu0 0
      %4479 = vmatpush1.bf16.msra.mxu0 0
      %4480 = vmatprep.subr.bf16.mxu0 0
      %4481 = vmatpush1.bf16.msra.mxu0 0
      %4482 = vmatprep.subr.bf16.mxu0 0
      %4483 = vmatpush1.bf16.msra.mxu0 0
      %4484 = vmatprep.subr.bf16.mxu0 0
      %4485 = vmatpush1.bf16.msra.mxu0 0
      %4486 = vmatprep.subr.bf16.mxu0 0
      %4487 = vmatpush1.bf16.msra.mxu0 0
      %4488 = vmatprep.subr.bf16.mxu0 0
      %4489 = vmatpush1.bf16.msra.mxu0 0
      %4490 = vmatprep.subr.bf16.mxu0 0
      %4491 = vmatpush1.bf16.msra.mxu0 0
      %4492 = vmatprep.subr.bf16.mxu0 0
      %4493 = vmatpush1.bf16.msra.mxu0 0
      %4494 = vmatprep.mubr.bf16.mxu0 0
      %4495 = vmatmul.mubr.bf16.gmra.mrb[0].mxu0 %v4313
      %v4496 = vpop.f32.mrb[0].mxu0
      %v4497 = vadd.f32 %v4310, %v4496
      %v4498 = vpop.f32.mrb[0].mxu0
      %v4499 = vadd.f32 %v4310, %v4498
      %v4500 = vpop.f32.mrb[0].mxu0
      %v4501 = vpop.f32.mrb[0].mxu0
      %4502 = vdwg.mxu0
      %v4503 = vmax.f32 %v4374, 0.0
      %v4504 = vmax.f32 %v4376, 0.0
      %v4505 = vmax.f32 %v4415, 0.0
      %v4506 = vmax.f32 %v4417, 0.0
      %v4507 = vmax.f32 %v4456, 0.0
      %v4508 = vmax.f32 %v4458, 0.0
      %v4509 = vmax.f32 %v4497, 0.0
      %v4510 = vmax.f32 %v4499, 0.0
      %v4511 = vmin.f32 %v4503, 6.0
      %v4512 = vmin.f32 %v4504, 6.0
      %v4513 = vmin.f32 %v4505, 6.0
      %v4514 = vmin.f32 %v4506, 6.0
      %v4515 = vmin.f32 %v4507, 6.0
      %v4516 = vmin.f32 %v4508, 6.0
      %v4517 = vmin.f32 %v4509, 6.0
      %v4518 = vmin.f32 %v4510, 6.0
      %v4519 = vadd.f32 %v4219, %v4511
      %v4520 = vadd.f32 %v4222, %v4512
      %v4521 = vadd.f32 %v4225, %v4513
      %v4522 = vadd.f32 %v4228, %v4514
      %v4523 = vadd.f32 %v4279, %v4515
      %v4524 = vadd.f32 %v4282, %v4516
      %v4525 = vadd.f32 %v4285, %v4517
      %v4526 = vadd.f32 %v4288, %v4518
      %v4527 = vld [vmem:[%s41] sm:$0xff]
      %v4528 = vld [vmem:[%s43] sm:$0xff]
      %v4529 = vld [vmem:[%s59] ss:$2 sm:$0xff]
      %s4530 = scalar_lea.vmem %s59, 1
      %v4531 = vld [vmem:[%s4530] ss:$2 sm:$0xff]
      %4540 = vrot.lane.b32.xlu0 %v4519, 33
      %v4541 = vpop.permute.xlu0 %4540
      %4542 = vrot.lane.b32.xlu0 %v4520, 33
      %v4543 = vpop.permute.xlu0 %4542
      %4544 = vrot.lane.b32.xlu0 %v4521, 33
      %v4545 = vpop.permute.xlu0 %4544
      %4546 = vrot.lane.b32.xlu0 %v4522, 33
      %v4547 = vpop.permute.xlu0 %4546
      %4548 = vrot.lane.b32.xlu0 %v4523, 33
      %v4549 = vpop.permute.xlu0 %4548
      %4550 = vrot.lane.b32.xlu0 %v4524, 33
      %v4551 = vpop.permute.xlu0 %4550
      %4552 = vrot.lane.b32.xlu0 %v4525, 33
      %v4553 = vpop.permute.xlu0 %4552
      %4554 = vrot.lane.b32.xlu0 %v4526, 33
      %v4555 = vpop.permute.xlu0 %4554
      %vm4556 = vcmask 269312
      %v4557 = vsel %vm4556, %v4541, %v4543
      %v4558 = vsel %vm4556, %v4543, %v4545
      %v4559 = vsel %vm4556, %v4545, %v4547
      %v4560 = vsel %vm4556, %v4547, %v4549
      %v4561 = vsel %vm4556, %v4549, %v4551
      %v4562 = vsel %vm4556, %v4551, %v4553
      %v4563 = vsel %vm4556, %v4553, %v4555
      %v4573 = vsel %vm4556, 0.0, %v4541
      %v4574 = vsel %vm4556, %v4555, 0.0
      %v4576 = vlaneseq
      %v4577 = vshrl.u32 %v4576, 7
      %v4578 = vsub.s32 0, %v4577
      %v4579 = vrot.slane %v4529, %v4578
      %v4580 = vlaneseq
      %v4581 = vshrl.u32 %v4580, 7
      %v4582 = vsub.s32 1, %v4581
      %v4583 = vrot.slane %v4529, %v4582
      %v4584 = vlaneseq
      %v4585 = vshrl.u32 %v4584, 7
      %v4586 = vsub.s32 2, %v4585
      %v4587 = vrot.slane %v4529, %v4586
      %v4588 = vlaneseq
      %v4589 = vshrl.u32 %v4588, 7
      %v4590 = vsub.s32 3, %v4589
      %v4591 = vrot.slane %v4529, %v4590
      %v4592 = vlaneseq
      %v4593 = vshrl.u32 %v4592, 7
      %v4594 = vsub.s32 4, %v4593
      %v4595 = vrot.slane %v4529, %v4594
      %v4596 = vlaneseq
      %v4597 = vshrl.u32 %v4596, 7
      %v4598 = vsub.s32 5, %v4597
      %v4599 = vrot.slane %v4529, %v4598
      %v4600 = vlaneseq
      %v4601 = vshrl.u32 %v4600, 7
      %v4602 = vsub.s32 6, %v4601
      %v4603 = vrot.slane %v4529, %v4602
      %v4604 = vlaneseq
      %v4605 = vshrl.u32 %v4604, 7
      %v4606 = vsub.s32 7, %v4605
      %v4607 = vrot.slane %v4529, %v4606
      %v4616 = vmul.f32 %v4573, %v4579
      %v4617 = vmul.f32 %v4557, %v4583
      %v4618 = vmul.f32 %v4558, %v4587
      %v4619 = vmul.f32 %v4559, %v4591
      %v4620 = vmul.f32 %v4560, %v4595
      %v4621 = vmul.f32 %v4561, %v4599
      %v4622 = vmul.f32 %v4562, %v4603
      %v4623 = vmul.f32 %v4563, %v4607
      %4625 = vset.pattern.permute.xlu0 0
      %4626 = vperm.xlu0 %4625, %v4527
      %v4627 = vpop.permute.xlu0 %4626
      %v4629 = vmul.f32 %v4616, %v4627
      %v4630 = vmul.f32 %v4617, %v4627
      %v4631 = vmul.f32 %v4618, %v4627
      %v4632 = vmul.f32 %v4619, %v4627
      %v4633 = vmul.f32 %v4620, %v4627
      %v4634 = vmul.f32 %v4621, %v4627
      %v4635 = vmul.f32 %v4622, %v4627
      %v4636 = vmul.f32 %v4623, %v4627
      %v4637 = vadd.f32 %v4629, 0.0
      %v4638 = vadd.f32 %v4630, 0.0
      %v4639 = vadd.f32 %v4631, 0.0
      %v4640 = vadd.f32 %v4632, 0.0
      %v4641 = vadd.f32 %v4633, 0.0
      %v4642 = vadd.f32 %v4634, 0.0
      %v4643 = vadd.f32 %v4635, 0.0
      %v4644 = vadd.f32 %v4636, 0.0
      %4645 = vset.pattern.permute.xlu0 1
      %4646 = vperm.xlu0 %4645, %v4527
      %v4647 = vpop.permute.xlu0 %4646
      %v4649 = vmul.f32 %v4573, %v4647
      %v4650 = vmul.f32 %v4557, %v4647
      %v4651 = vmul.f32 %v4558, %v4647
      %v4652 = vmul.f32 %v4559, %v4647
      %v4653 = vmul.f32 %v4560, %v4647
      %v4654 = vmul.f32 %v4561, %v4647
      %v4655 = vmul.f32 %v4562, %v4647
      %v4656 = vmul.f32 %v4563, %v4647
      %v4657 = vmul.f32 %v4574, %v4647
      %4667 = vrot.lane.b32.xlu0 %v4649, 127
      %v4668 = vpop.permute.xlu0 %4667
      %4669 = vrot.lane.b32.xlu0 %v4650, 127
      %v4670 = vpop.permute.xlu0 %4669
      %4671 = vrot.lane.b32.xlu0 %v4651, 127
      %v4672 = vpop.permute.xlu0 %4671
      %4673 = vrot.lane.b32.xlu0 %v4652, 127
      %v4674 = vpop.permute.xlu0 %4673
      %4675 = vrot.lane.b32.xlu0 %v4653, 127
      %v4676 = vpop.permute.xlu0 %4675
      %4677 = vrot.lane.b32.xlu0 %v4654, 127
      %v4678 = vpop.permute.xlu0 %4677
      %4679 = vrot.lane.b32.xlu0 %v4655, 127
      %v4680 = vpop.permute.xlu0 %4679
      %4681 = vrot.lane.b32.xlu0 %v4656, 127
      %v4682 = vpop.permute.xlu0 %4681
      %4683 = vrot.lane.b32.xlu0 %v4657, 127
      %v4684 = vpop.permute.xlu0 %4683
      %v4685 = vsel %vm2890, %v4668, %v4670
      %v4686 = vsel %vm2890, %v4670, %v4672
      %v4687 = vsel %vm2890, %v4672, %v4674
      %v4688 = vsel %vm2890, %v4674, %v4676
      %v4689 = vsel %vm2890, %v4676, %v4678
      %v4690 = vsel %vm2890, %v4678, %v4680
      %v4691 = vsel %vm2890, %v4680, %v4682
      %v4692 = vsel %vm2890, %v4682, %v4684
      %v4701 = vadd.f32 %v4637, %v4685
      %v4702 = vadd.f32 %v4638, %v4686
      %v4703 = vadd.f32 %v4639, %v4687
      %v4704 = vadd.f32 %v4640, %v4688
      %v4705 = vadd.f32 %v4641, %v4689
      %v4706 = vadd.f32 %v4642, %v4690
      %v4707 = vadd.f32 %v4643, %v4691
      %v4708 = vadd.f32 %v4644, %v4692
      %v4710 = vlaneseq
      %v4711 = vshrl.u32 %v4710, 7
      %v4712 = vsub.s32 0, %v4711
      %v4713 = vrot.slane %v4531, %v4712
      %v4714 = vlaneseq
      %v4715 = vshrl.u32 %v4714, 7
      %v4716 = vsub.s32 1, %v4715
      %v4717 = vrot.slane %v4531, %v4716
      %v4718 = vlaneseq
      %v4719 = vshrl.u32 %v4718, 7
      %v4720 = vsub.s32 2, %v4719
      %v4721 = vrot.slane %v4531, %v4720
      %v4722 = vlaneseq
      %v4723 = vshrl.u32 %v4722, 7
      %v4724 = vsub.s32 3, %v4723
      %v4725 = vrot.slane %v4531, %v4724
      %v4726 = vlaneseq
      %v4727 = vshrl.u32 %v4726, 7
      %v4728 = vsub.s32 4, %v4727
      %v4729 = vrot.slane %v4531, %v4728
      %v4730 = vlaneseq
      %v4731 = vshrl.u32 %v4730, 7
      %v4732 = vsub.s32 5, %v4731
      %v4733 = vrot.slane %v4531, %v4732
      %v4734 = vlaneseq
      %v4735 = vshrl.u32 %v4734, 7
      %v4736 = vsub.s32 6, %v4735
      %v4737 = vrot.slane %v4531, %v4736
      %v4738 = vlaneseq
      %v4739 = vshrl.u32 %v4738, 7
      %v4740 = vsub.s32 7, %v4739
      %v4741 = vrot.slane %v4531, %v4740
      %4742 = vrot.lane.b32.xlu0 %v4713, 2
      %v4743 = vpop.permute.xlu0 %4742
      %4744 = vrot.lane.b32.xlu0 %v4717, 2
      %v4745 = vpop.permute.xlu0 %4744
      %4746 = vrot.lane.b32.xlu0 %v4721, 2
      %v4747 = vpop.permute.xlu0 %4746
      %4748 = vrot.lane.b32.xlu0 %v4725, 2
      %v4749 = vpop.permute.xlu0 %4748
      %4750 = vrot.lane.b32.xlu0 %v4729, 2
      %v4751 = vpop.permute.xlu0 %4750
      %4752 = vrot.lane.b32.xlu0 %v4733, 2
      %v4753 = vpop.permute.xlu0 %4752
      %4754 = vrot.lane.b32.xlu0 %v4737, 2
      %v4755 = vpop.permute.xlu0 %4754
      %4756 = vrot.lane.b32.xlu0 %v4741, 2
      %v4757 = vpop.permute.xlu0 %4756
      %v4758 = vsel %vm2916, %v4743, %v4745
      %v4759 = vsel %vm2916, %v4745, %v4747
      %v4760 = vsel %vm2916, %v4747, %v4749
      %v4761 = vsel %vm2916, %v4749, %v4751
      %v4762 = vsel %vm2916, %v4751, %v4753
      %v4763 = vsel %vm2916, %v4753, %v4755
      %v4764 = vsel %vm2916, %v4755, %v4757
      %v4774 = vmul.f32 %v4573, %v4743
      %v4775 = vmul.f32 %v4557, %v4758
      %v4776 = vmul.f32 %v4558, %v4759
      %v4777 = vmul.f32 %v4559, %v4760
      %v4778 = vmul.f32 %v4560, %v4761
      %v4779 = vmul.f32 %v4561, %v4762
      %v4780 = vmul.f32 %v4562, %v4763
      %v4781 = vmul.f32 %v4563, %v4764
      %v4782 = vmul.f32 %v4574, %v4757
      %4783 = vset.pattern.permute.xlu0 2
      %4784 = vperm.xlu0 %4783, %v4527
      %v4785 = vpop.permute.xlu0 %4784
      %v4787 = vmul.f32 %v4774, %v4785
      %v4788 = vmul.f32 %v4775, %v4785
      %v4789 = vmul.f32 %v4776, %v4785
      %v4790 = vmul.f32 %v4777, %v4785
      %v4791 = vmul.f32 %v4778, %v4785
      %v4792 = vmul.f32 %v4779, %v4785
      %v4793 = vmul.f32 %v4780, %v4785
      %v4794 = vmul.f32 %v4781, %v4785
      %v4795 = vmul.f32 %v4782, %v4785
      %4805 = vrot.lane.b32.xlu0 %v4787, 126
      %v4806 = vpop.permute.xlu0 %4805
      %4807 = vrot.lane.b32.xlu0 %v4788, 126
      %v4808 = vpop.permute.xlu0 %4807
      %4809 = vrot.lane.b32.xlu0 %v4789, 126
      %v4810 = vpop.permute.xlu0 %4809
      %4811 = vrot.lane.b32.xlu0 %v4790, 126
      %v4812 = vpop.permute.xlu0 %4811
      %4813 = vrot.lane.b32.xlu0 %v4791, 126
      %v4814 = vpop.permute.xlu0 %4813
      %4815 = vrot.lane.b32.xlu0 %v4792, 126
      %v4816 = vpop.permute.xlu0 %4815
      %4817 = vrot.lane.b32.xlu0 %v4793, 126
      %v4818 = vpop.permute.xlu0 %4817
      %4819 = vrot.lane.b32.xlu0 %v4794, 126
      %v4820 = vpop.permute.xlu0 %4819
      %4821 = vrot.lane.b32.xlu0 %v4795, 126
      %v4822 = vpop.permute.xlu0 %4821
      %v4823 = vsel %vm2959, %v4806, %v4808
      %v4824 = vsel %vm2959, %v4808, %v4810
      %v4825 = vsel %vm2959, %v4810, %v4812
      %v4826 = vsel %vm2959, %v4812, %v4814
      %v4827 = vsel %vm2959, %v4814, %v4816
      %v4828 = vsel %vm2959, %v4816, %v4818
      %v4829 = vsel %vm2959, %v4818, %v4820
      %v4830 = vsel %vm2959, %v4820, %v4822
      %v4839 = vadd.f32 %v4701, %v4823
      %v4840 = vadd.f32 %v4702, %v4824
      %v4841 = vadd.f32 %v4703, %v4825
      %v4842 = vadd.f32 %v4704, %v4826
      %v4843 = vadd.f32 %v4705, %v4827
      %v4844 = vadd.f32 %v4706, %v4828
      %v4845 = vadd.f32 %v4707, %v4829
      %v4846 = vadd.f32 %v4708, %v4830
      %4847 = vrot.lane.b32.xlu0 %v4579, 32
      %v4848 = vpop.permute.xlu0 %4847
      %4849 = vrot.lane.b32.xlu0 %v4583, 32
      %v4850 = vpop.permute.xlu0 %4849
      %4851 = vrot.lane.b32.xlu0 %v4587, 32
      %v4852 = vpop.permute.xlu0 %4851
      %4853 = vrot.lane.b32.xlu0 %v4591, 32
      %v4854 = vpop.permute.xlu0 %4853
      %4855 = vrot.lane.b32.xlu0 %v4595, 32
      %v4856 = vpop.permute.xlu0 %4855
      %4857 = vrot.lane.b32.xlu0 %v4599, 32
      %v4858 = vpop.permute.xlu0 %4857
      %4859 = vrot.lane.b32.xlu0 %v4603, 32
      %v4860 = vpop.permute.xlu0 %4859
      %4861 = vrot.lane.b32.xlu0 %v4607, 32
      %v4862 = vpop.permute.xlu0 %4861
      %v4863 = vsel %vm1148, %v4848, %v4850
      %v4864 = vsel %vm1148, %v4850, %v4852
      %v4865 = vsel %vm1148, %v4852, %v4854
      %v4866 = vsel %vm1148, %v4854, %v4856
      %v4867 = vsel %vm1148, %v4856, %v4858
      %v4868 = vsel %vm1148, %v4858, %v4860
      %v4869 = vsel %vm1148, %v4860, %v4862
      %v4879 = vmul.f32 %v4573, %v4848
      %v4880 = vmul.f32 %v4557, %v4863
      %v4881 = vmul.f32 %v4558, %v4864
      %v4882 = vmul.f32 %v4559, %v4865
      %v4883 = vmul.f32 %v4560, %v4866
      %v4884 = vmul.f32 %v4561, %v4867
      %v4885 = vmul.f32 %v4562, %v4868
      %v4886 = vmul.f32 %v4563, %v4869
      %v4887 = vmul.f32 %v4574, %v4862
      %4888 = vset.pattern.permute.xlu0 3
      %4889 = vperm.xlu0 %4888, %v4527
      %v4890 = vpop.permute.xlu0 %4889
      %v4892 = vmul.f32 %v4879, %v4890
      %v4893 = vmul.f32 %v4880, %v4890
      %v4894 = vmul.f32 %v4881, %v4890
      %v4895 = vmul.f32 %v4882, %v4890
      %v4896 = vmul.f32 %v4883, %v4890
      %v4897 = vmul.f32 %v4884, %v4890
      %v4898 = vmul.f32 %v4885, %v4890
      %v4899 = vmul.f32 %v4886, %v4890
      %v4900 = vmul.f32 %v4887, %v4890
      %4910 = vrot.lane.b32.xlu0 %v4892, 96
      %v4911 = vpop.permute.xlu0 %4910
      %4912 = vrot.lane.b32.xlu0 %v4893, 96
      %v4913 = vpop.permute.xlu0 %4912
      %4914 = vrot.lane.b32.xlu0 %v4894, 96
      %v4915 = vpop.permute.xlu0 %4914
      %4916 = vrot.lane.b32.xlu0 %v4895, 96
      %v4917 = vpop.permute.xlu0 %4916
      %4918 = vrot.lane.b32.xlu0 %v4896, 96
      %v4919 = vpop.permute.xlu0 %4918
      %4920 = vrot.lane.b32.xlu0 %v4897, 96
      %v4921 = vpop.permute.xlu0 %4920
      %4922 = vrot.lane.b32.xlu0 %v4898, 96
      %v4923 = vpop.permute.xlu0 %4922
      %4924 = vrot.lane.b32.xlu0 %v4899, 96
      %v4925 = vpop.permute.xlu0 %4924
      %4926 = vrot.lane.b32.xlu0 %v4900, 96
      %v4927 = vpop.permute.xlu0 %4926
      %v4928 = vsel %vm2690, %v4911, %v4913
      %v4929 = vsel %vm2690, %v4913, %v4915
      %v4930 = vsel %vm2690, %v4915, %v4917
      %v4931 = vsel %vm2690, %v4917, %v4919
      %v4932 = vsel %vm2690, %v4919, %v4921
      %v4933 = vsel %vm2690, %v4921, %v4923
      %v4934 = vsel %vm2690, %v4923, %v4925
      %v4935 = vsel %vm2690, %v4925, %v4927
      %v4944 = vadd.f32 %v4839, %v4928
      %v4945 = vadd.f32 %v4840, %v4929
      %v4946 = vadd.f32 %v4841, %v4930
      %v4947 = vadd.f32 %v4842, %v4931
      %v4948 = vadd.f32 %v4843, %v4932
      %v4949 = vadd.f32 %v4844, %v4933
      %v4950 = vadd.f32 %v4845, %v4934
      %v4951 = vadd.f32 %v4846, %v4935
      %4952 = vset.pattern.permute.xlu0 4
      %4953 = vperm.xlu0 %4952, %v4527
      %v4954 = vpop.permute.xlu0 %4953
      %v4956 = vmul.f32 %v4573, %v4954
      %v4957 = vmul.f32 %v4557, %v4954
      %v4958 = vmul.f32 %v4558, %v4954
      %v4959 = vmul.f32 %v4559, %v4954
      %v4960 = vmul.f32 %v4560, %v4954
      %v4961 = vmul.f32 %v4561, %v4954
      %v4962 = vmul.f32 %v4562, %v4954
      %v4963 = vmul.f32 %v4563, %v4954
      %v4964 = vmul.f32 %v4574, %v4954
      %4974 = vrot.lane.b32.xlu0 %v4956, 95
      %v4975 = vpop.permute.xlu0 %4974
      %4976 = vrot.lane.b32.xlu0 %v4957, 95
      %v4977 = vpop.permute.xlu0 %4976
      %4978 = vrot.lane.b32.xlu0 %v4958, 95
      %v4979 = vpop.permute.xlu0 %4978
      %4980 = vrot.lane.b32.xlu0 %v4959, 95
      %v4981 = vpop.permute.xlu0 %4980
      %4982 = vrot.lane.b32.xlu0 %v4960, 95
      %v4983 = vpop.permute.xlu0 %4982
      %4984 = vrot.lane.b32.xlu0 %v4961, 95
      %v4985 = vpop.permute.xlu0 %4984
      %4986 = vrot.lane.b32.xlu0 %v4962, 95
      %v4987 = vpop.permute.xlu0 %4986
      %4988 = vrot.lane.b32.xlu0 %v4963, 95
      %v4989 = vpop.permute.xlu0 %4988
      %4990 = vrot.lane.b32.xlu0 %v4964, 95
      %v4991 = vpop.permute.xlu0 %4990
      %v4992 = vsel %vm3225, %v4975, %v4977
      %v4993 = vsel %vm3225, %v4977, %v4979
      %v4994 = vsel %vm3225, %v4979, %v4981
      %v4995 = vsel %vm3225, %v4981, %v4983
      %v4996 = vsel %vm3225, %v4983, %v4985
      %v4997 = vsel %vm3225, %v4985, %v4987
      %v4998 = vsel %vm3225, %v4987, %v4989
      %v4999 = vsel %vm3225, %v4989, %v4991
      %v5008 = vadd.f32 %v4944, %v4992
      %v5009 = vadd.f32 %v4945, %v4993
      %v5010 = vadd.f32 %v4946, %v4994
      %v5011 = vadd.f32 %v4947, %v4995
      %v5012 = vadd.f32 %v4948, %v4996
      %v5013 = vadd.f32 %v4949, %v4997
      %v5014 = vadd.f32 %v4950, %v4998
      %v5015 = vadd.f32 %v4951, %v4999
      %5016 = vrot.lane.b32.xlu0 %v4713, 34
      %v5017 = vpop.permute.xlu0 %5016
      %5018 = vrot.lane.b32.xlu0 %v4717, 34
      %v5019 = vpop.permute.xlu0 %5018
      %5020 = vrot.lane.b32.xlu0 %v4721, 34
      %v5021 = vpop.permute.xlu0 %5020
      %5022 = vrot.lane.b32.xlu0 %v4725, 34
      %v5023 = vpop.permute.xlu0 %5022
      %5024 = vrot.lane.b32.xlu0 %v4729, 34
      %v5025 = vpop.permute.xlu0 %5024
      %5026 = vrot.lane.b32.xlu0 %v4733, 34
      %v5027 = vpop.permute.xlu0 %5026
      %5028 = vrot.lane.b32.xlu0 %v4737, 34
      %v5029 = vpop.permute.xlu0 %5028
      %5030 = vrot.lane.b32.xlu0 %v4741, 34
      %v5031 = vpop.permute.xlu0 %5030
      %v5032 = vsel %vm3242, %v5017, %v5019
      %v5033 = vsel %vm3242, %v5019, %v5021
      %v5034 = vsel %vm3242, %v5021, %v5023
      %v5035 = vsel %vm3242, %v5023, %v5025
      %v5036 = vsel %vm3242, %v5025, %v5027
      %v5037 = vsel %vm3242, %v5027, %v5029
      %v5038 = vsel %vm3242, %v5029, %v5031
      %v5048 = vmul.f32 %v4573, %v5017
      %v5049 = vmul.f32 %v4557, %v5032
      %v5050 = vmul.f32 %v4558, %v5033
      %v5051 = vmul.f32 %v4559, %v5034
      %v5052 = vmul.f32 %v4560, %v5035
      %v5053 = vmul.f32 %v4561, %v5036
      %v5054 = vmul.f32 %v4562, %v5037
      %v5055 = vmul.f32 %v4563, %v5038
      %v5056 = vmul.f32 %v4574, %v5031
      %5057 = vset.pattern.permute.xlu0 5
      %5058 = vperm.xlu0 %5057, %v4527
      %v5059 = vpop.permute.xlu0 %5058
      %v5061 = vmul.f32 %v5048, %v5059
      %v5062 = vmul.f32 %v5049, %v5059
      %v5063 = vmul.f32 %v5050, %v5059
      %v5064 = vmul.f32 %v5051, %v5059
      %v5065 = vmul.f32 %v5052, %v5059
      %v5066 = vmul.f32 %v5053, %v5059
      %v5067 = vmul.f32 %v5054, %v5059
      %v5068 = vmul.f32 %v5055, %v5059
      %v5069 = vmul.f32 %v5056, %v5059
      %5079 = vrot.lane.b32.xlu0 %v5061, 94
      %v5080 = vpop.permute.xlu0 %5079
      %5081 = vrot.lane.b32.xlu0 %v5062, 94
      %v5082 = vpop.permute.xlu0 %5081
      %5083 = vrot.lane.b32.xlu0 %v5063, 94
      %v5084 = vpop.permute.xlu0 %5083
      %5085 = vrot.lane.b32.xlu0 %v5064, 94
      %v5086 = vpop.permute.xlu0 %5085
      %5087 = vrot.lane.b32.xlu0 %v5065, 94
      %v5088 = vpop.permute.xlu0 %5087
      %5089 = vrot.lane.b32.xlu0 %v5066, 94
      %v5090 = vpop.permute.xlu0 %5089
      %5091 = vrot.lane.b32.xlu0 %v5067, 94
      %v5092 = vpop.permute.xlu0 %5091
      %5093 = vrot.lane.b32.xlu0 %v5068, 94
      %v5094 = vpop.permute.xlu0 %5093
      %5095 = vrot.lane.b32.xlu0 %v5069, 94
      %v5096 = vpop.permute.xlu0 %5095
      %v5097 = vsel %vm3285, %v5080, %v5082
      %v5098 = vsel %vm3285, %v5082, %v5084
      %v5099 = vsel %vm3285, %v5084, %v5086
      %v5100 = vsel %vm3285, %v5086, %v5088
      %v5101 = vsel %vm3285, %v5088, %v5090
      %v5102 = vsel %vm3285, %v5090, %v5092
      %v5103 = vsel %vm3285, %v5092, %v5094
      %v5104 = vsel %vm3285, %v5094, %v5096
      %v5113 = vadd.f32 %v5008, %v5097
      %v5114 = vadd.f32 %v5009, %v5098
      %v5115 = vadd.f32 %v5010, %v5099
      %v5116 = vadd.f32 %v5011, %v5100
      %v5117 = vadd.f32 %v5012, %v5101
      %v5118 = vadd.f32 %v5013, %v5102
      %v5119 = vadd.f32 %v5014, %v5103
      %v5120 = vadd.f32 %v5015, %v5104
      %5121 = vrot.lane.b32.xlu0 %v4579, 64
      %v5122 = vpop.permute.xlu0 %5121
      %5123 = vrot.lane.b32.xlu0 %v4583, 64
      %v5124 = vpop.permute.xlu0 %5123
      %5125 = vrot.lane.b32.xlu0 %v4587, 64
      %v5126 = vpop.permute.xlu0 %5125
      %5127 = vrot.lane.b32.xlu0 %v4591, 64
      %v5128 = vpop.permute.xlu0 %5127
      %5129 = vrot.lane.b32.xlu0 %v4595, 64
      %v5130 = vpop.permute.xlu0 %5129
      %5131 = vrot.lane.b32.xlu0 %v4599, 64
      %v5132 = vpop.permute.xlu0 %5131
      %5133 = vrot.lane.b32.xlu0 %v4603, 64
      %v5134 = vpop.permute.xlu0 %5133
      %5135 = vrot.lane.b32.xlu0 %v4607, 64
      %v5136 = vpop.permute.xlu0 %5135
      %v5137 = vsel %vm2132, %v5122, %v5124
      %v5138 = vsel %vm2132, %v5124, %v5126
      %v5139 = vsel %vm2132, %v5126, %v5128
      %v5140 = vsel %vm2132, %v5128, %v5130
      %v5141 = vsel %vm2132, %v5130, %v5132
      %v5142 = vsel %vm2132, %v5132, %v5134
      %v5143 = vsel %vm2132, %v5134, %v5136
      %v5153 = vmul.f32 %v4573, %v5122
      %v5154 = vmul.f32 %v4557, %v5137
      %v5155 = vmul.f32 %v4558, %v5138
      %v5156 = vmul.f32 %v4559, %v5139
      %v5157 = vmul.f32 %v4560, %v5140
      %v5158 = vmul.f32 %v4561, %v5141
      %v5159 = vmul.f32 %v4562, %v5142
      %v5160 = vmul.f32 %v4563, %v5143
      %v5161 = vmul.f32 %v4574, %v5136
      %5162 = vset.pattern.permute.xlu0 6
      %5163 = vperm.xlu0 %5162, %v4527
      %v5164 = vpop.permute.xlu0 %5163
      %v5166 = vmul.f32 %v5153, %v5164
      %v5167 = vmul.f32 %v5154, %v5164
      %v5168 = vmul.f32 %v5155, %v5164
      %v5169 = vmul.f32 %v5156, %v5164
      %v5170 = vmul.f32 %v5157, %v5164
      %v5171 = vmul.f32 %v5158, %v5164
      %v5172 = vmul.f32 %v5159, %v5164
      %v5173 = vmul.f32 %v5160, %v5164
      %v5174 = vmul.f32 %v5161, %v5164
      %5184 = vrot.lane.b32.xlu0 %v5166, 64
      %v5185 = vpop.permute.xlu0 %5184
      %5186 = vrot.lane.b32.xlu0 %v5167, 64
      %v5187 = vpop.permute.xlu0 %5186
      %5188 = vrot.lane.b32.xlu0 %v5168, 64
      %v5189 = vpop.permute.xlu0 %5188
      %5190 = vrot.lane.b32.xlu0 %v5169, 64
      %v5191 = vpop.permute.xlu0 %5190
      %5192 = vrot.lane.b32.xlu0 %v5170, 64
      %v5193 = vpop.permute.xlu0 %5192
      %5194 = vrot.lane.b32.xlu0 %v5171, 64
      %v5195 = vpop.permute.xlu0 %5194
      %5196 = vrot.lane.b32.xlu0 %v5172, 64
      %v5197 = vpop.permute.xlu0 %5196
      %5198 = vrot.lane.b32.xlu0 %v5173, 64
      %v5199 = vpop.permute.xlu0 %5198
      %5200 = vrot.lane.b32.xlu0 %v5174, 64
      %v5201 = vpop.permute.xlu0 %5200
      %v5202 = vsel %vm2132, %v5185, %v5187
      %v5203 = vsel %vm2132, %v5187, %v5189
      %v5204 = vsel %vm2132, %v5189, %v5191
      %v5205 = vsel %vm2132, %v5191, %v5193
      %v5206 = vsel %vm2132, %v5193, %v5195
      %v5207 = vsel %vm2132, %v5195, %v5197
      %v5208 = vsel %vm2132, %v5197, %v5199
      %v5209 = vsel %vm2132, %v5199, %v5201
      %v5218 = vadd.f32 %v5113, %v5202
      %v5219 = vadd.f32 %v5114, %v5203
      %v5220 = vadd.f32 %v5115, %v5204
      %v5221 = vadd.f32 %v5116, %v5205
      %v5222 = vadd.f32 %v5117, %v5206
      %v5223 = vadd.f32 %v5118, %v5207
      %v5224 = vadd.f32 %v5119, %v5208
      %v5225 = vadd.f32 %v5120, %v5209
      %5226 = vset.pattern.permute.xlu0 7
      %5227 = vperm.xlu0 %5226, %v4527
      %v5228 = vpop.permute.xlu0 %5227
      %v5230 = vmul.f32 %v4573, %v5228
      %v5231 = vmul.f32 %v4557, %v5228
      %v5232 = vmul.f32 %v4558, %v5228
      %v5233 = vmul.f32 %v4559, %v5228
      %v5234 = vmul.f32 %v4560, %v5228
      %v5235 = vmul.f32 %v4561, %v5228
      %v5236 = vmul.f32 %v4562, %v5228
      %v5237 = vmul.f32 %v4563, %v5228
      %v5238 = vmul.f32 %v4574, %v5228
      %5248 = vrot.lane.b32.xlu0 %v5230, 63
      %v5249 = vpop.permute.xlu0 %5248
      %5250 = vrot.lane.b32.xlu0 %v5231, 63
      %v5251 = vpop.permute.xlu0 %5250
      %5252 = vrot.lane.b32.xlu0 %v5232, 63
      %v5253 = vpop.permute.xlu0 %5252
      %5254 = vrot.lane.b32.xlu0 %v5233, 63
      %v5255 = vpop.permute.xlu0 %5254
      %5256 = vrot.lane.b32.xlu0 %v5234, 63
      %v5257 = vpop.permute.xlu0 %5256
      %5258 = vrot.lane.b32.xlu0 %v5235, 63
      %v5259 = vpop.permute.xlu0 %5258
      %5260 = vrot.lane.b32.xlu0 %v5236, 63
      %v5261 = vpop.permute.xlu0 %5260
      %5262 = vrot.lane.b32.xlu0 %v5237, 63
      %v5263 = vpop.permute.xlu0 %5262
      %5264 = vrot.lane.b32.xlu0 %v5238, 63
      %v5265 = vpop.permute.xlu0 %5264
      %vm5266 = vcmask 515072
      %v5267 = vsel %vm5266, %v5249, %v5251
      %v5268 = vsel %vm5266, %v5251, %v5253
      %v5269 = vsel %vm5266, %v5253, %v5255
      %v5270 = vsel %vm5266, %v5255, %v5257
      %v5271 = vsel %vm5266, %v5257, %v5259
      %v5272 = vsel %vm5266, %v5259, %v5261
      %v5273 = vsel %vm5266, %v5261, %v5263
      %v5274 = vsel %vm5266, %v5263, %v5265
      %v5283 = vadd.f32 %v5218, %v5267
      %v5284 = vadd.f32 %v5219, %v5268
      %v5285 = vadd.f32 %v5220, %v5269
      %v5286 = vadd.f32 %v5221, %v5270
      %v5287 = vadd.f32 %v5222, %v5271
      %v5288 = vadd.f32 %v5223, %v5272
      %v5289 = vadd.f32 %v5224, %v5273
      %v5290 = vadd.f32 %v5225, %v5274
      %5291 = vrot.lane.b32.xlu0 %v4713, 66
      %v5292 = vpop.permute.xlu0 %5291
      %5293 = vrot.lane.b32.xlu0 %v4717, 66
      %v5294 = vpop.permute.xlu0 %5293
      %5295 = vrot.lane.b32.xlu0 %v4721, 66
      %v5296 = vpop.permute.xlu0 %5295
      %5297 = vrot.lane.b32.xlu0 %v4725, 66
      %v5298 = vpop.permute.xlu0 %5297
      %5299 = vrot.lane.b32.xlu0 %v4729, 66
      %v5300 = vpop.permute.xlu0 %5299
      %5301 = vrot.lane.b32.xlu0 %v4733, 66
      %v5302 = vpop.permute.xlu0 %5301
      %5303 = vrot.lane.b32.xlu0 %v4737, 66
      %v5304 = vpop.permute.xlu0 %5303
      %5305 = vrot.lane.b32.xlu0 %v4741, 66
      %v5306 = vpop.permute.xlu0 %5305
      %vm5307 = vcmask 539648
      %v5308 = vsel %vm5307, %v5292, %v5294
      %v5309 = vsel %vm5307, %v5294, %v5296
      %v5310 = vsel %vm5307, %v5296, %v5298
      %v5311 = vsel %vm5307, %v5298, %v5300
      %v5312 = vsel %vm5307, %v5300, %v5302
      %v5313 = vsel %vm5307, %v5302, %v5304
      %v5314 = vsel %vm5307, %v5304, %v5306
      %v5324 = vmul.f32 %v4573, %v5292
      %v5325 = vmul.f32 %v4557, %v5308
      %v5326 = vmul.f32 %v4558, %v5309
      %v5327 = vmul.f32 %v4559, %v5310
      %v5328 = vmul.f32 %v4560, %v5311
      %v5329 = vmul.f32 %v4561, %v5312
      %v5330 = vmul.f32 %v4562, %v5313
      %v5331 = vmul.f32 %v4563, %v5314
      %v5332 = vmul.f32 %v4574, %v5306
      %5333 = vset.pattern.permute.xlu0 8
      %5334 = vperm.xlu0 %5333, %v4527
      %v5335 = vpop.permute.xlu0 %5334
      %v5337 = vmul.f32 %v5324, %v5335
      %v5338 = vmul.f32 %v5325, %v5335
      %v5339 = vmul.f32 %v5326, %v5335
      %v5340 = vmul.f32 %v5327, %v5335
      %v5341 = vmul.f32 %v5328, %v5335
      %v5342 = vmul.f32 %v5329, %v5335
      %v5343 = vmul.f32 %v5330, %v5335
      %v5344 = vmul.f32 %v5331, %v5335
      %v5345 = vmul.f32 %v5332, %v5335
      %5355 = vrot.lane.b32.xlu0 %v5337, 62
      %v5356 = vpop.permute.xlu0 %5355
      %5357 = vrot.lane.b32.xlu0 %v5338, 62
      %v5358 = vpop.permute.xlu0 %5357
      %5359 = vrot.lane.b32.xlu0 %v5339, 62
      %v5360 = vpop.permute.xlu0 %5359
      %5361 = vrot.lane.b32.xlu0 %v5340, 62
      %v5362 = vpop.permute.xlu0 %5361
      %5363 = vrot.lane.b32.xlu0 %v5341, 62
      %v5364 = vpop.permute.xlu0 %5363
      %5365 = vrot.lane.b32.xlu0 %v5342, 62
      %v5366 = vpop.permute.xlu0 %5365
      %5367 = vrot.lane.b32.xlu0 %v5343, 62
      %v5368 = vpop.permute.xlu0 %5367
      %5369 = vrot.lane.b32.xlu0 %v5344, 62
      %v5370 = vpop.permute.xlu0 %5369
      %5371 = vrot.lane.b32.xlu0 %v5345, 62
      %v5372 = vpop.permute.xlu0 %5371
      %vm5373 = vcmask 506880
      %v5374 = vsel %vm5373, %v5356, %v5358
      %v5375 = vsel %vm5373, %v5358, %v5360
      %v5376 = vsel %vm5373, %v5360, %v5362
      %v5377 = vsel %vm5373, %v5362, %v5364
      %v5378 = vsel %vm5373, %v5364, %v5366
      %v5379 = vsel %vm5373, %v5366, %v5368
      %v5380 = vsel %vm5373, %v5368, %v5370
      %v5381 = vsel %vm5373, %v5370, %v5372
      %v5390 = vadd.f32 %v5283, %v5374
      %v5391 = vadd.f32 %v5284, %v5375
      %v5392 = vadd.f32 %v5285, %v5376
      %v5393 = vadd.f32 %v5286, %v5377
      %v5394 = vadd.f32 %v5287, %v5378
      %v5395 = vadd.f32 %v5288, %v5379
      %v5396 = vadd.f32 %v5289, %v5380
      %v5397 = vadd.f32 %v5290, %v5381
      %5399 = vset.pattern.permute.xlu0 0
      %5400 = vperm.xlu0 %5399, %v4528
      %v5401 = vpop.permute.xlu0 %5400
      %v5403 = vadd.f32 %v5390, %v5401
      %v5404 = vadd.f32 %v5391, %v5401
      %v5405 = vadd.f32 %v5392, %v5401
      %v5406 = vadd.f32 %v5393, %v5401
      %v5407 = vadd.f32 %v5394, %v5401
      %v5408 = vadd.f32 %v5395, %v5401
      %v5409 = vadd.f32 %v5396, %v5401
      %v5410 = vadd.f32 %v5397, %v5401
      %v5411 = vmax.f32 %v5403, 0.0
      %v5412 = vmax.f32 %v5404, 0.0
      %v5413 = vmax.f32 %v5405, 0.0
      %v5414 = vmax.f32 %v5406, 0.0
      %v5415 = vmax.f32 %v5407, 0.0
      %v5416 = vmax.f32 %v5408, 0.0
      %v5417 = vmax.f32 %v5409, 0.0
      %v5418 = vmax.f32 %v5410, 0.0
      %v5419 = vmin.f32 %v5411, 6.0
      %v5420 = vmin.f32 %v5412, 6.0
      %v5421 = vmin.f32 %v5413, 6.0
      %v5422 = vmin.f32 %v5414, 6.0
      %v5423 = vmin.f32 %v5415, 6.0
      %v5424 = vmin.f32 %v5416, 6.0
      %v5425 = vmin.f32 %v5417, 6.0
      %v5426 = vmin.f32 %v5418, 6.0
      %v5427 = vld [vmem:[%s45] sm:$0xf]
      %v5428 = vpack.c.bf16 %v5419, %v5419
      %v5429 = vpack.c.bf16 %v5420, %v5420
      %v5430 = vpack.c.bf16 %v5421, %v5421
      %v5431 = vpack.c.bf16 %v5422, %v5422
      %v5432 = vpack.c.bf16 %v5423, %v5423
      %v5433 = vpack.c.bf16 %v5424, %v5424
      %v5434 = vpack.c.bf16 %v5425, %v5425
      %v5435 = vpack.c.bf16 %v5426, %v5426
      %v5436 = vld [vmem:[%s47] sm:$0xff]
      %5438 = vset.pattern.permute.xlu0 0
      %5439 = vperm.xlu0 %5438, %v5436
      %v5440 = vpop.permute.xlu0 %5439
      %v5443 = vsel %vm1577, %v5427, 0
      %v5446 = vsel %vm1643, %v5428, 0
      %v5449 = vsel %vm1643, %v5429, 0
      %v5452 = vsel %vm1643, %v5430, 0
      %v5455 = vsel %vm1643, %v5431, 0
      %v5458 = vsel %vm1643, %v5432, 0
      %v5461 = vsel %vm1643, %v5433, 0
      %v5464 = vsel %vm1643, %v5434, 0
      %v5467 = vsel %vm1643, %v5435, 0
      %5469 = vmatprep.subr.bf16.mxu0 %v5449
      %5470 = vmatpush1.bf16.msra.mxu0 %v5446
      %5471 = vmatprep.subr.bf16.mxu0 0
      %5472 = vmatpush1.bf16.msra.mxu0 0
      %5473 = vmatprep.subr.bf16.mxu0 0
      %5474 = vmatpush1.bf16.msra.mxu0 0
      %5475 = vmatprep.subr.bf16.mxu0 0
      %5476 = vmatpush1.bf16.msra.mxu0 0
      %5477 = vmatprep.subr.bf16.mxu0 0
      %5478 = vmatpush1.bf16.msra.mxu0 0
      %5479 = vmatprep.subr.bf16.mxu0 0
      %5480 = vmatpush1.bf16.msra.mxu0 0
      %5481 = vmatprep.subr.bf16.mxu0 0
      %5482 = vmatpush1.bf16.msra.mxu0 0
      %5483 = vmatprep.subr.bf16.mxu0 0
      %5484 = vmatpush1.bf16.msra.mxu0 0
      %5485 = vmatprep.subr.bf16.mxu0 0
      %5486 = vmatpush1.bf16.msra.mxu0 0
      %5487 = vmatprep.subr.bf16.mxu0 0
      %5488 = vmatpush1.bf16.msra.mxu0 0
      %5489 = vmatprep.subr.bf16.mxu0 0
      %5490 = vmatpush1.bf16.msra.mxu0 0
      %5491 = vmatprep.subr.bf16.mxu0 0
      %5492 = vmatpush1.bf16.msra.mxu0 0
      %5493 = vmatprep.subr.bf16.mxu0 0
      %5494 = vmatpush1.bf16.msra.mxu0 0
      %5495 = vmatprep.subr.bf16.mxu0 0
      %5496 = vmatpush1.bf16.msra.mxu0 0
      %5497 = vmatprep.subr.bf16.mxu0 0
      %5498 = vmatpush1.bf16.msra.mxu0 0
      %5499 = vmatprep.subr.bf16.mxu0 0
      %5500 = vmatpush1.bf16.msra.mxu0 0
      %5501 = vmatprep.mubr.bf16.mxu0 0
      %5502 = vmatmul.mubr.bf16.gmra.mrb[0].mxu0 %v5443
      %v5503 = vpop.f32.mrb[0].mxu0
      %v5504 = vadd.f32 %v5440, %v5503
      %v5505 = vpop.f32.mrb[0].mxu0
      %v5506 = vadd.f32 %v5440, %v5505
      %v5507 = vpop.f32.mrb[0].mxu0
      %v5508 = vpop.f32.mrb[0].mxu0
      %5509 = vdwg.mxu0
      %5510 = vmatprep.subr.bf16.mxu0 %v5455
      %5511 = vmatpush1.bf16.msra.mxu0 %v5452
      %5512 = vmatprep.subr.bf16.mxu0 0
      %5513 = vmatpush1.bf16.msra.mxu0 0
      %5514 = vmatprep.subr.bf16.mxu0 0
      %5515 = vmatpush1.bf16.msra.mxu0 0
      %5516 = vmatprep.subr.bf16.mxu0 0
      %5517 = vmatpush1.bf16.msra.mxu0 0
      %5518 = vmatprep.subr.bf16.mxu0 0
      %5519 = vmatpush1.bf16.msra.mxu0 0
      %5520 = vmatprep.subr.bf16.mxu0 0
      %5521 = vmatpush1.bf16.msra.mxu0 0
      %5522 = vmatprep.subr.bf16.mxu0 0
      %5523 = vmatpush1.bf16.msra.mxu0 0
      %5524 = vmatprep.subr.bf16.mxu0 0
      %5525 = vmatpush1.bf16.msra.mxu0 0
      %5526 = vmatprep.subr.bf16.mxu0 0
      %5527 = vmatpush1.bf16.msra.mxu0 0
      %5528 = vmatprep.subr.bf16.mxu0 0
      %5529 = vmatpush1.bf16.msra.mxu0 0
      %5530 = vmatprep.subr.bf16.mxu0 0
      %5531 = vmatpush1.bf16.msra.mxu0 0
      %5532 = vmatprep.subr.bf16.mxu0 0
      %5533 = vmatpush1.bf16.msra.mxu0 0
      %5534 = vmatprep.subr.bf16.mxu0 0
      %5535 = vmatpush1.bf16.msra.mxu0 0
      %5536 = vmatprep.subr.bf16.mxu0 0
      %5537 = vmatpush1.bf16.msra.mxu0 0
      %5538 = vmatprep.subr.bf16.mxu0 0
      %5539 = vmatpush1.bf16.msra.mxu0 0
      %5540 = vmatprep.subr.bf16.mxu0 0
      %5541 = vmatpush1.bf16.msra.mxu0 0
      %5542 = vmatprep.mubr.bf16.mxu0 0
      %5543 = vmatmul.mubr.bf16.gmra.mrb[0].mxu0 %v5443
      %v5544 = vpop.f32.mrb[0].mxu0
      %v5545 = vadd.f32 %v5440, %v5544
      %v5546 = vpop.f32.mrb[0].mxu0
      %v5547 = vadd.f32 %v5440, %v5546
      %v5548 = vpop.f32.mrb[0].mxu0
      %v5549 = vpop.f32.mrb[0].mxu0
      %5550 = vdwg.mxu0
      %5551 = vmatprep.subr.bf16.mxu0 %v5461
      %5552 = vmatpush1.bf16.msra.mxu0 %v5458
      %5553 = vmatprep.subr.bf16.mxu0 0
      %5554 = vmatpush1.bf16.msra.mxu0 0
      %5555 = vmatprep.subr.bf16.mxu0 0
      %5556 = vmatpush1.bf16.msra.mxu0 0
      %5557 = vmatprep.subr.bf16.mxu0 0
      %5558 = vmatpush1.bf16.msra.mxu0 0
      %5559 = vmatprep.subr.bf16.mxu0 0
      %5560 = vmatpush1.bf16.msra.mxu0 0
      %5561 = vmatprep.subr.bf16.mxu0 0
      %5562 = vmatpush1.bf16.msra.mxu0 0
      %5563 = vmatprep.subr.bf16.mxu0 0
      %5564 = vmatpush1.bf16.msra.mxu0 0
      %5565 = vmatprep.subr.bf16.mxu0 0
      %5566 = vmatpush1.bf16.msra.mxu0 0
      %5567 = vmatprep.subr.bf16.mxu0 0
      %5568 = vmatpush1.bf16.msra.mxu0 0
      %5569 = vmatprep.subr.bf16.mxu0 0
      %5570 = vmatpush1.bf16.msra.mxu0 0
      %5571 = vmatprep.subr.bf16.mxu0 0
      %5572 = vmatpush1.bf16.msra.mxu0 0
      %5573 = vmatprep.subr.bf16.mxu0 0
      %5574 = vmatpush1.bf16.msra.mxu0 0
      %5575 = vmatprep.subr.bf16.mxu0 0
      %5576 = vmatpush1.bf16.msra.mxu0 0
      %5577 = vmatprep.subr.bf16.mxu0 0
      %5578 = vmatpush1.bf16.msra.mxu0 0
      %5579 = vmatprep.subr.bf16.mxu0 0
      %5580 = vmatpush1.bf16.msra.mxu0 0
      %5581 = vmatprep.subr.bf16.mxu0 0
      %5582 = vmatpush1.bf16.msra.mxu0 0
      %5583 = vmatprep.mubr.bf16.mxu0 0
      %5584 = vmatmul.mubr.bf16.gmra.mrb[0].mxu0 %v5443
      %v5585 = vpop.f32.mrb[0].mxu0
      %v5586 = vadd.f32 %v5440, %v5585
      %v5587 = vpop.f32.mrb[0].mxu0
      %v5588 = vadd.f32 %v5440, %v5587
      %v5589 = vpop.f32.mrb[0].mxu0
      %v5590 = vpop.f32.mrb[0].mxu0
      %5591 = vdwg.mxu0
      %5592 = vmatprep.subr.bf16.mxu0 %v5467
      %5593 = vmatpush1.bf16.msra.mxu0 %v5464
      %5594 = vmatprep.subr.bf16.mxu0 0
      %5595 = vmatpush1.bf16.msra.mxu0 0
      %5596 = vmatprep.subr.bf16.mxu0 0
      %5597 = vmatpush1.bf16.msra.mxu0 0
      %5598 = vmatprep.subr.bf16.mxu0 0
      %5599 = vmatpush1.bf16.msra.mxu0 0
      %5600 = vmatprep.subr.bf16.mxu0 0
      %5601 = vmatpush1.bf16.msra.mxu0 0
      %5602 = vmatprep.subr.bf16.mxu0 0
      %5603 = vmatpush1.bf16.msra.mxu0 0
      %5604 = vmatprep.subr.bf16.mxu0 0
      %5605 = vmatpush1.bf16.msra.mxu0 0
      %5606 = vmatprep.subr.bf16.mxu0 0
      %5607 = vmatpush1.bf16.msra.mxu0 0
      %5608 = vmatprep.subr.bf16.mxu0 0
      %5609 = vmatpush1.bf16.msra.mxu0 0
      %5610 = vmatprep.subr.bf16.mxu0 0
      %5611 = vmatpush1.bf16.msra.mxu0 0
      %5612 = vmatprep.subr.bf16.mxu0 0
      %5613 = vmatpush1.bf16.msra.mxu0 0
      %5614 = vmatprep.subr.bf16.mxu0 0
      %5615 = vmatpush1.bf16.msra.mxu0 0
      %5616 = vmatprep.subr.bf16.mxu0 0
      %5617 = vmatpush1.bf16.msra.mxu0 0
      %5618 = vmatprep.subr.bf16.mxu0 0
      %5619 = vmatpush1.bf16.msra.mxu0 0
      %5620 = vmatprep.subr.bf16.mxu0 0
      %5621 = vmatpush1.bf16.msra.mxu0 0
      %5622 = vmatprep.subr.bf16.mxu0 0
      %5623 = vmatpush1.bf16.msra.mxu0 0
      %5624 = vmatprep.mubr.bf16.mxu0 0
      %5625 = vmatmul.mubr.bf16.gmra.mrb[0].mxu0 %v5443
      %v5626 = vpop.f32.mrb[0].mxu0
      %v5627 = vadd.f32 %v5440, %v5626
      %v5628 = vpop.f32.mrb[0].mxu0
      %v5629 = vadd.f32 %v5440, %v5628
      %v5630 = vpop.f32.mrb[0].mxu0
      %v5631 = vpop.f32.mrb[0].mxu0
      %5632 = vdwg.mxu0
      %v5633 = vmax.f32 %v5504, 0.0
      %v5634 = vmax.f32 %v5506, 0.0
      %v5635 = vmax.f32 %v5545, 0.0
      %v5636 = vmax.f32 %v5547, 0.0
      %v5637 = vmax.f32 %v5586, 0.0
      %v5638 = vmax.f32 %v5588, 0.0
      %v5639 = vmax.f32 %v5627, 0.0
      %v5640 = vmax.f32 %v5629, 0.0
      %v5641 = vmin.f32 %v5633, 6.0
      %v5642 = vmin.f32 %v5634, 6.0
      %v5643 = vmin.f32 %v5635, 6.0
      %v5644 = vmin.f32 %v5636, 6.0
      %v5645 = vmin.f32 %v5637, 6.0
      %v5646 = vmin.f32 %v5638, 6.0
      %v5647 = vmin.f32 %v5639, 6.0
      %v5648 = vmin.f32 %v5640, 6.0
      %5649 = vst [vmem:[%s1096] sm:$0xff] %v5641
      %5650 = vst [vmem:[%s1096 + $0x8] sm:$0xff] %v5642
      %5651 = vst [vmem:[%s1096 + $0x10] sm:$0xff] %v5643
      %5652 = vst [vmem:[%s1096 + $0x18] sm:$0xff] %v5644
      %5653 = vst [vmem:[%s1096 + $0x20] sm:$0xff] %v5645
      %5654 = vst [vmem:[%s1096 + $0x28] sm:$0xff] %v5646
      %5655 = vst [vmem:[%s1096 + $0x30] sm:$0xff] %v5647
      %5656 = vst [vmem:[%s1096 + $0x38] sm:$0xff] %v5648
      %p5657 = scmp.lt.s32.totalorder %s79, 1
      %s5658 = scalar_select %p5657, %s79, 1
      %s5659 = smul.addr %s5658, 8
      %s5660 = smul.addr %s5659, 8
      %s5661 = scalar_lea.vmem %s61, %s5660
      %p5662 = scmp.lt.s32.totalorder %s79, 1
      %s5663 = scalar_select %p5662, %s79, 1
      %s5664 = smul.addr %s5663, 2
      %s5665 = smul.addr %s5664, 8
      %s5666 = scalar_lea.vmem %s63, %s5665
      %p5667 = scmp.lt.s32.totalorder %s79, 1
      %s5668 = scalar_select %p5667, %s79, 1
      %s5669 = smul.addr %s5668, 2
      %s5670 = smul.addr %s5669, 8
      %s5671 = scalar_lea.vmem %s65, %s5670
      %p5672 = scmp.lt.s32.totalorder %s79, 1
      %s5673 = scalar_select %p5672, %s79, 1
      %s5674 = smul.addr %s5673, 3
      %s5675 = smul.addr %s5674, 8
      %s5676 = scalar_lea.vmem %s67, %s5675
      // Predicated region
      $region141: #{light_fpn_forward.1} parent=139 // pred_check
        %p5677 = pneg %p747
      $region142: #{light_fpn_forward.1} parent=139 // pred_check_branch
        %5679 = sbr.rel (%p5677) target = $region144
      $region143: #{light_fpn_forward.1} parent=139 // pred_region
        _
      $region144: #{light_fpn_forward.1} parent=139 // pred_fallthru
        _
      // Predicated region
      $region145: #{light_fpn_forward.1} parent=139 // pred_check
        %p5680 = pneg %p773
      $region146: #{light_fpn_forward.1} parent=139 // pred_check_branch
        %5682 = sbr.rel (%p5680) target = $region148
      $region147: #{light_fpn_forward.1} parent=139 // pred_region
        _
      $region148: #{light_fpn_forward.1} parent=139 // pred_fallthru
        _
      // Predicated region
      $region149: #{light_fpn_forward.1} parent=139 // pred_check
        %p5683 = pneg %p799
      $region150: #{light_fpn_forward.1} parent=139 // pred_check_branch
        %5685 = sbr.rel (%p5683) target = $region152
      $region151: #{light_fpn_forward.1} parent=139 // pred_region
        _
      $region152: #{light_fpn_forward.1} parent=139 // pred_fallthru
        _
      // Predicated region
      $region153: #{light_fpn_forward.1} parent=139 // pred_check
        %p5686 = pneg %p825
      $region154: #{light_fpn_forward.1} parent=139 // pred_check_branch
        %5688 = sbr.rel (%p5686) target = $region156
      $region155: #{light_fpn_forward.1} parent=139 // pred_region
        _
      $region156: #{light_fpn_forward.1} parent=139 // pred_fallthru
        _
    $region140: #{light_fpn_forward.1} parent=5 // pred_fallthru
      _
    %p5689 = scmp.le.s32.totalorder 2, %s74
    // Predicated region
    $region157: #{light_fpn_forward.1} parent=5 // pred_check
      %p5690 = pneg %p5689
    $region158: #{light_fpn_forward.1} parent=5 // pred_check_branch
      %5692 = sbr.rel (%p5690) target = $region160
    $region159: #{light_fpn_forward.1} parent=5 // pred_region
      %s5693 = ssub.s32 %s74, 2
      // Predicated region
      $region161: #{light_fpn_forward.1} parent=159 // pred_check
        %p5694 = pneg %p753
      $region162: #{light_fpn_forward.1} parent=159 // pred_check_branch
        %5696 = sbr.rel (%p5694) target = $region164
      $region163: #{light_fpn_forward.1} parent=159 // pred_region
        %p5697 = scmp.lt.s32.totalorder %s80, 1
        %s5698 = scalar_select %p5697, %s80, 1
        %s5699 = smul.addr %s5698, 8
        %s5700 = smul.addr %s5699, 8
        %s5701 = scalar_lea.vmem %s61, %s5700
      $region164: #{light_fpn_forward.1} parent=159 // pred_fallthru
        _
      // Predicated region
      $region165: #{light_fpn_forward.1} parent=159 // pred_check
        %p5702 = pneg %p779
      $region166: #{light_fpn_forward.1} parent=159 // pred_check_branch
        %5704 = sbr.rel (%p5702) target = $region168
      $region167: #{light_fpn_forward.1} parent=159 // pred_region
        %p5705 = scmp.lt.s32.totalorder %s80, 1
        %s5706 = scalar_select %p5705, %s80, 1
        %s5707 = smul.addr %s5706, 2
        %s5708 = smul.addr %s5707, 8
        %s5709 = scalar_lea.vmem %s63, %s5708
      $region168: #{light_fpn_forward.1} parent=159 // pred_fallthru
        _
      // Predicated region
      $region169: #{light_fpn_forward.1} parent=159 // pred_check
        %p5710 = pneg %p805
      $region170: #{light_fpn_forward.1} parent=159 // pred_check_branch
        %5712 = sbr.rel (%p5710) target = $region172
      $region171: #{light_fpn_forward.1} parent=159 // pred_region
        %p5713 = scmp.lt.s32.totalorder %s80, 1
        %s5714 = scalar_select %p5713, %s80, 1
        %s5715 = smul.addr %s5714, 2
        %s5716 = smul.addr %s5715, 8
        %s5717 = scalar_lea.vmem %s65, %s5716
      $region172: #{light_fpn_forward.1} parent=159 // pred_fallthru
        _
      // Predicated region
      $region173: #{light_fpn_forward.1} parent=159 // pred_check
        %p5718 = pneg %p831
      $region174: #{light_fpn_forward.1} parent=159 // pred_check_branch
        %5720 = sbr.rel (%p5718) target = $region176
      $region175: #{light_fpn_forward.1} parent=159 // pred_region
        %p5721 = scmp.lt.s32.totalorder %s80, 1
        %s5722 = scalar_select %p5721, %s80, 1
        %s5723 = smul.addr %s5722, 3
        %s5724 = smul.addr %s5723, 8
        %s5725 = scalar_lea.vmem %s67, %s5724
      $region176: #{light_fpn_forward.1} parent=159 // pred_fallthru
        _
    $region160: #{light_fpn_forward.1} parent=5 // pred_fallthru
      _
  $region6: #{light_fpn_forward.1} parent=0 // loop_footer
    %s78 = sadd.s32 1, %s74
  $region7: #{light_fpn_forward.1} parent=0 // loop_footer_branch
    %73 = sbr.rel target = $region3
  $region8: #{light_fpn_forward.1} parent=0 // loop_exit
    _

</llo_original>
